<compile_context>
chip_gen: v5e
topology: v5e:2x2
jax: 0.10.0
libtpu: 0.0.40
codegen_flags: <defaults>
</compile_context>

<pallas_src>
import math

import jax
import jax.numpy as jnp
from jax import lax
from jax.experimental import pallas as pl
from jax.experimental.pallas import tpu as pltpu

# ----------------------------- model constants -----------------------------
INPUT_DIM = 8            # sequence length seen by the transformer
DIM_FF = 32              # d_model == dim_feedforward
NHEAD = 2
HEAD_DIM = DIM_FF // NHEAD
NLAYERS = 2
GRID_SIZE = 8            # KAN grid size
SPLINE_ORDER = 3         # efficient-KAN default spline order
N_BASIS = GRID_SIZE + SPLINE_ORDER            # 11 B-spline basis functions
N_KNOTS = GRID_SIZE + 2 * SPLINE_ORDER + 1    # 15 knots
N_FEAT = N_BASIS + 1                          # silu branch + 11 spline bases
LN_EPS = 1e-5

# Uniform knot vector on grid_range=[-1, 1] (efficient-KAN default), baked in
# as compile-time Python constants.
_H = 2.0 / GRID_SIZE
KNOTS = tuple(float(-1.0 + (j - SPLINE_ORDER) * _H) for j in range(N_KNOTS))

# Row layout of the packed (N_VEC_ROWS, 32) vector slab (one DMA).
_R_EMBED_W, _R_EMBED_B, _R_NORM_G, _R_NORM_B = 0, 1, 2, 3
_R_LAYER0 = 4
_VECS_PER_LAYER = 5      # out_proj bias, ln1_g, ln1_b, ln2_g, ln2_b
N_VEC_ROWS = _R_LAYER0 + NLAYERS * _VECS_PER_LAYER


# ------------------------- in-kernel helper functions ------------------------
def _layer_norm(z, g, b):
    mu = jnp.mean(z, axis=-1, keepdims=True)
    zc = z - mu
    var = jnp.mean(zc * zc, axis=-1, keepdims=True)
    return zc * lax.rsqrt(var + LN_EPS) * g + b


def _kan_feature_list(x):
    """List [silu(x), B_0(x), ..., B_10(x)], each the same shape as x.

    Uniform knots -> the Cox-de-Boor denominators are compile-time constants,
    so the recursion is pure VALU multiply/add (no divides).  Returning a
    list (instead of a lane-axis concat) keeps every operand lane-aligned.
    """
    ge = [(x >= t).astype(jnp.float32) for t in KNOTS]
    bases = [ge[i] - ge[i + 1] for i in range(N_KNOTS - 1)]   # degree-0 indicators
    d = [x - t for t in KNOTS]                                # x - knot_i, reused
    for k in range(1, SPLINE_ORDER + 1):
        inv = 1.0 / (k * _H)
        bases = [
            (d[i] * bases[i] - d[i + k + 1] * bases[i + 1]) * inv
            for i in range(len(bases) - 1)
        ]
    return [jax.nn.silu(x)] + bases


def _kan_linear(z, w):
    """efficient-KAN KANLinear:  sum_f  feature_f(z) @ w[f].

    z: (rows, d_in) float32.  w: (N_FEAT, d_in, d_out) bf16 (ref or array).
    Accumulation in float32 on the MXU; no lane-axis concatenation.
    """
    feats = _kan_feature_list(z)
    acc = jnp.dot(feats[0].astype(jnp.bfloat16), w[0],
                  preferred_element_type=jnp.float32)
    for f in range(1, N_FEAT):
        acc = acc + jnp.dot(feats[f].astype(jnp.bfloat16), w[f],
                            preferred_element_type=jnp.float32)
    return acc


def _softmax_rows(s):
    s = s - jnp.max(s, axis=-1, keepdims=True)
    p = jnp.exp(s)
    return p / jnp.sum(p, axis=-1, keepdims=True)


# ------------------------------ fused kernel --------------------------------
def _fused_forward_kernel(x_ref, pe_ref, vec_ref, qkv_w_ref, qkv_b_ref,
                          outw_ref, kan_w_ref, head_w_ref, o_ref):
    rows = x_ref.shape[0]                       # BB * S rows in this block
    S, D, H, DH = INPUT_DIM, DIM_FF, NHEAD, HEAD_DIM
    BB = rows // S
    scale = 1.0 / math.sqrt(DH)
    bf16 = jnp.bfloat16

    def vec(r):                                 # (1, D) row of the vector slab
        return vec_ref[r:r + 1, :]

    # ---- embedding (rank-1 -> VPU broadcast) + positional encoding + norm ----
    h = x_ref[...] * vec(_R_EMBED_W) + vec(_R_EMBED_B)                # (rows, D)
    h = (h.reshape(BB, S, D) + pe_ref[...][None, :, :]).reshape(rows, D)
    h = _layer_norm(h, vec(_R_NORM_G), vec(_R_NORM_B))

    # ---- transformer encoder layers (post-norm, KAN feed-forward) ----
    for l in range(NLAYERS):
        base = _R_LAYER0 + l * _VECS_PER_LAYER
        out_b, ln1_g, ln1_b, ln2_g, ln2_b = (vec(base + i) for i in range(5))

        # fused QKV projection: ONE (rows, D) @ (D, 3D) matmul per layer.
        qkv = jnp.dot(h.astype(bf16), qkv_w_ref[l],
                      preferred_element_type=jnp.float32) + qkv_b_ref[l]
        qkv3 = qkv.reshape(BB, S, 3 * D)                              # (BB,S,3D)

        # self-attention, batched over the whole batch block per head.
        sa = None
        for hd in range(H):
            q_h = qkv3[:, :, hd * DH:(hd + 1) * DH] * scale           # (BB,S,DH)
            k_h = qkv3[:, :, D + hd * DH:D + (hd + 1) * DH]
            v_h = qkv3[:, :, 2 * D + hd * DH:2 * D + (hd + 1) * DH]
            sc = jnp.einsum('bqd,bkd->bqk', q_h.astype(bf16), k_h.astype(bf16),
                            preferred_element_type=jnp.float32)       # (BB,S,S)
            p = _softmax_rows(sc)
            o_h = jnp.einsum('bqk,bkd->bqd', p.astype(bf16), v_h.astype(bf16),
                             preferred_element_type=jnp.float32)      # (BB,S,DH)
            contrib = jnp.dot(o_h.reshape(rows, DH).astype(bf16),
                              outw_ref[l, hd],
                              preferred_element_type=jnp.float32)     # (rows, D)
            sa = contrib if sa is None else sa + contrib
        sa = sa + out_b                                               # (rows, D)

        # norm1(x + self_attn(x))
        x1 = _layer_norm(h + sa, ln1_g, ln1_b)
        # feed-forward: efficient-KAN [D -> D -> D]
        f1 = _kan_linear(x1, kan_w_ref[2 * l + 0])
        f2 = _kan_linear(f1, kan_w_ref[2 * l + 1])
        # norm2(x + ff(x))
        h = _layer_norm(x1 + f2, ln2_g, ln2_b)

    # ---- flatten to (BB, S*D) with ONE lane concat, then KAN output head ----
    h3 = h.reshape(BB, S, D)
    flat = jnp.concatenate([h3[:, s, :] for s in range(S)], axis=-1)  # (BB, S*D)
    o_ref[...] = _kan_linear(flat, head_w_ref)                        # (BB, D)


# ------------------------------ forward wrapper ------------------------------
def transformer_kan_forward(x, params, *, batch_block=None):
    B = x.shape[0]
    if batch_block is None:
        batch_block = B if B <= 64 else 64      # bigger tiles fine on v5e/v6e
    BB = batch_block
    assert B % BB == 0, "batch must be divisible by the batch block"
    rows = BB * INPUT_DIM

    # Row-major (B*S, 1) staging of x; per-step block is only (BB*S, 1).
    x_rows = x.reshape(B * INPUT_DIM, 1)

    weights = (params["pe"], params["vec"], params["qkv_w"], params["qkv_b"],
               params["out_w"], params["kan_w"], params["head_w"])

    def resident(a):                            # full array, constant index_map
        z = (0,) * a.ndim
        return pl.BlockSpec(a.shape, lambda i, _z=z: _z)

    return pl.pallas_call(
        _fused_forward_kernel,
        grid=(B // BB,),
        in_specs=[pl.BlockSpec((rows, 1), lambda i: (i, 0))]
                 + [resident(a) for a in weights],
        out_specs=pl.BlockSpec((BB, DIM_FF), lambda i: (i, 0)),
        out_shape=jax.ShapeDtypeStruct((B, DIM_FF), jnp.float32),
        compiler_params=pltpu.CompilerParams(
            dimension_semantics=("parallel",)),
    )(x_rows, *weights)


# ------------------------------ parameters ----------------------------------
def init_params(key):
    keys = iter(jax.random.split(key, 64))

    def rn(shape, scale=0.1):
        return scale * jax.random.normal(next(keys), shape, dtype=jnp.float32)

    D, I, H, DH = DIM_FF, INPUT_DIM, NHEAD, HEAD_DIM

    def kan_stack(din, dout):
        # efficient-KAN KANLinear: base_weight (out,in), spline_weight
        # (out,in,n_basis), standalone spline_scaler (out,in).  Stored as a
        # (N_FEAT, din, dout) stack matching the in-kernel feature order
        # [silu | basis_0 | ... | basis_10] (no lane concat needed).
        base_w = rn((dout, din))
        spline_w = rn((dout, din, N_BASIS))
        scaler = 1.0 + rn((dout, din), 0.05)
        scaled = spline_w * scaler[..., None]
        return jnp.stack([base_w.T] + [scaled[:, :, j].T for j in range(N_BASIS)],
                         axis=0)

    # embedding (nn.Linear(1, D)), input LayerNorm
    embed_w = rn((D, 1))
    embed_b = rn((D,))
    norm_g = 1.0 + rn((D,), 0.05)
    norm_b = rn((D,), 0.05)

    vec_rows = [embed_w[:, 0], embed_b, norm_g, norm_b]
    qkv_w, qkv_b, out_w, kan_w = [], [], [], []

    for _ in range(NLAYERS):
        in_w = rn((3 * D, D))            # MHA in_proj_weight (torch layout [q;k;v])
        in_b = rn((3 * D,))
        ow = rn((D, D))                  # MHA out_proj.weight
        ob = rn((D,))
        ln1_g = 1.0 + rn((D,), 0.05); ln1_b = rn((D,), 0.05)
        ln2_g = 1.0 + rn((D,), 0.05); ln2_b = rn((D,), 0.05)

        qkv_w.append(in_w.T)             # (D, 3D): columns [q | k | v], heads contiguous
        qkv_b.append(in_b[None, :])      # (1, 3D)
        out_w.append(jnp.stack(          # (H, DH, D): per-head out_proj slices
            [ow[:, hd * DH:(hd + 1) * DH].T for hd in range(H)], axis=0))
        kan_w.append(kan_stack(D, D))    # ekan [D, D, D] -> 2 KANLinears
        kan_w.append(kan_stack(D, D))
        vec_rows += [ob, ln1_g, ln1_b, ln2_g, ln2_b]

    head_w = kan_stack(I * D, D)         # output ekan [I*D, D]

    # Sinusoidal positional encoding.  PositionalEncoding(input_dim) is applied
    # to x.permute(0,2,1) of shape (B, DIM_FF, INPUT_DIM): positions run along
    # the DIM_FF axis, encoding dim = INPUT_DIM (batch-first PE convention).
    # TODO(synk): PositionalEncoding source not provided; batch-first sinusoidal PE assumed.
    pos = jnp.arange(D, dtype=jnp.float32)[:, None]
    div = jnp.exp(jnp.arange(0, I, 2, dtype=jnp.float32)
                  * (-math.log(10000.0) / I))
    pe = jnp.zeros((D, I), dtype=jnp.float32)
    pe = pe.at[:, 0::2].set(jnp.sin(pos * div))
    pe = pe.at[:, 1::2].set(jnp.cos(pos * div))

    vec = jnp.stack(vec_rows, axis=0)
    assert vec.shape == (N_VEC_ROWS, D)

    bf = jnp.bfloat16                    # matmul weights in native MXU dtype
    return {
        "pe": pe.T,                                   # (I, D) f32
        "vec": vec,                                   # (N_VEC_ROWS, D) f32 slab
        "qkv_w": jnp.stack(qkv_w, axis=0).astype(bf), # (NLAYERS, D, 3D)
        "qkv_b": jnp.stack(qkv_b, axis=0),            # (NLAYERS, 1, 3D) f32
        "out_w": jnp.stack(out_w, axis=0).astype(bf), # (NLAYERS, H, DH, D)
        "kan_w": jnp.stack(kan_w, axis=0).astype(bf), # (NLAYERS*2, N_FEAT, D, D)
        "head_w": head_w.astype(bf),                  # (N_FEAT, I*D, D)
    }


# ---------------------------------- main -------------------------------------
if __name__ == "__main__":
    key = jax.random.PRNGKey(0)
    pkey, xkey = jax.random.split(key)
    params = init_params(pkey)
    x = jax.random.normal(xkey, (2, INPUT_DIM), dtype=jnp.float32)

    out = jax.jit(transformer_kan_forward)(x, params)
    out = jax.block_until_ready(out)

    assert out.shape == (2, DIM_FF), out.shape
    assert bool(jnp.all(jnp.isfinite(out)))
    print("KERNEL_OK")
</pallas_src>

<mosaic_0001>
module attributes {stable_mosaic.version = 11 : i64} {
  func.func @_fused_forward_kernel(%arg0: i32, %arg1: memref<16x1xf32, #tpu.memory_space<vmem>>, %arg2: memref<8x32xf32, #tpu.memory_space<vmem>>, %arg3: memref<14x32xf32, #tpu.memory_space<vmem>>, %arg4: memref<2x32x96xbf16, #tpu.memory_space<vmem>>, %arg5: memref<2x1x96xf32, #tpu.memory_space<vmem>>, %arg6: memref<2x2x16x32xbf16, #tpu.memory_space<vmem>>, %arg7: memref<4x12x32x32xbf16, #tpu.memory_space<vmem>>, %arg8: memref<12x256x32xbf16, #tpu.memory_space<vmem>>, %arg9: memref<2x32xf32, #tpu.memory_space<vmem>>) attributes {dimension_semantics = [#tpu.dimension_semantics<parallel>], iteration_bounds = array<i64: 1>, scalar_prefetch = 0 : i64, scratch_operands = 0 : i64, tpu.core_type = #tpu.core_type<tc>, window_params = [{transform_indices = @transform_0, window_bounds = array<i64: 16, 1>}, {pipeline_mode = #tpu.pipeline_mode<synchronous>, transform_indices = @transform_1, window_bounds = array<i64: 8, 32>}, {pipeline_mode = #tpu.pipeline_mode<synchronous>, transform_indices = @transform_2, window_bounds = array<i64: 14, 32>}, {pipeline_mode = #tpu.pipeline_mode<synchronous>, transform_indices = @transform_3, window_bounds = array<i64: 2, 32, 96>}, {pipeline_mode = #tpu.pipeline_mode<synchronous>, transform_indices = @transform_4, window_bounds = array<i64: 2, 1, 96>}, {pipeline_mode = #tpu.pipeline_mode<synchronous>, transform_indices = @transform_5, window_bounds = array<i64: 2, 2, 16, 32>}, {pipeline_mode = #tpu.pipeline_mode<synchronous>, transform_indices = @transform_6, window_bounds = array<i64: 4, 12, 32, 32>}, {pipeline_mode = #tpu.pipeline_mode<synchronous>, transform_indices = @transform_7, window_bounds = array<i64: 12, 256, 32>}, {transform_indices = @transform_8, window_bounds = array<i64: 2, 32>}]} {
    %c0 = arith.constant 0 : index
    %c0_0 = arith.constant 0 : index
    %0 = vector.load %arg1[%c0, %c0_0] : memref<16x1xf32, #tpu.memory_space<vmem>>, vector<16x1xf32>
    %c0_1 = arith.constant 0 : index
    %c0_2 = arith.constant 0 : index
    %1 = vector.load %arg3[%c0_1, %c0_2] : memref<14x32xf32, #tpu.memory_space<vmem>>, vector<1x32xf32>
    %2 = vector.broadcast %0 : vector<16x1xf32> to vector<16x32xf32>
    %3 = vector.broadcast %1 : vector<1x32xf32> to vector<16x32xf32>
    %4 = arith.mulf %2, %3 : vector<16x32xf32>
    %c1 = arith.constant 1 : index
    %c0_3 = arith.constant 0 : index
    %5 = vector.load %arg3[%c1, %c0_3] : memref<14x32xf32, #tpu.memory_space<vmem>>, vector<1x32xf32>
    %6 = vector.broadcast %5 : vector<1x32xf32> to vector<16x32xf32>
    %7 = arith.addf %4, %6 : vector<16x32xf32>
    %8 = vector.shape_cast %7 : vector<16x32xf32> to vector<2x8x32xf32>
    %c0_4 = arith.constant 0 : index
    %c0_5 = arith.constant 0 : index
    %9 = vector.load %arg2[%c0_4, %c0_5] : memref<8x32xf32, #tpu.memory_space<vmem>>, vector<8x32xf32>
    %10 = vector.shape_cast %9 : vector<8x32xf32> to vector<1x8x32xf32>
    %11 = vector.broadcast %10 : vector<1x8x32xf32> to vector<2x8x32xf32>
    %12 = arith.addf %8, %11 : vector<2x8x32xf32>
    %13 = vector.shape_cast %12 : vector<2x8x32xf32> to vector<16x32xf32>
    %c2 = arith.constant 2 : index
    %c0_6 = arith.constant 0 : index
    %14 = vector.load %arg3[%c2, %c0_6] : memref<14x32xf32, #tpu.memory_space<vmem>>, vector<1x32xf32>
    %c3 = arith.constant 3 : index
    %c0_7 = arith.constant 0 : index
    %15 = vector.load %arg3[%c3, %c0_7] : memref<14x32xf32, #tpu.memory_space<vmem>>, vector<1x32xf32>
    %cst = arith.constant dense<0.000000e+00> : vector<16xf32>
    %16 = vector.multi_reduction <add>, %13, %cst [1] : vector<16x32xf32> to vector<16xf32>
    %17 = vector.shape_cast %16 : vector<16xf32> to vector<16x1xf32>
    %cst_8 = arith.constant 3.200000e+01 : f32
    %18 = vector.broadcast %cst_8 : f32 to vector<16x1xf32>
    %19 = arith.divf %17, %18 : vector<16x1xf32>
    %20 = vector.broadcast %19 : vector<16x1xf32> to vector<16x32xf32>
    %21 = arith.subf %13, %20 : vector<16x32xf32>
    %22 = arith.mulf %21, %21 : vector<16x32xf32>
    %cst_9 = arith.constant dense<0.000000e+00> : vector<16xf32>
    %23 = vector.multi_reduction <add>, %22, %cst_9 [1] : vector<16x32xf32> to vector<16xf32>
    %24 = vector.shape_cast %23 : vector<16xf32> to vector<16x1xf32>
    %cst_10 = arith.constant 3.200000e+01 : f32
    %25 = vector.broadcast %cst_10 : f32 to vector<16x1xf32>
    %26 = arith.divf %24, %25 : vector<16x1xf32>
    %cst_11 = arith.constant 9.99999974E-6 : f32
    %27 = vector.broadcast %cst_11 : f32 to vector<16x1xf32>
    %28 = arith.addf %26, %27 : vector<16x1xf32>
    %29 = math.rsqrt %28 : vector<16x1xf32>
    %30 = vector.broadcast %29 : vector<16x1xf32> to vector<16x32xf32>
    %31 = arith.mulf %21, %30 : vector<16x32xf32>
    %32 = vector.broadcast %14 : vector<1x32xf32> to vector<16x32xf32>
    %33 = arith.mulf %31, %32 : vector<16x32xf32>
    %34 = vector.broadcast %15 : vector<1x32xf32> to vector<16x32xf32>
    %35 = arith.addf %33, %34 : vector<16x32xf32>
    %c4 = arith.constant 4 : index
    %c0_12 = arith.constant 0 : index
    %36 = vector.load %arg3[%c4, %c0_12] : memref<14x32xf32, #tpu.memory_space<vmem>>, vector<1x32xf32>
    %c5 = arith.constant 5 : index
    %c0_13 = arith.constant 0 : index
    %37 = vector.load %arg3[%c5, %c0_13] : memref<14x32xf32, #tpu.memory_space<vmem>>, vector<1x32xf32>
    %c6 = arith.constant 6 : index
    %c0_14 = arith.constant 0 : index
    %38 = vector.load %arg3[%c6, %c0_14] : memref<14x32xf32, #tpu.memory_space<vmem>>, vector<1x32xf32>
    %c7 = arith.constant 7 : index
    %c0_15 = arith.constant 0 : index
    %39 = vector.load %arg3[%c7, %c0_15] : memref<14x32xf32, #tpu.memory_space<vmem>>, vector<1x32xf32>
    %c8 = arith.constant 8 : index
    %c0_16 = arith.constant 0 : index
    %40 = vector.load %arg3[%c8, %c0_16] : memref<14x32xf32, #tpu.memory_space<vmem>>, vector<1x32xf32>
    %41 = arith.truncf %35 : vector<16x32xf32> to vector<16x32xbf16>
    %c0_17 = arith.constant 0 : index
    %c0_18 = arith.constant 0 : index
    %c0_19 = arith.constant 0 : index
    %42 = vector.load %arg4[%c0_17, %c0_18, %c0_19] : memref<2x32x96xbf16, #tpu.memory_space<vmem>>, vector<1x32x96xbf16>
    %43 = vector.shape_cast %42 : vector<1x32x96xbf16> to vector<32x96xbf16>
    %cst_20 = arith.constant dense<0.000000e+00> : vector<16x96xf32>
    %44 = tpu.matmul %41, %43, %cst_20 {dimension_numbers = #tpu.dot_dimension_numbers<[1], [0], [0], [1], [0, 0, 1, 1], [], []>} : vector<16x32xbf16>, vector<32x96xbf16>, vector<16x96xf32> -> vector<16x96xf32>
    %c0_21 = arith.constant 0 : index
    %c0_22 = arith.constant 0 : index
    %c0_23 = arith.constant 0 : index
    %45 = vector.load %arg5[%c0_21, %c0_22, %c0_23] : memref<2x1x96xf32, #tpu.memory_space<vmem>>, vector<1x1x96xf32>
    %46 = vector.shape_cast %45 : vector<1x1x96xf32> to vector<1x96xf32>
    %47 = vector.broadcast %46 : vector<1x96xf32> to vector<16x96xf32>
    %48 = arith.addf %44, %47 : vector<16x96xf32>
    %49 = vector.shape_cast %48 : vector<16x96xf32> to vector<2x8x96xf32>
    %50 = vector.extract_strided_slice %49 {offsets = [0, 0, 0], sizes = [2, 8, 16], strides = [1, 1, 1]} : vector<2x8x96xf32> to vector<2x8x16xf32>
    %cst_24 = arith.constant 2.500000e-01 : f32
    %51 = vector.broadcast %cst_24 : f32 to vector<2x8x16xf32>
    %52 = arith.mulf %50, %51 : vector<2x8x16xf32>
    %53 = vector.extract_strided_slice %49 {offsets = [0, 0, 32], sizes = [2, 8, 16], strides = [1, 1, 1]} : vector<2x8x96xf32> to vector<2x8x16xf32>
    %54 = vector.extract_strided_slice %49 {offsets = [0, 0, 64], sizes = [2, 8, 16], strides = [1, 1, 1]} : vector<2x8x96xf32> to vector<2x8x16xf32>
    %55 = arith.truncf %52 : vector<2x8x16xf32> to vector<2x8x16xbf16>
    %56 = arith.truncf %53 : vector<2x8x16xf32> to vector<2x8x16xbf16>
    "tpu.trace_start"() <{level = 10 : i32, message = "bqd,bkd->bqk"}> : () -> ()
    %cst_25 = arith.constant dense<0.000000e+00> : vector<2x8x8xf32>
    %57 = tpu.matmul %55, %56, %cst_25 {dimension_numbers = #tpu.dot_dimension_numbers<[2], [2], [1], [1], [0, 0, 0, 1, 1, 1], [0], [0]>} : vector<2x8x16xbf16>, vector<2x8x16xbf16>, vector<2x8x8xf32> -> vector<2x8x8xf32>
    "tpu.trace_stop"() : () -> ()
    %cst_26 = arith.constant dense<0xFF800000> : vector<2x8xf32>
    %58 = vector.multi_reduction <maximumf>, %57, %cst_26 [2] : vector<2x8x8xf32> to vector<2x8xf32>
    %59 = vector.shape_cast %58 : vector<2x8xf32> to vector<2x8x1xf32>
    %60 = vector.broadcast %59 : vector<2x8x1xf32> to vector<2x8x8xf32>
    %61 = arith.subf %57, %60 : vector<2x8x8xf32>
    %62 = math.exp %61 : vector<2x8x8xf32>
    %cst_27 = arith.constant dense<0.000000e+00> : vector<2x8xf32>
    %63 = vector.multi_reduction <add>, %62, %cst_27 [2] : vector<2x8x8xf32> to vector<2x8xf32>
    %64 = vector.shape_cast %63 : vector<2x8xf32> to vector<2x8x1xf32>
    %65 = vector.broadcast %64 : vector<2x8x1xf32> to vector<2x8x8xf32>
    %66 = arith.divf %62, %65 : vector<2x8x8xf32>
    %67 = arith.truncf %66 : vector<2x8x8xf32> to vector<2x8x8xbf16>
    %68 = arith.truncf %54 : vector<2x8x16xf32> to vector<2x8x16xbf16>
    "tpu.trace_start"() <{level = 10 : i32, message = "bqk,bkd->bqd"}> : () -> ()
    %cst_28 = arith.constant dense<0.000000e+00> : vector<2x8x16xf32>
    %69 = tpu.matmul %67, %68, %cst_28 {dimension_numbers = #tpu.dot_dimension_numbers<[2], [1], [1], [2], [0, 0, 0, 1, 1, 2], [0], [0]>} : vector<2x8x8xbf16>, vector<2x8x16xbf16>, vector<2x8x16xf32> -> vector<2x8x16xf32>
    "tpu.trace_stop"() : () -> ()
    %70 = vector.shape_cast %69 : vector<2x8x16xf32> to vector<16x16xf32>
    %71 = arith.truncf %70 : vector<16x16xf32> to vector<16x16xbf16>
    %c0_29 = arith.constant 0 : index
    %c0_30 = arith.constant 0 : index
    %c0_31 = arith.constant 0 : index
    %c0_32 = arith.constant 0 : index
    %72 = vector.load %arg6[%c0_29, %c0_30, %c0_31, %c0_32] : memref<2x2x16x32xbf16, #tpu.memory_space<vmem>>, vector<1x1x16x32xbf16>
    %73 = vector.shape_cast %72 : vector<1x1x16x32xbf16> to vector<16x32xbf16>
    %cst_33 = arith.constant dense<0.000000e+00> : vector<16x32xf32>
    %74 = tpu.matmul %71, %73, %cst_33 {dimension_numbers = #tpu.dot_dimension_numbers<[1], [0], [0], [1], [0, 0, 1, 1], [], []>} : vector<16x16xbf16>, vector<16x32xbf16>, vector<16x32xf32> -> vector<16x32xf32>
    %75 = vector.extract_strided_slice %49 {offsets = [0, 0, 16], sizes = [2, 8, 16], strides = [1, 1, 1]} : vector<2x8x96xf32> to vector<2x8x16xf32>
    %cst_34 = arith.constant 2.500000e-01 : f32
    %76 = vector.broadcast %cst_34 : f32 to vector<2x8x16xf32>
    %77 = arith.mulf %75, %76 : vector<2x8x16xf32>
    %78 = vector.extract_strided_slice %49 {offsets = [0, 0, 48], sizes = [2, 8, 16], strides = [1, 1, 1]} : vector<2x8x96xf32> to vector<2x8x16xf32>
    %79 = vector.extract_strided_slice %49 {offsets = [0, 0, 80], sizes = [2, 8, 16], strides = [1, 1, 1]} : vector<2x8x96xf32> to vector<2x8x16xf32>
    %80 = arith.truncf %77 : vector<2x8x16xf32> to vector<2x8x16xbf16>
    %81 = arith.truncf %78 : vector<2x8x16xf32> to vector<2x8x16xbf16>
    "tpu.trace_start"() <{level = 10 : i32, message = "bqd,bkd->bqk"}> : () -> ()
    %cst_35 = arith.constant dense<0.000000e+00> : vector<2x8x8xf32>
    %82 = tpu.matmul %80, %81, %cst_35 {dimension_numbers = #tpu.dot_dimension_numbers<[2], [2], [1], [1], [0, 0, 0, 1, 1, 1], [0], [0]>} : vector<2x8x16xbf16>, vector<2x8x16xbf16>, vector<2x8x8xf32> -> vector<2x8x8xf32>
    "tpu.trace_stop"() : () -> ()
    %cst_36 = arith.constant dense<0xFF800000> : vector<2x8xf32>
    %83 = vector.multi_reduction <maximumf>, %82, %cst_36 [2] : vector<2x8x8xf32> to vector<2x8xf32>
    %84 = vector.shape_cast %83 : vector<2x8xf32> to vector<2x8x1xf32>
    %85 = vector.broadcast %84 : vector<2x8x1xf32> to vector<2x8x8xf32>
    %86 = arith.subf %82, %85 : vector<2x8x8xf32>
    %87 = math.exp %86 : vector<2x8x8xf32>
    %cst_37 = arith.constant dense<0.000000e+00> : vector<2x8xf32>
    %88 = vector.multi_reduction <add>, %87, %cst_37 [2] : vector<2x8x8xf32> to vector<2x8xf32>
    %89 = vector.shape_cast %88 : vector<2x8xf32> to vector<2x8x1xf32>
    %90 = vector.broadcast %89 : vector<2x8x1xf32> to vector<2x8x8xf32>
    %91 = arith.divf %87, %90 : vector<2x8x8xf32>
    %92 = arith.truncf %91 : vector<2x8x8xf32> to vector<2x8x8xbf16>
    %93 = arith.truncf %79 : vector<2x8x16xf32> to vector<2x8x16xbf16>
    "tpu.trace_start"() <{level = 10 : i32, message = "bqk,bkd->bqd"}> : () -> ()
    %cst_38 = arith.constant dense<0.000000e+00> : vector<2x8x16xf32>
    %94 = tpu.matmul %92, %93, %cst_38 {dimension_numbers = #tpu.dot_dimension_numbers<[2], [1], [1], [2], [0, 0, 0, 1, 1, 2], [0], [0]>} : vector<2x8x8xbf16>, vector<2x8x16xbf16>, vector<2x8x16xf32> -> vector<2x8x16xf32>
    "tpu.trace_stop"() : () -> ()
    %95 = vector.shape_cast %94 : vector<2x8x16xf32> to vector<16x16xf32>
    %96 = arith.truncf %95 : vector<16x16xf32> to vector<16x16xbf16>
    %c0_39 = arith.constant 0 : index
    %c1_40 = arith.constant 1 : index
    %c0_41 = arith.constant 0 : index
    %c0_42 = arith.constant 0 : index
    %97 = vector.load %arg6[%c0_39, %c1_40, %c0_41, %c0_42] : memref<2x2x16x32xbf16, #tpu.memory_space<vmem>>, vector<1x1x16x32xbf16>
    %98 = vector.shape_cast %97 : vector<1x1x16x32xbf16> to vector<16x32xbf16>
    %cst_43 = arith.constant dense<0.000000e+00> : vector<16x32xf32>
    %99 = tpu.matmul %96, %98, %cst_43 {dimension_numbers = #tpu.dot_dimension_numbers<[1], [0], [0], [1], [0, 0, 1, 1], [], []>} : vector<16x16xbf16>, vector<16x32xbf16>, vector<16x32xf32> -> vector<16x32xf32>
    %100 = arith.addf %74, %99 : vector<16x32xf32>
    %101 = vector.broadcast %36 : vector<1x32xf32> to vector<16x32xf32>
    %102 = arith.addf %100, %101 : vector<16x32xf32>
    %103 = arith.addf %35, %102 : vector<16x32xf32>
    %cst_44 = arith.constant dense<0.000000e+00> : vector<16xf32>
    %104 = vector.multi_reduction <add>, %103, %cst_44 [1] : vector<16x32xf32> to vector<16xf32>
    %105 = vector.shape_cast %104 : vector<16xf32> to vector<16x1xf32>
    %cst_45 = arith.constant 3.200000e+01 : f32
    %106 = vector.broadcast %cst_45 : f32 to vector<16x1xf32>
    %107 = arith.divf %105, %106 : vector<16x1xf32>
    %108 = vector.broadcast %107 : vector<16x1xf32> to vector<16x32xf32>
    %109 = arith.subf %103, %108 : vector<16x32xf32>
    %110 = arith.mulf %109, %109 : vector<16x32xf32>
    %cst_46 = arith.constant dense<0.000000e+00> : vector<16xf32>
    %111 = vector.multi_reduction <add>, %110, %cst_46 [1] : vector<16x32xf32> to vector<16xf32>
    %112 = vector.shape_cast %111 : vector<16xf32> to vector<16x1xf32>
    %cst_47 = arith.constant 3.200000e+01 : f32
    %113 = vector.broadcast %cst_47 : f32 to vector<16x1xf32>
    %114 = arith.divf %112, %113 : vector<16x1xf32>
    %cst_48 = arith.constant 9.99999974E-6 : f32
    %115 = vector.broadcast %cst_48 : f32 to vector<16x1xf32>
    %116 = arith.addf %114, %115 : vector<16x1xf32>
    %117 = math.rsqrt %116 : vector<16x1xf32>
    %118 = vector.broadcast %117 : vector<16x1xf32> to vector<16x32xf32>
    %119 = arith.mulf %109, %118 : vector<16x32xf32>
    %120 = vector.broadcast %37 : vector<1x32xf32> to vector<16x32xf32>
    %121 = arith.mulf %119, %120 : vector<16x32xf32>
    %122 = vector.broadcast %38 : vector<1x32xf32> to vector<16x32xf32>
    %123 = arith.addf %121, %122 : vector<16x32xf32>
    %c0_49 = arith.constant 0 : index
    %c0_50 = arith.constant 0 : index
    %c0_51 = arith.constant 0 : index
    %c0_52 = arith.constant 0 : index
    %124 = vector.load %arg7[%c0_49, %c0_50, %c0_51, %c0_52] : memref<4x12x32x32xbf16, #tpu.memory_space<vmem>>, vector<1x12x32x32xbf16>
    %125 = vector.shape_cast %124 : vector<1x12x32x32xbf16> to vector<12x32x32xbf16>
    %cst_53 = arith.constant -1.750000e+00 : f32
    %126 = vector.broadcast %cst_53 : f32 to vector<16x32xf32>
    %127 = arith.cmpf oge, %123, %126 : vector<16x32xf32>
    %128 = arith.extui %127 : vector<16x32xi1> to vector<16x32xi32>
    %129 = arith.sitofp %128 : vector<16x32xi32> to vector<16x32xf32>
    %cst_54 = arith.constant -1.500000e+00 : f32
    %130 = vector.broadcast %cst_54 : f32 to vector<16x32xf32>
    %131 = arith.cmpf oge, %123, %130 : vector<16x32xf32>
    %132 = arith.extui %131 : vector<16x32xi1> to vector<16x32xi32>
    %133 = arith.sitofp %132 : vector<16x32xi32> to vector<16x32xf32>
    %cst_55 = arith.constant -1.250000e+00 : f32
    %134 = vector.broadcast %cst_55 : f32 to vector<16x32xf32>
    %135 = arith.cmpf oge, %123, %134 : vector<16x32xf32>
    %136 = arith.extui %135 : vector<16x32xi1> to vector<16x32xi32>
    %137 = arith.sitofp %136 : vector<16x32xi32> to vector<16x32xf32>
    %cst_56 = arith.constant -1.000000e+00 : f32
    %138 = vector.broadcast %cst_56 : f32 to vector<16x32xf32>
    %139 = arith.cmpf oge, %123, %138 : vector<16x32xf32>
    %140 = arith.extui %139 : vector<16x32xi1> to vector<16x32xi32>
    %141 = arith.sitofp %140 : vector<16x32xi32> to vector<16x32xf32>
    %cst_57 = arith.constant -7.500000e-01 : f32
    %142 = vector.broadcast %cst_57 : f32 to vector<16x32xf32>
    %143 = arith.cmpf oge, %123, %142 : vector<16x32xf32>
    %144 = arith.extui %143 : vector<16x32xi1> to vector<16x32xi32>
    %145 = arith.sitofp %144 : vector<16x32xi32> to vector<16x32xf32>
    %cst_58 = arith.constant -5.000000e-01 : f32
    %146 = vector.broadcast %cst_58 : f32 to vector<16x32xf32>
    %147 = arith.cmpf oge, %123, %146 : vector<16x32xf32>
    %148 = arith.extui %147 : vector<16x32xi1> to vector<16x32xi32>
    %149 = arith.sitofp %148 : vector<16x32xi32> to vector<16x32xf32>
    %cst_59 = arith.constant -2.500000e-01 : f32
    %150 = vector.broadcast %cst_59 : f32 to vector<16x32xf32>
    %151 = arith.cmpf oge, %123, %150 : vector<16x32xf32>
    %152 = arith.extui %151 : vector<16x32xi1> to vector<16x32xi32>
    %153 = arith.sitofp %152 : vector<16x32xi32> to vector<16x32xf32>
    %cst_60 = arith.constant 0.000000e+00 : f32
    %154 = vector.broadcast %cst_60 : f32 to vector<16x32xf32>
    %155 = arith.cmpf oge, %123, %154 : vector<16x32xf32>
    %156 = arith.extui %155 : vector<16x32xi1> to vector<16x32xi32>
    %157 = arith.sitofp %156 : vector<16x32xi32> to vector<16x32xf32>
    %cst_61 = arith.constant 2.500000e-01 : f32
    %158 = vector.broadcast %cst_61 : f32 to vector<16x32xf32>
    %159 = arith.cmpf oge, %123, %158 : vector<16x32xf32>
    %160 = arith.extui %159 : vector<16x32xi1> to vector<16x32xi32>
    %161 = arith.sitofp %160 : vector<16x32xi32> to vector<16x32xf32>
    %cst_62 = arith.constant 5.000000e-01 : f32
    %162 = vector.broadcast %cst_62 : f32 to vector<16x32xf32>
    %163 = arith.cmpf oge, %123, %162 : vector<16x32xf32>
    %164 = arith.extui %163 : vector<16x32xi1> to vector<16x32xi32>
    %165 = arith.sitofp %164 : vector<16x32xi32> to vector<16x32xf32>
    %cst_63 = arith.constant 7.500000e-01 : f32
    %166 = vector.broadcast %cst_63 : f32 to vector<16x32xf32>
    %167 = arith.cmpf oge, %123, %166 : vector<16x32xf32>
    %168 = arith.extui %167 : vector<16x32xi1> to vector<16x32xi32>
    %169 = arith.sitofp %168 : vector<16x32xi32> to vector<16x32xf32>
    %cst_64 = arith.constant 1.000000e+00 : f32
    %170 = vector.broadcast %cst_64 : f32 to vector<16x32xf32>
    %171 = arith.cmpf oge, %123, %170 : vector<16x32xf32>
    %172 = arith.extui %171 : vector<16x32xi1> to vector<16x32xi32>
    %173 = arith.sitofp %172 : vector<16x32xi32> to vector<16x32xf32>
    %cst_65 = arith.constant 1.250000e+00 : f32
    %174 = vector.broadcast %cst_65 : f32 to vector<16x32xf32>
    %175 = arith.cmpf oge, %123, %174 : vector<16x32xf32>
    %176 = arith.extui %175 : vector<16x32xi1> to vector<16x32xi32>
    %177 = arith.sitofp %176 : vector<16x32xi32> to vector<16x32xf32>
    %cst_66 = arith.constant 1.500000e+00 : f32
    %178 = vector.broadcast %cst_66 : f32 to vector<16x32xf32>
    %179 = arith.cmpf oge, %123, %178 : vector<16x32xf32>
    %180 = arith.extui %179 : vector<16x32xi1> to vector<16x32xi32>
    %181 = arith.sitofp %180 : vector<16x32xi32> to vector<16x32xf32>
    %cst_67 = arith.constant 1.750000e+00 : f32
    %182 = vector.broadcast %cst_67 : f32 to vector<16x32xf32>
    %183 = arith.cmpf oge, %123, %182 : vector<16x32xf32>
    %184 = arith.extui %183 : vector<16x32xi1> to vector<16x32xi32>
    %185 = arith.sitofp %184 : vector<16x32xi32> to vector<16x32xf32>
    %186 = arith.subf %129, %133 : vector<16x32xf32>
    %187 = arith.subf %133, %137 : vector<16x32xf32>
    %188 = arith.subf %137, %141 : vector<16x32xf32>
    %189 = arith.subf %141, %145 : vector<16x32xf32>
    %190 = arith.subf %145, %149 : vector<16x32xf32>
    %191 = arith.subf %149, %153 : vector<16x32xf32>
    %192 = arith.subf %153, %157 : vector<16x32xf32>
    %193 = arith.subf %157, %161 : vector<16x32xf32>
    %194 = arith.subf %161, %165 : vector<16x32xf32>
    %195 = arith.subf %165, %169 : vector<16x32xf32>
    %196 = arith.subf %169, %173 : vector<16x32xf32>
    %197 = arith.subf %173, %177 : vector<16x32xf32>
    %198 = arith.subf %177, %181 : vector<16x32xf32>
    %199 = arith.subf %181, %185 : vector<16x32xf32>
    %cst_68 = arith.constant -1.750000e+00 : f32
    %200 = vector.broadcast %cst_68 : f32 to vector<16x32xf32>
    %201 = arith.subf %123, %200 : vector<16x32xf32>
    %cst_69 = arith.constant -1.500000e+00 : f32
    %202 = vector.broadcast %cst_69 : f32 to vector<16x32xf32>
    %203 = arith.subf %123, %202 : vector<16x32xf32>
    %cst_70 = arith.constant -1.250000e+00 : f32
    %204 = vector.broadcast %cst_70 : f32 to vector<16x32xf32>
    %205 = arith.subf %123, %204 : vector<16x32xf32>
    %cst_71 = arith.constant -1.000000e+00 : f32
    %206 = vector.broadcast %cst_71 : f32 to vector<16x32xf32>
    %207 = arith.subf %123, %206 : vector<16x32xf32>
    %cst_72 = arith.constant -7.500000e-01 : f32
    %208 = vector.broadcast %cst_72 : f32 to vector<16x32xf32>
    %209 = arith.subf %123, %208 : vector<16x32xf32>
    %cst_73 = arith.constant -5.000000e-01 : f32
    %210 = vector.broadcast %cst_73 : f32 to vector<16x32xf32>
    %211 = arith.subf %123, %210 : vector<16x32xf32>
    %cst_74 = arith.constant -2.500000e-01 : f32
    %212 = vector.broadcast %cst_74 : f32 to vector<16x32xf32>
    %213 = arith.subf %123, %212 : vector<16x32xf32>
    %cst_75 = arith.constant 0.000000e+00 : f32
    %214 = vector.broadcast %cst_75 : f32 to vector<16x32xf32>
    %215 = arith.subf %123, %214 : vector<16x32xf32>
    %cst_76 = arith.constant 2.500000e-01 : f32
    %216 = vector.broadcast %cst_76 : f32 to vector<16x32xf32>
    %217 = arith.subf %123, %216 : vector<16x32xf32>
    %cst_77 = arith.constant 5.000000e-01 : f32
    %218 = vector.broadcast %cst_77 : f32 to vector<16x32xf32>
    %219 = arith.subf %123, %218 : vector<16x32xf32>
    %cst_78 = arith.constant 7.500000e-01 : f32
    %220 = vector.broadcast %cst_78 : f32 to vector<16x32xf32>
    %221 = arith.subf %123, %220 : vector<16x32xf32>
    %cst_79 = arith.constant 1.000000e+00 : f32
    %222 = vector.broadcast %cst_79 : f32 to vector<16x32xf32>
    %223 = arith.subf %123, %222 : vector<16x32xf32>
    %cst_80 = arith.constant 1.250000e+00 : f32
    %224 = vector.broadcast %cst_80 : f32 to vector<16x32xf32>
    %225 = arith.subf %123, %224 : vector<16x32xf32>
    %cst_81 = arith.constant 1.500000e+00 : f32
    %226 = vector.broadcast %cst_81 : f32 to vector<16x32xf32>
    %227 = arith.subf %123, %226 : vector<16x32xf32>
    %cst_82 = arith.constant 1.750000e+00 : f32
    %228 = vector.broadcast %cst_82 : f32 to vector<16x32xf32>
    %229 = arith.subf %123, %228 : vector<16x32xf32>
    %230 = arith.mulf %201, %186 : vector<16x32xf32>
    %231 = arith.mulf %205, %187 : vector<16x32xf32>
    %232 = arith.subf %230, %231 : vector<16x32xf32>
    %cst_83 = arith.constant 4.000000e+00 : f32
    %233 = vector.broadcast %cst_83 : f32 to vector<16x32xf32>
    %234 = arith.mulf %232, %233 : vector<16x32xf32>
    %235 = arith.mulf %203, %187 : vector<16x32xf32>
    %236 = arith.mulf %207, %188 : vector<16x32xf32>
    %237 = arith.subf %235, %236 : vector<16x32xf32>
    %cst_84 = arith.constant 4.000000e+00 : f32
    %238 = vector.broadcast %cst_84 : f32 to vector<16x32xf32>
    %239 = arith.mulf %237, %238 : vector<16x32xf32>
    %240 = arith.mulf %205, %188 : vector<16x32xf32>
    %241 = arith.mulf %209, %189 : vector<16x32xf32>
    %242 = arith.subf %240, %241 : vector<16x32xf32>
    %cst_85 = arith.constant 4.000000e+00 : f32
    %243 = vector.broadcast %cst_85 : f32 to vector<16x32xf32>
    %244 = arith.mulf %242, %243 : vector<16x32xf32>
    %245 = arith.mulf %207, %189 : vector<16x32xf32>
    %246 = arith.mulf %211, %190 : vector<16x32xf32>
    %247 = arith.subf %245, %246 : vector<16x32xf32>
    %cst_86 = arith.constant 4.000000e+00 : f32
    %248 = vector.broadcast %cst_86 : f32 to vector<16x32xf32>
    %249 = arith.mulf %247, %248 : vector<16x32xf32>
    %250 = arith.mulf %209, %190 : vector<16x32xf32>
    %251 = arith.mulf %213, %191 : vector<16x32xf32>
    %252 = arith.subf %250, %251 : vector<16x32xf32>
    %cst_87 = arith.constant 4.000000e+00 : f32
    %253 = vector.broadcast %cst_87 : f32 to vector<16x32xf32>
    %254 = arith.mulf %252, %253 : vector<16x32xf32>
    %255 = arith.mulf %211, %191 : vector<16x32xf32>
    %256 = arith.mulf %215, %192 : vector<16x32xf32>
    %257 = arith.subf %255, %256 : vector<16x32xf32>
    %cst_88 = arith.constant 4.000000e+00 : f32
    %258 = vector.broadcast %cst_88 : f32 to vector<16x32xf32>
    %259 = arith.mulf %257, %258 : vector<16x32xf32>
    %260 = arith.mulf %213, %192 : vector<16x32xf32>
    %261 = arith.mulf %217, %193 : vector<16x32xf32>
    %262 = arith.subf %260, %261 : vector<16x32xf32>
    %cst_89 = arith.constant 4.000000e+00 : f32
    %263 = vector.broadcast %cst_89 : f32 to vector<16x32xf32>
    %264 = arith.mulf %262, %263 : vector<16x32xf32>
    %265 = arith.mulf %215, %193 : vector<16x32xf32>
    %266 = arith.mulf %219, %194 : vector<16x32xf32>
    %267 = arith.subf %265, %266 : vector<16x32xf32>
    %cst_90 = arith.constant 4.000000e+00 : f32
    %268 = vector.broadcast %cst_90 : f32 to vector<16x32xf32>
    %269 = arith.mulf %267, %268 : vector<16x32xf32>
    %270 = arith.mulf %217, %194 : vector<16x32xf32>
    %271 = arith.mulf %221, %195 : vector<16x32xf32>
    %272 = arith.subf %270, %271 : vector<16x32xf32>
    %cst_91 = arith.constant 4.000000e+00 : f32
    %273 = vector.broadcast %cst_91 : f32 to vector<16x32xf32>
    %274 = arith.mulf %272, %273 : vector<16x32xf32>
    %275 = arith.mulf %219, %195 : vector<16x32xf32>
    %276 = arith.mulf %223, %196 : vector<16x32xf32>
    %277 = arith.subf %275, %276 : vector<16x32xf32>
    %cst_92 = arith.constant 4.000000e+00 : f32
    %278 = vector.broadcast %cst_92 : f32 to vector<16x32xf32>
    %279 = arith.mulf %277, %278 : vector<16x32xf32>
    %280 = arith.mulf %221, %196 : vector<16x32xf32>
    %281 = arith.mulf %225, %197 : vector<16x32xf32>
    %282 = arith.subf %280, %281 : vector<16x32xf32>
    %cst_93 = arith.constant 4.000000e+00 : f32
    %283 = vector.broadcast %cst_93 : f32 to vector<16x32xf32>
    %284 = arith.mulf %282, %283 : vector<16x32xf32>
    %285 = arith.mulf %223, %197 : vector<16x32xf32>
    %286 = arith.mulf %227, %198 : vector<16x32xf32>
    %287 = arith.subf %285, %286 : vector<16x32xf32>
    %cst_94 = arith.constant 4.000000e+00 : f32
    %288 = vector.broadcast %cst_94 : f32 to vector<16x32xf32>
    %289 = arith.mulf %287, %288 : vector<16x32xf32>
    %290 = arith.mulf %225, %198 : vector<16x32xf32>
    %291 = arith.mulf %229, %199 : vector<16x32xf32>
    %292 = arith.subf %290, %291 : vector<16x32xf32>
    %cst_95 = arith.constant 4.000000e+00 : f32
    %293 = vector.broadcast %cst_95 : f32 to vector<16x32xf32>
    %294 = arith.mulf %292, %293 : vector<16x32xf32>
    %295 = arith.mulf %201, %234 : vector<16x32xf32>
    %296 = arith.mulf %207, %239 : vector<16x32xf32>
    %297 = arith.subf %295, %296 : vector<16x32xf32>
    %cst_96 = arith.constant 2.000000e+00 : f32
    %298 = vector.broadcast %cst_96 : f32 to vector<16x32xf32>
    %299 = arith.mulf %297, %298 : vector<16x32xf32>
    %300 = arith.mulf %203, %239 : vector<16x32xf32>
    %301 = arith.mulf %209, %244 : vector<16x32xf32>
    %302 = arith.subf %300, %301 : vector<16x32xf32>
    %cst_97 = arith.constant 2.000000e+00 : f32
    %303 = vector.broadcast %cst_97 : f32 to vector<16x32xf32>
    %304 = arith.mulf %302, %303 : vector<16x32xf32>
    %305 = arith.mulf %205, %244 : vector<16x32xf32>
    %306 = arith.mulf %211, %249 : vector<16x32xf32>
    %307 = arith.subf %305, %306 : vector<16x32xf32>
    %cst_98 = arith.constant 2.000000e+00 : f32
    %308 = vector.broadcast %cst_98 : f32 to vector<16x32xf32>
    %309 = arith.mulf %307, %308 : vector<16x32xf32>
    %310 = arith.mulf %207, %249 : vector<16x32xf32>
    %311 = arith.mulf %213, %254 : vector<16x32xf32>
    %312 = arith.subf %310, %311 : vector<16x32xf32>
    %cst_99 = arith.constant 2.000000e+00 : f32
    %313 = vector.broadcast %cst_99 : f32 to vector<16x32xf32>
    %314 = arith.mulf %312, %313 : vector<16x32xf32>
    %315 = arith.mulf %209, %254 : vector<16x32xf32>
    %316 = arith.mulf %215, %259 : vector<16x32xf32>
    %317 = arith.subf %315, %316 : vector<16x32xf32>
    %cst_100 = arith.constant 2.000000e+00 : f32
    %318 = vector.broadcast %cst_100 : f32 to vector<16x32xf32>
    %319 = arith.mulf %317, %318 : vector<16x32xf32>
    %320 = arith.mulf %211, %259 : vector<16x32xf32>
    %321 = arith.mulf %217, %264 : vector<16x32xf32>
    %322 = arith.subf %320, %321 : vector<16x32xf32>
    %cst_101 = arith.constant 2.000000e+00 : f32
    %323 = vector.broadcast %cst_101 : f32 to vector<16x32xf32>
    %324 = arith.mulf %322, %323 : vector<16x32xf32>
    %325 = arith.mulf %213, %264 : vector<16x32xf32>
    %326 = arith.mulf %219, %269 : vector<16x32xf32>
    %327 = arith.subf %325, %326 : vector<16x32xf32>
    %cst_102 = arith.constant 2.000000e+00 : f32
    %328 = vector.broadcast %cst_102 : f32 to vector<16x32xf32>
    %329 = arith.mulf %327, %328 : vector<16x32xf32>
    %330 = arith.mulf %215, %269 : vector<16x32xf32>
    %331 = arith.mulf %221, %274 : vector<16x32xf32>
    %332 = arith.subf %330, %331 : vector<16x32xf32>
    %cst_103 = arith.constant 2.000000e+00 : f32
    %333 = vector.broadcast %cst_103 : f32 to vector<16x32xf32>
    %334 = arith.mulf %332, %333 : vector<16x32xf32>
    %335 = arith.mulf %217, %274 : vector<16x32xf32>
    %336 = arith.mulf %223, %279 : vector<16x32xf32>
    %337 = arith.subf %335, %336 : vector<16x32xf32>
    %cst_104 = arith.constant 2.000000e+00 : f32
    %338 = vector.broadcast %cst_104 : f32 to vector<16x32xf32>
    %339 = arith.mulf %337, %338 : vector<16x32xf32>
    %340 = arith.mulf %219, %279 : vector<16x32xf32>
    %341 = arith.mulf %225, %284 : vector<16x32xf32>
    %342 = arith.subf %340, %341 : vector<16x32xf32>
    %cst_105 = arith.constant 2.000000e+00 : f32
    %343 = vector.broadcast %cst_105 : f32 to vector<16x32xf32>
    %344 = arith.mulf %342, %343 : vector<16x32xf32>
    %345 = arith.mulf %221, %284 : vector<16x32xf32>
    %346 = arith.mulf %227, %289 : vector<16x32xf32>
    %347 = arith.subf %345, %346 : vector<16x32xf32>
    %cst_106 = arith.constant 2.000000e+00 : f32
    %348 = vector.broadcast %cst_106 : f32 to vector<16x32xf32>
    %349 = arith.mulf %347, %348 : vector<16x32xf32>
    %350 = arith.mulf %223, %289 : vector<16x32xf32>
    %351 = arith.mulf %229, %294 : vector<16x32xf32>
    %352 = arith.subf %350, %351 : vector<16x32xf32>
    %cst_107 = arith.constant 2.000000e+00 : f32
    %353 = vector.broadcast %cst_107 : f32 to vector<16x32xf32>
    %354 = arith.mulf %352, %353 : vector<16x32xf32>
    %355 = arith.mulf %201, %299 : vector<16x32xf32>
    %356 = arith.mulf %209, %304 : vector<16x32xf32>
    %357 = arith.subf %355, %356 : vector<16x32xf32>
    %cst_108 = arith.constant 1.33333337 : f32
    %358 = vector.broadcast %cst_108 : f32 to vector<16x32xf32>
    %359 = arith.mulf %357, %358 : vector<16x32xf32>
    %360 = arith.mulf %203, %304 : vector<16x32xf32>
    %361 = arith.mulf %211, %309 : vector<16x32xf32>
    %362 = arith.subf %360, %361 : vector<16x32xf32>
    %cst_109 = arith.constant 1.33333337 : f32
    %363 = vector.broadcast %cst_109 : f32 to vector<16x32xf32>
    %364 = arith.mulf %362, %363 : vector<16x32xf32>
    %365 = arith.mulf %205, %309 : vector<16x32xf32>
    %366 = arith.mulf %213, %314 : vector<16x32xf32>
    %367 = arith.subf %365, %366 : vector<16x32xf32>
    %cst_110 = arith.constant 1.33333337 : f32
    %368 = vector.broadcast %cst_110 : f32 to vector<16x32xf32>
    %369 = arith.mulf %367, %368 : vector<16x32xf32>
    %370 = arith.mulf %207, %314 : vector<16x32xf32>
    %371 = arith.mulf %215, %319 : vector<16x32xf32>
    %372 = arith.subf %370, %371 : vector<16x32xf32>
    %cst_111 = arith.constant 1.33333337 : f32
    %373 = vector.broadcast %cst_111 : f32 to vector<16x32xf32>
    %374 = arith.mulf %372, %373 : vector<16x32xf32>
    %375 = arith.mulf %209, %319 : vector<16x32xf32>
    %376 = arith.mulf %217, %324 : vector<16x32xf32>
    %377 = arith.subf %375, %376 : vector<16x32xf32>
    %cst_112 = arith.constant 1.33333337 : f32
    %378 = vector.broadcast %cst_112 : f32 to vector<16x32xf32>
    %379 = arith.mulf %377, %378 : vector<16x32xf32>
    %380 = arith.mulf %211, %324 : vector<16x32xf32>
    %381 = arith.mulf %219, %329 : vector<16x32xf32>
    %382 = arith.subf %380, %381 : vector<16x32xf32>
    %cst_113 = arith.constant 1.33333337 : f32
    %383 = vector.broadcast %cst_113 : f32 to vector<16x32xf32>
    %384 = arith.mulf %382, %383 : vector<16x32xf32>
    %385 = arith.mulf %213, %329 : vector<16x32xf32>
    %386 = arith.mulf %221, %334 : vector<16x32xf32>
    %387 = arith.subf %385, %386 : vector<16x32xf32>
    %cst_114 = arith.constant 1.33333337 : f32
    %388 = vector.broadcast %cst_114 : f32 to vector<16x32xf32>
    %389 = arith.mulf %387, %388 : vector<16x32xf32>
    %390 = arith.mulf %215, %334 : vector<16x32xf32>
    %391 = arith.mulf %223, %339 : vector<16x32xf32>
    %392 = arith.subf %390, %391 : vector<16x32xf32>
    %cst_115 = arith.constant 1.33333337 : f32
    %393 = vector.broadcast %cst_115 : f32 to vector<16x32xf32>
    %394 = arith.mulf %392, %393 : vector<16x32xf32>
    %395 = arith.mulf %217, %339 : vector<16x32xf32>
    %396 = arith.mulf %225, %344 : vector<16x32xf32>
    %397 = arith.subf %395, %396 : vector<16x32xf32>
    %cst_116 = arith.constant 1.33333337 : f32
    %398 = vector.broadcast %cst_116 : f32 to vector<16x32xf32>
    %399 = arith.mulf %397, %398 : vector<16x32xf32>
    %400 = arith.mulf %219, %344 : vector<16x32xf32>
    %401 = arith.mulf %227, %349 : vector<16x32xf32>
    %402 = arith.subf %400, %401 : vector<16x32xf32>
    %cst_117 = arith.constant 1.33333337 : f32
    %403 = vector.broadcast %cst_117 : f32 to vector<16x32xf32>
    %404 = arith.mulf %402, %403 : vector<16x32xf32>
    %405 = arith.mulf %221, %349 : vector<16x32xf32>
    %406 = arith.mulf %229, %354 : vector<16x32xf32>
    %407 = arith.subf %405, %406 : vector<16x32xf32>
    %cst_118 = arith.constant 1.33333337 : f32
    %408 = vector.broadcast %cst_118 : f32 to vector<16x32xf32>
    %409 = arith.mulf %407, %408 : vector<16x32xf32>
    %410 = arith.negf %123 : vector<16x32xf32>
    %411 = math.exp %410 : vector<16x32xf32>
    %cst_119 = arith.constant 1.000000e+00 : f32
    %412 = vector.broadcast %cst_119 : f32 to vector<16x32xf32>
    %413 = arith.addf %412, %411 : vector<16x32xf32>
    %414 = arith.divf %412, %413 : vector<16x32xf32>
    %415 = arith.mulf %123, %414 : vector<16x32xf32>
    %416 = arith.truncf %415 : vector<16x32xf32> to vector<16x32xbf16>
    %417 = vector.extract_strided_slice %125 {offsets = [0, 0, 0], sizes = [1, 32, 32], strides = [1, 1, 1]} : vector<12x32x32xbf16> to vector<1x32x32xbf16>
    %418 = vector.shape_cast %417 : vector<1x32x32xbf16> to vector<32x32xbf16>
    %cst_120 = arith.constant dense<0.000000e+00> : vector<16x32xf32>
    %419 = tpu.matmul %416, %418, %cst_120 {dimension_numbers = #tpu.dot_dimension_numbers<[1], [0], [0], [1], [0, 0, 1, 1], [], []>} : vector<16x32xbf16>, vector<32x32xbf16>, vector<16x32xf32> -> vector<16x32xf32>
    %420 = arith.truncf %359 : vector<16x32xf32> to vector<16x32xbf16>
    %421 = vector.extract_strided_slice %125 {offsets = [1, 0, 0], sizes = [1, 32, 32], strides = [1, 1, 1]} : vector<12x32x32xbf16> to vector<1x32x32xbf16>
    %422 = vector.shape_cast %421 : vector<1x32x32xbf16> to vector<32x32xbf16>
    %cst_121 = arith.constant dense<0.000000e+00> : vector<16x32xf32>
    %423 = tpu.matmul %420, %422, %cst_121 {dimension_numbers = #tpu.dot_dimension_numbers<[1], [0], [0], [1], [0, 0, 1, 1], [], []>} : vector<16x32xbf16>, vector<32x32xbf16>, vector<16x32xf32> -> vector<16x32xf32>
    %424 = arith.addf %419, %423 : vector<16x32xf32>
    %425 = arith.truncf %364 : vector<16x32xf32> to vector<16x32xbf16>
    %426 = vector.extract_strided_slice %125 {offsets = [2, 0, 0], sizes = [1, 32, 32], strides = [1, 1, 1]} : vector<12x32x32xbf16> to vector<1x32x32xbf16>
    %427 = vector.shape_cast %426 : vector<1x32x32xbf16> to vector<32x32xbf16>
    %cst_122 = arith.constant dense<0.000000e+00> : vector<16x32xf32>
    %428 = tpu.matmul %425, %427, %cst_122 {dimension_numbers = #tpu.dot_dimension_numbers<[1], [0], [0], [1], [0, 0, 1, 1], [], []>} : vector<16x32xbf16>, vector<32x32xbf16>, vector<16x32xf32> -> vector<16x32xf32>
    %429 = arith.addf %424, %428 : vector<16x32xf32>
    %430 = arith.truncf %369 : vector<16x32xf32> to vector<16x32xbf16>
    %431 = vector.extract_strided_slice %125 {offsets = [3, 0, 0], sizes = [1, 32, 32], strides = [1, 1, 1]} : vector<12x32x32xbf16> to vector<1x32x32xbf16>
    %432 = vector.shape_cast %431 : vector<1x32x32xbf16> to vector<32x32xbf16>
    %cst_123 = arith.constant dense<0.000000e+00> : vector<16x32xf32>
    %433 = tpu.matmul %430, %432, %cst_123 {dimension_numbers = #tpu.dot_dimension_numbers<[1], [0], [0], [1], [0, 0, 1, 1], [], []>} : vector<16x32xbf16>, vector<32x32xbf16>, vector<16x32xf32> -> vector<16x32xf32>
    %434 = arith.addf %429, %433 : vector<16x32xf32>
    %435 = arith.truncf %374 : vector<16x32xf32> to vector<16x32xbf16>
    %436 = vector.extract_strided_slice %125 {offsets = [4, 0, 0], sizes = [1, 32, 32], strides = [1, 1, 1]} : vector<12x32x32xbf16> to vector<1x32x32xbf16>
    %437 = vector.shape_cast %436 : vector<1x32x32xbf16> to vector<32x32xbf16>
    %cst_124 = arith.constant dense<0.000000e+00> : vector<16x32xf32>
    %438 = tpu.matmul %435, %437, %cst_124 {dimension_numbers = #tpu.dot_dimension_numbers<[1], [0], [0], [1], [0, 0, 1, 1], [], []>} : vector<16x32xbf16>, vector<32x32xbf16>, vector<16x32xf32> -> vector<16x32xf32>
    %439 = arith.addf %434, %438 : vector<16x32xf32>
    %440 = arith.truncf %379 : vector<16x32xf32> to vector<16x32xbf16>
    %441 = vector.extract_strided_slice %125 {offsets = [5, 0, 0], sizes = [1, 32, 32], strides = [1, 1, 1]} : vector<12x32x32xbf16> to vector<1x32x32xbf16>
    %442 = vector.shape_cast %441 : vector<1x32x32xbf16> to vector<32x32xbf16>
    %cst_125 = arith.constant dense<0.000000e+00> : vector<16x32xf32>
    %443 = tpu.matmul %440, %442, %cst_125 {dimension_numbers = #tpu.dot_dimension_numbers<[1], [0], [0], [1], [0, 0, 1, 1], [], []>} : vector<16x32xbf16>, vector<32x32xbf16>, vector<16x32xf32> -> vector<16x32xf32>
    %444 = arith.addf %439, %443 : vector<16x32xf32>
    %445 = arith.truncf %384 : vector<16x32xf32> to vector<16x32xbf16>
    %446 = vector.extract_strided_slice %125 {offsets = [6, 0, 0], sizes = [1, 32, 32], strides = [1, 1, 1]} : vector<12x32x32xbf16> to vector<1x32x32xbf16>
    %447 = vector.shape_cast %446 : vector<1x32x32xbf16> to vector<32x32xbf16>
    %cst_126 = arith.constant dense<0.000000e+00> : vector<16x32xf32>
    %448 = tpu.matmul %445, %447, %cst_126 {dimension_numbers = #tpu.dot_dimension_numbers<[1], [0], [0], [1], [0, 0, 1, 1], [], []>} : vector<16x32xbf16>, vector<32x32xbf16>, vector<16x32xf32> -> vector<16x32xf32>
    %449 = arith.addf %444, %448 : vector<16x32xf32>
    %450 = arith.truncf %389 : vector<16x32xf32> to vector<16x32xbf16>
    %451 = vector.extract_strided_slice %125 {offsets = [7, 0, 0], sizes = [1, 32, 32], strides = [1, 1, 1]} : vector<12x32x32xbf16> to vector<1x32x32xbf16>
    %452 = vector.shape_cast %451 : vector<1x32x32xbf16> to vector<32x32xbf16>
    %cst_127 = arith.constant dense<0.000000e+00> : vector<16x32xf32>
    %453 = tpu.matmul %450, %452, %cst_127 {dimension_numbers = #tpu.dot_dimension_numbers<[1], [0], [0], [1], [0, 0, 1, 1], [], []>} : vector<16x32xbf16>, vector<32x32xbf16>, vector<16x32xf32> -> vector<16x32xf32>
    %454 = arith.addf %449, %453 : vector<16x32xf32>
    %455 = arith.truncf %394 : vector<16x32xf32> to vector<16x32xbf16>
    %456 = vector.extract_strided_slice %125 {offsets = [8, 0, 0], sizes = [1, 32, 32], strides = [1, 1, 1]} : vector<12x32x32xbf16> to vector<1x32x32xbf16>
    %457 = vector.shape_cast %456 : vector<1x32x32xbf16> to vector<32x32xbf16>
    %cst_128 = arith.constant dense<0.000000e+00> : vector<16x32xf32>
    %458 = tpu.matmul %455, %457, %cst_128 {dimension_numbers = #tpu.dot_dimension_numbers<[1], [0], [0], [1], [0, 0, 1, 1], [], []>} : vector<16x32xbf16>, vector<32x32xbf16>, vector<16x32xf32> -> vector<16x32xf32>
    %459 = arith.addf %454, %458 : vector<16x32xf32>
    %460 = arith.truncf %399 : vector<16x32xf32> to vector<16x32xbf16>
    %461 = vector.extract_strided_slice %125 {offsets = [9, 0, 0], sizes = [1, 32, 32], strides = [1, 1, 1]} : vector<12x32x32xbf16> to vector<1x32x32xbf16>
    %462 = vector.shape_cast %461 : vector<1x32x32xbf16> to vector<32x32xbf16>
    %cst_129 = arith.constant dense<0.000000e+00> : vector<16x32xf32>
    %463 = tpu.matmul %460, %462, %cst_129 {dimension_numbers = #tpu.dot_dimension_numbers<[1], [0], [0], [1], [0, 0, 1, 1], [], []>} : vector<16x32xbf16>, vector<32x32xbf16>, vector<16x32xf32> -> vector<16x32xf32>
    %464 = arith.addf %459, %463 : vector<16x32xf32>
    %465 = arith.truncf %404 : vector<16x32xf32> to vector<16x32xbf16>
    %466 = vector.extract_strided_slice %125 {offsets = [10, 0, 0], sizes = [1, 32, 32], strides = [1, 1, 1]} : vector<12x32x32xbf16> to vector<1x32x32xbf16>
    %467 = vector.shape_cast %466 : vector<1x32x32xbf16> to vector<32x32xbf16>
    %cst_130 = arith.constant dense<0.000000e+00> : vector<16x32xf32>
    %468 = tpu.matmul %465, %467, %cst_130 {dimension_numbers = #tpu.dot_dimension_numbers<[1], [0], [0], [1], [0, 0, 1, 1], [], []>} : vector<16x32xbf16>, vector<32x32xbf16>, vector<16x32xf32> -> vector<16x32xf32>
    %469 = arith.addf %464, %468 : vector<16x32xf32>
    %470 = arith.truncf %409 : vector<16x32xf32> to vector<16x32xbf16>
    %471 = vector.extract_strided_slice %125 {offsets = [11, 0, 0], sizes = [1, 32, 32], strides = [1, 1, 1]} : vector<12x32x32xbf16> to vector<1x32x32xbf16>
    %472 = vector.shape_cast %471 : vector<1x32x32xbf16> to vector<32x32xbf16>
    %cst_131 = arith.constant dense<0.000000e+00> : vector<16x32xf32>
    %473 = tpu.matmul %470, %472, %cst_131 {dimension_numbers = #tpu.dot_dimension_numbers<[1], [0], [0], [1], [0, 0, 1, 1], [], []>} : vector<16x32xbf16>, vector<32x32xbf16>, vector<16x32xf32> -> vector<16x32xf32>
    %474 = arith.addf %469, %473 : vector<16x32xf32>
    %c1_132 = arith.constant 1 : index
    %c0_133 = arith.constant 0 : index
    %c0_134 = arith.constant 0 : index
    %c0_135 = arith.constant 0 : index
    %475 = vector.load %arg7[%c1_132, %c0_133, %c0_134, %c0_135] : memref<4x12x32x32xbf16, #tpu.memory_space<vmem>>, vector<1x12x32x32xbf16>
    %476 = vector.shape_cast %475 : vector<1x12x32x32xbf16> to vector<12x32x32xbf16>
    %cst_136 = arith.constant -1.750000e+00 : f32
    %477 = vector.broadcast %cst_136 : f32 to vector<16x32xf32>
    %478 = arith.cmpf oge, %474, %477 : vector<16x32xf32>
    %479 = arith.extui %478 : vector<16x32xi1> to vector<16x32xi32>
    %480 = arith.sitofp %479 : vector<16x32xi32> to vector<16x32xf32>
    %cst_137 = arith.constant -1.500000e+00 : f32
    %481 = vector.broadcast %cst_137 : f32 to vector<16x32xf32>
    %482 = arith.cmpf oge, %474, %481 : vector<16x32xf32>
    %483 = arith.extui %482 : vector<16x32xi1> to vector<16x32xi32>
    %484 = arith.sitofp %483 : vector<16x32xi32> to vector<16x32xf32>
    %cst_138 = arith.constant -1.250000e+00 : f32
    %485 = vector.broadcast %cst_138 : f32 to vector<16x32xf32>
    %486 = arith.cmpf oge, %474, %485 : vector<16x32xf32>
    %487 = arith.extui %486 : vector<16x32xi1> to vector<16x32xi32>
    %488 = arith.sitofp %487 : vector<16x32xi32> to vector<16x32xf32>
    %cst_139 = arith.constant -1.000000e+00 : f32
    %489 = vector.broadcast %cst_139 : f32 to vector<16x32xf32>
    %490 = arith.cmpf oge, %474, %489 : vector<16x32xf32>
    %491 = arith.extui %490 : vector<16x32xi1> to vector<16x32xi32>
    %492 = arith.sitofp %491 : vector<16x32xi32> to vector<16x32xf32>
    %cst_140 = arith.constant -7.500000e-01 : f32
    %493 = vector.broadcast %cst_140 : f32 to vector<16x32xf32>
    %494 = arith.cmpf oge, %474, %493 : vector<16x32xf32>
    %495 = arith.extui %494 : vector<16x32xi1> to vector<16x32xi32>
    %496 = arith.sitofp %495 : vector<16x32xi32> to vector<16x32xf32>
    %cst_141 = arith.constant -5.000000e-01 : f32
    %497 = vector.broadcast %cst_141 : f32 to vector<16x32xf32>
    %498 = arith.cmpf oge, %474, %497 : vector<16x32xf32>
    %499 = arith.extui %498 : vector<16x32xi1> to vector<16x32xi32>
    %500 = arith.sitofp %499 : vector<16x32xi32> to vector<16x32xf32>
    %cst_142 = arith.constant -2.500000e-01 : f32
    %501 = vector.broadcast %cst_142 : f32 to vector<16x32xf32>
    %502 = arith.cmpf oge, %474, %501 : vector<16x32xf32>
    %503 = arith.extui %502 : vector<16x32xi1> to vector<16x32xi32>
    %504 = arith.sitofp %503 : vector<16x32xi32> to vector<16x32xf32>
    %cst_143 = arith.constant 0.000000e+00 : f32
    %505 = vector.broadcast %cst_143 : f32 to vector<16x32xf32>
    %506 = arith.cmpf oge, %474, %505 : vector<16x32xf32>
    %507 = arith.extui %506 : vector<16x32xi1> to vector<16x32xi32>
    %508 = arith.sitofp %507 : vector<16x32xi32> to vector<16x32xf32>
    %cst_144 = arith.constant 2.500000e-01 : f32
    %509 = vector.broadcast %cst_144 : f32 to vector<16x32xf32>
    %510 = arith.cmpf oge, %474, %509 : vector<16x32xf32>
    %511 = arith.extui %510 : vector<16x32xi1> to vector<16x32xi32>
    %512 = arith.sitofp %511 : vector<16x32xi32> to vector<16x32xf32>
    %cst_145 = arith.constant 5.000000e-01 : f32
    %513 = vector.broadcast %cst_145 : f32 to vector<16x32xf32>
    %514 = arith.cmpf oge, %474, %513 : vector<16x32xf32>
    %515 = arith.extui %514 : vector<16x32xi1> to vector<16x32xi32>
    %516 = arith.sitofp %515 : vector<16x32xi32> to vector<16x32xf32>
    %cst_146 = arith.constant 7.500000e-01 : f32
    %517 = vector.broadcast %cst_146 : f32 to vector<16x32xf32>
    %518 = arith.cmpf oge, %474, %517 : vector<16x32xf32>
    %519 = arith.extui %518 : vector<16x32xi1> to vector<16x32xi32>
    %520 = arith.sitofp %519 : vector<16x32xi32> to vector<16x32xf32>
    %cst_147 = arith.constant 1.000000e+00 : f32
    %521 = vector.broadcast %cst_147 : f32 to vector<16x32xf32>
    %522 = arith.cmpf oge, %474, %521 : vector<16x32xf32>
    %523 = arith.extui %522 : vector<16x32xi1> to vector<16x32xi32>
    %524 = arith.sitofp %523 : vector<16x32xi32> to vector<16x32xf32>
    %cst_148 = arith.constant 1.250000e+00 : f32
    %525 = vector.broadcast %cst_148 : f32 to vector<16x32xf32>
    %526 = arith.cmpf oge, %474, %525 : vector<16x32xf32>
    %527 = arith.extui %526 : vector<16x32xi1> to vector<16x32xi32>
    %528 = arith.sitofp %527 : vector<16x32xi32> to vector<16x32xf32>
    %cst_149 = arith.constant 1.500000e+00 : f32
    %529 = vector.broadcast %cst_149 : f32 to vector<16x32xf32>
    %530 = arith.cmpf oge, %474, %529 : vector<16x32xf32>
    %531 = arith.extui %530 : vector<16x32xi1> to vector<16x32xi32>
    %532 = arith.sitofp %531 : vector<16x32xi32> to vector<16x32xf32>
    %cst_150 = arith.constant 1.750000e+00 : f32
    %533 = vector.broadcast %cst_150 : f32 to vector<16x32xf32>
    %534 = arith.cmpf oge, %474, %533 : vector<16x32xf32>
    %535 = arith.extui %534 : vector<16x32xi1> to vector<16x32xi32>
    %536 = arith.sitofp %535 : vector<16x32xi32> to vector<16x32xf32>
    %537 = arith.subf %480, %484 : vector<16x32xf32>
    %538 = arith.subf %484, %488 : vector<16x32xf32>
    %539 = arith.subf %488, %492 : vector<16x32xf32>
    %540 = arith.subf %492, %496 : vector<16x32xf32>
    %541 = arith.subf %496, %500 : vector<16x32xf32>
    %542 = arith.subf %500, %504 : vector<16x32xf32>
    %543 = arith.subf %504, %508 : vector<16x32xf32>
    %544 = arith.subf %508, %512 : vector<16x32xf32>
    %545 = arith.subf %512, %516 : vector<16x32xf32>
    %546 = arith.subf %516, %520 : vector<16x32xf32>
    %547 = arith.subf %520, %524 : vector<16x32xf32>
    %548 = arith.subf %524, %528 : vector<16x32xf32>
    %549 = arith.subf %528, %532 : vector<16x32xf32>
    %550 = arith.subf %532, %536 : vector<16x32xf32>
    %cst_151 = arith.constant -1.750000e+00 : f32
    %551 = vector.broadcast %cst_151 : f32 to vector<16x32xf32>
    %552 = arith.subf %474, %551 : vector<16x32xf32>
    %cst_152 = arith.constant -1.500000e+00 : f32
    %553 = vector.broadcast %cst_152 : f32 to vector<16x32xf32>
    %554 = arith.subf %474, %553 : vector<16x32xf32>
    %cst_153 = arith.constant -1.250000e+00 : f32
    %555 = vector.broadcast %cst_153 : f32 to vector<16x32xf32>
    %556 = arith.subf %474, %555 : vector<16x32xf32>
    %cst_154 = arith.constant -1.000000e+00 : f32
    %557 = vector.broadcast %cst_154 : f32 to vector<16x32xf32>
    %558 = arith.subf %474, %557 : vector<16x32xf32>
    %cst_155 = arith.constant -7.500000e-01 : f32
    %559 = vector.broadcast %cst_155 : f32 to vector<16x32xf32>
    %560 = arith.subf %474, %559 : vector<16x32xf32>
    %cst_156 = arith.constant -5.000000e-01 : f32
    %561 = vector.broadcast %cst_156 : f32 to vector<16x32xf32>
    %562 = arith.subf %474, %561 : vector<16x32xf32>
    %cst_157 = arith.constant -2.500000e-01 : f32
    %563 = vector.broadcast %cst_157 : f32 to vector<16x32xf32>
    %564 = arith.subf %474, %563 : vector<16x32xf32>
    %cst_158 = arith.constant 0.000000e+00 : f32
    %565 = vector.broadcast %cst_158 : f32 to vector<16x32xf32>
    %566 = arith.subf %474, %565 : vector<16x32xf32>
    %cst_159 = arith.constant 2.500000e-01 : f32
    %567 = vector.broadcast %cst_159 : f32 to vector<16x32xf32>
    %568 = arith.subf %474, %567 : vector<16x32xf32>
    %cst_160 = arith.constant 5.000000e-01 : f32
    %569 = vector.broadcast %cst_160 : f32 to vector<16x32xf32>
    %570 = arith.subf %474, %569 : vector<16x32xf32>
    %cst_161 = arith.constant 7.500000e-01 : f32
    %571 = vector.broadcast %cst_161 : f32 to vector<16x32xf32>
    %572 = arith.subf %474, %571 : vector<16x32xf32>
    %cst_162 = arith.constant 1.000000e+00 : f32
    %573 = vector.broadcast %cst_162 : f32 to vector<16x32xf32>
    %574 = arith.subf %474, %573 : vector<16x32xf32>
    %cst_163 = arith.constant 1.250000e+00 : f32
    %575 = vector.broadcast %cst_163 : f32 to vector<16x32xf32>
    %576 = arith.subf %474, %575 : vector<16x32xf32>
    %cst_164 = arith.constant 1.500000e+00 : f32
    %577 = vector.broadcast %cst_164 : f32 to vector<16x32xf32>
    %578 = arith.subf %474, %577 : vector<16x32xf32>
    %cst_165 = arith.constant 1.750000e+00 : f32
    %579 = vector.broadcast %cst_165 : f32 to vector<16x32xf32>
    %580 = arith.subf %474, %579 : vector<16x32xf32>
    %581 = arith.mulf %552, %537 : vector<16x32xf32>
    %582 = arith.mulf %556, %538 : vector<16x32xf32>
    %583 = arith.subf %581, %582 : vector<16x32xf32>
    %cst_166 = arith.constant 4.000000e+00 : f32
    %584 = vector.broadcast %cst_166 : f32 to vector<16x32xf32>
    %585 = arith.mulf %583, %584 : vector<16x32xf32>
    %586 = arith.mulf %554, %538 : vector<16x32xf32>
    %587 = arith.mulf %558, %539 : vector<16x32xf32>
    %588 = arith.subf %586, %587 : vector<16x32xf32>
    %cst_167 = arith.constant 4.000000e+00 : f32
    %589 = vector.broadcast %cst_167 : f32 to vector<16x32xf32>
    %590 = arith.mulf %588, %589 : vector<16x32xf32>
    %591 = arith.mulf %556, %539 : vector<16x32xf32>
    %592 = arith.mulf %560, %540 : vector<16x32xf32>
    %593 = arith.subf %591, %592 : vector<16x32xf32>
    %cst_168 = arith.constant 4.000000e+00 : f32
    %594 = vector.broadcast %cst_168 : f32 to vector<16x32xf32>
    %595 = arith.mulf %593, %594 : vector<16x32xf32>
    %596 = arith.mulf %558, %540 : vector<16x32xf32>
    %597 = arith.mulf %562, %541 : vector<16x32xf32>
    %598 = arith.subf %596, %597 : vector<16x32xf32>
    %cst_169 = arith.constant 4.000000e+00 : f32
    %599 = vector.broadcast %cst_169 : f32 to vector<16x32xf32>
    %600 = arith.mulf %598, %599 : vector<16x32xf32>
    %601 = arith.mulf %560, %541 : vector<16x32xf32>
    %602 = arith.mulf %564, %542 : vector<16x32xf32>
    %603 = arith.subf %601, %602 : vector<16x32xf32>
    %cst_170 = arith.constant 4.000000e+00 : f32
    %604 = vector.broadcast %cst_170 : f32 to vector<16x32xf32>
    %605 = arith.mulf %603, %604 : vector<16x32xf32>
    %606 = arith.mulf %562, %542 : vector<16x32xf32>
    %607 = arith.mulf %566, %543 : vector<16x32xf32>
    %608 = arith.subf %606, %607 : vector<16x32xf32>
    %cst_171 = arith.constant 4.000000e+00 : f32
    %609 = vector.broadcast %cst_171 : f32 to vector<16x32xf32>
    %610 = arith.mulf %608, %609 : vector<16x32xf32>
    %611 = arith.mulf %564, %543 : vector<16x32xf32>
    %612 = arith.mulf %568, %544 : vector<16x32xf32>
    %613 = arith.subf %611, %612 : vector<16x32xf32>
    %cst_172 = arith.constant 4.000000e+00 : f32
    %614 = vector.broadcast %cst_172 : f32 to vector<16x32xf32>
    %615 = arith.mulf %613, %614 : vector<16x32xf32>
    %616 = arith.mulf %566, %544 : vector<16x32xf32>
    %617 = arith.mulf %570, %545 : vector<16x32xf32>
    %618 = arith.subf %616, %617 : vector<16x32xf32>
    %cst_173 = arith.constant 4.000000e+00 : f32
    %619 = vector.broadcast %cst_173 : f32 to vector<16x32xf32>
    %620 = arith.mulf %618, %619 : vector<16x32xf32>
    %621 = arith.mulf %568, %545 : vector<16x32xf32>
    %622 = arith.mulf %572, %546 : vector<16x32xf32>
    %623 = arith.subf %621, %622 : vector<16x32xf32>
    %cst_174 = arith.constant 4.000000e+00 : f32
    %624 = vector.broadcast %cst_174 : f32 to vector<16x32xf32>
    %625 = arith.mulf %623, %624 : vector<16x32xf32>
    %626 = arith.mulf %570, %546 : vector<16x32xf32>
    %627 = arith.mulf %574, %547 : vector<16x32xf32>
    %628 = arith.subf %626, %627 : vector<16x32xf32>
    %cst_175 = arith.constant 4.000000e+00 : f32
    %629 = vector.broadcast %cst_175 : f32 to vector<16x32xf32>
    %630 = arith.mulf %628, %629 : vector<16x32xf32>
    %631 = arith.mulf %572, %547 : vector<16x32xf32>
    %632 = arith.mulf %576, %548 : vector<16x32xf32>
    %633 = arith.subf %631, %632 : vector<16x32xf32>
    %cst_176 = arith.constant 4.000000e+00 : f32
    %634 = vector.broadcast %cst_176 : f32 to vector<16x32xf32>
    %635 = arith.mulf %633, %634 : vector<16x32xf32>
    %636 = arith.mulf %574, %548 : vector<16x32xf32>
    %637 = arith.mulf %578, %549 : vector<16x32xf32>
    %638 = arith.subf %636, %637 : vector<16x32xf32>
    %cst_177 = arith.constant 4.000000e+00 : f32
    %639 = vector.broadcast %cst_177 : f32 to vector<16x32xf32>
    %640 = arith.mulf %638, %639 : vector<16x32xf32>
    %641 = arith.mulf %576, %549 : vector<16x32xf32>
    %642 = arith.mulf %580, %550 : vector<16x32xf32>
    %643 = arith.subf %641, %642 : vector<16x32xf32>
    %cst_178 = arith.constant 4.000000e+00 : f32
    %644 = vector.broadcast %cst_178 : f32 to vector<16x32xf32>
    %645 = arith.mulf %643, %644 : vector<16x32xf32>
    %646 = arith.mulf %552, %585 : vector<16x32xf32>
    %647 = arith.mulf %558, %590 : vector<16x32xf32>
    %648 = arith.subf %646, %647 : vector<16x32xf32>
    %cst_179 = arith.constant 2.000000e+00 : f32
    %649 = vector.broadcast %cst_179 : f32 to vector<16x32xf32>
    %650 = arith.mulf %648, %649 : vector<16x32xf32>
    %651 = arith.mulf %554, %590 : vector<16x32xf32>
    %652 = arith.mulf %560, %595 : vector<16x32xf32>
    %653 = arith.subf %651, %652 : vector<16x32xf32>
    %cst_180 = arith.constant 2.000000e+00 : f32
    %654 = vector.broadcast %cst_180 : f32 to vector<16x32xf32>
    %655 = arith.mulf %653, %654 : vector<16x32xf32>
    %656 = arith.mulf %556, %595 : vector<16x32xf32>
    %657 = arith.mulf %562, %600 : vector<16x32xf32>
    %658 = arith.subf %656, %657 : vector<16x32xf32>
    %cst_181 = arith.constant 2.000000e+00 : f32
    %659 = vector.broadcast %cst_181 : f32 to vector<16x32xf32>
    %660 = arith.mulf %658, %659 : vector<16x32xf32>
    %661 = arith.mulf %558, %600 : vector<16x32xf32>
    %662 = arith.mulf %564, %605 : vector<16x32xf32>
    %663 = arith.subf %661, %662 : vector<16x32xf32>
    %cst_182 = arith.constant 2.000000e+00 : f32
    %664 = vector.broadcast %cst_182 : f32 to vector<16x32xf32>
    %665 = arith.mulf %663, %664 : vector<16x32xf32>
    %666 = arith.mulf %560, %605 : vector<16x32xf32>
    %667 = arith.mulf %566, %610 : vector<16x32xf32>
    %668 = arith.subf %666, %667 : vector<16x32xf32>
    %cst_183 = arith.constant 2.000000e+00 : f32
    %669 = vector.broadcast %cst_183 : f32 to vector<16x32xf32>
    %670 = arith.mulf %668, %669 : vector<16x32xf32>
    %671 = arith.mulf %562, %610 : vector<16x32xf32>
    %672 = arith.mulf %568, %615 : vector<16x32xf32>
    %673 = arith.subf %671, %672 : vector<16x32xf32>
    %cst_184 = arith.constant 2.000000e+00 : f32
    %674 = vector.broadcast %cst_184 : f32 to vector<16x32xf32>
    %675 = arith.mulf %673, %674 : vector<16x32xf32>
    %676 = arith.mulf %564, %615 : vector<16x32xf32>
    %677 = arith.mulf %570, %620 : vector<16x32xf32>
    %678 = arith.subf %676, %677 : vector<16x32xf32>
    %cst_185 = arith.constant 2.000000e+00 : f32
    %679 = vector.broadcast %cst_185 : f32 to vector<16x32xf32>
    %680 = arith.mulf %678, %679 : vector<16x32xf32>
    %681 = arith.mulf %566, %620 : vector<16x32xf32>
    %682 = arith.mulf %572, %625 : vector<16x32xf32>
    %683 = arith.subf %681, %682 : vector<16x32xf32>
    %cst_186 = arith.constant 2.000000e+00 : f32
    %684 = vector.broadcast %cst_186 : f32 to vector<16x32xf32>
    %685 = arith.mulf %683, %684 : vector<16x32xf32>
    %686 = arith.mulf %568, %625 : vector<16x32xf32>
    %687 = arith.mulf %574, %630 : vector<16x32xf32>
    %688 = arith.subf %686, %687 : vector<16x32xf32>
    %cst_187 = arith.constant 2.000000e+00 : f32
    %689 = vector.broadcast %cst_187 : f32 to vector<16x32xf32>
    %690 = arith.mulf %688, %689 : vector<16x32xf32>
    %691 = arith.mulf %570, %630 : vector<16x32xf32>
    %692 = arith.mulf %576, %635 : vector<16x32xf32>
    %693 = arith.subf %691, %692 : vector<16x32xf32>
    %cst_188 = arith.constant 2.000000e+00 : f32
    %694 = vector.broadcast %cst_188 : f32 to vector<16x32xf32>
    %695 = arith.mulf %693, %694 : vector<16x32xf32>
    %696 = arith.mulf %572, %635 : vector<16x32xf32>
    %697 = arith.mulf %578, %640 : vector<16x32xf32>
    %698 = arith.subf %696, %697 : vector<16x32xf32>
    %cst_189 = arith.constant 2.000000e+00 : f32
    %699 = vector.broadcast %cst_189 : f32 to vector<16x32xf32>
    %700 = arith.mulf %698, %699 : vector<16x32xf32>
    %701 = arith.mulf %574, %640 : vector<16x32xf32>
    %702 = arith.mulf %580, %645 : vector<16x32xf32>
    %703 = arith.subf %701, %702 : vector<16x32xf32>
    %cst_190 = arith.constant 2.000000e+00 : f32
    %704 = vector.broadcast %cst_190 : f32 to vector<16x32xf32>
    %705 = arith.mulf %703, %704 : vector<16x32xf32>
    %706 = arith.mulf %552, %650 : vector<16x32xf32>
    %707 = arith.mulf %560, %655 : vector<16x32xf32>
    %708 = arith.subf %706, %707 : vector<16x32xf32>
    %cst_191 = arith.constant 1.33333337 : f32
    %709 = vector.broadcast %cst_191 : f32 to vector<16x32xf32>
    %710 = arith.mulf %708, %709 : vector<16x32xf32>
    %711 = arith.mulf %554, %655 : vector<16x32xf32>
    %712 = arith.mulf %562, %660 : vector<16x32xf32>
    %713 = arith.subf %711, %712 : vector<16x32xf32>
    %cst_192 = arith.constant 1.33333337 : f32
    %714 = vector.broadcast %cst_192 : f32 to vector<16x32xf32>
    %715 = arith.mulf %713, %714 : vector<16x32xf32>
    %716 = arith.mulf %556, %660 : vector<16x32xf32>
    %717 = arith.mulf %564, %665 : vector<16x32xf32>
    %718 = arith.subf %716, %717 : vector<16x32xf32>
    %cst_193 = arith.constant 1.33333337 : f32
    %719 = vector.broadcast %cst_193 : f32 to vector<16x32xf32>
    %720 = arith.mulf %718, %719 : vector<16x32xf32>
    %721 = arith.mulf %558, %665 : vector<16x32xf32>
    %722 = arith.mulf %566, %670 : vector<16x32xf32>
    %723 = arith.subf %721, %722 : vector<16x32xf32>
    %cst_194 = arith.constant 1.33333337 : f32
    %724 = vector.broadcast %cst_194 : f32 to vector<16x32xf32>
    %725 = arith.mulf %723, %724 : vector<16x32xf32>
    %726 = arith.mulf %560, %670 : vector<16x32xf32>
    %727 = arith.mulf %568, %675 : vector<16x32xf32>
    %728 = arith.subf %726, %727 : vector<16x32xf32>
    %cst_195 = arith.constant 1.33333337 : f32
    %729 = vector.broadcast %cst_195 : f32 to vector<16x32xf32>
    %730 = arith.mulf %728, %729 : vector<16x32xf32>
    %731 = arith.mulf %562, %675 : vector<16x32xf32>
    %732 = arith.mulf %570, %680 : vector<16x32xf32>
    %733 = arith.subf %731, %732 : vector<16x32xf32>
    %cst_196 = arith.constant 1.33333337 : f32
    %734 = vector.broadcast %cst_196 : f32 to vector<16x32xf32>
    %735 = arith.mulf %733, %734 : vector<16x32xf32>
    %736 = arith.mulf %564, %680 : vector<16x32xf32>
    %737 = arith.mulf %572, %685 : vector<16x32xf32>
    %738 = arith.subf %736, %737 : vector<16x32xf32>
    %cst_197 = arith.constant 1.33333337 : f32
    %739 = vector.broadcast %cst_197 : f32 to vector<16x32xf32>
    %740 = arith.mulf %738, %739 : vector<16x32xf32>
    %741 = arith.mulf %566, %685 : vector<16x32xf32>
    %742 = arith.mulf %574, %690 : vector<16x32xf32>
    %743 = arith.subf %741, %742 : vector<16x32xf32>
    %cst_198 = arith.constant 1.33333337 : f32
    %744 = vector.broadcast %cst_198 : f32 to vector<16x32xf32>
    %745 = arith.mulf %743, %744 : vector<16x32xf32>
    %746 = arith.mulf %568, %690 : vector<16x32xf32>
    %747 = arith.mulf %576, %695 : vector<16x32xf32>
    %748 = arith.subf %746, %747 : vector<16x32xf32>
    %cst_199 = arith.constant 1.33333337 : f32
    %749 = vector.broadcast %cst_199 : f32 to vector<16x32xf32>
    %750 = arith.mulf %748, %749 : vector<16x32xf32>
    %751 = arith.mulf %570, %695 : vector<16x32xf32>
    %752 = arith.mulf %578, %700 : vector<16x32xf32>
    %753 = arith.subf %751, %752 : vector<16x32xf32>
    %cst_200 = arith.constant 1.33333337 : f32
    %754 = vector.broadcast %cst_200 : f32 to vector<16x32xf32>
    %755 = arith.mulf %753, %754 : vector<16x32xf32>
    %756 = arith.mulf %572, %700 : vector<16x32xf32>
    %757 = arith.mulf %580, %705 : vector<16x32xf32>
    %758 = arith.subf %756, %757 : vector<16x32xf32>
    %cst_201 = arith.constant 1.33333337 : f32
    %759 = vector.broadcast %cst_201 : f32 to vector<16x32xf32>
    %760 = arith.mulf %758, %759 : vector<16x32xf32>
    %761 = arith.negf %474 : vector<16x32xf32>
    %762 = math.exp %761 : vector<16x32xf32>
    %cst_202 = arith.constant 1.000000e+00 : f32
    %763 = vector.broadcast %cst_202 : f32 to vector<16x32xf32>
    %764 = arith.addf %763, %762 : vector<16x32xf32>
    %765 = arith.divf %763, %764 : vector<16x32xf32>
    %766 = arith.mulf %474, %765 : vector<16x32xf32>
    %767 = arith.truncf %766 : vector<16x32xf32> to vector<16x32xbf16>
    %768 = vector.extract_strided_slice %476 {offsets = [0, 0, 0], sizes = [1, 32, 32], strides = [1, 1, 1]} : vector<12x32x32xbf16> to vector<1x32x32xbf16>
    %769 = vector.shape_cast %768 : vector<1x32x32xbf16> to vector<32x32xbf16>
    %cst_203 = arith.constant dense<0.000000e+00> : vector<16x32xf32>
    %770 = tpu.matmul %767, %769, %cst_203 {dimension_numbers = #tpu.dot_dimension_numbers<[1], [0], [0], [1], [0, 0, 1, 1], [], []>} : vector<16x32xbf16>, vector<32x32xbf16>, vector<16x32xf32> -> vector<16x32xf32>
    %771 = arith.truncf %710 : vector<16x32xf32> to vector<16x32xbf16>
    %772 = vector.extract_strided_slice %476 {offsets = [1, 0, 0], sizes = [1, 32, 32], strides = [1, 1, 1]} : vector<12x32x32xbf16> to vector<1x32x32xbf16>
    %773 = vector.shape_cast %772 : vector<1x32x32xbf16> to vector<32x32xbf16>
    %cst_204 = arith.constant dense<0.000000e+00> : vector<16x32xf32>
    %774 = tpu.matmul %771, %773, %cst_204 {dimension_numbers = #tpu.dot_dimension_numbers<[1], [0], [0], [1], [0, 0, 1, 1], [], []>} : vector<16x32xbf16>, vector<32x32xbf16>, vector<16x32xf32> -> vector<16x32xf32>
    %775 = arith.addf %770, %774 : vector<16x32xf32>
    %776 = arith.truncf %715 : vector<16x32xf32> to vector<16x32xbf16>
    %777 = vector.extract_strided_slice %476 {offsets = [2, 0, 0], sizes = [1, 32, 32], strides = [1, 1, 1]} : vector<12x32x32xbf16> to vector<1x32x32xbf16>
    %778 = vector.shape_cast %777 : vector<1x32x32xbf16> to vector<32x32xbf16>
    %cst_205 = arith.constant dense<0.000000e+00> : vector<16x32xf32>
    %779 = tpu.matmul %776, %778, %cst_205 {dimension_numbers = #tpu.dot_dimension_numbers<[1], [0], [0], [1], [0, 0, 1, 1], [], []>} : vector<16x32xbf16>, vector<32x32xbf16>, vector<16x32xf32> -> vector<16x32xf32>
    %780 = arith.addf %775, %779 : vector<16x32xf32>
    %781 = arith.truncf %720 : vector<16x32xf32> to vector<16x32xbf16>
    %782 = vector.extract_strided_slice %476 {offsets = [3, 0, 0], sizes = [1, 32, 32], strides = [1, 1, 1]} : vector<12x32x32xbf16> to vector<1x32x32xbf16>
    %783 = vector.shape_cast %782 : vector<1x32x32xbf16> to vector<32x32xbf16>
    %cst_206 = arith.constant dense<0.000000e+00> : vector<16x32xf32>
    %784 = tpu.matmul %781, %783, %cst_206 {dimension_numbers = #tpu.dot_dimension_numbers<[1], [0], [0], [1], [0, 0, 1, 1], [], []>} : vector<16x32xbf16>, vector<32x32xbf16>, vector<16x32xf32> -> vector<16x32xf32>
    %785 = arith.addf %780, %784 : vector<16x32xf32>
    %786 = arith.truncf %725 : vector<16x32xf32> to vector<16x32xbf16>
    %787 = vector.extract_strided_slice %476 {offsets = [4, 0, 0], sizes = [1, 32, 32], strides = [1, 1, 1]} : vector<12x32x32xbf16> to vector<1x32x32xbf16>
    %788 = vector.shape_cast %787 : vector<1x32x32xbf16> to vector<32x32xbf16>
    %cst_207 = arith.constant dense<0.000000e+00> : vector<16x32xf32>
    %789 = tpu.matmul %786, %788, %cst_207 {dimension_numbers = #tpu.dot_dimension_numbers<[1], [0], [0], [1], [0, 0, 1, 1], [], []>} : vector<16x32xbf16>, vector<32x32xbf16>, vector<16x32xf32> -> vector<16x32xf32>
    %790 = arith.addf %785, %789 : vector<16x32xf32>
    %791 = arith.truncf %730 : vector<16x32xf32> to vector<16x32xbf16>
    %792 = vector.extract_strided_slice %476 {offsets = [5, 0, 0], sizes = [1, 32, 32], strides = [1, 1, 1]} : vector<12x32x32xbf16> to vector<1x32x32xbf16>
    %793 = vector.shape_cast %792 : vector<1x32x32xbf16> to vector<32x32xbf16>
    %cst_208 = arith.constant dense<0.000000e+00> : vector<16x32xf32>
    %794 = tpu.matmul %791, %793, %cst_208 {dimension_numbers = #tpu.dot_dimension_numbers<[1], [0], [0], [1], [0, 0, 1, 1], [], []>} : vector<16x32xbf16>, vector<32x32xbf16>, vector<16x32xf32> -> vector<16x32xf32>
    %795 = arith.addf %790, %794 : vector<16x32xf32>
    %796 = arith.truncf %735 : vector<16x32xf32> to vector<16x32xbf16>
    %797 = vector.extract_strided_slice %476 {offsets = [6, 0, 0], sizes = [1, 32, 32], strides = [1, 1, 1]} : vector<12x32x32xbf16> to vector<1x32x32xbf16>
    %798 = vector.shape_cast %797 : vector<1x32x32xbf16> to vector<32x32xbf16>
    %cst_209 = arith.constant dense<0.000000e+00> : vector<16x32xf32>
    %799 = tpu.matmul %796, %798, %cst_209 {dimension_numbers = #tpu.dot_dimension_numbers<[1], [0], [0], [1], [0, 0, 1, 1], [], []>} : vector<16x32xbf16>, vector<32x32xbf16>, vector<16x32xf32> -> vector<16x32xf32>
    %800 = arith.addf %795, %799 : vector<16x32xf32>
    %801 = arith.truncf %740 : vector<16x32xf32> to vector<16x32xbf16>
    %802 = vector.extract_strided_slice %476 {offsets = [7, 0, 0], sizes = [1, 32, 32], strides = [1, 1, 1]} : vector<12x32x32xbf16> to vector<1x32x32xbf16>
    %803 = vector.shape_cast %802 : vector<1x32x32xbf16> to vector<32x32xbf16>
    %cst_210 = arith.constant dense<0.000000e+00> : vector<16x32xf32>
    %804 = tpu.matmul %801, %803, %cst_210 {dimension_numbers = #tpu.dot_dimension_numbers<[1], [0], [0], [1], [0, 0, 1, 1], [], []>} : vector<16x32xbf16>, vector<32x32xbf16>, vector<16x32xf32> -> vector<16x32xf32>
    %805 = arith.addf %800, %804 : vector<16x32xf32>
    %806 = arith.truncf %745 : vector<16x32xf32> to vector<16x32xbf16>
    %807 = vector.extract_strided_slice %476 {offsets = [8, 0, 0], sizes = [1, 32, 32], strides = [1, 1, 1]} : vector<12x32x32xbf16> to vector<1x32x32xbf16>
    %808 = vector.shape_cast %807 : vector<1x32x32xbf16> to vector<32x32xbf16>
    %cst_211 = arith.constant dense<0.000000e+00> : vector<16x32xf32>
    %809 = tpu.matmul %806, %808, %cst_211 {dimension_numbers = #tpu.dot_dimension_numbers<[1], [0], [0], [1], [0, 0, 1, 1], [], []>} : vector<16x32xbf16>, vector<32x32xbf16>, vector<16x32xf32> -> vector<16x32xf32>
    %810 = arith.addf %805, %809 : vector<16x32xf32>
    %811 = arith.truncf %750 : vector<16x32xf32> to vector<16x32xbf16>
    %812 = vector.extract_strided_slice %476 {offsets = [9, 0, 0], sizes = [1, 32, 32], strides = [1, 1, 1]} : vector<12x32x32xbf16> to vector<1x32x32xbf16>
    %813 = vector.shape_cast %812 : vector<1x32x32xbf16> to vector<32x32xbf16>
    %cst_212 = arith.constant dense<0.000000e+00> : vector<16x32xf32>
    %814 = tpu.matmul %811, %813, %cst_212 {dimension_numbers = #tpu.dot_dimension_numbers<[1], [0], [0], [1], [0, 0, 1, 1], [], []>} : vector<16x32xbf16>, vector<32x32xbf16>, vector<16x32xf32> -> vector<16x32xf32>
    %815 = arith.addf %810, %814 : vector<16x32xf32>
    %816 = arith.truncf %755 : vector<16x32xf32> to vector<16x32xbf16>
    %817 = vector.extract_strided_slice %476 {offsets = [10, 0, 0], sizes = [1, 32, 32], strides = [1, 1, 1]} : vector<12x32x32xbf16> to vector<1x32x32xbf16>
    %818 = vector.shape_cast %817 : vector<1x32x32xbf16> to vector<32x32xbf16>
    %cst_213 = arith.constant dense<0.000000e+00> : vector<16x32xf32>
    %819 = tpu.matmul %816, %818, %cst_213 {dimension_numbers = #tpu.dot_dimension_numbers<[1], [0], [0], [1], [0, 0, 1, 1], [], []>} : vector<16x32xbf16>, vector<32x32xbf16>, vector<16x32xf32> -> vector<16x32xf32>
    %820 = arith.addf %815, %819 : vector<16x32xf32>
    %821 = arith.truncf %760 : vector<16x32xf32> to vector<16x32xbf16>
    %822 = vector.extract_strided_slice %476 {offsets = [11, 0, 0], sizes = [1, 32, 32], strides = [1, 1, 1]} : vector<12x32x32xbf16> to vector<1x32x32xbf16>
    %823 = vector.shape_cast %822 : vector<1x32x32xbf16> to vector<32x32xbf16>
    %cst_214 = arith.constant dense<0.000000e+00> : vector<16x32xf32>
    %824 = tpu.matmul %821, %823, %cst_214 {dimension_numbers = #tpu.dot_dimension_numbers<[1], [0], [0], [1], [0, 0, 1, 1], [], []>} : vector<16x32xbf16>, vector<32x32xbf16>, vector<16x32xf32> -> vector<16x32xf32>
    %825 = arith.addf %820, %824 : vector<16x32xf32>
    %826 = arith.addf %123, %825 : vector<16x32xf32>
    %cst_215 = arith.constant dense<0.000000e+00> : vector<16xf32>
    %827 = vector.multi_reduction <add>, %826, %cst_215 [1] : vector<16x32xf32> to vector<16xf32>
    %828 = vector.shape_cast %827 : vector<16xf32> to vector<16x1xf32>
    %cst_216 = arith.constant 3.200000e+01 : f32
    %829 = vector.broadcast %cst_216 : f32 to vector<16x1xf32>
    %830 = arith.divf %828, %829 : vector<16x1xf32>
    %831 = vector.broadcast %830 : vector<16x1xf32> to vector<16x32xf32>
    %832 = arith.subf %826, %831 : vector<16x32xf32>
    %833 = arith.mulf %832, %832 : vector<16x32xf32>
    %cst_217 = arith.constant dense<0.000000e+00> : vector<16xf32>
    %834 = vector.multi_reduction <add>, %833, %cst_217 [1] : vector<16x32xf32> to vector<16xf32>
    %835 = vector.shape_cast %834 : vector<16xf32> to vector<16x1xf32>
    %cst_218 = arith.constant 3.200000e+01 : f32
    %836 = vector.broadcast %cst_218 : f32 to vector<16x1xf32>
    %837 = arith.divf %835, %836 : vector<16x1xf32>
    %cst_219 = arith.constant 9.99999974E-6 : f32
    %838 = vector.broadcast %cst_219 : f32 to vector<16x1xf32>
    %839 = arith.addf %837, %838 : vector<16x1xf32>
    %840 = math.rsqrt %839 : vector<16x1xf32>
    %841 = vector.broadcast %840 : vector<16x1xf32> to vector<16x32xf32>
    %842 = arith.mulf %832, %841 : vector<16x32xf32>
    %843 = vector.broadcast %39 : vector<1x32xf32> to vector<16x32xf32>
    %844 = arith.mulf %842, %843 : vector<16x32xf32>
    %845 = vector.broadcast %40 : vector<1x32xf32> to vector<16x32xf32>
    %846 = arith.addf %844, %845 : vector<16x32xf32>
    %c9 = arith.constant 9 : index
    %c0_220 = arith.constant 0 : index
    %847 = vector.load %arg3[%c9, %c0_220] : memref<14x32xf32, #tpu.memory_space<vmem>>, vector<1x32xf32>
    %c10 = arith.constant 10 : index
    %c0_221 = arith.constant 0 : index
    %848 = vector.load %arg3[%c10, %c0_221] : memref<14x32xf32, #tpu.memory_space<vmem>>, vector<1x32xf32>
    %c11 = arith.constant 11 : index
    %c0_222 = arith.constant 0 : index
    %849 = vector.load %arg3[%c11, %c0_222] : memref<14x32xf32, #tpu.memory_space<vmem>>, vector<1x32xf32>
    %c12 = arith.constant 12 : index
    %c0_223 = arith.constant 0 : index
    %850 = vector.load %arg3[%c12, %c0_223] : memref<14x32xf32, #tpu.memory_space<vmem>>, vector<1x32xf32>
    %c13 = arith.constant 13 : index
    %c0_224 = arith.constant 0 : index
    %851 = vector.load %arg3[%c13, %c0_224] : memref<14x32xf32, #tpu.memory_space<vmem>>, vector<1x32xf32>
    %852 = arith.truncf %846 : vector<16x32xf32> to vector<16x32xbf16>
    %c1_225 = arith.constant 1 : index
    %c0_226 = arith.constant 0 : index
    %c0_227 = arith.constant 0 : index
    %853 = vector.load %arg4[%c1_225, %c0_226, %c0_227] : memref<2x32x96xbf16, #tpu.memory_space<vmem>>, vector<1x32x96xbf16>
    %854 = vector.shape_cast %853 : vector<1x32x96xbf16> to vector<32x96xbf16>
    %cst_228 = arith.constant dense<0.000000e+00> : vector<16x96xf32>
    %855 = tpu.matmul %852, %854, %cst_228 {dimension_numbers = #tpu.dot_dimension_numbers<[1], [0], [0], [1], [0, 0, 1, 1], [], []>} : vector<16x32xbf16>, vector<32x96xbf16>, vector<16x96xf32> -> vector<16x96xf32>
    %c1_229 = arith.constant 1 : index
    %c0_230 = arith.constant 0 : index
    %c0_231 = arith.constant 0 : index
    %856 = vector.load %arg5[%c1_229, %c0_230, %c0_231] : memref<2x1x96xf32, #tpu.memory_space<vmem>>, vector<1x1x96xf32>
    %857 = vector.shape_cast %856 : vector<1x1x96xf32> to vector<1x96xf32>
    %858 = vector.broadcast %857 : vector<1x96xf32> to vector<16x96xf32>
    %859 = arith.addf %855, %858 : vector<16x96xf32>
    %860 = vector.shape_cast %859 : vector<16x96xf32> to vector<2x8x96xf32>
    %861 = vector.extract_strided_slice %860 {offsets = [0, 0, 0], sizes = [2, 8, 16], strides = [1, 1, 1]} : vector<2x8x96xf32> to vector<2x8x16xf32>
    %cst_232 = arith.constant 2.500000e-01 : f32
    %862 = vector.broadcast %cst_232 : f32 to vector<2x8x16xf32>
    %863 = arith.mulf %861, %862 : vector<2x8x16xf32>
    %864 = vector.extract_strided_slice %860 {offsets = [0, 0, 32], sizes = [2, 8, 16], strides = [1, 1, 1]} : vector<2x8x96xf32> to vector<2x8x16xf32>
    %865 = vector.extract_strided_slice %860 {offsets = [0, 0, 64], sizes = [2, 8, 16], strides = [1, 1, 1]} : vector<2x8x96xf32> to vector<2x8x16xf32>
    %866 = arith.truncf %863 : vector<2x8x16xf32> to vector<2x8x16xbf16>
    %867 = arith.truncf %864 : vector<2x8x16xf32> to vector<2x8x16xbf16>
    "tpu.trace_start"() <{level = 10 : i32, message = "bqd,bkd->bqk"}> : () -> ()
    %cst_233 = arith.constant dense<0.000000e+00> : vector<2x8x8xf32>
    %868 = tpu.matmul %866, %867, %cst_233 {dimension_numbers = #tpu.dot_dimension_numbers<[2], [2], [1], [1], [0, 0, 0, 1, 1, 1], [0], [0]>} : vector<2x8x16xbf16>, vector<2x8x16xbf16>, vector<2x8x8xf32> -> vector<2x8x8xf32>
    "tpu.trace_stop"() : () -> ()
    %cst_234 = arith.constant dense<0xFF800000> : vector<2x8xf32>
    %869 = vector.multi_reduction <maximumf>, %868, %cst_234 [2] : vector<2x8x8xf32> to vector<2x8xf32>
    %870 = vector.shape_cast %869 : vector<2x8xf32> to vector<2x8x1xf32>
    %871 = vector.broadcast %870 : vector<2x8x1xf32> to vector<2x8x8xf32>
    %872 = arith.subf %868, %871 : vector<2x8x8xf32>
    %873 = math.exp %872 : vector<2x8x8xf32>
    %cst_235 = arith.constant dense<0.000000e+00> : vector<2x8xf32>
    %874 = vector.multi_reduction <add>, %873, %cst_235 [2] : vector<2x8x8xf32> to vector<2x8xf32>
    %875 = vector.shape_cast %874 : vector<2x8xf32> to vector<2x8x1xf32>
    %876 = vector.broadcast %875 : vector<2x8x1xf32> to vector<2x8x8xf32>
    %877 = arith.divf %873, %876 : vector<2x8x8xf32>
    %878 = arith.truncf %877 : vector<2x8x8xf32> to vector<2x8x8xbf16>
    %879 = arith.truncf %865 : vector<2x8x16xf32> to vector<2x8x16xbf16>
    "tpu.trace_start"() <{level = 10 : i32, message = "bqk,bkd->bqd"}> : () -> ()
    %cst_236 = arith.constant dense<0.000000e+00> : vector<2x8x16xf32>
    %880 = tpu.matmul %878, %879, %cst_236 {dimension_numbers = #tpu.dot_dimension_numbers<[2], [1], [1], [2], [0, 0, 0, 1, 1, 2], [0], [0]>} : vector<2x8x8xbf16>, vector<2x8x16xbf16>, vector<2x8x16xf32> -> vector<2x8x16xf32>
    "tpu.trace_stop"() : () -> ()
    %881 = vector.shape_cast %880 : vector<2x8x16xf32> to vector<16x16xf32>
    %882 = arith.truncf %881 : vector<16x16xf32> to vector<16x16xbf16>
    %c1_237 = arith.constant 1 : index
    %c0_238 = arith.constant 0 : index
    %c0_239 = arith.constant 0 : index
    %c0_240 = arith.constant 0 : index
    %883 = vector.load %arg6[%c1_237, %c0_238, %c0_239, %c0_240] : memref<2x2x16x32xbf16, #tpu.memory_space<vmem>>, vector<1x1x16x32xbf16>
    %884 = vector.shape_cast %883 : vector<1x1x16x32xbf16> to vector<16x32xbf16>
    %cst_241 = arith.constant dense<0.000000e+00> : vector<16x32xf32>
    %885 = tpu.matmul %882, %884, %cst_241 {dimension_numbers = #tpu.dot_dimension_numbers<[1], [0], [0], [1], [0, 0, 1, 1], [], []>} : vector<16x16xbf16>, vector<16x32xbf16>, vector<16x32xf32> -> vector<16x32xf32>
    %886 = vector.extract_strided_slice %860 {offsets = [0, 0, 16], sizes = [2, 8, 16], strides = [1, 1, 1]} : vector<2x8x96xf32> to vector<2x8x16xf32>
    %cst_242 = arith.constant 2.500000e-01 : f32
    %887 = vector.broadcast %cst_242 : f32 to vector<2x8x16xf32>
    %888 = arith.mulf %886, %887 : vector<2x8x16xf32>
    %889 = vector.extract_strided_slice %860 {offsets = [0, 0, 48], sizes = [2, 8, 16], strides = [1, 1, 1]} : vector<2x8x96xf32> to vector<2x8x16xf32>
    %890 = vector.extract_strided_slice %860 {offsets = [0, 0, 80], sizes = [2, 8, 16], strides = [1, 1, 1]} : vector<2x8x96xf32> to vector<2x8x16xf32>
    %891 = arith.truncf %888 : vector<2x8x16xf32> to vector<2x8x16xbf16>
    %892 = arith.truncf %889 : vector<2x8x16xf32> to vector<2x8x16xbf16>
    "tpu.trace_start"() <{level = 10 : i32, message = "bqd,bkd->bqk"}> : () -> ()
    %cst_243 = arith.constant dense<0.000000e+00> : vector<2x8x8xf32>
    %893 = tpu.matmul %891, %892, %cst_243 {dimension_numbers = #tpu.dot_dimension_numbers<[2], [2], [1], [1], [0, 0, 0, 1, 1, 1], [0], [0]>} : vector<2x8x16xbf16>, vector<2x8x16xbf16>, vector<2x8x8xf32> -> vector<2x8x8xf32>
    "tpu.trace_stop"() : () -> ()
    %cst_244 = arith.constant dense<0xFF800000> : vector<2x8xf32>
    %894 = vector.multi_reduction <maximumf>, %893, %cst_244 [2] : vector<2x8x8xf32> to vector<2x8xf32>
    %895 = vector.shape_cast %894 : vector<2x8xf32> to vector<2x8x1xf32>
    %896 = vector.broadcast %895 : vector<2x8x1xf32> to vector<2x8x8xf32>
    %897 = arith.subf %893, %896 : vector<2x8x8xf32>
    %898 = math.exp %897 : vector<2x8x8xf32>
    %cst_245 = arith.constant dense<0.000000e+00> : vector<2x8xf32>
    %899 = vector.multi_reduction <add>, %898, %cst_245 [2] : vector<2x8x8xf32> to vector<2x8xf32>
    %900 = vector.shape_cast %899 : vector<2x8xf32> to vector<2x8x1xf32>
    %901 = vector.broadcast %900 : vector<2x8x1xf32> to vector<2x8x8xf32>
    %902 = arith.divf %898, %901 : vector<2x8x8xf32>
    %903 = arith.truncf %902 : vector<2x8x8xf32> to vector<2x8x8xbf16>
    %904 = arith.truncf %890 : vector<2x8x16xf32> to vector<2x8x16xbf16>
    "tpu.trace_start"() <{level = 10 : i32, message = "bqk,bkd->bqd"}> : () -> ()
    %cst_246 = arith.constant dense<0.000000e+00> : vector<2x8x16xf32>
    %905 = tpu.matmul %903, %904, %cst_246 {dimension_numbers = #tpu.dot_dimension_numbers<[2], [1], [1], [2], [0, 0, 0, 1, 1, 2], [0], [0]>} : vector<2x8x8xbf16>, vector<2x8x16xbf16>, vector<2x8x16xf32> -> vector<2x8x16xf32>
    "tpu.trace_stop"() : () -> ()
    %906 = vector.shape_cast %905 : vector<2x8x16xf32> to vector<16x16xf32>
    %907 = arith.truncf %906 : vector<16x16xf32> to vector<16x16xbf16>
    %c1_247 = arith.constant 1 : index
    %c1_248 = arith.constant 1 : index
    %c0_249 = arith.constant 0 : index
    %c0_250 = arith.constant 0 : index
    %908 = vector.load %arg6[%c1_247, %c1_248, %c0_249, %c0_250] : memref<2x2x16x32xbf16, #tpu.memory_space<vmem>>, vector<1x1x16x32xbf16>
    %909 = vector.shape_cast %908 : vector<1x1x16x32xbf16> to vector<16x32xbf16>
    %cst_251 = arith.constant dense<0.000000e+00> : vector<16x32xf32>
    %910 = tpu.matmul %907, %909, %cst_251 {dimension_numbers = #tpu.dot_dimension_numbers<[1], [0], [0], [1], [0, 0, 1, 1], [], []>} : vector<16x16xbf16>, vector<16x32xbf16>, vector<16x32xf32> -> vector<16x32xf32>
    %911 = arith.addf %885, %910 : vector<16x32xf32>
    %912 = vector.broadcast %847 : vector<1x32xf32> to vector<16x32xf32>
    %913 = arith.addf %911, %912 : vector<16x32xf32>
    %914 = arith.addf %846, %913 : vector<16x32xf32>
    %cst_252 = arith.constant dense<0.000000e+00> : vector<16xf32>
    %915 = vector.multi_reduction <add>, %914, %cst_252 [1] : vector<16x32xf32> to vector<16xf32>
    %916 = vector.shape_cast %915 : vector<16xf32> to vector<16x1xf32>
    %cst_253 = arith.constant 3.200000e+01 : f32
    %917 = vector.broadcast %cst_253 : f32 to vector<16x1xf32>
    %918 = arith.divf %916, %917 : vector<16x1xf32>
    %919 = vector.broadcast %918 : vector<16x1xf32> to vector<16x32xf32>
    %920 = arith.subf %914, %919 : vector<16x32xf32>
    %921 = arith.mulf %920, %920 : vector<16x32xf32>
    %cst_254 = arith.constant dense<0.000000e+00> : vector<16xf32>
    %922 = vector.multi_reduction <add>, %921, %cst_254 [1] : vector<16x32xf32> to vector<16xf32>
    %923 = vector.shape_cast %922 : vector<16xf32> to vector<16x1xf32>
    %cst_255 = arith.constant 3.200000e+01 : f32
    %924 = vector.broadcast %cst_255 : f32 to vector<16x1xf32>
    %925 = arith.divf %923, %924 : vector<16x1xf32>
    %cst_256 = arith.constant 9.99999974E-6 : f32
    %926 = vector.broadcast %cst_256 : f32 to vector<16x1xf32>
    %927 = arith.addf %925, %926 : vector<16x1xf32>
    %928 = math.rsqrt %927 : vector<16x1xf32>
    %929 = vector.broadcast %928 : vector<16x1xf32> to vector<16x32xf32>
    %930 = arith.mulf %920, %929 : vector<16x32xf32>
    %931 = vector.broadcast %848 : vector<1x32xf32> to vector<16x32xf32>
    %932 = arith.mulf %930, %931 : vector<16x32xf32>
    %933 = vector.broadcast %849 : vector<1x32xf32> to vector<16x32xf32>
    %934 = arith.addf %932, %933 : vector<16x32xf32>
    %c2_257 = arith.constant 2 : index
    %c0_258 = arith.constant 0 : index
    %c0_259 = arith.constant 0 : index
    %c0_260 = arith.constant 0 : index
    %935 = vector.load %arg7[%c2_257, %c0_258, %c0_259, %c0_260] : memref<4x12x32x32xbf16, #tpu.memory_space<vmem>>, vector<1x12x32x32xbf16>
    %936 = vector.shape_cast %935 : vector<1x12x32x32xbf16> to vector<12x32x32xbf16>
    %cst_261 = arith.constant -1.750000e+00 : f32
    %937 = vector.broadcast %cst_261 : f32 to vector<16x32xf32>
    %938 = arith.cmpf oge, %934, %937 : vector<16x32xf32>
    %939 = arith.extui %938 : vector<16x32xi1> to vector<16x32xi32>
    %940 = arith.sitofp %939 : vector<16x32xi32> to vector<16x32xf32>
    %cst_262 = arith.constant -1.500000e+00 : f32
    %941 = vector.broadcast %cst_262 : f32 to vector<16x32xf32>
    %942 = arith.cmpf oge, %934, %941 : vector<16x32xf32>
    %943 = arith.extui %942 : vector<16x32xi1> to vector<16x32xi32>
    %944 = arith.sitofp %943 : vector<16x32xi32> to vector<16x32xf32>
    %cst_263 = arith.constant -1.250000e+00 : f32
    %945 = vector.broadcast %cst_263 : f32 to vector<16x32xf32>
    %946 = arith.cmpf oge, %934, %945 : vector<16x32xf32>
    %947 = arith.extui %946 : vector<16x32xi1> to vector<16x32xi32>
    %948 = arith.sitofp %947 : vector<16x32xi32> to vector<16x32xf32>
    %cst_264 = arith.constant -1.000000e+00 : f32
    %949 = vector.broadcast %cst_264 : f32 to vector<16x32xf32>
    %950 = arith.cmpf oge, %934, %949 : vector<16x32xf32>
    %951 = arith.extui %950 : vector<16x32xi1> to vector<16x32xi32>
    %952 = arith.sitofp %951 : vector<16x32xi32> to vector<16x32xf32>
    %cst_265 = arith.constant -7.500000e-01 : f32
    %953 = vector.broadcast %cst_265 : f32 to vector<16x32xf32>
    %954 = arith.cmpf oge, %934, %953 : vector<16x32xf32>
    %955 = arith.extui %954 : vector<16x32xi1> to vector<16x32xi32>
    %956 = arith.sitofp %955 : vector<16x32xi32> to vector<16x32xf32>
    %cst_266 = arith.constant -5.000000e-01 : f32
    %957 = vector.broadcast %cst_266 : f32 to vector<16x32xf32>
    %958 = arith.cmpf oge, %934, %957 : vector<16x32xf32>
    %959 = arith.extui %958 : vector<16x32xi1> to vector<16x32xi32>
    %960 = arith.sitofp %959 : vector<16x32xi32> to vector<16x32xf32>
    %cst_267 = arith.constant -2.500000e-01 : f32
    %961 = vector.broadcast %cst_267 : f32 to vector<16x32xf32>
    %962 = arith.cmpf oge, %934, %961 : vector<16x32xf32>
    %963 = arith.extui %962 : vector<16x32xi1> to vector<16x32xi32>
    %964 = arith.sitofp %963 : vector<16x32xi32> to vector<16x32xf32>
    %cst_268 = arith.constant 0.000000e+00 : f32
    %965 = vector.broadcast %cst_268 : f32 to vector<16x32xf32>
    %966 = arith.cmpf oge, %934, %965 : vector<16x32xf32>
    %967 = arith.extui %966 : vector<16x32xi1> to vector<16x32xi32>
    %968 = arith.sitofp %967 : vector<16x32xi32> to vector<16x32xf32>
    %cst_269 = arith.constant 2.500000e-01 : f32
    %969 = vector.broadcast %cst_269 : f32 to vector<16x32xf32>
    %970 = arith.cmpf oge, %934, %969 : vector<16x32xf32>
    %971 = arith.extui %970 : vector<16x32xi1> to vector<16x32xi32>
    %972 = arith.sitofp %971 : vector<16x32xi32> to vector<16x32xf32>
    %cst_270 = arith.constant 5.000000e-01 : f32
    %973 = vector.broadcast %cst_270 : f32 to vector<16x32xf32>
    %974 = arith.cmpf oge, %934, %973 : vector<16x32xf32>
    %975 = arith.extui %974 : vector<16x32xi1> to vector<16x32xi32>
    %976 = arith.sitofp %975 : vector<16x32xi32> to vector<16x32xf32>
    %cst_271 = arith.constant 7.500000e-01 : f32
    %977 = vector.broadcast %cst_271 : f32 to vector<16x32xf32>
    %978 = arith.cmpf oge, %934, %977 : vector<16x32xf32>
    %979 = arith.extui %978 : vector<16x32xi1> to vector<16x32xi32>
    %980 = arith.sitofp %979 : vector<16x32xi32> to vector<16x32xf32>
    %cst_272 = arith.constant 1.000000e+00 : f32
    %981 = vector.broadcast %cst_272 : f32 to vector<16x32xf32>
    %982 = arith.cmpf oge, %934, %981 : vector<16x32xf32>
    %983 = arith.extui %982 : vector<16x32xi1> to vector<16x32xi32>
    %984 = arith.sitofp %983 : vector<16x32xi32> to vector<16x32xf32>
    %cst_273 = arith.constant 1.250000e+00 : f32
    %985 = vector.broadcast %cst_273 : f32 to vector<16x32xf32>
    %986 = arith.cmpf oge, %934, %985 : vector<16x32xf32>
    %987 = arith.extui %986 : vector<16x32xi1> to vector<16x32xi32>
    %988 = arith.sitofp %987 : vector<16x32xi32> to vector<16x32xf32>
    %cst_274 = arith.constant 1.500000e+00 : f32
    %989 = vector.broadcast %cst_274 : f32 to vector<16x32xf32>
    %990 = arith.cmpf oge, %934, %989 : vector<16x32xf32>
    %991 = arith.extui %990 : vector<16x32xi1> to vector<16x32xi32>
    %992 = arith.sitofp %991 : vector<16x32xi32> to vector<16x32xf32>
    %cst_275 = arith.constant 1.750000e+00 : f32
    %993 = vector.broadcast %cst_275 : f32 to vector<16x32xf32>
    %994 = arith.cmpf oge, %934, %993 : vector<16x32xf32>
    %995 = arith.extui %994 : vector<16x32xi1> to vector<16x32xi32>
    %996 = arith.sitofp %995 : vector<16x32xi32> to vector<16x32xf32>
    %997 = arith.subf %940, %944 : vector<16x32xf32>
    %998 = arith.subf %944, %948 : vector<16x32xf32>
    %999 = arith.subf %948, %952 : vector<16x32xf32>
    %1000 = arith.subf %952, %956 : vector<16x32xf32>
    %1001 = arith.subf %956, %960 : vector<16x32xf32>
    %1002 = arith.subf %960, %964 : vector<16x32xf32>
    %1003 = arith.subf %964, %968 : vector<16x32xf32>
    %1004 = arith.subf %968, %972 : vector<16x32xf32>
    %1005 = arith.subf %972, %976 : vector<16x32xf32>
    %1006 = arith.subf %976, %980 : vector<16x32xf32>
    %1007 = arith.subf %980, %984 : vector<16x32xf32>
    %1008 = arith.subf %984, %988 : vector<16x32xf32>
    %1009 = arith.subf %988, %992 : vector<16x32xf32>
    %1010 = arith.subf %992, %996 : vector<16x32xf32>
    %cst_276 = arith.constant -1.750000e+00 : f32
    %1011 = vector.broadcast %cst_276 : f32 to vector<16x32xf32>
    %1012 = arith.subf %934, %1011 : vector<16x32xf32>
    %cst_277 = arith.constant -1.500000e+00 : f32
    %1013 = vector.broadcast %cst_277 : f32 to vector<16x32xf32>
    %1014 = arith.subf %934, %1013 : vector<16x32xf32>
    %cst_278 = arith.constant -1.250000e+00 : f32
    %1015 = vector.broadcast %cst_278 : f32 to vector<16x32xf32>
    %1016 = arith.subf %934, %1015 : vector<16x32xf32>
    %cst_279 = arith.constant -1.000000e+00 : f32
    %1017 = vector.broadcast %cst_279 : f32 to vector<16x32xf32>
    %1018 = arith.subf %934, %1017 : vector<16x32xf32>
    %cst_280 = arith.constant -7.500000e-01 : f32
    %1019 = vector.broadcast %cst_280 : f32 to vector<16x32xf32>
    %1020 = arith.subf %934, %1019 : vector<16x32xf32>
    %cst_281 = arith.constant -5.000000e-01 : f32
    %1021 = vector.broadcast %cst_281 : f32 to vector<16x32xf32>
    %1022 = arith.subf %934, %1021 : vector<16x32xf32>
    %cst_282 = arith.constant -2.500000e-01 : f32
    %1023 = vector.broadcast %cst_282 : f32 to vector<16x32xf32>
    %1024 = arith.subf %934, %1023 : vector<16x32xf32>
    %cst_283 = arith.constant 0.000000e+00 : f32
    %1025 = vector.broadcast %cst_283 : f32 to vector<16x32xf32>
    %1026 = arith.subf %934, %1025 : vector<16x32xf32>
    %cst_284 = arith.constant 2.500000e-01 : f32
    %1027 = vector.broadcast %cst_284 : f32 to vector<16x32xf32>
    %1028 = arith.subf %934, %1027 : vector<16x32xf32>
    %cst_285 = arith.constant 5.000000e-01 : f32
    %1029 = vector.broadcast %cst_285 : f32 to vector<16x32xf32>
    %1030 = arith.subf %934, %1029 : vector<16x32xf32>
    %cst_286 = arith.constant 7.500000e-01 : f32
    %1031 = vector.broadcast %cst_286 : f32 to vector<16x32xf32>
    %1032 = arith.subf %934, %1031 : vector<16x32xf32>
    %cst_287 = arith.constant 1.000000e+00 : f32
    %1033 = vector.broadcast %cst_287 : f32 to vector<16x32xf32>
    %1034 = arith.subf %934, %1033 : vector<16x32xf32>
    %cst_288 = arith.constant 1.250000e+00 : f32
    %1035 = vector.broadcast %cst_288 : f32 to vector<16x32xf32>
    %1036 = arith.subf %934, %1035 : vector<16x32xf32>
    %cst_289 = arith.constant 1.500000e+00 : f32
    %1037 = vector.broadcast %cst_289 : f32 to vector<16x32xf32>
    %1038 = arith.subf %934, %1037 : vector<16x32xf32>
    %cst_290 = arith.constant 1.750000e+00 : f32
    %1039 = vector.broadcast %cst_290 : f32 to vector<16x32xf32>
    %1040 = arith.subf %934, %1039 : vector<16x32xf32>
    %1041 = arith.mulf %1012, %997 : vector<16x32xf32>
    %1042 = arith.mulf %1016, %998 : vector<16x32xf32>
    %1043 = arith.subf %1041, %1042 : vector<16x32xf32>
    %cst_291 = arith.constant 4.000000e+00 : f32
    %1044 = vector.broadcast %cst_291 : f32 to vector<16x32xf32>
    %1045 = arith.mulf %1043, %1044 : vector<16x32xf32>
    %1046 = arith.mulf %1014, %998 : vector<16x32xf32>
    %1047 = arith.mulf %1018, %999 : vector<16x32xf32>
    %1048 = arith.subf %1046, %1047 : vector<16x32xf32>
    %cst_292 = arith.constant 4.000000e+00 : f32
    %1049 = vector.broadcast %cst_292 : f32 to vector<16x32xf32>
    %1050 = arith.mulf %1048, %1049 : vector<16x32xf32>
    %1051 = arith.mulf %1016, %999 : vector<16x32xf32>
    %1052 = arith.mulf %1020, %1000 : vector<16x32xf32>
    %1053 = arith.subf %1051, %1052 : vector<16x32xf32>
    %cst_293 = arith.constant 4.000000e+00 : f32
    %1054 = vector.broadcast %cst_293 : f32 to vector<16x32xf32>
    %1055 = arith.mulf %1053, %1054 : vector<16x32xf32>
    %1056 = arith.mulf %1018, %1000 : vector<16x32xf32>
    %1057 = arith.mulf %1022, %1001 : vector<16x32xf32>
    %1058 = arith.subf %1056, %1057 : vector<16x32xf32>
    %cst_294 = arith.constant 4.000000e+00 : f32
    %1059 = vector.broadcast %cst_294 : f32 to vector<16x32xf32>
    %1060 = arith.mulf %1058, %1059 : vector<16x32xf32>
    %1061 = arith.mulf %1020, %1001 : vector<16x32xf32>
    %1062 = arith.mulf %1024, %1002 : vector<16x32xf32>
    %1063 = arith.subf %1061, %1062 : vector<16x32xf32>
    %cst_295 = arith.constant 4.000000e+00 : f32
    %1064 = vector.broadcast %cst_295 : f32 to vector<16x32xf32>
    %1065 = arith.mulf %1063, %1064 : vector<16x32xf32>
    %1066 = arith.mulf %1022, %1002 : vector<16x32xf32>
    %1067 = arith.mulf %1026, %1003 : vector<16x32xf32>
    %1068 = arith.subf %1066, %1067 : vector<16x32xf32>
    %cst_296 = arith.constant 4.000000e+00 : f32
    %1069 = vector.broadcast %cst_296 : f32 to vector<16x32xf32>
    %1070 = arith.mulf %1068, %1069 : vector<16x32xf32>
    %1071 = arith.mulf %1024, %1003 : vector<16x32xf32>
    %1072 = arith.mulf %1028, %1004 : vector<16x32xf32>
    %1073 = arith.subf %1071, %1072 : vector<16x32xf32>
    %cst_297 = arith.constant 4.000000e+00 : f32
    %1074 = vector.broadcast %cst_297 : f32 to vector<16x32xf32>
    %1075 = arith.mulf %1073, %1074 : vector<16x32xf32>
    %1076 = arith.mulf %1026, %1004 : vector<16x32xf32>
    %1077 = arith.mulf %1030, %1005 : vector<16x32xf32>
    %1078 = arith.subf %1076, %1077 : vector<16x32xf32>
    %cst_298 = arith.constant 4.000000e+00 : f32
    %1079 = vector.broadcast %cst_298 : f32 to vector<16x32xf32>
    %1080 = arith.mulf %1078, %1079 : vector<16x32xf32>
    %1081 = arith.mulf %1028, %1005 : vector<16x32xf32>
    %1082 = arith.mulf %1032, %1006 : vector<16x32xf32>
    %1083 = arith.subf %1081, %1082 : vector<16x32xf32>
    %cst_299 = arith.constant 4.000000e+00 : f32
    %1084 = vector.broadcast %cst_299 : f32 to vector<16x32xf32>
    %1085 = arith.mulf %1083, %1084 : vector<16x32xf32>
    %1086 = arith.mulf %1030, %1006 : vector<16x32xf32>
    %1087 = arith.mulf %1034, %1007 : vector<16x32xf32>
    %1088 = arith.subf %1086, %1087 : vector<16x32xf32>
    %cst_300 = arith.constant 4.000000e+00 : f32
    %1089 = vector.broadcast %cst_300 : f32 to vector<16x32xf32>
    %1090 = arith.mulf %1088, %1089 : vector<16x32xf32>
    %1091 = arith.mulf %1032, %1007 : vector<16x32xf32>
    %1092 = arith.mulf %1036, %1008 : vector<16x32xf32>
    %1093 = arith.subf %1091, %1092 : vector<16x32xf32>
    %cst_301 = arith.constant 4.000000e+00 : f32
    %1094 = vector.broadcast %cst_301 : f32 to vector<16x32xf32>
    %1095 = arith.mulf %1093, %1094 : vector<16x32xf32>
    %1096 = arith.mulf %1034, %1008 : vector<16x32xf32>
    %1097 = arith.mulf %1038, %1009 : vector<16x32xf32>
    %1098 = arith.subf %1096, %1097 : vector<16x32xf32>
    %cst_302 = arith.constant 4.000000e+00 : f32
    %1099 = vector.broadcast %cst_302 : f32 to vector<16x32xf32>
    %1100 = arith.mulf %1098, %1099 : vector<16x32xf32>
    %1101 = arith.mulf %1036, %1009 : vector<16x32xf32>
    %1102 = arith.mulf %1040, %1010 : vector<16x32xf32>
    %1103 = arith.subf %1101, %1102 : vector<16x32xf32>
    %cst_303 = arith.constant 4.000000e+00 : f32
    %1104 = vector.broadcast %cst_303 : f32 to vector<16x32xf32>
    %1105 = arith.mulf %1103, %1104 : vector<16x32xf32>
    %1106 = arith.mulf %1012, %1045 : vector<16x32xf32>
    %1107 = arith.mulf %1018, %1050 : vector<16x32xf32>
    %1108 = arith.subf %1106, %1107 : vector<16x32xf32>
    %cst_304 = arith.constant 2.000000e+00 : f32
    %1109 = vector.broadcast %cst_304 : f32 to vector<16x32xf32>
    %1110 = arith.mulf %1108, %1109 : vector<16x32xf32>
    %1111 = arith.mulf %1014, %1050 : vector<16x32xf32>
    %1112 = arith.mulf %1020, %1055 : vector<16x32xf32>
    %1113 = arith.subf %1111, %1112 : vector<16x32xf32>
    %cst_305 = arith.constant 2.000000e+00 : f32
    %1114 = vector.broadcast %cst_305 : f32 to vector<16x32xf32>
    %1115 = arith.mulf %1113, %1114 : vector<16x32xf32>
    %1116 = arith.mulf %1016, %1055 : vector<16x32xf32>
    %1117 = arith.mulf %1022, %1060 : vector<16x32xf32>
    %1118 = arith.subf %1116, %1117 : vector<16x32xf32>
    %cst_306 = arith.constant 2.000000e+00 : f32
    %1119 = vector.broadcast %cst_306 : f32 to vector<16x32xf32>
    %1120 = arith.mulf %1118, %1119 : vector<16x32xf32>
    %1121 = arith.mulf %1018, %1060 : vector<16x32xf32>
    %1122 = arith.mulf %1024, %1065 : vector<16x32xf32>
    %1123 = arith.subf %1121, %1122 : vector<16x32xf32>
    %cst_307 = arith.constant 2.000000e+00 : f32
    %1124 = vector.broadcast %cst_307 : f32 to vector<16x32xf32>
    %1125 = arith.mulf %1123, %1124 : vector<16x32xf32>
    %1126 = arith.mulf %1020, %1065 : vector<16x32xf32>
    %1127 = arith.mulf %1026, %1070 : vector<16x32xf32>
    %1128 = arith.subf %1126, %1127 : vector<16x32xf32>
    %cst_308 = arith.constant 2.000000e+00 : f32
    %1129 = vector.broadcast %cst_308 : f32 to vector<16x32xf32>
    %1130 = arith.mulf %1128, %1129 : vector<16x32xf32>
    %1131 = arith.mulf %1022, %1070 : vector<16x32xf32>
    %1132 = arith.mulf %1028, %1075 : vector<16x32xf32>
    %1133 = arith.subf %1131, %1132 : vector<16x32xf32>
    %cst_309 = arith.constant 2.000000e+00 : f32
    %1134 = vector.broadcast %cst_309 : f32 to vector<16x32xf32>
    %1135 = arith.mulf %1133, %1134 : vector<16x32xf32>
    %1136 = arith.mulf %1024, %1075 : vector<16x32xf32>
    %1137 = arith.mulf %1030, %1080 : vector<16x32xf32>
    %1138 = arith.subf %1136, %1137 : vector<16x32xf32>
    %cst_310 = arith.constant 2.000000e+00 : f32
    %1139 = vector.broadcast %cst_310 : f32 to vector<16x32xf32>
    %1140 = arith.mulf %1138, %1139 : vector<16x32xf32>
    %1141 = arith.mulf %1026, %1080 : vector<16x32xf32>
    %1142 = arith.mulf %1032, %1085 : vector<16x32xf32>
    %1143 = arith.subf %1141, %1142 : vector<16x32xf32>
    %cst_311 = arith.constant 2.000000e+00 : f32
    %1144 = vector.broadcast %cst_311 : f32 to vector<16x32xf32>
    %1145 = arith.mulf %1143, %1144 : vector<16x32xf32>
    %1146 = arith.mulf %1028, %1085 : vector<16x32xf32>
    %1147 = arith.mulf %1034, %1090 : vector<16x32xf32>
    %1148 = arith.subf %1146, %1147 : vector<16x32xf32>
    %cst_312 = arith.constant 2.000000e+00 : f32
    %1149 = vector.broadcast %cst_312 : f32 to vector<16x32xf32>
    %1150 = arith.mulf %1148, %1149 : vector<16x32xf32>
    %1151 = arith.mulf %1030, %1090 : vector<16x32xf32>
    %1152 = arith.mulf %1036, %1095 : vector<16x32xf32>
    %1153 = arith.subf %1151, %1152 : vector<16x32xf32>
    %cst_313 = arith.constant 2.000000e+00 : f32
    %1154 = vector.broadcast %cst_313 : f32 to vector<16x32xf32>
    %1155 = arith.mulf %1153, %1154 : vector<16x32xf32>
    %1156 = arith.mulf %1032, %1095 : vector<16x32xf32>
    %1157 = arith.mulf %1038, %1100 : vector<16x32xf32>
    %1158 = arith.subf %1156, %1157 : vector<16x32xf32>
    %cst_314 = arith.constant 2.000000e+00 : f32
    %1159 = vector.broadcast %cst_314 : f32 to vector<16x32xf32>
    %1160 = arith.mulf %1158, %1159 : vector<16x32xf32>
    %1161 = arith.mulf %1034, %1100 : vector<16x32xf32>
    %1162 = arith.mulf %1040, %1105 : vector<16x32xf32>
    %1163 = arith.subf %1161, %1162 : vector<16x32xf32>
    %cst_315 = arith.constant 2.000000e+00 : f32
    %1164 = vector.broadcast %cst_315 : f32 to vector<16x32xf32>
    %1165 = arith.mulf %1163, %1164 : vector<16x32xf32>
    %1166 = arith.mulf %1012, %1110 : vector<16x32xf32>
    %1167 = arith.mulf %1020, %1115 : vector<16x32xf32>
    %1168 = arith.subf %1166, %1167 : vector<16x32xf32>
    %cst_316 = arith.constant 1.33333337 : f32
    %1169 = vector.broadcast %cst_316 : f32 to vector<16x32xf32>
    %1170 = arith.mulf %1168, %1169 : vector<16x32xf32>
    %1171 = arith.mulf %1014, %1115 : vector<16x32xf32>
    %1172 = arith.mulf %1022, %1120 : vector<16x32xf32>
    %1173 = arith.subf %1171, %1172 : vector<16x32xf32>
    %cst_317 = arith.constant 1.33333337 : f32
    %1174 = vector.broadcast %cst_317 : f32 to vector<16x32xf32>
    %1175 = arith.mulf %1173, %1174 : vector<16x32xf32>
    %1176 = arith.mulf %1016, %1120 : vector<16x32xf32>
    %1177 = arith.mulf %1024, %1125 : vector<16x32xf32>
    %1178 = arith.subf %1176, %1177 : vector<16x32xf32>
    %cst_318 = arith.constant 1.33333337 : f32
    %1179 = vector.broadcast %cst_318 : f32 to vector<16x32xf32>
    %1180 = arith.mulf %1178, %1179 : vector<16x32xf32>
    %1181 = arith.mulf %1018, %1125 : vector<16x32xf32>
    %1182 = arith.mulf %1026, %1130 : vector<16x32xf32>
    %1183 = arith.subf %1181, %1182 : vector<16x32xf32>
    %cst_319 = arith.constant 1.33333337 : f32
    %1184 = vector.broadcast %cst_319 : f32 to vector<16x32xf32>
    %1185 = arith.mulf %1183, %1184 : vector<16x32xf32>
    %1186 = arith.mulf %1020, %1130 : vector<16x32xf32>
    %1187 = arith.mulf %1028, %1135 : vector<16x32xf32>
    %1188 = arith.subf %1186, %1187 : vector<16x32xf32>
    %cst_320 = arith.constant 1.33333337 : f32
    %1189 = vector.broadcast %cst_320 : f32 to vector<16x32xf32>
    %1190 = arith.mulf %1188, %1189 : vector<16x32xf32>
    %1191 = arith.mulf %1022, %1135 : vector<16x32xf32>
    %1192 = arith.mulf %1030, %1140 : vector<16x32xf32>
    %1193 = arith.subf %1191, %1192 : vector<16x32xf32>
    %cst_321 = arith.constant 1.33333337 : f32
    %1194 = vector.broadcast %cst_321 : f32 to vector<16x32xf32>
    %1195 = arith.mulf %1193, %1194 : vector<16x32xf32>
    %1196 = arith.mulf %1024, %1140 : vector<16x32xf32>
    %1197 = arith.mulf %1032, %1145 : vector<16x32xf32>
    %1198 = arith.subf %1196, %1197 : vector<16x32xf32>
    %cst_322 = arith.constant 1.33333337 : f32
    %1199 = vector.broadcast %cst_322 : f32 to vector<16x32xf32>
    %1200 = arith.mulf %1198, %1199 : vector<16x32xf32>
    %1201 = arith.mulf %1026, %1145 : vector<16x32xf32>
    %1202 = arith.mulf %1034, %1150 : vector<16x32xf32>
    %1203 = arith.subf %1201, %1202 : vector<16x32xf32>
    %cst_323 = arith.constant 1.33333337 : f32
    %1204 = vector.broadcast %cst_323 : f32 to vector<16x32xf32>
    %1205 = arith.mulf %1203, %1204 : vector<16x32xf32>
    %1206 = arith.mulf %1028, %1150 : vector<16x32xf32>
    %1207 = arith.mulf %1036, %1155 : vector<16x32xf32>
    %1208 = arith.subf %1206, %1207 : vector<16x32xf32>
    %cst_324 = arith.constant 1.33333337 : f32
    %1209 = vector.broadcast %cst_324 : f32 to vector<16x32xf32>
    %1210 = arith.mulf %1208, %1209 : vector<16x32xf32>
    %1211 = arith.mulf %1030, %1155 : vector<16x32xf32>
    %1212 = arith.mulf %1038, %1160 : vector<16x32xf32>
    %1213 = arith.subf %1211, %1212 : vector<16x32xf32>
    %cst_325 = arith.constant 1.33333337 : f32
    %1214 = vector.broadcast %cst_325 : f32 to vector<16x32xf32>
    %1215 = arith.mulf %1213, %1214 : vector<16x32xf32>
    %1216 = arith.mulf %1032, %1160 : vector<16x32xf32>
    %1217 = arith.mulf %1040, %1165 : vector<16x32xf32>
    %1218 = arith.subf %1216, %1217 : vector<16x32xf32>
    %cst_326 = arith.constant 1.33333337 : f32
    %1219 = vector.broadcast %cst_326 : f32 to vector<16x32xf32>
    %1220 = arith.mulf %1218, %1219 : vector<16x32xf32>
    %1221 = arith.negf %934 : vector<16x32xf32>
    %1222 = math.exp %1221 : vector<16x32xf32>
    %cst_327 = arith.constant 1.000000e+00 : f32
    %1223 = vector.broadcast %cst_327 : f32 to vector<16x32xf32>
    %1224 = arith.addf %1223, %1222 : vector<16x32xf32>
    %1225 = arith.divf %1223, %1224 : vector<16x32xf32>
    %1226 = arith.mulf %934, %1225 : vector<16x32xf32>
    %1227 = arith.truncf %1226 : vector<16x32xf32> to vector<16x32xbf16>
    %1228 = vector.extract_strided_slice %936 {offsets = [0, 0, 0], sizes = [1, 32, 32], strides = [1, 1, 1]} : vector<12x32x32xbf16> to vector<1x32x32xbf16>
    %1229 = vector.shape_cast %1228 : vector<1x32x32xbf16> to vector<32x32xbf16>
    %cst_328 = arith.constant dense<0.000000e+00> : vector<16x32xf32>
    %1230 = tpu.matmul %1227, %1229, %cst_328 {dimension_numbers = #tpu.dot_dimension_numbers<[1], [0], [0], [1], [0, 0, 1, 1], [], []>} : vector<16x32xbf16>, vector<32x32xbf16>, vector<16x32xf32> -> vector<16x32xf32>
    %1231 = arith.truncf %1170 : vector<16x32xf32> to vector<16x32xbf16>
    %1232 = vector.extract_strided_slice %936 {offsets = [1, 0, 0], sizes = [1, 32, 32], strides = [1, 1, 1]} : vector<12x32x32xbf16> to vector<1x32x32xbf16>
    %1233 = vector.shape_cast %1232 : vector<1x32x32xbf16> to vector<32x32xbf16>
    %cst_329 = arith.constant dense<0.000000e+00> : vector<16x32xf32>
    %1234 = tpu.matmul %1231, %1233, %cst_329 {dimension_numbers = #tpu.dot_dimension_numbers<[1], [0], [0], [1], [0, 0, 1, 1], [], []>} : vector<16x32xbf16>, vector<32x32xbf16>, vector<16x32xf32> -> vector<16x32xf32>
    %1235 = arith.addf %1230, %1234 : vector<16x32xf32>
    %1236 = arith.truncf %1175 : vector<16x32xf32> to vector<16x32xbf16>
    %1237 = vector.extract_strided_slice %936 {offsets = [2, 0, 0], sizes = [1, 32, 32], strides = [1, 1, 1]} : vector<12x32x32xbf16> to vector<1x32x32xbf16>
    %1238 = vector.shape_cast %1237 : vector<1x32x32xbf16> to vector<32x32xbf16>
    %cst_330 = arith.constant dense<0.000000e+00> : vector<16x32xf32>
    %1239 = tpu.matmul %1236, %1238, %cst_330 {dimension_numbers = #tpu.dot_dimension_numbers<[1], [0], [0], [1], [0, 0, 1, 1], [], []>} : vector<16x32xbf16>, vector<32x32xbf16>, vector<16x32xf32> -> vector<16x32xf32>
    %1240 = arith.addf %1235, %1239 : vector<16x32xf32>
    %1241 = arith.truncf %1180 : vector<16x32xf32> to vector<16x32xbf16>
    %1242 = vector.extract_strided_slice %936 {offsets = [3, 0, 0], sizes = [1, 32, 32], strides = [1, 1, 1]} : vector<12x32x32xbf16> to vector<1x32x32xbf16>
    %1243 = vector.shape_cast %1242 : vector<1x32x32xbf16> to vector<32x32xbf16>
    %cst_331 = arith.constant dense<0.000000e+00> : vector<16x32xf32>
    %1244 = tpu.matmul %1241, %1243, %cst_331 {dimension_numbers = #tpu.dot_dimension_numbers<[1], [0], [0], [1], [0, 0, 1, 1], [], []>} : vector<16x32xbf16>, vector<32x32xbf16>, vector<16x32xf32> -> vector<16x32xf32>
    %1245 = arith.addf %1240, %1244 : vector<16x32xf32>
    %1246 = arith.truncf %1185 : vector<16x32xf32> to vector<16x32xbf16>
    %1247 = vector.extract_strided_slice %936 {offsets = [4, 0, 0], sizes = [1, 32, 32], strides = [1, 1, 1]} : vector<12x32x32xbf16> to vector<1x32x32xbf16>
    %1248 = vector.shape_cast %1247 : vector<1x32x32xbf16> to vector<32x32xbf16>
    %cst_332 = arith.constant dense<0.000000e+00> : vector<16x32xf32>
    %1249 = tpu.matmul %1246, %1248, %cst_332 {dimension_numbers = #tpu.dot_dimension_numbers<[1], [0], [0], [1], [0, 0, 1, 1], [], []>} : vector<16x32xbf16>, vector<32x32xbf16>, vector<16x32xf32> -> vector<16x32xf32>
    %1250 = arith.addf %1245, %1249 : vector<16x32xf32>
    %1251 = arith.truncf %1190 : vector<16x32xf32> to vector<16x32xbf16>
    %1252 = vector.extract_strided_slice %936 {offsets = [5, 0, 0], sizes = [1, 32, 32], strides = [1, 1, 1]} : vector<12x32x32xbf16> to vector<1x32x32xbf16>
    %1253 = vector.shape_cast %1252 : vector<1x32x32xbf16> to vector<32x32xbf16>
    %cst_333 = arith.constant dense<0.000000e+00> : vector<16x32xf32>
    %1254 = tpu.matmul %1251, %1253, %cst_333 {dimension_numbers = #tpu.dot_dimension_numbers<[1], [0], [0], [1], [0, 0, 1, 1], [], []>} : vector<16x32xbf16>, vector<32x32xbf16>, vector<16x32xf32> -> vector<16x32xf32>
    %1255 = arith.addf %1250, %1254 : vector<16x32xf32>
    %1256 = arith.truncf %1195 : vector<16x32xf32> to vector<16x32xbf16>
    %1257 = vector.extract_strided_slice %936 {offsets = [6, 0, 0], sizes = [1, 32, 32], strides = [1, 1, 1]} : vector<12x32x32xbf16> to vector<1x32x32xbf16>
    %1258 = vector.shape_cast %1257 : vector<1x32x32xbf16> to vector<32x32xbf16>
    %cst_334 = arith.constant dense<0.000000e+00> : vector<16x32xf32>
    %1259 = tpu.matmul %1256, %1258, %cst_334 {dimension_numbers = #tpu.dot_dimension_numbers<[1], [0], [0], [1], [0, 0, 1, 1], [], []>} : vector<16x32xbf16>, vector<32x32xbf16>, vector<16x32xf32> -> vector<16x32xf32>
    %1260 = arith.addf %1255, %1259 : vector<16x32xf32>
    %1261 = arith.truncf %1200 : vector<16x32xf32> to vector<16x32xbf16>
    %1262 = vector.extract_strided_slice %936 {offsets = [7, 0, 0], sizes = [1, 32, 32], strides = [1, 1, 1]} : vector<12x32x32xbf16> to vector<1x32x32xbf16>
    %1263 = vector.shape_cast %1262 : vector<1x32x32xbf16> to vector<32x32xbf16>
    %cst_335 = arith.constant dense<0.000000e+00> : vector<16x32xf32>
    %1264 = tpu.matmul %1261, %1263, %cst_335 {dimension_numbers = #tpu.dot_dimension_numbers<[1], [0], [0], [1], [0, 0, 1, 1], [], []>} : vector<16x32xbf16>, vector<32x32xbf16>, vector<16x32xf32> -> vector<16x32xf32>
    %1265 = arith.addf %1260, %1264 : vector<16x32xf32>
    %1266 = arith.truncf %1205 : vector<16x32xf32> to vector<16x32xbf16>
    %1267 = vector.extract_strided_slice %936 {offsets = [8, 0, 0], sizes = [1, 32, 32], strides = [1, 1, 1]} : vector<12x32x32xbf16> to vector<1x32x32xbf16>
    %1268 = vector.shape_cast %1267 : vector<1x32x32xbf16> to vector<32x32xbf16>
    %cst_336 = arith.constant dense<0.000000e+00> : vector<16x32xf32>
    %1269 = tpu.matmul %1266, %1268, %cst_336 {dimension_numbers = #tpu.dot_dimension_numbers<[1], [0], [0], [1], [0, 0, 1, 1], [], []>} : vector<16x32xbf16>, vector<32x32xbf16>, vector<16x32xf32> -> vector<16x32xf32>
    %1270 = arith.addf %1265, %1269 : vector<16x32xf32>
    %1271 = arith.truncf %1210 : vector<16x32xf32> to vector<16x32xbf16>
    %1272 = vector.extract_strided_slice %936 {offsets = [9, 0, 0], sizes = [1, 32, 32], strides = [1, 1, 1]} : vector<12x32x32xbf16> to vector<1x32x32xbf16>
    %1273 = vector.shape_cast %1272 : vector<1x32x32xbf16> to vector<32x32xbf16>
    %cst_337 = arith.constant dense<0.000000e+00> : vector<16x32xf32>
    %1274 = tpu.matmul %1271, %1273, %cst_337 {dimension_numbers = #tpu.dot_dimension_numbers<[1], [0], [0], [1], [0, 0, 1, 1], [], []>} : vector<16x32xbf16>, vector<32x32xbf16>, vector<16x32xf32> -> vector<16x32xf32>
    %1275 = arith.addf %1270, %1274 : vector<16x32xf32>
    %1276 = arith.truncf %1215 : vector<16x32xf32> to vector<16x32xbf16>
    %1277 = vector.extract_strided_slice %936 {offsets = [10, 0, 0], sizes = [1, 32, 32], strides = [1, 1, 1]} : vector<12x32x32xbf16> to vector<1x32x32xbf16>
    %1278 = vector.shape_cast %1277 : vector<1x32x32xbf16> to vector<32x32xbf16>
    %cst_338 = arith.constant dense<0.000000e+00> : vector<16x32xf32>
    %1279 = tpu.matmul %1276, %1278, %cst_338 {dimension_numbers = #tpu.dot_dimension_numbers<[1], [0], [0], [1], [0, 0, 1, 1], [], []>} : vector<16x32xbf16>, vector<32x32xbf16>, vector<16x32xf32> -> vector<16x32xf32>
    %1280 = arith.addf %1275, %1279 : vector<16x32xf32>
    %1281 = arith.truncf %1220 : vector<16x32xf32> to vector<16x32xbf16>
    %1282 = vector.extract_strided_slice %936 {offsets = [11, 0, 0], sizes = [1, 32, 32], strides = [1, 1, 1]} : vector<12x32x32xbf16> to vector<1x32x32xbf16>
    %1283 = vector.shape_cast %1282 : vector<1x32x32xbf16> to vector<32x32xbf16>
    %cst_339 = arith.constant dense<0.000000e+00> : vector<16x32xf32>
    %1284 = tpu.matmul %1281, %1283, %cst_339 {dimension_numbers = #tpu.dot_dimension_numbers<[1], [0], [0], [1], [0, 0, 1, 1], [], []>} : vector<16x32xbf16>, vector<32x32xbf16>, vector<16x32xf32> -> vector<16x32xf32>
    %1285 = arith.addf %1280, %1284 : vector<16x32xf32>
    %c3_340 = arith.constant 3 : index
    %c0_341 = arith.constant 0 : index
    %c0_342 = arith.constant 0 : index
    %c0_343 = arith.constant 0 : index
    %1286 = vector.load %arg7[%c3_340, %c0_341, %c0_342, %c0_343] : memref<4x12x32x32xbf16, #tpu.memory_space<vmem>>, vector<1x12x32x32xbf16>
    %1287 = vector.shape_cast %1286 : vector<1x12x32x32xbf16> to vector<12x32x32xbf16>
    %cst_344 = arith.constant -1.750000e+00 : f32
    %1288 = vector.broadcast %cst_344 : f32 to vector<16x32xf32>
    %1289 = arith.cmpf oge, %1285, %1288 : vector<16x32xf32>
    %1290 = arith.extui %1289 : vector<16x32xi1> to vector<16x32xi32>
    %1291 = arith.sitofp %1290 : vector<16x32xi32> to vector<16x32xf32>
    %cst_345 = arith.constant -1.500000e+00 : f32
    %1292 = vector.broadcast %cst_345 : f32 to vector<16x32xf32>
    %1293 = arith.cmpf oge, %1285, %1292 : vector<16x32xf32>
    %1294 = arith.extui %1293 : vector<16x32xi1> to vector<16x32xi32>
    %1295 = arith.sitofp %1294 : vector<16x32xi32> to vector<16x32xf32>
    %cst_346 = arith.constant -1.250000e+00 : f32
    %1296 = vector.broadcast %cst_346 : f32 to vector<16x32xf32>
    %1297 = arith.cmpf oge, %1285, %1296 : vector<16x32xf32>
    %1298 = arith.extui %1297 : vector<16x32xi1> to vector<16x32xi32>
    %1299 = arith.sitofp %1298 : vector<16x32xi32> to vector<16x32xf32>
    %cst_347 = arith.constant -1.000000e+00 : f32
    %1300 = vector.broadcast %cst_347 : f32 to vector<16x32xf32>
    %1301 = arith.cmpf oge, %1285, %1300 : vector<16x32xf32>
    %1302 = arith.extui %1301 : vector<16x32xi1> to vector<16x32xi32>
    %1303 = arith.sitofp %1302 : vector<16x32xi32> to vector<16x32xf32>
    %cst_348 = arith.constant -7.500000e-01 : f32
    %1304 = vector.broadcast %cst_348 : f32 to vector<16x32xf32>
    %1305 = arith.cmpf oge, %1285, %1304 : vector<16x32xf32>
    %1306 = arith.extui %1305 : vector<16x32xi1> to vector<16x32xi32>
    %1307 = arith.sitofp %1306 : vector<16x32xi32> to vector<16x32xf32>
    %cst_349 = arith.constant -5.000000e-01 : f32
    %1308 = vector.broadcast %cst_349 : f32 to vector<16x32xf32>
    %1309 = arith.cmpf oge, %1285, %1308 : vector<16x32xf32>
    %1310 = arith.extui %1309 : vector<16x32xi1> to vector<16x32xi32>
    %1311 = arith.sitofp %1310 : vector<16x32xi32> to vector<16x32xf32>
    %cst_350 = arith.constant -2.500000e-01 : f32
    %1312 = vector.broadcast %cst_350 : f32 to vector<16x32xf32>
    %1313 = arith.cmpf oge, %1285, %1312 : vector<16x32xf32>
    %1314 = arith.extui %1313 : vector<16x32xi1> to vector<16x32xi32>
    %1315 = arith.sitofp %1314 : vector<16x32xi32> to vector<16x32xf32>
    %cst_351 = arith.constant 0.000000e+00 : f32
    %1316 = vector.broadcast %cst_351 : f32 to vector<16x32xf32>
    %1317 = arith.cmpf oge, %1285, %1316 : vector<16x32xf32>
    %1318 = arith.extui %1317 : vector<16x32xi1> to vector<16x32xi32>
    %1319 = arith.sitofp %1318 : vector<16x32xi32> to vector<16x32xf32>
    %cst_352 = arith.constant 2.500000e-01 : f32
    %1320 = vector.broadcast %cst_352 : f32 to vector<16x32xf32>
    %1321 = arith.cmpf oge, %1285, %1320 : vector<16x32xf32>
    %1322 = arith.extui %1321 : vector<16x32xi1> to vector<16x32xi32>
    %1323 = arith.sitofp %1322 : vector<16x32xi32> to vector<16x32xf32>
    %cst_353 = arith.constant 5.000000e-01 : f32
    %1324 = vector.broadcast %cst_353 : f32 to vector<16x32xf32>
    %1325 = arith.cmpf oge, %1285, %1324 : vector<16x32xf32>
    %1326 = arith.extui %1325 : vector<16x32xi1> to vector<16x32xi32>
    %1327 = arith.sitofp %1326 : vector<16x32xi32> to vector<16x32xf32>
    %cst_354 = arith.constant 7.500000e-01 : f32
    %1328 = vector.broadcast %cst_354 : f32 to vector<16x32xf32>
    %1329 = arith.cmpf oge, %1285, %1328 : vector<16x32xf32>
    %1330 = arith.extui %1329 : vector<16x32xi1> to vector<16x32xi32>
    %1331 = arith.sitofp %1330 : vector<16x32xi32> to vector<16x32xf32>
    %cst_355 = arith.constant 1.000000e+00 : f32
    %1332 = vector.broadcast %cst_355 : f32 to vector<16x32xf32>
    %1333 = arith.cmpf oge, %1285, %1332 : vector<16x32xf32>
    %1334 = arith.extui %1333 : vector<16x32xi1> to vector<16x32xi32>
    %1335 = arith.sitofp %1334 : vector<16x32xi32> to vector<16x32xf32>
    %cst_356 = arith.constant 1.250000e+00 : f32
    %1336 = vector.broadcast %cst_356 : f32 to vector<16x32xf32>
    %1337 = arith.cmpf oge, %1285, %1336 : vector<16x32xf32>
    %1338 = arith.extui %1337 : vector<16x32xi1> to vector<16x32xi32>
    %1339 = arith.sitofp %1338 : vector<16x32xi32> to vector<16x32xf32>
    %cst_357 = arith.constant 1.500000e+00 : f32
    %1340 = vector.broadcast %cst_357 : f32 to vector<16x32xf32>
    %1341 = arith.cmpf oge, %1285, %1340 : vector<16x32xf32>
    %1342 = arith.extui %1341 : vector<16x32xi1> to vector<16x32xi32>
    %1343 = arith.sitofp %1342 : vector<16x32xi32> to vector<16x32xf32>
    %cst_358 = arith.constant 1.750000e+00 : f32
    %1344 = vector.broadcast %cst_358 : f32 to vector<16x32xf32>
    %1345 = arith.cmpf oge, %1285, %1344 : vector<16x32xf32>
    %1346 = arith.extui %1345 : vector<16x32xi1> to vector<16x32xi32>
    %1347 = arith.sitofp %1346 : vector<16x32xi32> to vector<16x32xf32>
    %1348 = arith.subf %1291, %1295 : vector<16x32xf32>
    %1349 = arith.subf %1295, %1299 : vector<16x32xf32>
    %1350 = arith.subf %1299, %1303 : vector<16x32xf32>
    %1351 = arith.subf %1303, %1307 : vector<16x32xf32>
    %1352 = arith.subf %1307, %1311 : vector<16x32xf32>
    %1353 = arith.subf %1311, %1315 : vector<16x32xf32>
    %1354 = arith.subf %1315, %1319 : vector<16x32xf32>
    %1355 = arith.subf %1319, %1323 : vector<16x32xf32>
    %1356 = arith.subf %1323, %1327 : vector<16x32xf32>
    %1357 = arith.subf %1327, %1331 : vector<16x32xf32>
    %1358 = arith.subf %1331, %1335 : vector<16x32xf32>
    %1359 = arith.subf %1335, %1339 : vector<16x32xf32>
    %1360 = arith.subf %1339, %1343 : vector<16x32xf32>
    %1361 = arith.subf %1343, %1347 : vector<16x32xf32>
    %cst_359 = arith.constant -1.750000e+00 : f32
    %1362 = vector.broadcast %cst_359 : f32 to vector<16x32xf32>
    %1363 = arith.subf %1285, %1362 : vector<16x32xf32>
    %cst_360 = arith.constant -1.500000e+00 : f32
    %1364 = vector.broadcast %cst_360 : f32 to vector<16x32xf32>
    %1365 = arith.subf %1285, %1364 : vector<16x32xf32>
    %cst_361 = arith.constant -1.250000e+00 : f32
    %1366 = vector.broadcast %cst_361 : f32 to vector<16x32xf32>
    %1367 = arith.subf %1285, %1366 : vector<16x32xf32>
    %cst_362 = arith.constant -1.000000e+00 : f32
    %1368 = vector.broadcast %cst_362 : f32 to vector<16x32xf32>
    %1369 = arith.subf %1285, %1368 : vector<16x32xf32>
    %cst_363 = arith.constant -7.500000e-01 : f32
    %1370 = vector.broadcast %cst_363 : f32 to vector<16x32xf32>
    %1371 = arith.subf %1285, %1370 : vector<16x32xf32>
    %cst_364 = arith.constant -5.000000e-01 : f32
    %1372 = vector.broadcast %cst_364 : f32 to vector<16x32xf32>
    %1373 = arith.subf %1285, %1372 : vector<16x32xf32>
    %cst_365 = arith.constant -2.500000e-01 : f32
    %1374 = vector.broadcast %cst_365 : f32 to vector<16x32xf32>
    %1375 = arith.subf %1285, %1374 : vector<16x32xf32>
    %cst_366 = arith.constant 0.000000e+00 : f32
    %1376 = vector.broadcast %cst_366 : f32 to vector<16x32xf32>
    %1377 = arith.subf %1285, %1376 : vector<16x32xf32>
    %cst_367 = arith.constant 2.500000e-01 : f32
    %1378 = vector.broadcast %cst_367 : f32 to vector<16x32xf32>
    %1379 = arith.subf %1285, %1378 : vector<16x32xf32>
    %cst_368 = arith.constant 5.000000e-01 : f32
    %1380 = vector.broadcast %cst_368 : f32 to vector<16x32xf32>
    %1381 = arith.subf %1285, %1380 : vector<16x32xf32>
    %cst_369 = arith.constant 7.500000e-01 : f32
    %1382 = vector.broadcast %cst_369 : f32 to vector<16x32xf32>
    %1383 = arith.subf %1285, %1382 : vector<16x32xf32>
    %cst_370 = arith.constant 1.000000e+00 : f32
    %1384 = vector.broadcast %cst_370 : f32 to vector<16x32xf32>
    %1385 = arith.subf %1285, %1384 : vector<16x32xf32>
    %cst_371 = arith.constant 1.250000e+00 : f32
    %1386 = vector.broadcast %cst_371 : f32 to vector<16x32xf32>
    %1387 = arith.subf %1285, %1386 : vector<16x32xf32>
    %cst_372 = arith.constant 1.500000e+00 : f32
    %1388 = vector.broadcast %cst_372 : f32 to vector<16x32xf32>
    %1389 = arith.subf %1285, %1388 : vector<16x32xf32>
    %cst_373 = arith.constant 1.750000e+00 : f32
    %1390 = vector.broadcast %cst_373 : f32 to vector<16x32xf32>
    %1391 = arith.subf %1285, %1390 : vector<16x32xf32>
    %1392 = arith.mulf %1363, %1348 : vector<16x32xf32>
    %1393 = arith.mulf %1367, %1349 : vector<16x32xf32>
    %1394 = arith.subf %1392, %1393 : vector<16x32xf32>
    %cst_374 = arith.constant 4.000000e+00 : f32
    %1395 = vector.broadcast %cst_374 : f32 to vector<16x32xf32>
    %1396 = arith.mulf %1394, %1395 : vector<16x32xf32>
    %1397 = arith.mulf %1365, %1349 : vector<16x32xf32>
    %1398 = arith.mulf %1369, %1350 : vector<16x32xf32>
    %1399 = arith.subf %1397, %1398 : vector<16x32xf32>
    %cst_375 = arith.constant 4.000000e+00 : f32
    %1400 = vector.broadcast %cst_375 : f32 to vector<16x32xf32>
    %1401 = arith.mulf %1399, %1400 : vector<16x32xf32>
    %1402 = arith.mulf %1367, %1350 : vector<16x32xf32>
    %1403 = arith.mulf %1371, %1351 : vector<16x32xf32>
    %1404 = arith.subf %1402, %1403 : vector<16x32xf32>
    %cst_376 = arith.constant 4.000000e+00 : f32
    %1405 = vector.broadcast %cst_376 : f32 to vector<16x32xf32>
    %1406 = arith.mulf %1404, %1405 : vector<16x32xf32>
    %1407 = arith.mulf %1369, %1351 : vector<16x32xf32>
    %1408 = arith.mulf %1373, %1352 : vector<16x32xf32>
    %1409 = arith.subf %1407, %1408 : vector<16x32xf32>
    %cst_377 = arith.constant 4.000000e+00 : f32
    %1410 = vector.broadcast %cst_377 : f32 to vector<16x32xf32>
    %1411 = arith.mulf %1409, %1410 : vector<16x32xf32>
    %1412 = arith.mulf %1371, %1352 : vector<16x32xf32>
    %1413 = arith.mulf %1375, %1353 : vector<16x32xf32>
    %1414 = arith.subf %1412, %1413 : vector<16x32xf32>
    %cst_378 = arith.constant 4.000000e+00 : f32
    %1415 = vector.broadcast %cst_378 : f32 to vector<16x32xf32>
    %1416 = arith.mulf %1414, %1415 : vector<16x32xf32>
    %1417 = arith.mulf %1373, %1353 : vector<16x32xf32>
    %1418 = arith.mulf %1377, %1354 : vector<16x32xf32>
    %1419 = arith.subf %1417, %1418 : vector<16x32xf32>
    %cst_379 = arith.constant 4.000000e+00 : f32
    %1420 = vector.broadcast %cst_379 : f32 to vector<16x32xf32>
    %1421 = arith.mulf %1419, %1420 : vector<16x32xf32>
    %1422 = arith.mulf %1375, %1354 : vector<16x32xf32>
    %1423 = arith.mulf %1379, %1355 : vector<16x32xf32>
    %1424 = arith.subf %1422, %1423 : vector<16x32xf32>
    %cst_380 = arith.constant 4.000000e+00 : f32
    %1425 = vector.broadcast %cst_380 : f32 to vector<16x32xf32>
    %1426 = arith.mulf %1424, %1425 : vector<16x32xf32>
    %1427 = arith.mulf %1377, %1355 : vector<16x32xf32>
    %1428 = arith.mulf %1381, %1356 : vector<16x32xf32>
    %1429 = arith.subf %1427, %1428 : vector<16x32xf32>
    %cst_381 = arith.constant 4.000000e+00 : f32
    %1430 = vector.broadcast %cst_381 : f32 to vector<16x32xf32>
    %1431 = arith.mulf %1429, %1430 : vector<16x32xf32>
    %1432 = arith.mulf %1379, %1356 : vector<16x32xf32>
    %1433 = arith.mulf %1383, %1357 : vector<16x32xf32>
    %1434 = arith.subf %1432, %1433 : vector<16x32xf32>
    %cst_382 = arith.constant 4.000000e+00 : f32
    %1435 = vector.broadcast %cst_382 : f32 to vector<16x32xf32>
    %1436 = arith.mulf %1434, %1435 : vector<16x32xf32>
    %1437 = arith.mulf %1381, %1357 : vector<16x32xf32>
    %1438 = arith.mulf %1385, %1358 : vector<16x32xf32>
    %1439 = arith.subf %1437, %1438 : vector<16x32xf32>
    %cst_383 = arith.constant 4.000000e+00 : f32
    %1440 = vector.broadcast %cst_383 : f32 to vector<16x32xf32>
    %1441 = arith.mulf %1439, %1440 : vector<16x32xf32>
    %1442 = arith.mulf %1383, %1358 : vector<16x32xf32>
    %1443 = arith.mulf %1387, %1359 : vector<16x32xf32>
    %1444 = arith.subf %1442, %1443 : vector<16x32xf32>
    %cst_384 = arith.constant 4.000000e+00 : f32
    %1445 = vector.broadcast %cst_384 : f32 to vector<16x32xf32>
    %1446 = arith.mulf %1444, %1445 : vector<16x32xf32>
    %1447 = arith.mulf %1385, %1359 : vector<16x32xf32>
    %1448 = arith.mulf %1389, %1360 : vector<16x32xf32>
    %1449 = arith.subf %1447, %1448 : vector<16x32xf32>
    %cst_385 = arith.constant 4.000000e+00 : f32
    %1450 = vector.broadcast %cst_385 : f32 to vector<16x32xf32>
    %1451 = arith.mulf %1449, %1450 : vector<16x32xf32>
    %1452 = arith.mulf %1387, %1360 : vector<16x32xf32>
    %1453 = arith.mulf %1391, %1361 : vector<16x32xf32>
    %1454 = arith.subf %1452, %1453 : vector<16x32xf32>
    %cst_386 = arith.constant 4.000000e+00 : f32
    %1455 = vector.broadcast %cst_386 : f32 to vector<16x32xf32>
    %1456 = arith.mulf %1454, %1455 : vector<16x32xf32>
    %1457 = arith.mulf %1363, %1396 : vector<16x32xf32>
    %1458 = arith.mulf %1369, %1401 : vector<16x32xf32>
    %1459 = arith.subf %1457, %1458 : vector<16x32xf32>
    %cst_387 = arith.constant 2.000000e+00 : f32
    %1460 = vector.broadcast %cst_387 : f32 to vector<16x32xf32>
    %1461 = arith.mulf %1459, %1460 : vector<16x32xf32>
    %1462 = arith.mulf %1365, %1401 : vector<16x32xf32>
    %1463 = arith.mulf %1371, %1406 : vector<16x32xf32>
    %1464 = arith.subf %1462, %1463 : vector<16x32xf32>
    %cst_388 = arith.constant 2.000000e+00 : f32
    %1465 = vector.broadcast %cst_388 : f32 to vector<16x32xf32>
    %1466 = arith.mulf %1464, %1465 : vector<16x32xf32>
    %1467 = arith.mulf %1367, %1406 : vector<16x32xf32>
    %1468 = arith.mulf %1373, %1411 : vector<16x32xf32>
    %1469 = arith.subf %1467, %1468 : vector<16x32xf32>
    %cst_389 = arith.constant 2.000000e+00 : f32
    %1470 = vector.broadcast %cst_389 : f32 to vector<16x32xf32>
    %1471 = arith.mulf %1469, %1470 : vector<16x32xf32>
    %1472 = arith.mulf %1369, %1411 : vector<16x32xf32>
    %1473 = arith.mulf %1375, %1416 : vector<16x32xf32>
    %1474 = arith.subf %1472, %1473 : vector<16x32xf32>
    %cst_390 = arith.constant 2.000000e+00 : f32
    %1475 = vector.broadcast %cst_390 : f32 to vector<16x32xf32>
    %1476 = arith.mulf %1474, %1475 : vector<16x32xf32>
    %1477 = arith.mulf %1371, %1416 : vector<16x32xf32>
    %1478 = arith.mulf %1377, %1421 : vector<16x32xf32>
    %1479 = arith.subf %1477, %1478 : vector<16x32xf32>
    %cst_391 = arith.constant 2.000000e+00 : f32
    %1480 = vector.broadcast %cst_391 : f32 to vector<16x32xf32>
    %1481 = arith.mulf %1479, %1480 : vector<16x32xf32>
    %1482 = arith.mulf %1373, %1421 : vector<16x32xf32>
    %1483 = arith.mulf %1379, %1426 : vector<16x32xf32>
    %1484 = arith.subf %1482, %1483 : vector<16x32xf32>
    %cst_392 = arith.constant 2.000000e+00 : f32
    %1485 = vector.broadcast %cst_392 : f32 to vector<16x32xf32>
    %1486 = arith.mulf %1484, %1485 : vector<16x32xf32>
    %1487 = arith.mulf %1375, %1426 : vector<16x32xf32>
    %1488 = arith.mulf %1381, %1431 : vector<16x32xf32>
    %1489 = arith.subf %1487, %1488 : vector<16x32xf32>
    %cst_393 = arith.constant 2.000000e+00 : f32
    %1490 = vector.broadcast %cst_393 : f32 to vector<16x32xf32>
    %1491 = arith.mulf %1489, %1490 : vector<16x32xf32>
    %1492 = arith.mulf %1377, %1431 : vector<16x32xf32>
    %1493 = arith.mulf %1383, %1436 : vector<16x32xf32>
    %1494 = arith.subf %1492, %1493 : vector<16x32xf32>
    %cst_394 = arith.constant 2.000000e+00 : f32
    %1495 = vector.broadcast %cst_394 : f32 to vector<16x32xf32>
    %1496 = arith.mulf %1494, %1495 : vector<16x32xf32>
    %1497 = arith.mulf %1379, %1436 : vector<16x32xf32>
    %1498 = arith.mulf %1385, %1441 : vector<16x32xf32>
    %1499 = arith.subf %1497, %1498 : vector<16x32xf32>
    %cst_395 = arith.constant 2.000000e+00 : f32
    %1500 = vector.broadcast %cst_395 : f32 to vector<16x32xf32>
    %1501 = arith.mulf %1499, %1500 : vector<16x32xf32>
    %1502 = arith.mulf %1381, %1441 : vector<16x32xf32>
    %1503 = arith.mulf %1387, %1446 : vector<16x32xf32>
    %1504 = arith.subf %1502, %1503 : vector<16x32xf32>
    %cst_396 = arith.constant 2.000000e+00 : f32
    %1505 = vector.broadcast %cst_396 : f32 to vector<16x32xf32>
    %1506 = arith.mulf %1504, %1505 : vector<16x32xf32>
    %1507 = arith.mulf %1383, %1446 : vector<16x32xf32>
    %1508 = arith.mulf %1389, %1451 : vector<16x32xf32>
    %1509 = arith.subf %1507, %1508 : vector<16x32xf32>
    %cst_397 = arith.constant 2.000000e+00 : f32
    %1510 = vector.broadcast %cst_397 : f32 to vector<16x32xf32>
    %1511 = arith.mulf %1509, %1510 : vector<16x32xf32>
    %1512 = arith.mulf %1385, %1451 : vector<16x32xf32>
    %1513 = arith.mulf %1391, %1456 : vector<16x32xf32>
    %1514 = arith.subf %1512, %1513 : vector<16x32xf32>
    %cst_398 = arith.constant 2.000000e+00 : f32
    %1515 = vector.broadcast %cst_398 : f32 to vector<16x32xf32>
    %1516 = arith.mulf %1514, %1515 : vector<16x32xf32>
    %1517 = arith.mulf %1363, %1461 : vector<16x32xf32>
    %1518 = arith.mulf %1371, %1466 : vector<16x32xf32>
    %1519 = arith.subf %1517, %1518 : vector<16x32xf32>
    %cst_399 = arith.constant 1.33333337 : f32
    %1520 = vector.broadcast %cst_399 : f32 to vector<16x32xf32>
    %1521 = arith.mulf %1519, %1520 : vector<16x32xf32>
    %1522 = arith.mulf %1365, %1466 : vector<16x32xf32>
    %1523 = arith.mulf %1373, %1471 : vector<16x32xf32>
    %1524 = arith.subf %1522, %1523 : vector<16x32xf32>
    %cst_400 = arith.constant 1.33333337 : f32
    %1525 = vector.broadcast %cst_400 : f32 to vector<16x32xf32>
    %1526 = arith.mulf %1524, %1525 : vector<16x32xf32>
    %1527 = arith.mulf %1367, %1471 : vector<16x32xf32>
    %1528 = arith.mulf %1375, %1476 : vector<16x32xf32>
    %1529 = arith.subf %1527, %1528 : vector<16x32xf32>
    %cst_401 = arith.constant 1.33333337 : f32
    %1530 = vector.broadcast %cst_401 : f32 to vector<16x32xf32>
    %1531 = arith.mulf %1529, %1530 : vector<16x32xf32>
    %1532 = arith.mulf %1369, %1476 : vector<16x32xf32>
    %1533 = arith.mulf %1377, %1481 : vector<16x32xf32>
    %1534 = arith.subf %1532, %1533 : vector<16x32xf32>
    %cst_402 = arith.constant 1.33333337 : f32
    %1535 = vector.broadcast %cst_402 : f32 to vector<16x32xf32>
    %1536 = arith.mulf %1534, %1535 : vector<16x32xf32>
    %1537 = arith.mulf %1371, %1481 : vector<16x32xf32>
    %1538 = arith.mulf %1379, %1486 : vector<16x32xf32>
    %1539 = arith.subf %1537, %1538 : vector<16x32xf32>
    %cst_403 = arith.constant 1.33333337 : f32
    %1540 = vector.broadcast %cst_403 : f32 to vector<16x32xf32>
    %1541 = arith.mulf %1539, %1540 : vector<16x32xf32>
    %1542 = arith.mulf %1373, %1486 : vector<16x32xf32>
    %1543 = arith.mulf %1381, %1491 : vector<16x32xf32>
    %1544 = arith.subf %1542, %1543 : vector<16x32xf32>
    %cst_404 = arith.constant 1.33333337 : f32
    %1545 = vector.broadcast %cst_404 : f32 to vector<16x32xf32>
    %1546 = arith.mulf %1544, %1545 : vector<16x32xf32>
    %1547 = arith.mulf %1375, %1491 : vector<16x32xf32>
    %1548 = arith.mulf %1383, %1496 : vector<16x32xf32>
    %1549 = arith.subf %1547, %1548 : vector<16x32xf32>
    %cst_405 = arith.constant 1.33333337 : f32
    %1550 = vector.broadcast %cst_405 : f32 to vector<16x32xf32>
    %1551 = arith.mulf %1549, %1550 : vector<16x32xf32>
    %1552 = arith.mulf %1377, %1496 : vector<16x32xf32>
    %1553 = arith.mulf %1385, %1501 : vector<16x32xf32>
    %1554 = arith.subf %1552, %1553 : vector<16x32xf32>
    %cst_406 = arith.constant 1.33333337 : f32
    %1555 = vector.broadcast %cst_406 : f32 to vector<16x32xf32>
    %1556 = arith.mulf %1554, %1555 : vector<16x32xf32>
    %1557 = arith.mulf %1379, %1501 : vector<16x32xf32>
    %1558 = arith.mulf %1387, %1506 : vector<16x32xf32>
    %1559 = arith.subf %1557, %1558 : vector<16x32xf32>
    %cst_407 = arith.constant 1.33333337 : f32
    %1560 = vector.broadcast %cst_407 : f32 to vector<16x32xf32>
    %1561 = arith.mulf %1559, %1560 : vector<16x32xf32>
    %1562 = arith.mulf %1381, %1506 : vector<16x32xf32>
    %1563 = arith.mulf %1389, %1511 : vector<16x32xf32>
    %1564 = arith.subf %1562, %1563 : vector<16x32xf32>
    %cst_408 = arith.constant 1.33333337 : f32
    %1565 = vector.broadcast %cst_408 : f32 to vector<16x32xf32>
    %1566 = arith.mulf %1564, %1565 : vector<16x32xf32>
    %1567 = arith.mulf %1383, %1511 : vector<16x32xf32>
    %1568 = arith.mulf %1391, %1516 : vector<16x32xf32>
    %1569 = arith.subf %1567, %1568 : vector<16x32xf32>
    %cst_409 = arith.constant 1.33333337 : f32
    %1570 = vector.broadcast %cst_409 : f32 to vector<16x32xf32>
    %1571 = arith.mulf %1569, %1570 : vector<16x32xf32>
    %1572 = arith.negf %1285 : vector<16x32xf32>
    %1573 = math.exp %1572 : vector<16x32xf32>
    %cst_410 = arith.constant 1.000000e+00 : f32
    %1574 = vector.broadcast %cst_410 : f32 to vector<16x32xf32>
    %1575 = arith.addf %1574, %1573 : vector<16x32xf32>
    %1576 = arith.divf %1574, %1575 : vector<16x32xf32>
    %1577 = arith.mulf %1285, %1576 : vector<16x32xf32>
    %1578 = arith.truncf %1577 : vector<16x32xf32> to vector<16x32xbf16>
    %1579 = vector.extract_strided_slice %1287 {offsets = [0, 0, 0], sizes = [1, 32, 32], strides = [1, 1, 1]} : vector<12x32x32xbf16> to vector<1x32x32xbf16>
    %1580 = vector.shape_cast %1579 : vector<1x32x32xbf16> to vector<32x32xbf16>
    %cst_411 = arith.constant dense<0.000000e+00> : vector<16x32xf32>
    %1581 = tpu.matmul %1578, %1580, %cst_411 {dimension_numbers = #tpu.dot_dimension_numbers<[1], [0], [0], [1], [0, 0, 1, 1], [], []>} : vector<16x32xbf16>, vector<32x32xbf16>, vector<16x32xf32> -> vector<16x32xf32>
    %1582 = arith.truncf %1521 : vector<16x32xf32> to vector<16x32xbf16>
    %1583 = vector.extract_strided_slice %1287 {offsets = [1, 0, 0], sizes = [1, 32, 32], strides = [1, 1, 1]} : vector<12x32x32xbf16> to vector<1x32x32xbf16>
    %1584 = vector.shape_cast %1583 : vector<1x32x32xbf16> to vector<32x32xbf16>
    %cst_412 = arith.constant dense<0.000000e+00> : vector<16x32xf32>
    %1585 = tpu.matmul %1582, %1584, %cst_412 {dimension_numbers = #tpu.dot_dimension_numbers<[1], [0], [0], [1], [0, 0, 1, 1], [], []>} : vector<16x32xbf16>, vector<32x32xbf16>, vector<16x32xf32> -> vector<16x32xf32>
    %1586 = arith.addf %1581, %1585 : vector<16x32xf32>
    %1587 = arith.truncf %1526 : vector<16x32xf32> to vector<16x32xbf16>
    %1588 = vector.extract_strided_slice %1287 {offsets = [2, 0, 0], sizes = [1, 32, 32], strides = [1, 1, 1]} : vector<12x32x32xbf16> to vector<1x32x32xbf16>
    %1589 = vector.shape_cast %1588 : vector<1x32x32xbf16> to vector<32x32xbf16>
    %cst_413 = arith.constant dense<0.000000e+00> : vector<16x32xf32>
    %1590 = tpu.matmul %1587, %1589, %cst_413 {dimension_numbers = #tpu.dot_dimension_numbers<[1], [0], [0], [1], [0, 0, 1, 1], [], []>} : vector<16x32xbf16>, vector<32x32xbf16>, vector<16x32xf32> -> vector<16x32xf32>
    %1591 = arith.addf %1586, %1590 : vector<16x32xf32>
    %1592 = arith.truncf %1531 : vector<16x32xf32> to vector<16x32xbf16>
    %1593 = vector.extract_strided_slice %1287 {offsets = [3, 0, 0], sizes = [1, 32, 32], strides = [1, 1, 1]} : vector<12x32x32xbf16> to vector<1x32x32xbf16>
    %1594 = vector.shape_cast %1593 : vector<1x32x32xbf16> to vector<32x32xbf16>
    %cst_414 = arith.constant dense<0.000000e+00> : vector<16x32xf32>
    %1595 = tpu.matmul %1592, %1594, %cst_414 {dimension_numbers = #tpu.dot_dimension_numbers<[1], [0], [0], [1], [0, 0, 1, 1], [], []>} : vector<16x32xbf16>, vector<32x32xbf16>, vector<16x32xf32> -> vector<16x32xf32>
    %1596 = arith.addf %1591, %1595 : vector<16x32xf32>
    %1597 = arith.truncf %1536 : vector<16x32xf32> to vector<16x32xbf16>
    %1598 = vector.extract_strided_slice %1287 {offsets = [4, 0, 0], sizes = [1, 32, 32], strides = [1, 1, 1]} : vector<12x32x32xbf16> to vector<1x32x32xbf16>
    %1599 = vector.shape_cast %1598 : vector<1x32x32xbf16> to vector<32x32xbf16>
    %cst_415 = arith.constant dense<0.000000e+00> : vector<16x32xf32>
    %1600 = tpu.matmul %1597, %1599, %cst_415 {dimension_numbers = #tpu.dot_dimension_numbers<[1], [0], [0], [1], [0, 0, 1, 1], [], []>} : vector<16x32xbf16>, vector<32x32xbf16>, vector<16x32xf32> -> vector<16x32xf32>
    %1601 = arith.addf %1596, %1600 : vector<16x32xf32>
    %1602 = arith.truncf %1541 : vector<16x32xf32> to vector<16x32xbf16>
    %1603 = vector.extract_strided_slice %1287 {offsets = [5, 0, 0], sizes = [1, 32, 32], strides = [1, 1, 1]} : vector<12x32x32xbf16> to vector<1x32x32xbf16>
    %1604 = vector.shape_cast %1603 : vector<1x32x32xbf16> to vector<32x32xbf16>
    %cst_416 = arith.constant dense<0.000000e+00> : vector<16x32xf32>
    %1605 = tpu.matmul %1602, %1604, %cst_416 {dimension_numbers = #tpu.dot_dimension_numbers<[1], [0], [0], [1], [0, 0, 1, 1], [], []>} : vector<16x32xbf16>, vector<32x32xbf16>, vector<16x32xf32> -> vector<16x32xf32>
    %1606 = arith.addf %1601, %1605 : vector<16x32xf32>
    %1607 = arith.truncf %1546 : vector<16x32xf32> to vector<16x32xbf16>
    %1608 = vector.extract_strided_slice %1287 {offsets = [6, 0, 0], sizes = [1, 32, 32], strides = [1, 1, 1]} : vector<12x32x32xbf16> to vector<1x32x32xbf16>
    %1609 = vector.shape_cast %1608 : vector<1x32x32xbf16> to vector<32x32xbf16>
    %cst_417 = arith.constant dense<0.000000e+00> : vector<16x32xf32>
    %1610 = tpu.matmul %1607, %1609, %cst_417 {dimension_numbers = #tpu.dot_dimension_numbers<[1], [0], [0], [1], [0, 0, 1, 1], [], []>} : vector<16x32xbf16>, vector<32x32xbf16>, vector<16x32xf32> -> vector<16x32xf32>
    %1611 = arith.addf %1606, %1610 : vector<16x32xf32>
    %1612 = arith.truncf %1551 : vector<16x32xf32> to vector<16x32xbf16>
    %1613 = vector.extract_strided_slice %1287 {offsets = [7, 0, 0], sizes = [1, 32, 32], strides = [1, 1, 1]} : vector<12x32x32xbf16> to vector<1x32x32xbf16>
    %1614 = vector.shape_cast %1613 : vector<1x32x32xbf16> to vector<32x32xbf16>
    %cst_418 = arith.constant dense<0.000000e+00> : vector<16x32xf32>
    %1615 = tpu.matmul %1612, %1614, %cst_418 {dimension_numbers = #tpu.dot_dimension_numbers<[1], [0], [0], [1], [0, 0, 1, 1], [], []>} : vector<16x32xbf16>, vector<32x32xbf16>, vector<16x32xf32> -> vector<16x32xf32>
    %1616 = arith.addf %1611, %1615 : vector<16x32xf32>
    %1617 = arith.truncf %1556 : vector<16x32xf32> to vector<16x32xbf16>
    %1618 = vector.extract_strided_slice %1287 {offsets = [8, 0, 0], sizes = [1, 32, 32], strides = [1, 1, 1]} : vector<12x32x32xbf16> to vector<1x32x32xbf16>
    %1619 = vector.shape_cast %1618 : vector<1x32x32xbf16> to vector<32x32xbf16>
    %cst_419 = arith.constant dense<0.000000e+00> : vector<16x32xf32>
    %1620 = tpu.matmul %1617, %1619, %cst_419 {dimension_numbers = #tpu.dot_dimension_numbers<[1], [0], [0], [1], [0, 0, 1, 1], [], []>} : vector<16x32xbf16>, vector<32x32xbf16>, vector<16x32xf32> -> vector<16x32xf32>
    %1621 = arith.addf %1616, %1620 : vector<16x32xf32>
    %1622 = arith.truncf %1561 : vector<16x32xf32> to vector<16x32xbf16>
    %1623 = vector.extract_strided_slice %1287 {offsets = [9, 0, 0], sizes = [1, 32, 32], strides = [1, 1, 1]} : vector<12x32x32xbf16> to vector<1x32x32xbf16>
    %1624 = vector.shape_cast %1623 : vector<1x32x32xbf16> to vector<32x32xbf16>
    %cst_420 = arith.constant dense<0.000000e+00> : vector<16x32xf32>
    %1625 = tpu.matmul %1622, %1624, %cst_420 {dimension_numbers = #tpu.dot_dimension_numbers<[1], [0], [0], [1], [0, 0, 1, 1], [], []>} : vector<16x32xbf16>, vector<32x32xbf16>, vector<16x32xf32> -> vector<16x32xf32>
    %1626 = arith.addf %1621, %1625 : vector<16x32xf32>
    %1627 = arith.truncf %1566 : vector<16x32xf32> to vector<16x32xbf16>
    %1628 = vector.extract_strided_slice %1287 {offsets = [10, 0, 0], sizes = [1, 32, 32], strides = [1, 1, 1]} : vector<12x32x32xbf16> to vector<1x32x32xbf16>
    %1629 = vector.shape_cast %1628 : vector<1x32x32xbf16> to vector<32x32xbf16>
    %cst_421 = arith.constant dense<0.000000e+00> : vector<16x32xf32>
    %1630 = tpu.matmul %1627, %1629, %cst_421 {dimension_numbers = #tpu.dot_dimension_numbers<[1], [0], [0], [1], [0, 0, 1, 1], [], []>} : vector<16x32xbf16>, vector<32x32xbf16>, vector<16x32xf32> -> vector<16x32xf32>
    %1631 = arith.addf %1626, %1630 : vector<16x32xf32>
    %1632 = arith.truncf %1571 : vector<16x32xf32> to vector<16x32xbf16>
    %1633 = vector.extract_strided_slice %1287 {offsets = [11, 0, 0], sizes = [1, 32, 32], strides = [1, 1, 1]} : vector<12x32x32xbf16> to vector<1x32x32xbf16>
    %1634 = vector.shape_cast %1633 : vector<1x32x32xbf16> to vector<32x32xbf16>
    %cst_422 = arith.constant dense<0.000000e+00> : vector<16x32xf32>
    %1635 = tpu.matmul %1632, %1634, %cst_422 {dimension_numbers = #tpu.dot_dimension_numbers<[1], [0], [0], [1], [0, 0, 1, 1], [], []>} : vector<16x32xbf16>, vector<32x32xbf16>, vector<16x32xf32> -> vector<16x32xf32>
    %1636 = arith.addf %1631, %1635 : vector<16x32xf32>
    %1637 = arith.addf %934, %1636 : vector<16x32xf32>
    %cst_423 = arith.constant dense<0.000000e+00> : vector<16xf32>
    %1638 = vector.multi_reduction <add>, %1637, %cst_423 [1] : vector<16x32xf32> to vector<16xf32>
    %1639 = vector.shape_cast %1638 : vector<16xf32> to vector<16x1xf32>
    %cst_424 = arith.constant 3.200000e+01 : f32
    %1640 = vector.broadcast %cst_424 : f32 to vector<16x1xf32>
    %1641 = arith.divf %1639, %1640 : vector<16x1xf32>
    %1642 = vector.broadcast %1641 : vector<16x1xf32> to vector<16x32xf32>
    %1643 = arith.subf %1637, %1642 : vector<16x32xf32>
    %1644 = arith.mulf %1643, %1643 : vector<16x32xf32>
    %cst_425 = arith.constant dense<0.000000e+00> : vector<16xf32>
    %1645 = vector.multi_reduction <add>, %1644, %cst_425 [1] : vector<16x32xf32> to vector<16xf32>
    %1646 = vector.shape_cast %1645 : vector<16xf32> to vector<16x1xf32>
    %cst_426 = arith.constant 3.200000e+01 : f32
    %1647 = vector.broadcast %cst_426 : f32 to vector<16x1xf32>
    %1648 = arith.divf %1646, %1647 : vector<16x1xf32>
    %cst_427 = arith.constant 9.99999974E-6 : f32
    %1649 = vector.broadcast %cst_427 : f32 to vector<16x1xf32>
    %1650 = arith.addf %1648, %1649 : vector<16x1xf32>
    %1651 = math.rsqrt %1650 : vector<16x1xf32>
    %1652 = vector.broadcast %1651 : vector<16x1xf32> to vector<16x32xf32>
    %1653 = arith.mulf %1643, %1652 : vector<16x32xf32>
    %1654 = vector.broadcast %850 : vector<1x32xf32> to vector<16x32xf32>
    %1655 = arith.mulf %1653, %1654 : vector<16x32xf32>
    %1656 = vector.broadcast %851 : vector<1x32xf32> to vector<16x32xf32>
    %1657 = arith.addf %1655, %1656 : vector<16x32xf32>
    %1658 = vector.shape_cast %1657 : vector<16x32xf32> to vector<2x8x32xf32>
    %1659 = vector.extract_strided_slice %1658 {offsets = [0, 0, 0], sizes = [2, 1, 32], strides = [1, 1, 1]} : vector<2x8x32xf32> to vector<2x1x32xf32>
    %1660 = vector.shape_cast %1659 : vector<2x1x32xf32> to vector<2x32xf32>
    %1661 = vector.extract_strided_slice %1658 {offsets = [0, 1, 0], sizes = [2, 1, 32], strides = [1, 1, 1]} : vector<2x8x32xf32> to vector<2x1x32xf32>
    %1662 = vector.shape_cast %1661 : vector<2x1x32xf32> to vector<2x32xf32>
    %1663 = vector.extract_strided_slice %1658 {offsets = [0, 2, 0], sizes = [2, 1, 32], strides = [1, 1, 1]} : vector<2x8x32xf32> to vector<2x1x32xf32>
    %1664 = vector.shape_cast %1663 : vector<2x1x32xf32> to vector<2x32xf32>
    %1665 = vector.extract_strided_slice %1658 {offsets = [0, 3, 0], sizes = [2, 1, 32], strides = [1, 1, 1]} : vector<2x8x32xf32> to vector<2x1x32xf32>
    %1666 = vector.shape_cast %1665 : vector<2x1x32xf32> to vector<2x32xf32>
    %1667 = vector.extract_strided_slice %1658 {offsets = [0, 4, 0], sizes = [2, 1, 32], strides = [1, 1, 1]} : vector<2x8x32xf32> to vector<2x1x32xf32>
    %1668 = vector.shape_cast %1667 : vector<2x1x32xf32> to vector<2x32xf32>
    %1669 = vector.extract_strided_slice %1658 {offsets = [0, 5, 0], sizes = [2, 1, 32], strides = [1, 1, 1]} : vector<2x8x32xf32> to vector<2x1x32xf32>
    %1670 = vector.shape_cast %1669 : vector<2x1x32xf32> to vector<2x32xf32>
    %1671 = vector.extract_strided_slice %1658 {offsets = [0, 6, 0], sizes = [2, 1, 32], strides = [1, 1, 1]} : vector<2x8x32xf32> to vector<2x1x32xf32>
    %1672 = vector.shape_cast %1671 : vector<2x1x32xf32> to vector<2x32xf32>
    %1673 = vector.extract_strided_slice %1658 {offsets = [0, 7, 0], sizes = [2, 1, 32], strides = [1, 1, 1]} : vector<2x8x32xf32> to vector<2x1x32xf32>
    %1674 = vector.shape_cast %1673 : vector<2x1x32xf32> to vector<2x32xf32>
    %1675 = tpu.concatenate %1660, %1662, %1664, %1666, %1668, %1670, %1672, %1674 in 1 : vector<2x32xf32>, vector<2x32xf32>, vector<2x32xf32>, vector<2x32xf32>, vector<2x32xf32>, vector<2x32xf32>, vector<2x32xf32>, vector<2x32xf32> -> vector<2x256xf32>
    %cst_428 = arith.constant -1.750000e+00 : f32
    %1676 = vector.broadcast %cst_428 : f32 to vector<2x256xf32>
    %1677 = arith.cmpf oge, %1675, %1676 : vector<2x256xf32>
    %1678 = arith.extui %1677 : vector<2x256xi1> to vector<2x256xi32>
    %1679 = arith.sitofp %1678 : vector<2x256xi32> to vector<2x256xf32>
    %cst_429 = arith.constant -1.500000e+00 : f32
    %1680 = vector.broadcast %cst_429 : f32 to vector<2x256xf32>
    %1681 = arith.cmpf oge, %1675, %1680 : vector<2x256xf32>
    %1682 = arith.extui %1681 : vector<2x256xi1> to vector<2x256xi32>
    %1683 = arith.sitofp %1682 : vector<2x256xi32> to vector<2x256xf32>
    %cst_430 = arith.constant -1.250000e+00 : f32
    %1684 = vector.broadcast %cst_430 : f32 to vector<2x256xf32>
    %1685 = arith.cmpf oge, %1675, %1684 : vector<2x256xf32>
    %1686 = arith.extui %1685 : vector<2x256xi1> to vector<2x256xi32>
    %1687 = arith.sitofp %1686 : vector<2x256xi32> to vector<2x256xf32>
    %cst_431 = arith.constant -1.000000e+00 : f32
    %1688 = vector.broadcast %cst_431 : f32 to vector<2x256xf32>
    %1689 = arith.cmpf oge, %1675, %1688 : vector<2x256xf32>
    %1690 = arith.extui %1689 : vector<2x256xi1> to vector<2x256xi32>
    %1691 = arith.sitofp %1690 : vector<2x256xi32> to vector<2x256xf32>
    %cst_432 = arith.constant -7.500000e-01 : f32
    %1692 = vector.broadcast %cst_432 : f32 to vector<2x256xf32>
    %1693 = arith.cmpf oge, %1675, %1692 : vector<2x256xf32>
    %1694 = arith.extui %1693 : vector<2x256xi1> to vector<2x256xi32>
    %1695 = arith.sitofp %1694 : vector<2x256xi32> to vector<2x256xf32>
    %cst_433 = arith.constant -5.000000e-01 : f32
    %1696 = vector.broadcast %cst_433 : f32 to vector<2x256xf32>
    %1697 = arith.cmpf oge, %1675, %1696 : vector<2x256xf32>
    %1698 = arith.extui %1697 : vector<2x256xi1> to vector<2x256xi32>
    %1699 = arith.sitofp %1698 : vector<2x256xi32> to vector<2x256xf32>
    %cst_434 = arith.constant -2.500000e-01 : f32
    %1700 = vector.broadcast %cst_434 : f32 to vector<2x256xf32>
    %1701 = arith.cmpf oge, %1675, %1700 : vector<2x256xf32>
    %1702 = arith.extui %1701 : vector<2x256xi1> to vector<2x256xi32>
    %1703 = arith.sitofp %1702 : vector<2x256xi32> to vector<2x256xf32>
    %cst_435 = arith.constant 0.000000e+00 : f32
    %1704 = vector.broadcast %cst_435 : f32 to vector<2x256xf32>
    %1705 = arith.cmpf oge, %1675, %1704 : vector<2x256xf32>
    %1706 = arith.extui %1705 : vector<2x256xi1> to vector<2x256xi32>
    %1707 = arith.sitofp %1706 : vector<2x256xi32> to vector<2x256xf32>
    %cst_436 = arith.constant 2.500000e-01 : f32
    %1708 = vector.broadcast %cst_436 : f32 to vector<2x256xf32>
    %1709 = arith.cmpf oge, %1675, %1708 : vector<2x256xf32>
    %1710 = arith.extui %1709 : vector<2x256xi1> to vector<2x256xi32>
    %1711 = arith.sitofp %1710 : vector<2x256xi32> to vector<2x256xf32>
    %cst_437 = arith.constant 5.000000e-01 : f32
    %1712 = vector.broadcast %cst_437 : f32 to vector<2x256xf32>
    %1713 = arith.cmpf oge, %1675, %1712 : vector<2x256xf32>
    %1714 = arith.extui %1713 : vector<2x256xi1> to vector<2x256xi32>
    %1715 = arith.sitofp %1714 : vector<2x256xi32> to vector<2x256xf32>
    %cst_438 = arith.constant 7.500000e-01 : f32
    %1716 = vector.broadcast %cst_438 : f32 to vector<2x256xf32>
    %1717 = arith.cmpf oge, %1675, %1716 : vector<2x256xf32>
    %1718 = arith.extui %1717 : vector<2x256xi1> to vector<2x256xi32>
    %1719 = arith.sitofp %1718 : vector<2x256xi32> to vector<2x256xf32>
    %cst_439 = arith.constant 1.000000e+00 : f32
    %1720 = vector.broadcast %cst_439 : f32 to vector<2x256xf32>
    %1721 = arith.cmpf oge, %1675, %1720 : vector<2x256xf32>
    %1722 = arith.extui %1721 : vector<2x256xi1> to vector<2x256xi32>
    %1723 = arith.sitofp %1722 : vector<2x256xi32> to vector<2x256xf32>
    %cst_440 = arith.constant 1.250000e+00 : f32
    %1724 = vector.broadcast %cst_440 : f32 to vector<2x256xf32>
    %1725 = arith.cmpf oge, %1675, %1724 : vector<2x256xf32>
    %1726 = arith.extui %1725 : vector<2x256xi1> to vector<2x256xi32>
    %1727 = arith.sitofp %1726 : vector<2x256xi32> to vector<2x256xf32>
    %cst_441 = arith.constant 1.500000e+00 : f32
    %1728 = vector.broadcast %cst_441 : f32 to vector<2x256xf32>
    %1729 = arith.cmpf oge, %1675, %1728 : vector<2x256xf32>
    %1730 = arith.extui %1729 : vector<2x256xi1> to vector<2x256xi32>
    %1731 = arith.sitofp %1730 : vector<2x256xi32> to vector<2x256xf32>
    %cst_442 = arith.constant 1.750000e+00 : f32
    %1732 = vector.broadcast %cst_442 : f32 to vector<2x256xf32>
    %1733 = arith.cmpf oge, %1675, %1732 : vector<2x256xf32>
    %1734 = arith.extui %1733 : vector<2x256xi1> to vector<2x256xi32>
    %1735 = arith.sitofp %1734 : vector<2x256xi32> to vector<2x256xf32>
    %1736 = arith.subf %1679, %1683 : vector<2x256xf32>
    %1737 = arith.subf %1683, %1687 : vector<2x256xf32>
    %1738 = arith.subf %1687, %1691 : vector<2x256xf32>
    %1739 = arith.subf %1691, %1695 : vector<2x256xf32>
    %1740 = arith.subf %1695, %1699 : vector<2x256xf32>
    %1741 = arith.subf %1699, %1703 : vector<2x256xf32>
    %1742 = arith.subf %1703, %1707 : vector<2x256xf32>
    %1743 = arith.subf %1707, %1711 : vector<2x256xf32>
    %1744 = arith.subf %1711, %1715 : vector<2x256xf32>
    %1745 = arith.subf %1715, %1719 : vector<2x256xf32>
    %1746 = arith.subf %1719, %1723 : vector<2x256xf32>
    %1747 = arith.subf %1723, %1727 : vector<2x256xf32>
    %1748 = arith.subf %1727, %1731 : vector<2x256xf32>
    %1749 = arith.subf %1731, %1735 : vector<2x256xf32>
    %cst_443 = arith.constant -1.750000e+00 : f32
    %1750 = vector.broadcast %cst_443 : f32 to vector<2x256xf32>
    %1751 = arith.subf %1675, %1750 : vector<2x256xf32>
    %cst_444 = arith.constant -1.500000e+00 : f32
    %1752 = vector.broadcast %cst_444 : f32 to vector<2x256xf32>
    %1753 = arith.subf %1675, %1752 : vector<2x256xf32>
    %cst_445 = arith.constant -1.250000e+00 : f32
    %1754 = vector.broadcast %cst_445 : f32 to vector<2x256xf32>
    %1755 = arith.subf %1675, %1754 : vector<2x256xf32>
    %cst_446 = arith.constant -1.000000e+00 : f32
    %1756 = vector.broadcast %cst_446 : f32 to vector<2x256xf32>
    %1757 = arith.subf %1675, %1756 : vector<2x256xf32>
    %cst_447 = arith.constant -7.500000e-01 : f32
    %1758 = vector.broadcast %cst_447 : f32 to vector<2x256xf32>
    %1759 = arith.subf %1675, %1758 : vector<2x256xf32>
    %cst_448 = arith.constant -5.000000e-01 : f32
    %1760 = vector.broadcast %cst_448 : f32 to vector<2x256xf32>
    %1761 = arith.subf %1675, %1760 : vector<2x256xf32>
    %cst_449 = arith.constant -2.500000e-01 : f32
    %1762 = vector.broadcast %cst_449 : f32 to vector<2x256xf32>
    %1763 = arith.subf %1675, %1762 : vector<2x256xf32>
    %cst_450 = arith.constant 0.000000e+00 : f32
    %1764 = vector.broadcast %cst_450 : f32 to vector<2x256xf32>
    %1765 = arith.subf %1675, %1764 : vector<2x256xf32>
    %cst_451 = arith.constant 2.500000e-01 : f32
    %1766 = vector.broadcast %cst_451 : f32 to vector<2x256xf32>
    %1767 = arith.subf %1675, %1766 : vector<2x256xf32>
    %cst_452 = arith.constant 5.000000e-01 : f32
    %1768 = vector.broadcast %cst_452 : f32 to vector<2x256xf32>
    %1769 = arith.subf %1675, %1768 : vector<2x256xf32>
    %cst_453 = arith.constant 7.500000e-01 : f32
    %1770 = vector.broadcast %cst_453 : f32 to vector<2x256xf32>
    %1771 = arith.subf %1675, %1770 : vector<2x256xf32>
    %cst_454 = arith.constant 1.000000e+00 : f32
    %1772 = vector.broadcast %cst_454 : f32 to vector<2x256xf32>
    %1773 = arith.subf %1675, %1772 : vector<2x256xf32>
    %cst_455 = arith.constant 1.250000e+00 : f32
    %1774 = vector.broadcast %cst_455 : f32 to vector<2x256xf32>
    %1775 = arith.subf %1675, %1774 : vector<2x256xf32>
    %cst_456 = arith.constant 1.500000e+00 : f32
    %1776 = vector.broadcast %cst_456 : f32 to vector<2x256xf32>
    %1777 = arith.subf %1675, %1776 : vector<2x256xf32>
    %cst_457 = arith.constant 1.750000e+00 : f32
    %1778 = vector.broadcast %cst_457 : f32 to vector<2x256xf32>
    %1779 = arith.subf %1675, %1778 : vector<2x256xf32>
    %1780 = arith.mulf %1751, %1736 : vector<2x256xf32>
    %1781 = arith.mulf %1755, %1737 : vector<2x256xf32>
    %1782 = arith.subf %1780, %1781 : vector<2x256xf32>
    %cst_458 = arith.constant 4.000000e+00 : f32
    %1783 = vector.broadcast %cst_458 : f32 to vector<2x256xf32>
    %1784 = arith.mulf %1782, %1783 : vector<2x256xf32>
    %1785 = arith.mulf %1753, %1737 : vector<2x256xf32>
    %1786 = arith.mulf %1757, %1738 : vector<2x256xf32>
    %1787 = arith.subf %1785, %1786 : vector<2x256xf32>
    %cst_459 = arith.constant 4.000000e+00 : f32
    %1788 = vector.broadcast %cst_459 : f32 to vector<2x256xf32>
    %1789 = arith.mulf %1787, %1788 : vector<2x256xf32>
    %1790 = arith.mulf %1755, %1738 : vector<2x256xf32>
    %1791 = arith.mulf %1759, %1739 : vector<2x256xf32>
    %1792 = arith.subf %1790, %1791 : vector<2x256xf32>
    %cst_460 = arith.constant 4.000000e+00 : f32
    %1793 = vector.broadcast %cst_460 : f32 to vector<2x256xf32>
    %1794 = arith.mulf %1792, %1793 : vector<2x256xf32>
    %1795 = arith.mulf %1757, %1739 : vector<2x256xf32>
    %1796 = arith.mulf %1761, %1740 : vector<2x256xf32>
    %1797 = arith.subf %1795, %1796 : vector<2x256xf32>
    %cst_461 = arith.constant 4.000000e+00 : f32
    %1798 = vector.broadcast %cst_461 : f32 to vector<2x256xf32>
    %1799 = arith.mulf %1797, %1798 : vector<2x256xf32>
    %1800 = arith.mulf %1759, %1740 : vector<2x256xf32>
    %1801 = arith.mulf %1763, %1741 : vector<2x256xf32>
    %1802 = arith.subf %1800, %1801 : vector<2x256xf32>
    %cst_462 = arith.constant 4.000000e+00 : f32
    %1803 = vector.broadcast %cst_462 : f32 to vector<2x256xf32>
    %1804 = arith.mulf %1802, %1803 : vector<2x256xf32>
    %1805 = arith.mulf %1761, %1741 : vector<2x256xf32>
    %1806 = arith.mulf %1765, %1742 : vector<2x256xf32>
    %1807 = arith.subf %1805, %1806 : vector<2x256xf32>
    %cst_463 = arith.constant 4.000000e+00 : f32
    %1808 = vector.broadcast %cst_463 : f32 to vector<2x256xf32>
    %1809 = arith.mulf %1807, %1808 : vector<2x256xf32>
    %1810 = arith.mulf %1763, %1742 : vector<2x256xf32>
    %1811 = arith.mulf %1767, %1743 : vector<2x256xf32>
    %1812 = arith.subf %1810, %1811 : vector<2x256xf32>
    %cst_464 = arith.constant 4.000000e+00 : f32
    %1813 = vector.broadcast %cst_464 : f32 to vector<2x256xf32>
    %1814 = arith.mulf %1812, %1813 : vector<2x256xf32>
    %1815 = arith.mulf %1765, %1743 : vector<2x256xf32>
    %1816 = arith.mulf %1769, %1744 : vector<2x256xf32>
    %1817 = arith.subf %1815, %1816 : vector<2x256xf32>
    %cst_465 = arith.constant 4.000000e+00 : f32
    %1818 = vector.broadcast %cst_465 : f32 to vector<2x256xf32>
    %1819 = arith.mulf %1817, %1818 : vector<2x256xf32>
    %1820 = arith.mulf %1767, %1744 : vector<2x256xf32>
    %1821 = arith.mulf %1771, %1745 : vector<2x256xf32>
    %1822 = arith.subf %1820, %1821 : vector<2x256xf32>
    %cst_466 = arith.constant 4.000000e+00 : f32
    %1823 = vector.broadcast %cst_466 : f32 to vector<2x256xf32>
    %1824 = arith.mulf %1822, %1823 : vector<2x256xf32>
    %1825 = arith.mulf %1769, %1745 : vector<2x256xf32>
    %1826 = arith.mulf %1773, %1746 : vector<2x256xf32>
    %1827 = arith.subf %1825, %1826 : vector<2x256xf32>
    %cst_467 = arith.constant 4.000000e+00 : f32
    %1828 = vector.broadcast %cst_467 : f32 to vector<2x256xf32>
    %1829 = arith.mulf %1827, %1828 : vector<2x256xf32>
    %1830 = arith.mulf %1771, %1746 : vector<2x256xf32>
    %1831 = arith.mulf %1775, %1747 : vector<2x256xf32>
    %1832 = arith.subf %1830, %1831 : vector<2x256xf32>
    %cst_468 = arith.constant 4.000000e+00 : f32
    %1833 = vector.broadcast %cst_468 : f32 to vector<2x256xf32>
    %1834 = arith.mulf %1832, %1833 : vector<2x256xf32>
    %1835 = arith.mulf %1773, %1747 : vector<2x256xf32>
    %1836 = arith.mulf %1777, %1748 : vector<2x256xf32>
    %1837 = arith.subf %1835, %1836 : vector<2x256xf32>
    %cst_469 = arith.constant 4.000000e+00 : f32
    %1838 = vector.broadcast %cst_469 : f32 to vector<2x256xf32>
    %1839 = arith.mulf %1837, %1838 : vector<2x256xf32>
    %1840 = arith.mulf %1775, %1748 : vector<2x256xf32>
    %1841 = arith.mulf %1779, %1749 : vector<2x256xf32>
    %1842 = arith.subf %1840, %1841 : vector<2x256xf32>
    %cst_470 = arith.constant 4.000000e+00 : f32
    %1843 = vector.broadcast %cst_470 : f32 to vector<2x256xf32>
    %1844 = arith.mulf %1842, %1843 : vector<2x256xf32>
    %1845 = arith.mulf %1751, %1784 : vector<2x256xf32>
    %1846 = arith.mulf %1757, %1789 : vector<2x256xf32>
    %1847 = arith.subf %1845, %1846 : vector<2x256xf32>
    %cst_471 = arith.constant 2.000000e+00 : f32
    %1848 = vector.broadcast %cst_471 : f32 to vector<2x256xf32>
    %1849 = arith.mulf %1847, %1848 : vector<2x256xf32>
    %1850 = arith.mulf %1753, %1789 : vector<2x256xf32>
    %1851 = arith.mulf %1759, %1794 : vector<2x256xf32>
    %1852 = arith.subf %1850, %1851 : vector<2x256xf32>
    %cst_472 = arith.constant 2.000000e+00 : f32
    %1853 = vector.broadcast %cst_472 : f32 to vector<2x256xf32>
    %1854 = arith.mulf %1852, %1853 : vector<2x256xf32>
    %1855 = arith.mulf %1755, %1794 : vector<2x256xf32>
    %1856 = arith.mulf %1761, %1799 : vector<2x256xf32>
    %1857 = arith.subf %1855, %1856 : vector<2x256xf32>
    %cst_473 = arith.constant 2.000000e+00 : f32
    %1858 = vector.broadcast %cst_473 : f32 to vector<2x256xf32>
    %1859 = arith.mulf %1857, %1858 : vector<2x256xf32>
    %1860 = arith.mulf %1757, %1799 : vector<2x256xf32>
    %1861 = arith.mulf %1763, %1804 : vector<2x256xf32>
    %1862 = arith.subf %1860, %1861 : vector<2x256xf32>
    %cst_474 = arith.constant 2.000000e+00 : f32
    %1863 = vector.broadcast %cst_474 : f32 to vector<2x256xf32>
    %1864 = arith.mulf %1862, %1863 : vector<2x256xf32>
    %1865 = arith.mulf %1759, %1804 : vector<2x256xf32>
    %1866 = arith.mulf %1765, %1809 : vector<2x256xf32>
    %1867 = arith.subf %1865, %1866 : vector<2x256xf32>
    %cst_475 = arith.constant 2.000000e+00 : f32
    %1868 = vector.broadcast %cst_475 : f32 to vector<2x256xf32>
    %1869 = arith.mulf %1867, %1868 : vector<2x256xf32>
    %1870 = arith.mulf %1761, %1809 : vector<2x256xf32>
    %1871 = arith.mulf %1767, %1814 : vector<2x256xf32>
    %1872 = arith.subf %1870, %1871 : vector<2x256xf32>
    %cst_476 = arith.constant 2.000000e+00 : f32
    %1873 = vector.broadcast %cst_476 : f32 to vector<2x256xf32>
    %1874 = arith.mulf %1872, %1873 : vector<2x256xf32>
    %1875 = arith.mulf %1763, %1814 : vector<2x256xf32>
    %1876 = arith.mulf %1769, %1819 : vector<2x256xf32>
    %1877 = arith.subf %1875, %1876 : vector<2x256xf32>
    %cst_477 = arith.constant 2.000000e+00 : f32
    %1878 = vector.broadcast %cst_477 : f32 to vector<2x256xf32>
    %1879 = arith.mulf %1877, %1878 : vector<2x256xf32>
    %1880 = arith.mulf %1765, %1819 : vector<2x256xf32>
    %1881 = arith.mulf %1771, %1824 : vector<2x256xf32>
    %1882 = arith.subf %1880, %1881 : vector<2x256xf32>
    %cst_478 = arith.constant 2.000000e+00 : f32
    %1883 = vector.broadcast %cst_478 : f32 to vector<2x256xf32>
    %1884 = arith.mulf %1882, %1883 : vector<2x256xf32>
    %1885 = arith.mulf %1767, %1824 : vector<2x256xf32>
    %1886 = arith.mulf %1773, %1829 : vector<2x256xf32>
    %1887 = arith.subf %1885, %1886 : vector<2x256xf32>
    %cst_479 = arith.constant 2.000000e+00 : f32
    %1888 = vector.broadcast %cst_479 : f32 to vector<2x256xf32>
    %1889 = arith.mulf %1887, %1888 : vector<2x256xf32>
    %1890 = arith.mulf %1769, %1829 : vector<2x256xf32>
    %1891 = arith.mulf %1775, %1834 : vector<2x256xf32>
    %1892 = arith.subf %1890, %1891 : vector<2x256xf32>
    %cst_480 = arith.constant 2.000000e+00 : f32
    %1893 = vector.broadcast %cst_480 : f32 to vector<2x256xf32>
    %1894 = arith.mulf %1892, %1893 : vector<2x256xf32>
    %1895 = arith.mulf %1771, %1834 : vector<2x256xf32>
    %1896 = arith.mulf %1777, %1839 : vector<2x256xf32>
    %1897 = arith.subf %1895, %1896 : vector<2x256xf32>
    %cst_481 = arith.constant 2.000000e+00 : f32
    %1898 = vector.broadcast %cst_481 : f32 to vector<2x256xf32>
    %1899 = arith.mulf %1897, %1898 : vector<2x256xf32>
    %1900 = arith.mulf %1773, %1839 : vector<2x256xf32>
    %1901 = arith.mulf %1779, %1844 : vector<2x256xf32>
    %1902 = arith.subf %1900, %1901 : vector<2x256xf32>
    %cst_482 = arith.constant 2.000000e+00 : f32
    %1903 = vector.broadcast %cst_482 : f32 to vector<2x256xf32>
    %1904 = arith.mulf %1902, %1903 : vector<2x256xf32>
    %1905 = arith.mulf %1751, %1849 : vector<2x256xf32>
    %1906 = arith.mulf %1759, %1854 : vector<2x256xf32>
    %1907 = arith.subf %1905, %1906 : vector<2x256xf32>
    %cst_483 = arith.constant 1.33333337 : f32
    %1908 = vector.broadcast %cst_483 : f32 to vector<2x256xf32>
    %1909 = arith.mulf %1907, %1908 : vector<2x256xf32>
    %1910 = arith.mulf %1753, %1854 : vector<2x256xf32>
    %1911 = arith.mulf %1761, %1859 : vector<2x256xf32>
    %1912 = arith.subf %1910, %1911 : vector<2x256xf32>
    %cst_484 = arith.constant 1.33333337 : f32
    %1913 = vector.broadcast %cst_484 : f32 to vector<2x256xf32>
    %1914 = arith.mulf %1912, %1913 : vector<2x256xf32>
    %1915 = arith.mulf %1755, %1859 : vector<2x256xf32>
    %1916 = arith.mulf %1763, %1864 : vector<2x256xf32>
    %1917 = arith.subf %1915, %1916 : vector<2x256xf32>
    %cst_485 = arith.constant 1.33333337 : f32
    %1918 = vector.broadcast %cst_485 : f32 to vector<2x256xf32>
    %1919 = arith.mulf %1917, %1918 : vector<2x256xf32>
    %1920 = arith.mulf %1757, %1864 : vector<2x256xf32>
    %1921 = arith.mulf %1765, %1869 : vector<2x256xf32>
    %1922 = arith.subf %1920, %1921 : vector<2x256xf32>
    %cst_486 = arith.constant 1.33333337 : f32
    %1923 = vector.broadcast %cst_486 : f32 to vector<2x256xf32>
    %1924 = arith.mulf %1922, %1923 : vector<2x256xf32>
    %1925 = arith.mulf %1759, %1869 : vector<2x256xf32>
    %1926 = arith.mulf %1767, %1874 : vector<2x256xf32>
    %1927 = arith.subf %1925, %1926 : vector<2x256xf32>
    %cst_487 = arith.constant 1.33333337 : f32
    %1928 = vector.broadcast %cst_487 : f32 to vector<2x256xf32>
    %1929 = arith.mulf %1927, %1928 : vector<2x256xf32>
    %1930 = arith.mulf %1761, %1874 : vector<2x256xf32>
    %1931 = arith.mulf %1769, %1879 : vector<2x256xf32>
    %1932 = arith.subf %1930, %1931 : vector<2x256xf32>
    %cst_488 = arith.constant 1.33333337 : f32
    %1933 = vector.broadcast %cst_488 : f32 to vector<2x256xf32>
    %1934 = arith.mulf %1932, %1933 : vector<2x256xf32>
    %1935 = arith.mulf %1763, %1879 : vector<2x256xf32>
    %1936 = arith.mulf %1771, %1884 : vector<2x256xf32>
    %1937 = arith.subf %1935, %1936 : vector<2x256xf32>
    %cst_489 = arith.constant 1.33333337 : f32
    %1938 = vector.broadcast %cst_489 : f32 to vector<2x256xf32>
    %1939 = arith.mulf %1937, %1938 : vector<2x256xf32>
    %1940 = arith.mulf %1765, %1884 : vector<2x256xf32>
    %1941 = arith.mulf %1773, %1889 : vector<2x256xf32>
    %1942 = arith.subf %1940, %1941 : vector<2x256xf32>
    %cst_490 = arith.constant 1.33333337 : f32
    %1943 = vector.broadcast %cst_490 : f32 to vector<2x256xf32>
    %1944 = arith.mulf %1942, %1943 : vector<2x256xf32>
    %1945 = arith.mulf %1767, %1889 : vector<2x256xf32>
    %1946 = arith.mulf %1775, %1894 : vector<2x256xf32>
    %1947 = arith.subf %1945, %1946 : vector<2x256xf32>
    %cst_491 = arith.constant 1.33333337 : f32
    %1948 = vector.broadcast %cst_491 : f32 to vector<2x256xf32>
    %1949 = arith.mulf %1947, %1948 : vector<2x256xf32>
    %1950 = arith.mulf %1769, %1894 : vector<2x256xf32>
    %1951 = arith.mulf %1777, %1899 : vector<2x256xf32>
    %1952 = arith.subf %1950, %1951 : vector<2x256xf32>
    %cst_492 = arith.constant 1.33333337 : f32
    %1953 = vector.broadcast %cst_492 : f32 to vector<2x256xf32>
    %1954 = arith.mulf %1952, %1953 : vector<2x256xf32>
    %1955 = arith.mulf %1771, %1899 : vector<2x256xf32>
    %1956 = arith.mulf %1779, %1904 : vector<2x256xf32>
    %1957 = arith.subf %1955, %1956 : vector<2x256xf32>
    %cst_493 = arith.constant 1.33333337 : f32
    %1958 = vector.broadcast %cst_493 : f32 to vector<2x256xf32>
    %1959 = arith.mulf %1957, %1958 : vector<2x256xf32>
    %1960 = arith.negf %1675 : vector<2x256xf32>
    %1961 = math.exp %1960 : vector<2x256xf32>
    %cst_494 = arith.constant 1.000000e+00 : f32
    %1962 = vector.broadcast %cst_494 : f32 to vector<2x256xf32>
    %1963 = arith.addf %1962, %1961 : vector<2x256xf32>
    %1964 = arith.divf %1962, %1963 : vector<2x256xf32>
    %1965 = arith.mulf %1675, %1964 : vector<2x256xf32>
    %1966 = arith.truncf %1965 : vector<2x256xf32> to vector<2x256xbf16>
    %c0_495 = arith.constant 0 : index
    %c0_496 = arith.constant 0 : index
    %c0_497 = arith.constant 0 : index
    %1967 = vector.load %arg8[%c0_495, %c0_496, %c0_497] : memref<12x256x32xbf16, #tpu.memory_space<vmem>>, vector<1x256x32xbf16>
    %1968 = vector.shape_cast %1967 : vector<1x256x32xbf16> to vector<256x32xbf16>
    %cst_498 = arith.constant dense<0.000000e+00> : vector<2x32xf32>
    %1969 = tpu.matmul %1966, %1968, %cst_498 {dimension_numbers = #tpu.dot_dimension_numbers<[1], [0], [0], [1], [0, 0, 1, 1], [], []>} : vector<2x256xbf16>, vector<256x32xbf16>, vector<2x32xf32> -> vector<2x32xf32>
    %1970 = arith.truncf %1909 : vector<2x256xf32> to vector<2x256xbf16>
    %c1_499 = arith.constant 1 : index
    %c0_500 = arith.constant 0 : index
    %c0_501 = arith.constant 0 : index
    %1971 = vector.load %arg8[%c1_499, %c0_500, %c0_501] : memref<12x256x32xbf16, #tpu.memory_space<vmem>>, vector<1x256x32xbf16>
    %1972 = vector.shape_cast %1971 : vector<1x256x32xbf16> to vector<256x32xbf16>
    %cst_502 = arith.constant dense<0.000000e+00> : vector<2x32xf32>
    %1973 = tpu.matmul %1970, %1972, %cst_502 {dimension_numbers = #tpu.dot_dimension_numbers<[1], [0], [0], [1], [0, 0, 1, 1], [], []>} : vector<2x256xbf16>, vector<256x32xbf16>, vector<2x32xf32> -> vector<2x32xf32>
    %1974 = arith.addf %1969, %1973 : vector<2x32xf32>
    %1975 = arith.truncf %1914 : vector<2x256xf32> to vector<2x256xbf16>
    %c2_503 = arith.constant 2 : index
    %c0_504 = arith.constant 0 : index
    %c0_505 = arith.constant 0 : index
    %1976 = vector.load %arg8[%c2_503, %c0_504, %c0_505] : memref<12x256x32xbf16, #tpu.memory_space<vmem>>, vector<1x256x32xbf16>
    %1977 = vector.shape_cast %1976 : vector<1x256x32xbf16> to vector<256x32xbf16>
    %cst_506 = arith.constant dense<0.000000e+00> : vector<2x32xf32>
    %1978 = tpu.matmul %1975, %1977, %cst_506 {dimension_numbers = #tpu.dot_dimension_numbers<[1], [0], [0], [1], [0, 0, 1, 1], [], []>} : vector<2x256xbf16>, vector<256x32xbf16>, vector<2x32xf32> -> vector<2x32xf32>
    %1979 = arith.addf %1974, %1978 : vector<2x32xf32>
    %1980 = arith.truncf %1919 : vector<2x256xf32> to vector<2x256xbf16>
    %c3_507 = arith.constant 3 : index
    %c0_508 = arith.constant 0 : index
    %c0_509 = arith.constant 0 : index
    %1981 = vector.load %arg8[%c3_507, %c0_508, %c0_509] : memref<12x256x32xbf16, #tpu.memory_space<vmem>>, vector<1x256x32xbf16>
    %1982 = vector.shape_cast %1981 : vector<1x256x32xbf16> to vector<256x32xbf16>
    %cst_510 = arith.constant dense<0.000000e+00> : vector<2x32xf32>
    %1983 = tpu.matmul %1980, %1982, %cst_510 {dimension_numbers = #tpu.dot_dimension_numbers<[1], [0], [0], [1], [0, 0, 1, 1], [], []>} : vector<2x256xbf16>, vector<256x32xbf16>, vector<2x32xf32> -> vector<2x32xf32>
    %1984 = arith.addf %1979, %1983 : vector<2x32xf32>
    %1985 = arith.truncf %1924 : vector<2x256xf32> to vector<2x256xbf16>
    %c4_511 = arith.constant 4 : index
    %c0_512 = arith.constant 0 : index
    %c0_513 = arith.constant 0 : index
    %1986 = vector.load %arg8[%c4_511, %c0_512, %c0_513] : memref<12x256x32xbf16, #tpu.memory_space<vmem>>, vector<1x256x32xbf16>
    %1987 = vector.shape_cast %1986 : vector<1x256x32xbf16> to vector<256x32xbf16>
    %cst_514 = arith.constant dense<0.000000e+00> : vector<2x32xf32>
    %1988 = tpu.matmul %1985, %1987, %cst_514 {dimension_numbers = #tpu.dot_dimension_numbers<[1], [0], [0], [1], [0, 0, 1, 1], [], []>} : vector<2x256xbf16>, vector<256x32xbf16>, vector<2x32xf32> -> vector<2x32xf32>
    %1989 = arith.addf %1984, %1988 : vector<2x32xf32>
    %1990 = arith.truncf %1929 : vector<2x256xf32> to vector<2x256xbf16>
    %c5_515 = arith.constant 5 : index
    %c0_516 = arith.constant 0 : index
    %c0_517 = arith.constant 0 : index
    %1991 = vector.load %arg8[%c5_515, %c0_516, %c0_517] : memref<12x256x32xbf16, #tpu.memory_space<vmem>>, vector<1x256x32xbf16>
    %1992 = vector.shape_cast %1991 : vector<1x256x32xbf16> to vector<256x32xbf16>
    %cst_518 = arith.constant dense<0.000000e+00> : vector<2x32xf32>
    %1993 = tpu.matmul %1990, %1992, %cst_518 {dimension_numbers = #tpu.dot_dimension_numbers<[1], [0], [0], [1], [0, 0, 1, 1], [], []>} : vector<2x256xbf16>, vector<256x32xbf16>, vector<2x32xf32> -> vector<2x32xf32>
    %1994 = arith.addf %1989, %1993 : vector<2x32xf32>
    %1995 = arith.truncf %1934 : vector<2x256xf32> to vector<2x256xbf16>
    %c6_519 = arith.constant 6 : index
    %c0_520 = arith.constant 0 : index
    %c0_521 = arith.constant 0 : index
    %1996 = vector.load %arg8[%c6_519, %c0_520, %c0_521] : memref<12x256x32xbf16, #tpu.memory_space<vmem>>, vector<1x256x32xbf16>
    %1997 = vector.shape_cast %1996 : vector<1x256x32xbf16> to vector<256x32xbf16>
    %cst_522 = arith.constant dense<0.000000e+00> : vector<2x32xf32>
    %1998 = tpu.matmul %1995, %1997, %cst_522 {dimension_numbers = #tpu.dot_dimension_numbers<[1], [0], [0], [1], [0, 0, 1, 1], [], []>} : vector<2x256xbf16>, vector<256x32xbf16>, vector<2x32xf32> -> vector<2x32xf32>
    %1999 = arith.addf %1994, %1998 : vector<2x32xf32>
    %2000 = arith.truncf %1939 : vector<2x256xf32> to vector<2x256xbf16>
    %c7_523 = arith.constant 7 : index
    %c0_524 = arith.constant 0 : index
    %c0_525 = arith.constant 0 : index
    %2001 = vector.load %arg8[%c7_523, %c0_524, %c0_525] : memref<12x256x32xbf16, #tpu.memory_space<vmem>>, vector<1x256x32xbf16>
    %2002 = vector.shape_cast %2001 : vector<1x256x32xbf16> to vector<256x32xbf16>
    %cst_526 = arith.constant dense<0.000000e+00> : vector<2x32xf32>
    %2003 = tpu.matmul %2000, %2002, %cst_526 {dimension_numbers = #tpu.dot_dimension_numbers<[1], [0], [0], [1], [0, 0, 1, 1], [], []>} : vector<2x256xbf16>, vector<256x32xbf16>, vector<2x32xf32> -> vector<2x32xf32>
    %2004 = arith.addf %1999, %2003 : vector<2x32xf32>
    %2005 = arith.truncf %1944 : vector<2x256xf32> to vector<2x256xbf16>
    %c8_527 = arith.constant 8 : index
    %c0_528 = arith.constant 0 : index
    %c0_529 = arith.constant 0 : index
    %2006 = vector.load %arg8[%c8_527, %c0_528, %c0_529] : memref<12x256x32xbf16, #tpu.memory_space<vmem>>, vector<1x256x32xbf16>
    %2007 = vector.shape_cast %2006 : vector<1x256x32xbf16> to vector<256x32xbf16>
    %cst_530 = arith.constant dense<0.000000e+00> : vector<2x32xf32>
    %2008 = tpu.matmul %2005, %2007, %cst_530 {dimension_numbers = #tpu.dot_dimension_numbers<[1], [0], [0], [1], [0, 0, 1, 1], [], []>} : vector<2x256xbf16>, vector<256x32xbf16>, vector<2x32xf32> -> vector<2x32xf32>
    %2009 = arith.addf %2004, %2008 : vector<2x32xf32>
    %2010 = arith.truncf %1949 : vector<2x256xf32> to vector<2x256xbf16>
    %c9_531 = arith.constant 9 : index
    %c0_532 = arith.constant 0 : index
    %c0_533 = arith.constant 0 : index
    %2011 = vector.load %arg8[%c9_531, %c0_532, %c0_533] : memref<12x256x32xbf16, #tpu.memory_space<vmem>>, vector<1x256x32xbf16>
    %2012 = vector.shape_cast %2011 : vector<1x256x32xbf16> to vector<256x32xbf16>
    %cst_534 = arith.constant dense<0.000000e+00> : vector<2x32xf32>
    %2013 = tpu.matmul %2010, %2012, %cst_534 {dimension_numbers = #tpu.dot_dimension_numbers<[1], [0], [0], [1], [0, 0, 1, 1], [], []>} : vector<2x256xbf16>, vector<256x32xbf16>, vector<2x32xf32> -> vector<2x32xf32>
    %2014 = arith.addf %2009, %2013 : vector<2x32xf32>
    %2015 = arith.truncf %1954 : vector<2x256xf32> to vector<2x256xbf16>
    %c10_535 = arith.constant 10 : index
    %c0_536 = arith.constant 0 : index
    %c0_537 = arith.constant 0 : index
    %2016 = vector.load %arg8[%c10_535, %c0_536, %c0_537] : memref<12x256x32xbf16, #tpu.memory_space<vmem>>, vector<1x256x32xbf16>
    %2017 = vector.shape_cast %2016 : vector<1x256x32xbf16> to vector<256x32xbf16>
    %cst_538 = arith.constant dense<0.000000e+00> : vector<2x32xf32>
    %2018 = tpu.matmul %2015, %2017, %cst_538 {dimension_numbers = #tpu.dot_dimension_numbers<[1], [0], [0], [1], [0, 0, 1, 1], [], []>} : vector<2x256xbf16>, vector<256x32xbf16>, vector<2x32xf32> -> vector<2x32xf32>
    %2019 = arith.addf %2014, %2018 : vector<2x32xf32>
    %2020 = arith.truncf %1959 : vector<2x256xf32> to vector<2x256xbf16>
    %c11_539 = arith.constant 11 : index
    %c0_540 = arith.constant 0 : index
    %c0_541 = arith.constant 0 : index
    %2021 = vector.load %arg8[%c11_539, %c0_540, %c0_541] : memref<12x256x32xbf16, #tpu.memory_space<vmem>>, vector<1x256x32xbf16>
    %2022 = vector.shape_cast %2021 : vector<1x256x32xbf16> to vector<256x32xbf16>
    %cst_542 = arith.constant dense<0.000000e+00> : vector<2x32xf32>
    %2023 = tpu.matmul %2020, %2022, %cst_542 {dimension_numbers = #tpu.dot_dimension_numbers<[1], [0], [0], [1], [0, 0, 1, 1], [], []>} : vector<2x256xbf16>, vector<256x32xbf16>, vector<2x32xf32> -> vector<2x32xf32>
    %2024 = arith.addf %2019, %2023 : vector<2x32xf32>
    %c0_543 = arith.constant 0 : index
    %c0_544 = arith.constant 0 : index
    %2025 = vector.load %arg9[%c0_543, %c0_544] : memref<2x32xf32, #tpu.memory_space<vmem>>, vector<2x32xf32>
    tpu.vector_store %arg9[%c0_543, %c0_544], %2024 {strides = array<i32>} : memref<2x32xf32, #tpu.memory_space<vmem>>, vector<2x32xf32>,
    return
  }
  func.func @transform_0(%arg0: i32) -> (i32, i32) {
    %c0_i32 = arith.constant 0 : i32
    %c0_i32_0 = arith.constant 0 : i32
    return %arg0, %c0_i32 : i32, i32
  }
  func.func @transform_1(%arg0: i32) -> (i32, i32) {
    %c0_i32 = arith.constant 0 : i32
    %c0_i32_0 = arith.constant 0 : i32
    %c0_i32_1 = arith.constant 0 : i32
    return %c0_i32, %c0_i32_0 : i32, i32
  }
  func.func @transform_2(%arg0: i32) -> (i32, i32) {
    %c0_i32 = arith.constant 0 : i32
    %c0_i32_0 = arith.constant 0 : i32
    %c0_i32_1 = arith.constant 0 : i32
    return %c0_i32, %c0_i32_0 : i32, i32
  }
  func.func @transform_3(%arg0: i32) -> (i32, i32, i32) {
    %c0_i32 = arith.constant 0 : i32
    %c0_i32_0 = arith.constant 0 : i32
    %c0_i32_1 = arith.constant 0 : i32
    %c0_i32_2 = arith.constant 0 : i32
    return %c0_i32, %c0_i32_0, %c0_i32_1 : i32, i32, i32
  }
  func.func @transform_4(%arg0: i32) -> (i32, i32, i32) {
    %c0_i32 = arith.constant 0 : i32
    %c0_i32_0 = arith.constant 0 : i32
    %c0_i32_1 = arith.constant 0 : i32
    %c0_i32_2 = arith.constant 0 : i32
    return %c0_i32, %c0_i32_0, %c0_i32_1 : i32, i32, i32
  }
  func.func @transform_5(%arg0: i32) -> (i32, i32, i32, i32) {
    %c0_i32 = arith.constant 0 : i32
    %c0_i32_0 = arith.constant 0 : i32
    %c0_i32_1 = arith.constant 0 : i32
    %c0_i32_2 = arith.constant 0 : i32
    %c0_i32_3 = arith.constant 0 : i32
    return %c0_i32, %c0_i32_0, %c0_i32_1, %c0_i32_2 : i32, i32, i32, i32
  }
  func.func @transform_6(%arg0: i32) -> (i32, i32, i32, i32) {
    %c0_i32 = arith.constant 0 : i32
    %c0_i32_0 = arith.constant 0 : i32
    %c0_i32_1 = arith.constant 0 : i32
    %c0_i32_2 = arith.constant 0 : i32
    %c0_i32_3 = arith.constant 0 : i32
    return %c0_i32, %c0_i32_0, %c0_i32_1, %c0_i32_2 : i32, i32, i32, i32
  }
  func.func @transform_7(%arg0: i32) -> (i32, i32, i32) {
    %c0_i32 = arith.constant 0 : i32
    %c0_i32_0 = arith.constant 0 : i32
    %c0_i32_1 = arith.constant 0 : i32
    %c0_i32_2 = arith.constant 0 : i32
    return %c0_i32, %c0_i32_0, %c0_i32_1 : i32, i32, i32
  }
  func.func @transform_8(%arg0: i32) -> (i32, i32) {
    %c0_i32 = arith.constant 0 : i32
    %c0_i32_0 = arith.constant 0 : i32
    return %arg0, %c0_i32 : i32, i32
  }
}

</mosaic_0001>

<llo_original>
// kernel: transformer_kan_forward.1
$region0: #{transformer_kan_forward.1}
  #allocation0 [shape = 'u32[]', space=smem, size = 0x4, offset = 0x4, fixed_abs, tag = 'smem constant byte address 0x4 - core index']
  #allocation1 [shape = 'u32[72,128]{1,0:T(1,128)}', space=vmem, size = 0x9000, scoped, tag = 'internal scratch']
  %s0 = inlined_call_operand.vmem [shape: f32[16,1], index: 0, kind: input, shape index: {}]
  %s1 = inlined_call_operand.vmem [shape: f32[8,32], index: 1, kind: input, shape index: {}]
  %s2 = inlined_call_operand.vmem [shape: f32[14,32], index: 2, kind: input, shape index: {}]
  %s3 = inlined_call_operand.vmem [shape: bf16[2,32,96], index: 3, kind: input, shape index: {}]
  %s4 = inlined_call_operand.vmem [shape: f32[2,1,96], index: 4, kind: input, shape index: {}]
  %s5 = inlined_call_operand.vmem [shape: bf16[2,2,16,32], index: 5, kind: input, shape index: {}]
  %s6 = inlined_call_operand.vmem [shape: bf16[4,12,32,32], index: 6, kind: input, shape index: {}]
  %s7 = inlined_call_operand.vmem [shape: bf16[12,256,32], index: 7, kind: input, shape index: {}]
  %s8 = inlined_call_operand.hbm [shape: f32[2,32], index: 8, kind: output, shape index: {}]
  %s9 = sld [smem:[#allocation0]]
  $region42: #{transformer_kan_forward.1} parent=0
    _
  %s11 = ssub.s32 1, %s9
  %s12 = scalar_select 0, %s11, %s9
  $region1: #{transformer_kan_forward.1} parent=0
    #allocation2 [shape = 'u8[1024]{0}', space=vmem, size = 0x400, scoped, tag = 'output window, operand 0, single buffered']
    #allocation3 [shape = 's32[1]{0}', space=sflag, size = 0x4, scoped, tag = 'scoped memory for transformer_kan_forward.1']
    %13 = vsyncpa [#allocation3], 0
    // Predicated region
    $region2: #{transformer_kan_forward.1} parent=1 // pred_check
      _
    $region3: #{transformer_kan_forward.1} parent=1 // pred_check_branch
      %15 = sbr.rel (0) target = $region5
    $region4: #{transformer_kan_forward.1} parent=1 // pred_region
      _
    $region5: #{transformer_kan_forward.1} parent=1 // pred_fallthru
      _
    // Predicated region
    $region6: #{transformer_kan_forward.1} parent=1 // pred_check
      _
    $region7: #{transformer_kan_forward.1} parent=1 // pred_check_branch
      %17 = sbr.rel (0) target = $region9
    $region8: #{transformer_kan_forward.1} parent=1 // pred_region
      _
    $region9: #{transformer_kan_forward.1} parent=1 // pred_fallthru
      _
    // Predicated region
    $region10: #{transformer_kan_forward.1} parent=1 // pred_check
      _
    $region11: #{transformer_kan_forward.1} parent=1 // pred_check_branch
      %19 = sbr.rel (0) target = $region13
    $region12: #{transformer_kan_forward.1} parent=1 // pred_region
      _
    $region13: #{transformer_kan_forward.1} parent=1 // pred_fallthru
      _
    // Predicated region
    $region14: #{transformer_kan_forward.1} parent=1 // pred_check
      _
    $region15: #{transformer_kan_forward.1} parent=1 // pred_check_branch
      %21 = sbr.rel (0) target = $region17
    $region16: #{transformer_kan_forward.1} parent=1 // pred_region
      _
    $region17: #{transformer_kan_forward.1} parent=1 // pred_fallthru
      _
    // Predicated region
    $region18: #{transformer_kan_forward.1} parent=1 // pred_check
      _
    $region19: #{transformer_kan_forward.1} parent=1 // pred_check_branch
      %23 = sbr.rel (0) target = $region21
    $region20: #{transformer_kan_forward.1} parent=1 // pred_region
      _
    $region21: #{transformer_kan_forward.1} parent=1 // pred_fallthru
      _
    // Predicated region
    $region22: #{transformer_kan_forward.1} parent=1 // pred_check
      _
    $region23: #{transformer_kan_forward.1} parent=1 // pred_check_branch
      %25 = sbr.rel (0) target = $region25
    $region24: #{transformer_kan_forward.1} parent=1 // pred_region
      _
    $region25: #{transformer_kan_forward.1} parent=1 // pred_fallthru
      _
    // Predicated region
    $region26: #{transformer_kan_forward.1} parent=1 // pred_check
      _
    $region27: #{transformer_kan_forward.1} parent=1 // pred_check_branch
      %27 = sbr.rel (0) target = $region29
    $region28: #{transformer_kan_forward.1} parent=1 // pred_region
      _
    $region29: #{transformer_kan_forward.1} parent=1 // pred_fallthru
      _
    // Predicated region
    $region30: #{transformer_kan_forward.1} parent=1 // pred_check
      _
    $region31: #{transformer_kan_forward.1} parent=1 // pred_check_branch
      %29 = sbr.rel (0) target = $region33
    $region32: #{transformer_kan_forward.1} parent=1 // pred_region
      _
    $region33: #{transformer_kan_forward.1} parent=1 // pred_fallthru
      _
    %v31 = vld [vmem:[%s0] sm:$0xff]
    %v32 = vld [vmem:[%s0 + $0x8] sm:$0xff]
    %v33 = vld [vmem:[%s2] sm:$0x1]
    %35 = vset.pattern.permute.xlu0 0
    %36 = vperm.xlu0 %35, %v31
    %v37 = vpop.permute.xlu0 %36
    %40 = vset.pattern.permute.xlu0 0
    %41 = vperm.xlu0 %40, %v32
    %v42 = vpop.permute.xlu0 %41
    %v44 = vperm.slane %v33, 0
    %v45 = vmul.f32 %v37, %v44
    %v46 = vmul.f32 %v42, %v44
    %v47 = vld [vmem:[%s2 + $0x1] sm:$0x1]
    %v48 = vperm.slane %v47, 0
    %v49 = vadd.f32 %v45, %v48
    %v50 = vadd.f32 %v46, %v48
    %v51 = vld [vmem:[%s1] sm:$0xff]
    %v52 = vadd.f32 %v49, %v51
    %v53 = vadd.f32 %v50, %v51
    %v54 = vld [vmem:[%s2 + $0x2] sm:$0x1]
    %v55 = vld [vmem:[%s2 + $0x3] sm:$0x1]
    %vm56 = vcmask 261120
    %v57 = vsel %vm56, %v52, 0.0
    %58 = vadd.xlane.f32.xlu0 %v57
    %v59 = vpop.xlane.xlu0 %58
    %v60 = vsel %vm56, %v53, 0.0
    %61 = vadd.xlane.f32.xlu0 %v60
    %v62 = vpop.xlane.xlu0 %61
    %v63 = vrcp.pop 32.0
    %v64 = vmul.f32 32.0, %v63
    %v65 = vsub.f32 1.0, %v64
    %v66 = vmul.f32 %v63, %v65
    %v67 = vadd.f32 %v63, %v66
    %vm68 = vweird.f32 %v63
    %v69 = vsel %vm68, %v63, %v67
    %v70 = vmul.f32 %v59, %v69
    %v71 = vmul.f32 %v62, %v69
    %v72 = vsub.f32 %v52, %v70
    %v73 = vsub.f32 %v53, %v71
    %v74 = vmul.f32 %v72, %v72
    %v75 = vmul.f32 %v73, %v73
    %v76 = vsel %vm56, %v74, 0.0
    %77 = vadd.xlane.f32.xlu0 %v76
    %v78 = vpop.xlane.xlu0 %77
    %v79 = vsel %vm56, %v75, 0.0
    %80 = vadd.xlane.f32.xlu0 %v79
    %v81 = vpop.xlane.xlu0 %80
    %v82 = vmul.f32 %v78, %v69
    %v83 = vmul.f32 %v81, %v69
    %v84 = vadd.f32 %v82, 1e-05
    %v85 = vadd.f32 %v83, 1e-05
    %v86 = vrsqrt.pop %v84
    %v87 = vmul.f32 %v86, %v84
    %v88 = vmul.f32 %v87, %v86
    %v89 = vmul.f32 0.5, %v88
    %v90 = vsub.f32 1.5, %v89
    %v91 = vmul.f32 %v86, %v90
    %vm92 = vweird.f32 %v84
    %vm93 = vweird.f32 %v86
    %vm94 = vmor %vm92, %vm93
    %v95 = vsel %vm94, %v86, %v91
    %v96 = vrsqrt.pop %v85
    %v97 = vmul.f32 %v96, %v85
    %v98 = vmul.f32 %v97, %v96
    %v99 = vmul.f32 0.5, %v98
    %v100 = vsub.f32 1.5, %v99
    %v101 = vmul.f32 %v96, %v100
    %vm102 = vweird.f32 %v85
    %vm103 = vweird.f32 %v96
    %vm104 = vmor %vm102, %vm103
    %v105 = vsel %vm104, %v96, %v101
    %v106 = vmul.f32 %v72, %v95
    %v107 = vmul.f32 %v73, %v105
    %v108 = vperm.slane %v54, 0
    %v109 = vmul.f32 %v106, %v108
    %v110 = vmul.f32 %v107, %v108
    %v111 = vperm.slane %v55, 0
    %v112 = vadd.f32 %v109, %v111
    %v113 = vadd.f32 %v110, %v111
    %v114 = vld [vmem:[%s2 + $0x4] sm:$0x1]
    %v115 = vld [vmem:[%s2 + $0x5] sm:$0x1]
    %v116 = vld [vmem:[%s2 + $0x6] sm:$0x1]
    %v117 = vld [vmem:[%s2 + $0x7] sm:$0x1]
    %v118 = vld [vmem:[%s2 + $0x8] sm:$0x1]
    %v119 = vpack.c.bf16 %v113, %v112
    %v120 = vld [vmem:[%s3] sm:$0xf]
    %v121 = vld [vmem:[%s3 + $0x4] sm:$0xf]
    %v122 = vld [vmem:[%s3 + $0x8] sm:$0xf]
    %v123 = vld [vmem:[%s3 + $0xc] sm:$0xf]
    %v124 = vld [vmem:[%s4] sm:$0x1]
    %v126 = vperm.slane %v124, 0
    %v132 = vunpack.c.l.b16 %v120
    %v133 = vunpack.c.l.b16 %v121
    %v134 = vunpack.c.l.b16 %v122
    %v135 = vunpack.c.l.b16 %v123
    %v136 = vpack.c.b16 %v133, %v132
    %v137 = vpack.c.b16 %v135, %v134
    %v141 = vsel %vm56, %v119, 0
    %143 = vmatpush.bf16.msra.mxu0 0
    %144 = vmatpush.bf16.msra.mxu0 0
    %145 = vmatpush.bf16.msra.mxu0 0
    %146 = vmatpush.bf16.msra.mxu0 0
    %147 = vmatpush.bf16.msra.mxu0 0
    %148 = vmatpush.bf16.msra.mxu0 0
    %149 = vmatpush.bf16.msra.mxu0 %v137
    %150 = vmatpush.bf16.msra.mxu0 %v136
    %151 = vmatmul.bf16.gmra.mxu0 %v141
    %v152 = vpop.f32.mrf.mxu0
    %v153 = vadd.f32 %v126, %v152
    %v154 = vpop.f32.mrf.mxu0
    %v155 = vadd.f32 %v126, %v154
    %156 = vdwg.mxu0
    %v157 = vmul.f32 %v153, 0.25
    %v158 = vmul.f32 %v155, 0.25
    %v159 = vpack.c.bf16 %v157, %v157
    %v160 = vpack.c.bf16 %v158, %v158
    %v161 = vpack.c.bf16 %v153, %v153
    %v162 = vpack.c.bf16 %v155, %v155
    %v164 = vunpack.c.l.b16 %v161
    %v165 = vpack.c.b16 %v164, %v164
    %166 = vrot.lane.b32.xlu0 %v165, 96
    %v167 = vpop.permute.xlu0 %166
    %vm168 = vcmask 130048
    %v170 = vsel %vm168, %v159, 0
    %v173 = vsel %vm168, %v167, 0
    %175 = vmatpush.bf16.xpose.msra.mxu0 0
    %176 = vmatpush.bf16.xpose.msra.mxu0 0
    %177 = vmatpush.bf16.xpose.msra.mxu0 0
    %178 = vmatpush.bf16.xpose.msra.mxu0 0
    %179 = vmatpush.bf16.xpose.msra.mxu0 0
    %180 = vmatpush.bf16.xpose.msra.mxu0 0
    %181 = vmatpush.bf16.xpose.msra.mxu0 0
    %182 = vmatpush.bf16.xpose.msra.mxu0 %v173
    %183 = vmatmul.bf16.gmra.mxu0 %v170
    %v184 = vpop.f32.mrf.mxu0
    %v185 = vadd.f32 0.0, %v184
    %v186 = vpop.f32.mrf.mxu0
    %187 = vdwg.mxu0
    %v189 = vunpack.c.l.b16 %v162
    %v190 = vpack.c.b16 %v189, %v189
    %191 = vrot.lane.b32.xlu0 %v190, 96
    %v192 = vpop.permute.xlu0 %191
    %v194 = vsel %vm168, %v160, 0
    %v197 = vsel %vm168, %v192, 0
    %199 = vmatpush.bf16.xpose.msra.mxu0 0
    %200 = vmatpush.bf16.xpose.msra.mxu0 0
    %201 = vmatpush.bf16.xpose.msra.mxu0 0
    %202 = vmatpush.bf16.xpose.msra.mxu0 0
    %203 = vmatpush.bf16.xpose.msra.mxu0 0
    %204 = vmatpush.bf16.xpose.msra.mxu0 0
    %205 = vmatpush.bf16.xpose.msra.mxu0 0
    %206 = vmatpush.bf16.xpose.msra.mxu0 %v197
    %207 = vmatmul.bf16.gmra.mxu0 %v194
    %v208 = vpop.f32.mrf.mxu0
    %v209 = vadd.f32 0.0, %v208
    %v210 = vpop.f32.mrf.mxu0
    %211 = vdwg.mxu0
    %vm212 = vcmask 64512
    %v213 = vsel %vm212, %v185, -inf
    %214 = vmax.xlane.f32.xlu0 %v213
    %v215 = vpop.xlane.xlu0 %214
    %v216 = vsel %vm212, %v209, -inf
    %217 = vmax.xlane.f32.xlu0 %v216
    %v218 = vpop.xlane.xlu0 %217
    %v219 = vsub.f32 %v185, %v215
    %v220 = vsub.f32 %v209, %v218
    %v221 = vmul.f32 %v219, 1.442695
    %v222 = vpow.pop %v221
    %v223 = vmul.f32 %v220, 1.442695
    %v224 = vpow.pop %v223
    %v225 = vsel %vm212, %v222, 0.0
    %226 = vadd.xlane.f32.xlu0 %v225
    %v227 = vpop.xlane.xlu0 %226
    %v228 = vsel %vm212, %v224, 0.0
    %229 = vadd.xlane.f32.xlu0 %v228
    %v230 = vpop.xlane.xlu0 %229
    %v231 = vrcp.pop %v227
    %v232 = vmul.f32 %v227, %v231
    %v233 = vsub.f32 1.0, %v232
    %v234 = vmul.f32 %v231, %v233
    %v235 = vadd.f32 %v231, %v234
    %vm236 = vweird.f32 %v227
    %vm237 = vweird.f32 %v231
    %vm238 = vmor %vm236, %vm237
    %v239 = vsel %vm238, %v231, %v235
    %v240 = vand.u32 2147483647, %v227
    %vm241 = vcmp.eq.f32.partialorder %v240, 8.507059e+37
    %v242 = vand.u32 %v227, 2147483648
    %v243 = vor.u32 1.1754944e-38, %v242
    %v244 = vsel %vm241, %v243, %v239
    %v245 = vmul.f32 %v222, %v244
    %v246 = vrcp.pop %v230
    %v247 = vmul.f32 %v230, %v246
    %v248 = vsub.f32 1.0, %v247
    %v249 = vmul.f32 %v246, %v248
    %v250 = vadd.f32 %v246, %v249
    %vm251 = vweird.f32 %v230
    %vm252 = vweird.f32 %v246
    %vm253 = vmor %vm251, %vm252
    %v254 = vsel %vm253, %v246, %v250
    %v255 = vand.u32 2147483647, %v230
    %vm256 = vcmp.eq.f32.partialorder %v255, 8.507059e+37
    %v257 = vand.u32 %v230, 2147483648
    %v258 = vor.u32 1.1754944e-38, %v257
    %v259 = vsel %vm256, %v258, %v254
    %v260 = vmul.f32 %v224, %v259
    %v261 = vpack.c.bf16 %v245, %v245
    %v262 = vpack.c.bf16 %v260, %v260
    %263 = vrot.lane.b32.xlu0 %v165, 64
    %v264 = vpop.permute.xlu0 %263
    %v266 = vsel %vm212, %v261, 0
    %vm268 = vcmask 1043456
    %v270 = vsel %vm268, %v264, 0
    %272 = vmatpush.bf16.msra.mxu0 0
    %273 = vmatpush.bf16.msra.mxu0 0
    %274 = vmatpush.bf16.msra.mxu0 0
    %275 = vmatpush.bf16.msra.mxu0 0
    %276 = vmatpush.bf16.msra.mxu0 0
    %277 = vmatpush.bf16.msra.mxu0 0
    %278 = vmatpush.bf16.msra.mxu0 0
    %279 = vmatpush.bf16.msra.mxu0 %v270
    %280 = vmatmul.bf16.gmra.mxu0 %v266
    %v281 = vpop.f32.mrf.mxu0
    %v282 = vadd.f32 0.0, %v281
    %v283 = vpop.f32.mrf.mxu0
    %284 = vdwg.mxu0
    %285 = vrot.lane.b32.xlu0 %v190, 64
    %v286 = vpop.permute.xlu0 %285
    %v288 = vsel %vm212, %v262, 0
    %v291 = vsel %vm268, %v286, 0
    %293 = vmatpush.bf16.msra.mxu0 0
    %294 = vmatpush.bf16.msra.mxu0 0
    %295 = vmatpush.bf16.msra.mxu0 0
    %296 = vmatpush.bf16.msra.mxu0 0
    %297 = vmatpush.bf16.msra.mxu0 0
    %298 = vmatpush.bf16.msra.mxu0 0
    %299 = vmatpush.bf16.msra.mxu0 0
    %300 = vmatpush.bf16.msra.mxu0 %v291
    %301 = vmatmul.bf16.gmra.mxu0 %v288
    %v302 = vpop.f32.mrf.mxu0
    %v303 = vadd.f32 0.0, %v302
    %v304 = vpop.f32.mrf.mxu0
    %305 = vdwg.mxu0
    %v306 = vpack.c.bf16 %v303, %v282
    %v307 = vld [vmem:[%s5] sm:$0xf]
    %v308 = vld [vmem:[%s5 + $0x4] sm:$0xf]
    %v310 = vunpack.c.l.b16 %v159
    %v311 = vpack.c.b16 %v310, %v310
    %312 = vrot.lane.b32.xlu0 %v311, 112
    %v313 = vpop.permute.xlu0 %312
    %314 = vrot.lane.b32.xlu0 %v165, 80
    %v315 = vpop.permute.xlu0 %314
    %v317 = vsel %vm168, %v313, 0
    %v320 = vsel %vm168, %v315, 0
    %322 = vmatpush.bf16.xpose.msra.mxu0 0
    %323 = vmatpush.bf16.xpose.msra.mxu0 0
    %324 = vmatpush.bf16.xpose.msra.mxu0 0
    %325 = vmatpush.bf16.xpose.msra.mxu0 0
    %326 = vmatpush.bf16.xpose.msra.mxu0 0
    %327 = vmatpush.bf16.xpose.msra.mxu0 0
    %328 = vmatpush.bf16.xpose.msra.mxu0 0
    %329 = vmatpush.bf16.xpose.msra.mxu0 %v320
    %330 = vmatmul.bf16.gmra.mxu0 %v317
    %v331 = vpop.f32.mrf.mxu0
    %v332 = vadd.f32 0.0, %v331
    %v333 = vpop.f32.mrf.mxu0
    %334 = vdwg.mxu0
    %v336 = vunpack.c.l.b16 %v160
    %v337 = vpack.c.b16 %v336, %v336
    %338 = vrot.lane.b32.xlu0 %v337, 112
    %v339 = vpop.permute.xlu0 %338
    %340 = vrot.lane.b32.xlu0 %v190, 80
    %v341 = vpop.permute.xlu0 %340
    %v343 = vsel %vm168, %v339, 0
    %v346 = vsel %vm168, %v341, 0
    %348 = vmatpush.bf16.xpose.msra.mxu0 0
    %349 = vmatpush.bf16.xpose.msra.mxu0 0
    %350 = vmatpush.bf16.xpose.msra.mxu0 0
    %351 = vmatpush.bf16.xpose.msra.mxu0 0
    %352 = vmatpush.bf16.xpose.msra.mxu0 0
    %353 = vmatpush.bf16.xpose.msra.mxu0 0
    %354 = vmatpush.bf16.xpose.msra.mxu0 0
    %355 = vmatpush.bf16.xpose.msra.mxu0 %v346
    %356 = vmatmul.bf16.gmra.mxu0 %v343
    %v357 = vpop.f32.mrf.mxu0
    %v358 = vadd.f32 0.0, %v357
    %v359 = vpop.f32.mrf.mxu0
    %360 = vdwg.mxu0
    %v361 = vsel %vm212, %v332, -inf
    %362 = vmax.xlane.f32.xlu0 %v361
    %v363 = vpop.xlane.xlu0 %362
    %v364 = vsel %vm212, %v358, -inf
    %365 = vmax.xlane.f32.xlu0 %v364
    %v366 = vpop.xlane.xlu0 %365
    %v367 = vsub.f32 %v332, %v363
    %v368 = vsub.f32 %v358, %v366
    %v369 = vmul.f32 %v367, 1.442695
    %v370 = vpow.pop %v369
    %v371 = vmul.f32 %v368, 1.442695
    %v372 = vpow.pop %v371
    %v373 = vsel %vm212, %v370, 0.0
    %374 = vadd.xlane.f32.xlu0 %v373
    %v375 = vpop.xlane.xlu0 %374
    %v376 = vsel %vm212, %v372, 0.0
    %377 = vadd.xlane.f32.xlu0 %v376
    %v378 = vpop.xlane.xlu0 %377
    %v379 = vrcp.pop %v375
    %v380 = vmul.f32 %v375, %v379
    %v381 = vsub.f32 1.0, %v380
    %v382 = vmul.f32 %v379, %v381
    %v383 = vadd.f32 %v379, %v382
    %vm384 = vweird.f32 %v375
    %vm385 = vweird.f32 %v379
    %vm386 = vmor %vm384, %vm385
    %v387 = vsel %vm386, %v379, %v383
    %v388 = vand.u32 2147483647, %v375
    %vm389 = vcmp.eq.f32.partialorder %v388, 8.507059e+37
    %v390 = vand.u32 %v375, 2147483648
    %v391 = vor.u32 1.1754944e-38, %v390
    %v392 = vsel %vm389, %v391, %v387
    %v393 = vmul.f32 %v370, %v392
    %v394 = vrcp.pop %v378
    %v395 = vmul.f32 %v378, %v394
    %v396 = vsub.f32 1.0, %v395
    %v397 = vmul.f32 %v394, %v396
    %v398 = vadd.f32 %v394, %v397
    %vm399 = vweird.f32 %v378
    %vm400 = vweird.f32 %v394
    %vm401 = vmor %vm399, %vm400
    %v402 = vsel %vm401, %v394, %v398
    %v403 = vand.u32 2147483647, %v378
    %vm404 = vcmp.eq.f32.partialorder %v403, 8.507059e+37
    %v405 = vand.u32 %v378, 2147483648
    %v406 = vor.u32 1.1754944e-38, %v405
    %v407 = vsel %vm404, %v406, %v402
    %v408 = vmul.f32 %v372, %v407
    %v409 = vpack.c.bf16 %v393, %v393
    %v410 = vpack.c.bf16 %v408, %v408
    %411 = vrot.lane.b32.xlu0 %v165, 48
    %v412 = vpop.permute.xlu0 %411
    %v414 = vsel %vm212, %v409, 0
    %v417 = vsel %vm268, %v412, 0
    %419 = vmatpush.bf16.msra.mxu0 0
    %420 = vmatpush.bf16.msra.mxu0 0
    %421 = vmatpush.bf16.msra.mxu0 0
    %422 = vmatpush.bf16.msra.mxu0 0
    %423 = vmatpush.bf16.msra.mxu0 0
    %424 = vmatpush.bf16.msra.mxu0 0
    %425 = vmatpush.bf16.msra.mxu0 0
    %426 = vmatpush.bf16.msra.mxu0 %v417
    %427 = vmatmul.bf16.gmra.mxu0 %v414
    %v428 = vpop.f32.mrf.mxu0
    %v429 = vadd.f32 0.0, %v428
    %v430 = vpop.f32.mrf.mxu0
    %431 = vdwg.mxu0
    %432 = vrot.lane.b32.xlu0 %v190, 48
    %v433 = vpop.permute.xlu0 %432
    %v435 = vsel %vm212, %v410, 0
    %v438 = vsel %vm268, %v433, 0
    %440 = vmatpush.bf16.msra.mxu0 0
    %441 = vmatpush.bf16.msra.mxu0 0
    %442 = vmatpush.bf16.msra.mxu0 0
    %443 = vmatpush.bf16.msra.mxu0 0
    %444 = vmatpush.bf16.msra.mxu0 0
    %445 = vmatpush.bf16.msra.mxu0 0
    %446 = vmatpush.bf16.msra.mxu0 0
    %447 = vmatpush.bf16.msra.mxu0 %v438
    %448 = vmatmul.bf16.gmra.mxu0 %v435
    %v449 = vpop.f32.mrf.mxu0
    %v450 = vadd.f32 0.0, %v449
    %v451 = vpop.f32.mrf.mxu0
    %452 = vdwg.mxu0
    %v453 = vpack.c.bf16 %v450, %v429
    %s454 = scalar_lea.vmem %s5, 8
    %v455 = vld [vmem:[%s454] sm:$0xf]
    %v456 = vld [vmem:[%s454 + $0x4] sm:$0xf]
    %v459 = vunpack.c.l.b16 %v455
    %v460 = vunpack.c.l.b16 %v456
    %v461 = vpack.c.b16 %v460, %v459
    %v464 = vsel %vm168, %v453, 0
    %466 = vmatpush.bf16.msra.mxu0 0
    %467 = vmatpush.bf16.msra.mxu0 0
    %468 = vmatpush.bf16.msra.mxu0 0
    %469 = vmatpush.bf16.msra.mxu0 0
    %470 = vmatpush.bf16.msra.mxu0 0
    %471 = vmatpush.bf16.msra.mxu0 0
    %472 = vmatpush.bf16.msra.mxu0 0
    %473 = vmatpush.bf16.msra.mxu0 %v461
    %474 = vmatmul.bf16.gmra.mxu0 %v464
    %v475 = vpop.f32.mrf.mxu0
    %v476 = vadd.f32 0.0, %v475
    %v477 = vpop.f32.mrf.mxu0
    %v478 = vadd.f32 0.0, %v477
    %479 = vdwg.mxu0
    %v482 = vunpack.c.l.b16 %v307
    %v483 = vunpack.c.l.b16 %v308
    %v484 = vpack.c.b16 %v483, %v482
    %v487 = vsel %vm168, %v306, 0
    %489 = vmatpush.bf16.msra.mxu0 0
    %490 = vmatpush.bf16.msra.mxu0 0
    %491 = vmatpush.bf16.msra.mxu0 0
    %492 = vmatpush.bf16.msra.mxu0 0
    %493 = vmatpush.bf16.msra.mxu0 0
    %494 = vmatpush.bf16.msra.mxu0 0
    %495 = vmatpush.bf16.msra.mxu0 0
    %496 = vmatpush.bf16.msra.mxu0 %v484
    %497 = vmatmul.bf16.gmra.mxu0 %v487
    %v498 = vpop.f32.mrf.mxu0
    %v499 = vadd.f32 %v476, %v498
    %v500 = vpop.f32.mrf.mxu0
    %v501 = vadd.f32 %v478, %v500
    %502 = vdwg.mxu0
    %v503 = vperm.slane %v114, 0
    %v504 = vadd.f32 %v499, %v503
    %v505 = vadd.f32 %v501, %v503
    %v506 = vadd.f32 %v112, %v504
    %v507 = vadd.f32 %v113, %v505
    %v508 = vsel %vm56, %v506, 0.0
    %509 = vadd.xlane.f32.xlu0 %v508
    %v510 = vpop.xlane.xlu0 %509
    %v511 = vsel %vm56, %v507, 0.0
    %512 = vadd.xlane.f32.xlu0 %v511
    %v513 = vpop.xlane.xlu0 %512
    %v514 = vmul.f32 %v510, %v69
    %v515 = vmul.f32 %v513, %v69
    %v516 = vsub.f32 %v506, %v514
    %v517 = vsub.f32 %v507, %v515
    %v518 = vmul.f32 %v516, %v516
    %v519 = vmul.f32 %v517, %v517
    %v520 = vsel %vm56, %v518, 0.0
    %521 = vadd.xlane.f32.xlu0 %v520
    %v522 = vpop.xlane.xlu0 %521
    %v523 = vsel %vm56, %v519, 0.0
    %524 = vadd.xlane.f32.xlu0 %v523
    %v525 = vpop.xlane.xlu0 %524
    %v526 = vmul.f32 %v522, %v69
    %v527 = vmul.f32 %v525, %v69
    %v528 = vadd.f32 %v526, 1e-05
    %v529 = vadd.f32 %v527, 1e-05
    %v530 = vrsqrt.pop %v528
    %v531 = vmul.f32 %v530, %v528
    %v532 = vmul.f32 %v531, %v530
    %v533 = vmul.f32 0.5, %v532
    %v534 = vsub.f32 1.5, %v533
    %v535 = vmul.f32 %v530, %v534
    %vm536 = vweird.f32 %v528
    %vm537 = vweird.f32 %v530
    %vm538 = vmor %vm536, %vm537
    %v539 = vsel %vm538, %v530, %v535
    %v540 = vrsqrt.pop %v529
    %v541 = vmul.f32 %v540, %v529
    %v542 = vmul.f32 %v541, %v540
    %v543 = vmul.f32 0.5, %v542
    %v544 = vsub.f32 1.5, %v543
    %v545 = vmul.f32 %v540, %v544
    %vm546 = vweird.f32 %v529
    %vm547 = vweird.f32 %v540
    %vm548 = vmor %vm546, %vm547
    %v549 = vsel %vm548, %v540, %v545
    %v550 = vmul.f32 %v516, %v539
    %v551 = vmul.f32 %v517, %v549
    %v552 = vperm.slane %v115, 0
    %v553 = vmul.f32 %v550, %v552
    %v554 = vmul.f32 %v551, %v552
    %v555 = vperm.slane %v116, 0
    %v556 = vadd.f32 %v553, %v555
    %v557 = vadd.f32 %v554, %v555
    %v558 = vld [vmem:[%s6] sm:$0xf]
    %v559 = vld [vmem:[%s6 + $0x4] sm:$0xf]
    %v560 = vld [vmem:[%s6 + $0x8] sm:$0xf]
    %v561 = vld [vmem:[%s6 + $0xc] sm:$0xf]
    %v562 = vld [vmem:[%s6 + $0x10] sm:$0xf]
    %v563 = vld [vmem:[%s6 + $0x14] sm:$0xf]
    %v564 = vld [vmem:[%s6 + $0x18] sm:$0xf]
    %v565 = vld [vmem:[%s6 + $0x1c] sm:$0xf]
    %v566 = vld [vmem:[%s6 + $0x20] sm:$0xf]
    %v567 = vld [vmem:[%s6 + $0x24] sm:$0xf]
    %v568 = vld [vmem:[%s6 + $0x28] sm:$0xf]
    %v569 = vld [vmem:[%s6 + $0x2c] sm:$0xf]
    %v570 = vld [vmem:[%s6 + $0x30] sm:$0xf]
    %v571 = vld [vmem:[%s6 + $0x34] sm:$0xf]
    %v572 = vld [vmem:[%s6 + $0x38] sm:$0xf]
    %v573 = vld [vmem:[%s6 + $0x3c] sm:$0xf]
    %v574 = vld [vmem:[%s6 + $0x40] sm:$0xf]
    %v575 = vld [vmem:[%s6 + $0x44] sm:$0xf]
    %v576 = vld [vmem:[%s6 + $0x48] sm:$0xf]
    %v577 = vld [vmem:[%s6 + $0x4c] sm:$0xf]
    %v578 = vld [vmem:[%s6 + $0x50] sm:$0xf]
    %v579 = vld [vmem:[%s6 + $0x54] sm:$0xf]
    %v580 = vld [vmem:[%s6 + $0x58] sm:$0xf]
    %v581 = vld [vmem:[%s6 + $0x5c] sm:$0xf]
    %v582 = vld [vmem:[%s6 + $0x60] sm:$0xf]
    %v583 = vld [vmem:[%s6 + $0x64] sm:$0xf]
    %v584 = vld [vmem:[%s6 + $0x68] sm:$0xf]
    %v585 = vld [vmem:[%s6 + $0x6c] sm:$0xf]
    %v586 = vld [vmem:[%s6 + $0x70] sm:$0xf]
    %v587 = vld [vmem:[%s6 + $0x74] sm:$0xf]
    %v588 = vld [vmem:[%s6 + $0x78] sm:$0xf]
    %v589 = vld [vmem:[%s6 + $0x7c] sm:$0xf]
    %v590 = vld [vmem:[%s6 + $0x80] sm:$0xf]
    %v591 = vld [vmem:[%s6 + $0x84] sm:$0xf]
    %v592 = vld [vmem:[%s6 + $0x88] sm:$0xf]
    %v593 = vld [vmem:[%s6 + $0x8c] sm:$0xf]
    %v594 = vld [vmem:[%s6 + $0x90] sm:$0xf]
    %v595 = vld [vmem:[%s6 + $0x94] sm:$0xf]
    %v596 = vld [vmem:[%s6 + $0x98] sm:$0xf]
    %v597 = vld [vmem:[%s6 + $0x9c] sm:$0xf]
    %v598 = vld [vmem:[%s6 + $0xa0] sm:$0xf]
    %v599 = vld [vmem:[%s6 + $0xa4] sm:$0xf]
    %v600 = vld [vmem:[%s6 + $0xa8] sm:$0xf]
    %v601 = vld [vmem:[%s6 + $0xac] sm:$0xf]
    %v602 = vld [vmem:[%s6 + $0xb0] sm:$0xf]
    %v603 = vld [vmem:[%s6 + $0xb4] sm:$0xf]
    %v604 = vld [vmem:[%s6 + $0xb8] sm:$0xf]
    %v605 = vld [vmem:[%s6 + $0xbc] sm:$0xf]
    %vm606 = vcmp.ge.f32.partialorder %v556, -1.75
    %vm607 = vcmp.ge.f32.partialorder %v557, -1.75
    %v608 = vsel %vm606, 1, 0
    %v609 = vsel %vm607, 1, 0
    %v610 = vcvt.s32.f32 %v608
    %v611 = vcvt.s32.f32 %v609
    %vm612 = vcmp.ge.f32.partialorder %v556, -1.5
    %vm613 = vcmp.ge.f32.partialorder %v557, -1.5
    %v614 = vsel %vm612, 1, 0
    %v615 = vsel %vm613, 1, 0
    %v616 = vcvt.s32.f32 %v614
    %v617 = vcvt.s32.f32 %v615
    %vm618 = vcmp.ge.f32.partialorder %v556, -1.25
    %vm619 = vcmp.ge.f32.partialorder %v557, -1.25
    %v620 = vsel %vm618, 1, 0
    %v621 = vsel %vm619, 1, 0
    %v622 = vcvt.s32.f32 %v620
    %v623 = vcvt.s32.f32 %v621
    %vm624 = vcmp.ge.f32.partialorder %v556, -1.0
    %vm625 = vcmp.ge.f32.partialorder %v557, -1.0
    %v626 = vsel %vm624, 1, 0
    %v627 = vsel %vm625, 1, 0
    %v628 = vcvt.s32.f32 %v626
    %v629 = vcvt.s32.f32 %v627
    %vm630 = vcmp.ge.f32.partialorder %v556, -0.75
    %vm631 = vcmp.ge.f32.partialorder %v557, -0.75
    %v632 = vsel %vm630, 1, 0
    %v633 = vsel %vm631, 1, 0
    %v634 = vcvt.s32.f32 %v632
    %v635 = vcvt.s32.f32 %v633
    %vm636 = vcmp.ge.f32.partialorder %v556, -0.5
    %vm637 = vcmp.ge.f32.partialorder %v557, -0.5
    %v638 = vsel %vm636, 1, 0
    %v639 = vsel %vm637, 1, 0
    %v640 = vcvt.s32.f32 %v638
    %v641 = vcvt.s32.f32 %v639
    %vm642 = vcmp.ge.f32.partialorder %v556, -0.25
    %vm643 = vcmp.ge.f32.partialorder %v557, -0.25
    %v644 = vsel %vm642, 1, 0
    %v645 = vsel %vm643, 1, 0
    %v646 = vcvt.s32.f32 %v644
    %v647 = vcvt.s32.f32 %v645
    %vm648 = vcmp.ge.f32.partialorder %v556, 0.0
    %vm649 = vcmp.ge.f32.partialorder %v557, 0.0
    %v650 = vsel %vm648, 1, 0
    %v651 = vsel %vm649, 1, 0
    %v652 = vcvt.s32.f32 %v650
    %v653 = vcvt.s32.f32 %v651
    %vm654 = vcmp.ge.f32.partialorder %v556, 0.25
    %vm655 = vcmp.ge.f32.partialorder %v557, 0.25
    %v656 = vsel %vm654, 1, 0
    %v657 = vsel %vm655, 1, 0
    %v658 = vcvt.s32.f32 %v656
    %v659 = vcvt.s32.f32 %v657
    %vm660 = vcmp.ge.f32.partialorder %v556, 0.5
    %vm661 = vcmp.ge.f32.partialorder %v557, 0.5
    %v662 = vsel %vm660, 1, 0
    %v663 = vsel %vm661, 1, 0
    %v664 = vcvt.s32.f32 %v662
    %v665 = vcvt.s32.f32 %v663
    %vm666 = vcmp.ge.f32.partialorder %v556, 0.75
    %vm667 = vcmp.ge.f32.partialorder %v557, 0.75
    %v668 = vsel %vm666, 1, 0
    %v669 = vsel %vm667, 1, 0
    %v670 = vcvt.s32.f32 %v668
    %v671 = vcvt.s32.f32 %v669
    %vm672 = vcmp.ge.f32.partialorder %v556, 1.0
    %vm673 = vcmp.ge.f32.partialorder %v557, 1.0
    %v674 = vsel %vm672, 1, 0
    %v675 = vsel %vm673, 1, 0
    %v676 = vcvt.s32.f32 %v674
    %v677 = vcvt.s32.f32 %v675
    %vm678 = vcmp.ge.f32.partialorder %v556, 1.25
    %vm679 = vcmp.ge.f32.partialorder %v557, 1.25
    %v680 = vsel %vm678, 1, 0
    %v681 = vsel %vm679, 1, 0
    %v682 = vcvt.s32.f32 %v680
    %v683 = vcvt.s32.f32 %v681
    %vm684 = vcmp.ge.f32.partialorder %v556, 1.5
    %vm685 = vcmp.ge.f32.partialorder %v557, 1.5
    %v686 = vsel %vm684, 1, 0
    %v687 = vsel %vm685, 1, 0
    %v688 = vcvt.s32.f32 %v686
    %v689 = vcvt.s32.f32 %v687
    %vm690 = vcmp.ge.f32.partialorder %v556, 1.75
    %vm691 = vcmp.ge.f32.partialorder %v557, 1.75
    %v692 = vsel %vm690, 1, 0
    %v693 = vsel %vm691, 1, 0
    %v694 = vcvt.s32.f32 %v692
    %v695 = vcvt.s32.f32 %v693
    %v696 = vsub.f32 %v610, %v616
    %v697 = vsub.f32 %v611, %v617
    %v698 = vsub.f32 %v616, %v622
    %v699 = vsub.f32 %v617, %v623
    %v700 = vsub.f32 %v622, %v628
    %v701 = vsub.f32 %v623, %v629
    %v702 = vsub.f32 %v628, %v634
    %v703 = vsub.f32 %v629, %v635
    %v704 = vsub.f32 %v634, %v640
    %v705 = vsub.f32 %v635, %v641
    %v706 = vsub.f32 %v640, %v646
    %v707 = vsub.f32 %v641, %v647
    %v708 = vsub.f32 %v646, %v652
    %v709 = vsub.f32 %v647, %v653
    %v710 = vsub.f32 %v652, %v658
    %v711 = vsub.f32 %v653, %v659
    %v712 = vsub.f32 %v658, %v664
    %v713 = vsub.f32 %v659, %v665
    %v714 = vsub.f32 %v664, %v670
    %v715 = vsub.f32 %v665, %v671
    %v716 = vsub.f32 %v670, %v676
    %v717 = vsub.f32 %v671, %v677
    %v718 = vsub.f32 %v676, %v682
    %v719 = vsub.f32 %v677, %v683
    %v720 = vsub.f32 %v682, %v688
    %v721 = vsub.f32 %v683, %v689
    %v722 = vsub.f32 %v688, %v694
    %v723 = vsub.f32 %v689, %v695
    %v724 = vsub.f32 %v556, -1.75
    %v725 = vsub.f32 %v557, -1.75
    %v726 = vsub.f32 %v556, -1.5
    %v727 = vsub.f32 %v557, -1.5
    %v728 = vsub.f32 %v556, -1.25
    %v729 = vsub.f32 %v557, -1.25
    %v730 = vsub.f32 %v556, -1.0
    %v731 = vsub.f32 %v557, -1.0
    %v732 = vsub.f32 %v556, -0.75
    %v733 = vsub.f32 %v557, -0.75
    %v734 = vsub.f32 %v556, -0.5
    %v735 = vsub.f32 %v557, -0.5
    %v736 = vsub.f32 %v556, -0.25
    %v737 = vsub.f32 %v557, -0.25
    %v738 = vsub.f32 %v556, 0.25
    %v739 = vsub.f32 %v557, 0.25
    %v740 = vsub.f32 %v556, 0.5
    %v741 = vsub.f32 %v557, 0.5
    %v742 = vsub.f32 %v556, 0.75
    %v743 = vsub.f32 %v557, 0.75
    %v744 = vsub.f32 %v556, 1.0
    %v745 = vsub.f32 %v557, 1.0
    %v746 = vsub.f32 %v556, 1.25
    %v747 = vsub.f32 %v557, 1.25
    %v748 = vsub.f32 %v556, 1.5
    %v749 = vsub.f32 %v557, 1.5
    %v750 = vsub.f32 %v556, 1.75
    %v751 = vsub.f32 %v557, 1.75
    %v752 = vmul.f32 %v724, %v696
    %v753 = vmul.f32 %v725, %v697
    %v754 = vmul.f32 %v728, %v698
    %v755 = vmul.f32 %v729, %v699
    %v756 = vsub.f32 %v752, %v754
    %v757 = vsub.f32 %v753, %v755
    %v758 = vmul.f32 %v756, 4.0
    %v759 = vmul.f32 %v757, 4.0
    %v760 = vmul.f32 %v726, %v698
    %v761 = vmul.f32 %v727, %v699
    %v762 = vmul.f32 %v730, %v700
    %v763 = vmul.f32 %v731, %v701
    %v764 = vsub.f32 %v760, %v762
    %v765 = vsub.f32 %v761, %v763
    %v766 = vmul.f32 %v764, 4.0
    %v767 = vmul.f32 %v765, 4.0
    %v768 = vmul.f32 %v728, %v700
    %v769 = vmul.f32 %v729, %v701
    %v770 = vmul.f32 %v732, %v702
    %v771 = vmul.f32 %v733, %v703
    %v772 = vsub.f32 %v768, %v770
    %v773 = vsub.f32 %v769, %v771
    %v774 = vmul.f32 %v772, 4.0
    %v775 = vmul.f32 %v773, 4.0
    %v776 = vmul.f32 %v730, %v702
    %v777 = vmul.f32 %v731, %v703
    %v778 = vmul.f32 %v734, %v704
    %v779 = vmul.f32 %v735, %v705
    %v780 = vsub.f32 %v776, %v778
    %v781 = vsub.f32 %v777, %v779
    %v782 = vmul.f32 %v780, 4.0
    %v783 = vmul.f32 %v781, 4.0
    %v784 = vmul.f32 %v732, %v704
    %v785 = vmul.f32 %v733, %v705
    %v786 = vmul.f32 %v736, %v706
    %v787 = vmul.f32 %v737, %v707
    %v788 = vsub.f32 %v784, %v786
    %v789 = vsub.f32 %v785, %v787
    %v790 = vmul.f32 %v788, 4.0
    %v791 = vmul.f32 %v789, 4.0
    %v792 = vmul.f32 %v734, %v706
    %v793 = vmul.f32 %v735, %v707
    %v794 = vmul.f32 %v556, %v708
    %v795 = vmul.f32 %v557, %v709
    %v796 = vsub.f32 %v792, %v794
    %v797 = vsub.f32 %v793, %v795
    %v798 = vmul.f32 %v796, 4.0
    %v799 = vmul.f32 %v797, 4.0
    %v800 = vmul.f32 %v736, %v708
    %v801 = vmul.f32 %v737, %v709
    %v802 = vmul.f32 %v738, %v710
    %v803 = vmul.f32 %v739, %v711
    %v804 = vsub.f32 %v800, %v802
    %v805 = vsub.f32 %v801, %v803
    %v806 = vmul.f32 %v804, 4.0
    %v807 = vmul.f32 %v805, 4.0
    %v808 = vmul.f32 %v556, %v710
    %v809 = vmul.f32 %v557, %v711
    %v810 = vmul.f32 %v740, %v712
    %v811 = vmul.f32 %v741, %v713
    %v812 = vsub.f32 %v808, %v810
    %v813 = vsub.f32 %v809, %v811
    %v814 = vmul.f32 %v812, 4.0
    %v815 = vmul.f32 %v813, 4.0
    %v816 = vmul.f32 %v738, %v712
    %v817 = vmul.f32 %v739, %v713
    %v818 = vmul.f32 %v742, %v714
    %v819 = vmul.f32 %v743, %v715
    %v820 = vsub.f32 %v816, %v818
    %v821 = vsub.f32 %v817, %v819
    %v822 = vmul.f32 %v820, 4.0
    %v823 = vmul.f32 %v821, 4.0
    %v824 = vmul.f32 %v740, %v714
    %v825 = vmul.f32 %v741, %v715
    %v826 = vmul.f32 %v744, %v716
    %v827 = vmul.f32 %v745, %v717
    %v828 = vsub.f32 %v824, %v826
    %v829 = vsub.f32 %v825, %v827
    %v830 = vmul.f32 %v828, 4.0
    %v831 = vmul.f32 %v829, 4.0
    %v832 = vmul.f32 %v742, %v716
    %v833 = vmul.f32 %v743, %v717
    %v834 = vmul.f32 %v746, %v718
    %v835 = vmul.f32 %v747, %v719
    %v836 = vsub.f32 %v832, %v834
    %v837 = vsub.f32 %v833, %v835
    %v838 = vmul.f32 %v836, 4.0
    %v839 = vmul.f32 %v837, 4.0
    %v840 = vmul.f32 %v744, %v718
    %v841 = vmul.f32 %v745, %v719
    %v842 = vmul.f32 %v748, %v720
    %v843 = vmul.f32 %v749, %v721
    %v844 = vsub.f32 %v840, %v842
    %v845 = vsub.f32 %v841, %v843
    %v846 = vmul.f32 %v844, 4.0
    %v847 = vmul.f32 %v845, 4.0
    %v848 = vmul.f32 %v746, %v720
    %v849 = vmul.f32 %v747, %v721
    %v850 = vmul.f32 %v750, %v722
    %v851 = vmul.f32 %v751, %v723
    %v852 = vsub.f32 %v848, %v850
    %v853 = vsub.f32 %v849, %v851
    %v854 = vmul.f32 %v852, 4.0
    %v855 = vmul.f32 %v853, 4.0
    %v856 = vmul.f32 %v724, %v758
    %v857 = vmul.f32 %v725, %v759
    %v858 = vmul.f32 %v730, %v766
    %v859 = vmul.f32 %v731, %v767
    %v860 = vsub.f32 %v856, %v858
    %v861 = vsub.f32 %v857, %v859
    %v862 = vmul.f32 %v860, 2.0
    %v863 = vmul.f32 %v861, 2.0
    %v864 = vmul.f32 %v726, %v766
    %v865 = vmul.f32 %v727, %v767
    %v866 = vmul.f32 %v732, %v774
    %v867 = vmul.f32 %v733, %v775
    %v868 = vsub.f32 %v864, %v866
    %v869 = vsub.f32 %v865, %v867
    %v870 = vmul.f32 %v868, 2.0
    %v871 = vmul.f32 %v869, 2.0
    %v872 = vmul.f32 %v728, %v774
    %v873 = vmul.f32 %v729, %v775
    %v874 = vmul.f32 %v734, %v782
    %v875 = vmul.f32 %v735, %v783
    %v876 = vsub.f32 %v872, %v874
    %v877 = vsub.f32 %v873, %v875
    %v878 = vmul.f32 %v876, 2.0
    %v879 = vmul.f32 %v877, 2.0
    %v880 = vmul.f32 %v730, %v782
    %v881 = vmul.f32 %v731, %v783
    %v882 = vmul.f32 %v736, %v790
    %v883 = vmul.f32 %v737, %v791
    %v884 = vsub.f32 %v880, %v882
    %v885 = vsub.f32 %v881, %v883
    %v886 = vmul.f32 %v884, 2.0
    %v887 = vmul.f32 %v885, 2.0
    %v888 = vmul.f32 %v732, %v790
    %v889 = vmul.f32 %v733, %v791
    %v890 = vmul.f32 %v556, %v798
    %v891 = vmul.f32 %v557, %v799
    %v892 = vsub.f32 %v888, %v890
    %v893 = vsub.f32 %v889, %v891
    %v894 = vmul.f32 %v892, 2.0
    %v895 = vmul.f32 %v893, 2.0
    %v896 = vmul.f32 %v734, %v798
    %v897 = vmul.f32 %v735, %v799
    %v898 = vmul.f32 %v738, %v806
    %v899 = vmul.f32 %v739, %v807
    %v900 = vsub.f32 %v896, %v898
    %v901 = vsub.f32 %v897, %v899
    %v902 = vmul.f32 %v900, 2.0
    %v903 = vmul.f32 %v901, 2.0
    %v904 = vmul.f32 %v736, %v806
    %v905 = vmul.f32 %v737, %v807
    %v906 = vmul.f32 %v740, %v814
    %v907 = vmul.f32 %v741, %v815
    %v908 = vsub.f32 %v904, %v906
    %v909 = vsub.f32 %v905, %v907
    %v910 = vmul.f32 %v908, 2.0
    %v911 = vmul.f32 %v909, 2.0
    %v912 = vmul.f32 %v556, %v814
    %v913 = vmul.f32 %v557, %v815
    %v914 = vmul.f32 %v742, %v822
    %v915 = vmul.f32 %v743, %v823
    %v916 = vsub.f32 %v912, %v914
    %v917 = vsub.f32 %v913, %v915
    %v918 = vmul.f32 %v916, 2.0
    %v919 = vmul.f32 %v917, 2.0
    %v920 = vmul.f32 %v738, %v822
    %v921 = vmul.f32 %v739, %v823
    %v922 = vmul.f32 %v744, %v830
    %v923 = vmul.f32 %v745, %v831
    %v924 = vsub.f32 %v920, %v922
    %v925 = vsub.f32 %v921, %v923
    %v926 = vmul.f32 %v924, 2.0
    %v927 = vmul.f32 %v925, 2.0
    %v928 = vmul.f32 %v740, %v830
    %v929 = vmul.f32 %v741, %v831
    %v930 = vmul.f32 %v746, %v838
    %v931 = vmul.f32 %v747, %v839
    %v932 = vsub.f32 %v928, %v930
    %v933 = vsub.f32 %v929, %v931
    %v934 = vmul.f32 %v932, 2.0
    %v935 = vmul.f32 %v933, 2.0
    %v936 = vmul.f32 %v742, %v838
    %v937 = vmul.f32 %v743, %v839
    %v938 = vmul.f32 %v748, %v846
    %v939 = vmul.f32 %v749, %v847
    %v940 = vsub.f32 %v936, %v938
    %v941 = vsub.f32 %v937, %v939
    %v942 = vmul.f32 %v940, 2.0
    %v943 = vmul.f32 %v941, 2.0
    %v944 = vmul.f32 %v744, %v846
    %v945 = vmul.f32 %v745, %v847
    %v946 = vmul.f32 %v750, %v854
    %v947 = vmul.f32 %v751, %v855
    %v948 = vsub.f32 %v944, %v946
    %v949 = vsub.f32 %v945, %v947
    %v950 = vmul.f32 %v948, 2.0
    %v951 = vmul.f32 %v949, 2.0
    %v952 = vmul.f32 %v724, %v862
    %v953 = vmul.f32 %v725, %v863
    %v954 = vmul.f32 %v732, %v870
    %v955 = vmul.f32 %v733, %v871
    %v956 = vsub.f32 %v952, %v954
    %v957 = vsub.f32 %v953, %v955
    %v958 = vmul.f32 %v956, 1.3333334
    %v959 = vmul.f32 %v957, 1.3333334
    %v960 = vmul.f32 %v726, %v870
    %v961 = vmul.f32 %v727, %v871
    %v962 = vmul.f32 %v734, %v878
    %v963 = vmul.f32 %v735, %v879
    %v964 = vsub.f32 %v960, %v962
    %v965 = vsub.f32 %v961, %v963
    %v966 = vmul.f32 %v964, 1.3333334
    %v967 = vmul.f32 %v965, 1.3333334
    %v968 = vmul.f32 %v728, %v878
    %v969 = vmul.f32 %v729, %v879
    %v970 = vmul.f32 %v736, %v886
    %v971 = vmul.f32 %v737, %v887
    %v972 = vsub.f32 %v968, %v970
    %v973 = vsub.f32 %v969, %v971
    %v974 = vmul.f32 %v972, 1.3333334
    %v975 = vmul.f32 %v973, 1.3333334
    %v976 = vmul.f32 %v730, %v886
    %v977 = vmul.f32 %v731, %v887
    %v978 = vmul.f32 %v556, %v894
    %v979 = vmul.f32 %v557, %v895
    %v980 = vsub.f32 %v976, %v978
    %v981 = vsub.f32 %v977, %v979
    %v982 = vmul.f32 %v980, 1.3333334
    %v983 = vmul.f32 %v981, 1.3333334
    %v984 = vmul.f32 %v732, %v894
    %v985 = vmul.f32 %v733, %v895
    %v986 = vmul.f32 %v738, %v902
    %v987 = vmul.f32 %v739, %v903
    %v988 = vsub.f32 %v984, %v986
    %v989 = vsub.f32 %v985, %v987
    %v990 = vmul.f32 %v988, 1.3333334
    %v991 = vmul.f32 %v989, 1.3333334
    %v992 = vmul.f32 %v734, %v902
    %v993 = vmul.f32 %v735, %v903
    %v994 = vmul.f32 %v740, %v910
    %v995 = vmul.f32 %v741, %v911
    %v996 = vsub.f32 %v992, %v994
    %v997 = vsub.f32 %v993, %v995
    %v998 = vmul.f32 %v996, 1.3333334
    %v999 = vmul.f32 %v997, 1.3333334
    %v1000 = vmul.f32 %v736, %v910
    %v1001 = vmul.f32 %v737, %v911
    %v1002 = vmul.f32 %v742, %v918
    %v1003 = vmul.f32 %v743, %v919
    %v1004 = vsub.f32 %v1000, %v1002
    %v1005 = vsub.f32 %v1001, %v1003
    %v1006 = vmul.f32 %v1004, 1.3333334
    %v1007 = vmul.f32 %v1005, 1.3333334
    %v1008 = vmul.f32 %v556, %v918
    %v1009 = vmul.f32 %v557, %v919
    %v1010 = vmul.f32 %v744, %v926
    %v1011 = vmul.f32 %v745, %v927
    %v1012 = vsub.f32 %v1008, %v1010
    %v1013 = vsub.f32 %v1009, %v1011
    %v1014 = vmul.f32 %v1012, 1.3333334
    %v1015 = vmul.f32 %v1013, 1.3333334
    %v1016 = vmul.f32 %v738, %v926
    %v1017 = vmul.f32 %v739, %v927
    %v1018 = vmul.f32 %v746, %v934
    %v1019 = vmul.f32 %v747, %v935
    %v1020 = vsub.f32 %v1016, %v1018
    %v1021 = vsub.f32 %v1017, %v1019
    %v1022 = vmul.f32 %v1020, 1.3333334
    %v1023 = vmul.f32 %v1021, 1.3333334
    %v1024 = vmul.f32 %v740, %v934
    %v1025 = vmul.f32 %v741, %v935
    %v1026 = vmul.f32 %v748, %v942
    %v1027 = vmul.f32 %v749, %v943
    %v1028 = vsub.f32 %v1024, %v1026
    %v1029 = vsub.f32 %v1025, %v1027
    %v1030 = vmul.f32 %v1028, 1.3333334
    %v1031 = vmul.f32 %v1029, 1.3333334
    %v1032 = vmul.f32 %v742, %v942
    %v1033 = vmul.f32 %v743, %v943
    %v1034 = vmul.f32 %v750, %v950
    %v1035 = vmul.f32 %v751, %v951
    %v1036 = vsub.f32 %v1032, %v1034
    %v1037 = vsub.f32 %v1033, %v1035
    %v1038 = vmul.f32 %v1036, 1.3333334
    %v1039 = vmul.f32 %v1037, 1.3333334
    %v1040 = vxor.u32 %v556, 2147483648
    %v1041 = vxor.u32 %v557, 2147483648
    %v1042 = vmul.f32 %v1040, 1.442695
    %v1043 = vpow.pop %v1042
    %v1044 = vmul.f32 %v1041, 1.442695
    %v1045 = vpow.pop %v1044
    %v1046 = vadd.f32 %v1043, 1.0
    %v1047 = vadd.f32 %v1045, 1.0
    %v1048 = vrcp.pop %v1046
    %v1049 = vmul.f32 %v1046, %v1048
    %v1050 = vsub.f32 1.0, %v1049
    %v1051 = vmul.f32 %v1048, %v1050
    %v1052 = vadd.f32 %v1048, %v1051
    %vm1053 = vweird.f32 %v1046
    %vm1054 = vweird.f32 %v1048
    %vm1055 = vmor %vm1053, %vm1054
    %v1056 = vsel %vm1055, %v1048, %v1052
    %v1057 = vand.u32 2147483647, %v1046
    %vm1058 = vcmp.eq.f32.partialorder %v1057, 8.507059e+37
    %v1059 = vand.u32 %v1046, 2147483648
    %v1060 = vor.u32 1.1754944e-38, %v1059
    %v1061 = vsel %vm1058, %v1060, %v1056
    %v1062 = vmul.f32 1.0, %v1061
    %v1063 = vrcp.pop %v1047
    %v1064 = vmul.f32 %v1047, %v1063
    %v1065 = vsub.f32 1.0, %v1064
    %v1066 = vmul.f32 %v1063, %v1065
    %v1067 = vadd.f32 %v1063, %v1066
    %vm1068 = vweird.f32 %v1047
    %vm1069 = vweird.f32 %v1063
    %vm1070 = vmor %vm1068, %vm1069
    %v1071 = vsel %vm1070, %v1063, %v1067
    %v1072 = vand.u32 2147483647, %v1047
    %vm1073 = vcmp.eq.f32.partialorder %v1072, 8.507059e+37
    %v1074 = vand.u32 %v1047, 2147483648
    %v1075 = vor.u32 1.1754944e-38, %v1074
    %v1076 = vsel %vm1073, %v1075, %v1071
    %v1077 = vmul.f32 1.0, %v1076
    %v1078 = vmul.f32 %v556, %v1062
    %v1079 = vmul.f32 %v557, %v1077
    %v1080 = vpack.c.bf16 %v1079, %v1078
    %v1081 = vpack.c.bf16 %v959, %v958
    %v1086 = vunpack.c.l.b16 %v562
    %v1087 = vunpack.c.l.b16 %v563
    %v1088 = vunpack.c.l.b16 %v564
    %v1089 = vunpack.c.l.b16 %v565
    %v1090 = vpack.c.b16 %v1087, %v1086
    %v1091 = vpack.c.b16 %v1089, %v1088
    %v1095 = vsel %vm56, %v1081, 0
    %1097 = vmatpush.bf16.msra.mxu0 0
    %1098 = vmatpush.bf16.msra.mxu0 0
    %1099 = vmatpush.bf16.msra.mxu0 0
    %1100 = vmatpush.bf16.msra.mxu0 0
    %1101 = vmatpush.bf16.msra.mxu0 0
    %1102 = vmatpush.bf16.msra.mxu0 0
    %1103 = vmatpush.bf16.msra.mxu0 %v1091
    %1104 = vmatpush.bf16.msra.mxu0 %v1090
    %1105 = vmatmul.bf16.gmra.mxu0 %v1095
    %v1106 = vpop.f32.mrf.mxu0
    %v1107 = vadd.f32 0.0, %v1106
    %v1108 = vpop.f32.mrf.mxu0
    %v1109 = vadd.f32 0.0, %v1108
    %1110 = vdwg.mxu0
    %v1115 = vunpack.c.l.b16 %v558
    %v1116 = vunpack.c.l.b16 %v559
    %v1117 = vunpack.c.l.b16 %v560
    %v1118 = vunpack.c.l.b16 %v561
    %v1119 = vpack.c.b16 %v1116, %v1115
    %v1120 = vpack.c.b16 %v1118, %v1117
    %v1124 = vsel %vm56, %v1080, 0
    %1126 = vmatpush.bf16.msra.mxu0 0
    %1127 = vmatpush.bf16.msra.mxu0 0
    %1128 = vmatpush.bf16.msra.mxu0 0
    %1129 = vmatpush.bf16.msra.mxu0 0
    %1130 = vmatpush.bf16.msra.mxu0 0
    %1131 = vmatpush.bf16.msra.mxu0 0
    %1132 = vmatpush.bf16.msra.mxu0 %v1120
    %1133 = vmatpush.bf16.msra.mxu0 %v1119
    %1134 = vmatmul.bf16.gmra.mxu0 %v1124
    %v1135 = vpop.f32.mrf.mxu0
    %v1136 = vadd.f32 %v1107, %v1135
    %v1137 = vpop.f32.mrf.mxu0
    %v1138 = vadd.f32 %v1109, %v1137
    %1139 = vdwg.mxu0
    %v1140 = vpack.c.bf16 %v967, %v966
    %v1145 = vunpack.c.l.b16 %v566
    %v1146 = vunpack.c.l.b16 %v567
    %v1147 = vunpack.c.l.b16 %v568
    %v1148 = vunpack.c.l.b16 %v569
    %v1149 = vpack.c.b16 %v1146, %v1145
    %v1150 = vpack.c.b16 %v1148, %v1147
    %v1154 = vsel %vm56, %v1140, 0
    %1156 = vmatpush.bf16.msra.mxu0 0
    %1157 = vmatpush.bf16.msra.mxu0 0
    %1158 = vmatpush.bf16.msra.mxu0 0
    %1159 = vmatpush.bf16.msra.mxu0 0
    %1160 = vmatpush.bf16.msra.mxu0 0
    %1161 = vmatpush.bf16.msra.mxu0 0
    %1162 = vmatpush.bf16.msra.mxu0 %v1150
    %1163 = vmatpush.bf16.msra.mxu0 %v1149
    %1164 = vmatmul.bf16.gmra.mxu0 %v1154
    %v1165 = vpop.f32.mrf.mxu0
    %v1166 = vadd.f32 0.0, %v1165
    %v1167 = vpop.f32.mrf.mxu0
    %v1168 = vadd.f32 0.0, %v1167
    %1169 = vdwg.mxu0
    %v1170 = vadd.f32 %v1136, %v1166
    %v1171 = vadd.f32 %v1138, %v1168
    %v1172 = vpack.c.bf16 %v975, %v974
    %v1177 = vunpack.c.l.b16 %v570
    %v1178 = vunpack.c.l.b16 %v571
    %v1179 = vunpack.c.l.b16 %v572
    %v1180 = vunpack.c.l.b16 %v573
    %v1181 = vpack.c.b16 %v1178, %v1177
    %v1182 = vpack.c.b16 %v1180, %v1179
    %v1186 = vsel %vm56, %v1172, 0
    %1188 = vmatpush.bf16.msra.mxu0 0
    %1189 = vmatpush.bf16.msra.mxu0 0
    %1190 = vmatpush.bf16.msra.mxu0 0
    %1191 = vmatpush.bf16.msra.mxu0 0
    %1192 = vmatpush.bf16.msra.mxu0 0
    %1193 = vmatpush.bf16.msra.mxu0 0
    %1194 = vmatpush.bf16.msra.mxu0 %v1182
    %1195 = vmatpush.bf16.msra.mxu0 %v1181
    %1196 = vmatmul.bf16.gmra.mxu0 %v1186
    %v1197 = vpop.f32.mrf.mxu0
    %v1198 = vadd.f32 0.0, %v1197
    %v1199 = vpop.f32.mrf.mxu0
    %v1200 = vadd.f32 0.0, %v1199
    %1201 = vdwg.mxu0
    %v1202 = vadd.f32 %v1170, %v1198
    %v1203 = vadd.f32 %v1171, %v1200
    %v1204 = vpack.c.bf16 %v983, %v982
    %v1209 = vunpack.c.l.b16 %v574
    %v1210 = vunpack.c.l.b16 %v575
    %v1211 = vunpack.c.l.b16 %v576
    %v1212 = vunpack.c.l.b16 %v577
    %v1213 = vpack.c.b16 %v1210, %v1209
    %v1214 = vpack.c.b16 %v1212, %v1211
    %v1218 = vsel %vm56, %v1204, 0
    %1220 = vmatpush.bf16.msra.mxu0 0
    %1221 = vmatpush.bf16.msra.mxu0 0
    %1222 = vmatpush.bf16.msra.mxu0 0
    %1223 = vmatpush.bf16.msra.mxu0 0
    %1224 = vmatpush.bf16.msra.mxu0 0
    %1225 = vmatpush.bf16.msra.mxu0 0
    %1226 = vmatpush.bf16.msra.mxu0 %v1214
    %1227 = vmatpush.bf16.msra.mxu0 %v1213
    %1228 = vmatmul.bf16.gmra.mxu0 %v1218
    %v1229 = vpop.f32.mrf.mxu0
    %v1230 = vadd.f32 0.0, %v1229
    %v1231 = vpop.f32.mrf.mxu0
    %v1232 = vadd.f32 0.0, %v1231
    %1233 = vdwg.mxu0
    %v1234 = vadd.f32 %v1202, %v1230
    %v1235 = vadd.f32 %v1203, %v1232
    %v1236 = vpack.c.bf16 %v991, %v990
    %v1241 = vunpack.c.l.b16 %v578
    %v1242 = vunpack.c.l.b16 %v579
    %v1243 = vunpack.c.l.b16 %v580
    %v1244 = vunpack.c.l.b16 %v581
    %v1245 = vpack.c.b16 %v1242, %v1241
    %v1246 = vpack.c.b16 %v1244, %v1243
    %v1250 = vsel %vm56, %v1236, 0
    %1252 = vmatpush.bf16.msra.mxu0 0
    %1253 = vmatpush.bf16.msra.mxu0 0
    %1254 = vmatpush.bf16.msra.mxu0 0
    %1255 = vmatpush.bf16.msra.mxu0 0
    %1256 = vmatpush.bf16.msra.mxu0 0
    %1257 = vmatpush.bf16.msra.mxu0 0
    %1258 = vmatpush.bf16.msra.mxu0 %v1246
    %1259 = vmatpush.bf16.msra.mxu0 %v1245
    %1260 = vmatmul.bf16.gmra.mxu0 %v1250
    %v1261 = vpop.f32.mrf.mxu0
    %v1262 = vadd.f32 0.0, %v1261
    %v1263 = vpop.f32.mrf.mxu0
    %v1264 = vadd.f32 0.0, %v1263
    %1265 = vdwg.mxu0
    %v1266 = vadd.f32 %v1234, %v1262
    %v1267 = vadd.f32 %v1235, %v1264
    %v1268 = vpack.c.bf16 %v999, %v998
    %v1273 = vunpack.c.l.b16 %v582
    %v1274 = vunpack.c.l.b16 %v583
    %v1275 = vunpack.c.l.b16 %v584
    %v1276 = vunpack.c.l.b16 %v585
    %v1277 = vpack.c.b16 %v1274, %v1273
    %v1278 = vpack.c.b16 %v1276, %v1275
    %v1282 = vsel %vm56, %v1268, 0
    %1284 = vmatpush.bf16.msra.mxu0 0
    %1285 = vmatpush.bf16.msra.mxu0 0
    %1286 = vmatpush.bf16.msra.mxu0 0
    %1287 = vmatpush.bf16.msra.mxu0 0
    %1288 = vmatpush.bf16.msra.mxu0 0
    %1289 = vmatpush.bf16.msra.mxu0 0
    %1290 = vmatpush.bf16.msra.mxu0 %v1278
    %1291 = vmatpush.bf16.msra.mxu0 %v1277
    %1292 = vmatmul.bf16.gmra.mxu0 %v1282
    %v1293 = vpop.f32.mrf.mxu0
    %v1294 = vadd.f32 0.0, %v1293
    %v1295 = vpop.f32.mrf.mxu0
    %v1296 = vadd.f32 0.0, %v1295
    %1297 = vdwg.mxu0
    %v1298 = vadd.f32 %v1266, %v1294
    %v1299 = vadd.f32 %v1267, %v1296
    %v1300 = vpack.c.bf16 %v1007, %v1006
    %v1305 = vunpack.c.l.b16 %v586
    %v1306 = vunpack.c.l.b16 %v587
    %v1307 = vunpack.c.l.b16 %v588
    %v1308 = vunpack.c.l.b16 %v589
    %v1309 = vpack.c.b16 %v1306, %v1305
    %v1310 = vpack.c.b16 %v1308, %v1307
    %v1314 = vsel %vm56, %v1300, 0
    %1316 = vmatpush.bf16.msra.mxu0 0
    %1317 = vmatpush.bf16.msra.mxu0 0
    %1318 = vmatpush.bf16.msra.mxu0 0
    %1319 = vmatpush.bf16.msra.mxu0 0
    %1320 = vmatpush.bf16.msra.mxu0 0
    %1321 = vmatpush.bf16.msra.mxu0 0
    %1322 = vmatpush.bf16.msra.mxu0 %v1310
    %1323 = vmatpush.bf16.msra.mxu0 %v1309
    %1324 = vmatmul.bf16.gmra.mxu0 %v1314
    %v1325 = vpop.f32.mrf.mxu0
    %v1326 = vadd.f32 0.0, %v1325
    %v1327 = vpop.f32.mrf.mxu0
    %v1328 = vadd.f32 0.0, %v1327
    %1329 = vdwg.mxu0
    %v1330 = vadd.f32 %v1298, %v1326
    %v1331 = vadd.f32 %v1299, %v1328
    %v1332 = vpack.c.bf16 %v1015, %v1014
    %v1337 = vunpack.c.l.b16 %v590
    %v1338 = vunpack.c.l.b16 %v591
    %v1339 = vunpack.c.l.b16 %v592
    %v1340 = vunpack.c.l.b16 %v593
    %v1341 = vpack.c.b16 %v1338, %v1337
    %v1342 = vpack.c.b16 %v1340, %v1339
    %v1346 = vsel %vm56, %v1332, 0
    %1348 = vmatpush.bf16.msra.mxu0 0
    %1349 = vmatpush.bf16.msra.mxu0 0
    %1350 = vmatpush.bf16.msra.mxu0 0
    %1351 = vmatpush.bf16.msra.mxu0 0
    %1352 = vmatpush.bf16.msra.mxu0 0
    %1353 = vmatpush.bf16.msra.mxu0 0
    %1354 = vmatpush.bf16.msra.mxu0 %v1342
    %1355 = vmatpush.bf16.msra.mxu0 %v1341
    %1356 = vmatmul.bf16.gmra.mxu0 %v1346
    %v1357 = vpop.f32.mrf.mxu0
    %v1358 = vadd.f32 0.0, %v1357
    %v1359 = vpop.f32.mrf.mxu0
    %v1360 = vadd.f32 0.0, %v1359
    %1361 = vdwg.mxu0
    %v1362 = vadd.f32 %v1330, %v1358
    %v1363 = vadd.f32 %v1331, %v1360
    %v1364 = vpack.c.bf16 %v1023, %v1022
    %v1369 = vunpack.c.l.b16 %v594
    %v1370 = vunpack.c.l.b16 %v595
    %v1371 = vunpack.c.l.b16 %v596
    %v1372 = vunpack.c.l.b16 %v597
    %v1373 = vpack.c.b16 %v1370, %v1369
    %v1374 = vpack.c.b16 %v1372, %v1371
    %v1378 = vsel %vm56, %v1364, 0
    %1380 = vmatpush.bf16.msra.mxu0 0
    %1381 = vmatpush.bf16.msra.mxu0 0
    %1382 = vmatpush.bf16.msra.mxu0 0
    %1383 = vmatpush.bf16.msra.mxu0 0
    %1384 = vmatpush.bf16.msra.mxu0 0
    %1385 = vmatpush.bf16.msra.mxu0 0
    %1386 = vmatpush.bf16.msra.mxu0 %v1374
    %1387 = vmatpush.bf16.msra.mxu0 %v1373
    %1388 = vmatmul.bf16.gmra.mxu0 %v1378
    %v1389 = vpop.f32.mrf.mxu0
    %v1390 = vadd.f32 0.0, %v1389
    %v1391 = vpop.f32.mrf.mxu0
    %v1392 = vadd.f32 0.0, %v1391
    %1393 = vdwg.mxu0
    %v1394 = vadd.f32 %v1362, %v1390
    %v1395 = vadd.f32 %v1363, %v1392
    %v1396 = vpack.c.bf16 %v1031, %v1030
    %v1401 = vunpack.c.l.b16 %v598
    %v1402 = vunpack.c.l.b16 %v599
    %v1403 = vunpack.c.l.b16 %v600
    %v1404 = vunpack.c.l.b16 %v601
    %v1405 = vpack.c.b16 %v1402, %v1401
    %v1406 = vpack.c.b16 %v1404, %v1403
    %v1410 = vsel %vm56, %v1396, 0
    %1412 = vmatpush.bf16.msra.mxu0 0
    %1413 = vmatpush.bf16.msra.mxu0 0
    %1414 = vmatpush.bf16.msra.mxu0 0
    %1415 = vmatpush.bf16.msra.mxu0 0
    %1416 = vmatpush.bf16.msra.mxu0 0
    %1417 = vmatpush.bf16.msra.mxu0 0
    %1418 = vmatpush.bf16.msra.mxu0 %v1406
    %1419 = vmatpush.bf16.msra.mxu0 %v1405
    %1420 = vmatmul.bf16.gmra.mxu0 %v1410
    %v1421 = vpop.f32.mrf.mxu0
    %v1422 = vadd.f32 0.0, %v1421
    %v1423 = vpop.f32.mrf.mxu0
    %v1424 = vadd.f32 0.0, %v1423
    %1425 = vdwg.mxu0
    %v1426 = vadd.f32 %v1394, %v1422
    %v1427 = vadd.f32 %v1395, %v1424
    %v1428 = vpack.c.bf16 %v1039, %v1038
    %v1433 = vunpack.c.l.b16 %v602
    %v1434 = vunpack.c.l.b16 %v603
    %v1435 = vunpack.c.l.b16 %v604
    %v1436 = vunpack.c.l.b16 %v605
    %v1437 = vpack.c.b16 %v1434, %v1433
    %v1438 = vpack.c.b16 %v1436, %v1435
    %v1442 = vsel %vm56, %v1428, 0
    %1444 = vmatpush.bf16.msra.mxu0 0
    %1445 = vmatpush.bf16.msra.mxu0 0
    %1446 = vmatpush.bf16.msra.mxu0 0
    %1447 = vmatpush.bf16.msra.mxu0 0
    %1448 = vmatpush.bf16.msra.mxu0 0
    %1449 = vmatpush.bf16.msra.mxu0 0
    %1450 = vmatpush.bf16.msra.mxu0 %v1438
    %1451 = vmatpush.bf16.msra.mxu0 %v1437
    %1452 = vmatmul.bf16.gmra.mxu0 %v1442
    %v1453 = vpop.f32.mrf.mxu0
    %v1454 = vadd.f32 0.0, %v1453
    %v1455 = vpop.f32.mrf.mxu0
    %v1456 = vadd.f32 0.0, %v1455
    %1457 = vdwg.mxu0
    %v1458 = vadd.f32 %v1426, %v1454
    %v1459 = vadd.f32 %v1427, %v1456
    %s1460 = scalar_lea.vmem %s6, 192
    %v1461 = vld [vmem:[%s1460] sm:$0xf]
    %v1462 = vld [vmem:[%s1460 + $0x4] sm:$0xf]
    %v1463 = vld [vmem:[%s1460 + $0x8] sm:$0xf]
    %v1464 = vld [vmem:[%s1460 + $0xc] sm:$0xf]
    %v1465 = vld [vmem:[%s1460 + $0x10] sm:$0xf]
    %v1466 = vld [vmem:[%s1460 + $0x14] sm:$0xf]
    %v1467 = vld [vmem:[%s1460 + $0x18] sm:$0xf]
    %v1468 = vld [vmem:[%s1460 + $0x1c] sm:$0xf]
    %v1469 = vld [vmem:[%s1460 + $0x20] sm:$0xf]
    %v1470 = vld [vmem:[%s1460 + $0x24] sm:$0xf]
    %v1471 = vld [vmem:[%s1460 + $0x28] sm:$0xf]
    %v1472 = vld [vmem:[%s1460 + $0x2c] sm:$0xf]
    %v1473 = vld [vmem:[%s1460 + $0x30] sm:$0xf]
    %v1474 = vld [vmem:[%s1460 + $0x34] sm:$0xf]
    %v1475 = vld [vmem:[%s1460 + $0x38] sm:$0xf]
    %v1476 = vld [vmem:[%s1460 + $0x3c] sm:$0xf]
    %v1477 = vld [vmem:[%s1460 + $0x40] sm:$0xf]
    %v1478 = vld [vmem:[%s1460 + $0x44] sm:$0xf]
    %v1479 = vld [vmem:[%s1460 + $0x48] sm:$0xf]
    %v1480 = vld [vmem:[%s1460 + $0x4c] sm:$0xf]
    %v1481 = vld [vmem:[%s1460 + $0x50] sm:$0xf]
    %v1482 = vld [vmem:[%s1460 + $0x54] sm:$0xf]
    %v1483 = vld [vmem:[%s1460 + $0x58] sm:$0xf]
    %v1484 = vld [vmem:[%s1460 + $0x5c] sm:$0xf]
    %v1485 = vld [vmem:[%s1460 + $0x60] sm:$0xf]
    %v1486 = vld [vmem:[%s1460 + $0x64] sm:$0xf]
    %v1487 = vld [vmem:[%s1460 + $0x68] sm:$0xf]
    %v1488 = vld [vmem:[%s1460 + $0x6c] sm:$0xf]
    %v1489 = vld [vmem:[%s1460 + $0x70] sm:$0xf]
    %v1490 = vld [vmem:[%s1460 + $0x74] sm:$0xf]
    %v1491 = vld [vmem:[%s1460 + $0x78] sm:$0xf]
    %v1492 = vld [vmem:[%s1460 + $0x7c] sm:$0xf]
    %v1493 = vld [vmem:[%s1460 + $0x80] sm:$0xf]
    %v1494 = vld [vmem:[%s1460 + $0x84] sm:$0xf]
    %v1495 = vld [vmem:[%s1460 + $0x88] sm:$0xf]
    %v1496 = vld [vmem:[%s1460 + $0x8c] sm:$0xf]
    %v1497 = vld [vmem:[%s1460 + $0x90] sm:$0xf]
    %v1498 = vld [vmem:[%s1460 + $0x94] sm:$0xf]
    %v1499 = vld [vmem:[%s1460 + $0x98] sm:$0xf]
    %v1500 = vld [vmem:[%s1460 + $0x9c] sm:$0xf]
    %v1501 = vld [vmem:[%s1460 + $0xa0] sm:$0xf]
    %v1502 = vld [vmem:[%s1460 + $0xa4] sm:$0xf]
    %v1503 = vld [vmem:[%s1460 + $0xa8] sm:$0xf]
    %v1504 = vld [vmem:[%s1460 + $0xac] sm:$0xf]
    %v1505 = vld [vmem:[%s1460 + $0xb0] sm:$0xf]
    %v1506 = vld [vmem:[%s1460 + $0xb4] sm:$0xf]
    %v1507 = vld [vmem:[%s1460 + $0xb8] sm:$0xf]
    %v1508 = vld [vmem:[%s1460 + $0xbc] sm:$0xf]
    %vm1509 = vcmp.ge.f32.partialorder %v1458, -1.75
    %vm1510 = vcmp.ge.f32.partialorder %v1459, -1.75
    %v1511 = vsel %vm1509, 1, 0
    %v1512 = vsel %vm1510, 1, 0
    %v1513 = vcvt.s32.f32 %v1511
    %v1514 = vcvt.s32.f32 %v1512
    %vm1515 = vcmp.ge.f32.partialorder %v1458, -1.5
    %vm1516 = vcmp.ge.f32.partialorder %v1459, -1.5
    %v1517 = vsel %vm1515, 1, 0
    %v1518 = vsel %vm1516, 1, 0
    %v1519 = vcvt.s32.f32 %v1517
    %v1520 = vcvt.s32.f32 %v1518
    %vm1521 = vcmp.ge.f32.partialorder %v1458, -1.25
    %vm1522 = vcmp.ge.f32.partialorder %v1459, -1.25
    %v1523 = vsel %vm1521, 1, 0
    %v1524 = vsel %vm1522, 1, 0
    %v1525 = vcvt.s32.f32 %v1523
    %v1526 = vcvt.s32.f32 %v1524
    %vm1527 = vcmp.ge.f32.partialorder %v1458, -1.0
    %vm1528 = vcmp.ge.f32.partialorder %v1459, -1.0
    %v1529 = vsel %vm1527, 1, 0
    %v1530 = vsel %vm1528, 1, 0
    %v1531 = vcvt.s32.f32 %v1529
    %v1532 = vcvt.s32.f32 %v1530
    %vm1533 = vcmp.ge.f32.partialorder %v1458, -0.75
    %vm1534 = vcmp.ge.f32.partialorder %v1459, -0.75
    %v1535 = vsel %vm1533, 1, 0
    %v1536 = vsel %vm1534, 1, 0
    %v1537 = vcvt.s32.f32 %v1535
    %v1538 = vcvt.s32.f32 %v1536
    %vm1539 = vcmp.ge.f32.partialorder %v1458, -0.5
    %vm1540 = vcmp.ge.f32.partialorder %v1459, -0.5
    %v1541 = vsel %vm1539, 1, 0
    %v1542 = vsel %vm1540, 1, 0
    %v1543 = vcvt.s32.f32 %v1541
    %v1544 = vcvt.s32.f32 %v1542
    %vm1545 = vcmp.ge.f32.partialorder %v1458, -0.25
    %vm1546 = vcmp.ge.f32.partialorder %v1459, -0.25
    %v1547 = vsel %vm1545, 1, 0
    %v1548 = vsel %vm1546, 1, 0
    %v1549 = vcvt.s32.f32 %v1547
    %v1550 = vcvt.s32.f32 %v1548
    %vm1551 = vcmp.ge.f32.partialorder %v1458, 0.0
    %vm1552 = vcmp.ge.f32.partialorder %v1459, 0.0
    %v1553 = vsel %vm1551, 1, 0
    %v1554 = vsel %vm1552, 1, 0
    %v1555 = vcvt.s32.f32 %v1553
    %v1556 = vcvt.s32.f32 %v1554
    %vm1557 = vcmp.ge.f32.partialorder %v1458, 0.25
    %vm1558 = vcmp.ge.f32.partialorder %v1459, 0.25
    %v1559 = vsel %vm1557, 1, 0
    %v1560 = vsel %vm1558, 1, 0
    %v1561 = vcvt.s32.f32 %v1559
    %v1562 = vcvt.s32.f32 %v1560
    %vm1563 = vcmp.ge.f32.partialorder %v1458, 0.5
    %vm1564 = vcmp.ge.f32.partialorder %v1459, 0.5
    %v1565 = vsel %vm1563, 1, 0
    %v1566 = vsel %vm1564, 1, 0
    %v1567 = vcvt.s32.f32 %v1565
    %v1568 = vcvt.s32.f32 %v1566
    %vm1569 = vcmp.ge.f32.partialorder %v1458, 0.75
    %vm1570 = vcmp.ge.f32.partialorder %v1459, 0.75
    %v1571 = vsel %vm1569, 1, 0
    %v1572 = vsel %vm1570, 1, 0
    %v1573 = vcvt.s32.f32 %v1571
    %v1574 = vcvt.s32.f32 %v1572
    %vm1575 = vcmp.ge.f32.partialorder %v1458, 1.0
    %vm1576 = vcmp.ge.f32.partialorder %v1459, 1.0
    %v1577 = vsel %vm1575, 1, 0
    %v1578 = vsel %vm1576, 1, 0
    %v1579 = vcvt.s32.f32 %v1577
    %v1580 = vcvt.s32.f32 %v1578
    %vm1581 = vcmp.ge.f32.partialorder %v1458, 1.25
    %vm1582 = vcmp.ge.f32.partialorder %v1459, 1.25
    %v1583 = vsel %vm1581, 1, 0
    %v1584 = vsel %vm1582, 1, 0
    %v1585 = vcvt.s32.f32 %v1583
    %v1586 = vcvt.s32.f32 %v1584
    %vm1587 = vcmp.ge.f32.partialorder %v1458, 1.5
    %vm1588 = vcmp.ge.f32.partialorder %v1459, 1.5
    %v1589 = vsel %vm1587, 1, 0
    %v1590 = vsel %vm1588, 1, 0
    %v1591 = vcvt.s32.f32 %v1589
    %v1592 = vcvt.s32.f32 %v1590
    %vm1593 = vcmp.ge.f32.partialorder %v1458, 1.75
    %vm1594 = vcmp.ge.f32.partialorder %v1459, 1.75
    %v1595 = vsel %vm1593, 1, 0
    %v1596 = vsel %vm1594, 1, 0
    %v1597 = vcvt.s32.f32 %v1595
    %v1598 = vcvt.s32.f32 %v1596
    %v1599 = vsub.f32 %v1513, %v1519
    %v1600 = vsub.f32 %v1514, %v1520
    %v1601 = vsub.f32 %v1519, %v1525
    %v1602 = vsub.f32 %v1520, %v1526
    %v1603 = vsub.f32 %v1525, %v1531
    %v1604 = vsub.f32 %v1526, %v1532
    %v1605 = vsub.f32 %v1531, %v1537
    %v1606 = vsub.f32 %v1532, %v1538
    %v1607 = vsub.f32 %v1537, %v1543
    %v1608 = vsub.f32 %v1538, %v1544
    %v1609 = vsub.f32 %v1543, %v1549
    %v1610 = vsub.f32 %v1544, %v1550
    %v1611 = vsub.f32 %v1549, %v1555
    %v1612 = vsub.f32 %v1550, %v1556
    %v1613 = vsub.f32 %v1555, %v1561
    %v1614 = vsub.f32 %v1556, %v1562
    %v1615 = vsub.f32 %v1561, %v1567
    %v1616 = vsub.f32 %v1562, %v1568
    %v1617 = vsub.f32 %v1567, %v1573
    %v1618 = vsub.f32 %v1568, %v1574
    %v1619 = vsub.f32 %v1573, %v1579
    %v1620 = vsub.f32 %v1574, %v1580
    %v1621 = vsub.f32 %v1579, %v1585
    %v1622 = vsub.f32 %v1580, %v1586
    %v1623 = vsub.f32 %v1585, %v1591
    %v1624 = vsub.f32 %v1586, %v1592
    %v1625 = vsub.f32 %v1591, %v1597
    %v1626 = vsub.f32 %v1592, %v1598
    %v1627 = vsub.f32 %v1458, -1.75
    %v1628 = vsub.f32 %v1459, -1.75
    %v1629 = vsub.f32 %v1458, -1.5
    %v1630 = vsub.f32 %v1459, -1.5
    %v1631 = vsub.f32 %v1458, -1.25
    %v1632 = vsub.f32 %v1459, -1.25
    %v1633 = vsub.f32 %v1458, -1.0
    %v1634 = vsub.f32 %v1459, -1.0
    %v1635 = vsub.f32 %v1458, -0.75
    %v1636 = vsub.f32 %v1459, -0.75
    %v1637 = vsub.f32 %v1458, -0.5
    %v1638 = vsub.f32 %v1459, -0.5
    %v1639 = vsub.f32 %v1458, -0.25
    %v1640 = vsub.f32 %v1459, -0.25
    %v1641 = vsub.f32 %v1458, 0.25
    %v1642 = vsub.f32 %v1459, 0.25
    %v1643 = vsub.f32 %v1458, 0.5
    %v1644 = vsub.f32 %v1459, 0.5
    %v1645 = vsub.f32 %v1458, 0.75
    %v1646 = vsub.f32 %v1459, 0.75
    %v1647 = vsub.f32 %v1458, 1.0
    %v1648 = vsub.f32 %v1459, 1.0
    %v1649 = vsub.f32 %v1458, 1.25
    %v1650 = vsub.f32 %v1459, 1.25
    %v1651 = vsub.f32 %v1458, 1.5
    %v1652 = vsub.f32 %v1459, 1.5
    %v1653 = vsub.f32 %v1458, 1.75
    %v1654 = vsub.f32 %v1459, 1.75
    %v1655 = vmul.f32 %v1627, %v1599
    %v1656 = vmul.f32 %v1628, %v1600
    %v1657 = vmul.f32 %v1631, %v1601
    %v1658 = vmul.f32 %v1632, %v1602
    %v1659 = vsub.f32 %v1655, %v1657
    %v1660 = vsub.f32 %v1656, %v1658
    %v1661 = vmul.f32 %v1659, 4.0
    %v1662 = vmul.f32 %v1660, 4.0
    %v1663 = vmul.f32 %v1629, %v1601
    %v1664 = vmul.f32 %v1630, %v1602
    %v1665 = vmul.f32 %v1633, %v1603
    %v1666 = vmul.f32 %v1634, %v1604
    %v1667 = vsub.f32 %v1663, %v1665
    %v1668 = vsub.f32 %v1664, %v1666
    %v1669 = vmul.f32 %v1667, 4.0
    %v1670 = vmul.f32 %v1668, 4.0
    %v1671 = vmul.f32 %v1631, %v1603
    %v1672 = vmul.f32 %v1632, %v1604
    %v1673 = vmul.f32 %v1635, %v1605
    %v1674 = vmul.f32 %v1636, %v1606
    %v1675 = vsub.f32 %v1671, %v1673
    %v1676 = vsub.f32 %v1672, %v1674
    %v1677 = vmul.f32 %v1675, 4.0
    %v1678 = vmul.f32 %v1676, 4.0
    %v1679 = vmul.f32 %v1633, %v1605
    %v1680 = vmul.f32 %v1634, %v1606
    %v1681 = vmul.f32 %v1637, %v1607
    %v1682 = vmul.f32 %v1638, %v1608
    %v1683 = vsub.f32 %v1679, %v1681
    %v1684 = vsub.f32 %v1680, %v1682
    %v1685 = vmul.f32 %v1683, 4.0
    %v1686 = vmul.f32 %v1684, 4.0
    %v1687 = vmul.f32 %v1635, %v1607
    %v1688 = vmul.f32 %v1636, %v1608
    %v1689 = vmul.f32 %v1639, %v1609
    %v1690 = vmul.f32 %v1640, %v1610
    %v1691 = vsub.f32 %v1687, %v1689
    %v1692 = vsub.f32 %v1688, %v1690
    %v1693 = vmul.f32 %v1691, 4.0
    %v1694 = vmul.f32 %v1692, 4.0
    %v1695 = vmul.f32 %v1637, %v1609
    %v1696 = vmul.f32 %v1638, %v1610
    %v1697 = vmul.f32 %v1458, %v1611
    %v1698 = vmul.f32 %v1459, %v1612
    %v1699 = vsub.f32 %v1695, %v1697
    %v1700 = vsub.f32 %v1696, %v1698
    %v1701 = vmul.f32 %v1699, 4.0
    %v1702 = vmul.f32 %v1700, 4.0
    %v1703 = vmul.f32 %v1639, %v1611
    %v1704 = vmul.f32 %v1640, %v1612
    %v1705 = vmul.f32 %v1641, %v1613
    %v1706 = vmul.f32 %v1642, %v1614
    %v1707 = vsub.f32 %v1703, %v1705
    %v1708 = vsub.f32 %v1704, %v1706
    %v1709 = vmul.f32 %v1707, 4.0
    %v1710 = vmul.f32 %v1708, 4.0
    %v1711 = vmul.f32 %v1458, %v1613
    %v1712 = vmul.f32 %v1459, %v1614
    %v1713 = vmul.f32 %v1643, %v1615
    %v1714 = vmul.f32 %v1644, %v1616
    %v1715 = vsub.f32 %v1711, %v1713
    %v1716 = vsub.f32 %v1712, %v1714
    %v1717 = vmul.f32 %v1715, 4.0
    %v1718 = vmul.f32 %v1716, 4.0
    %v1719 = vmul.f32 %v1641, %v1615
    %v1720 = vmul.f32 %v1642, %v1616
    %v1721 = vmul.f32 %v1645, %v1617
    %v1722 = vmul.f32 %v1646, %v1618
    %v1723 = vsub.f32 %v1719, %v1721
    %v1724 = vsub.f32 %v1720, %v1722
    %v1725 = vmul.f32 %v1723, 4.0
    %v1726 = vmul.f32 %v1724, 4.0
    %v1727 = vmul.f32 %v1643, %v1617
    %v1728 = vmul.f32 %v1644, %v1618
    %v1729 = vmul.f32 %v1647, %v1619
    %v1730 = vmul.f32 %v1648, %v1620
    %v1731 = vsub.f32 %v1727, %v1729
    %v1732 = vsub.f32 %v1728, %v1730
    %v1733 = vmul.f32 %v1731, 4.0
    %v1734 = vmul.f32 %v1732, 4.0
    %v1735 = vmul.f32 %v1645, %v1619
    %v1736 = vmul.f32 %v1646, %v1620
    %v1737 = vmul.f32 %v1649, %v1621
    %v1738 = vmul.f32 %v1650, %v1622
    %v1739 = vsub.f32 %v1735, %v1737
    %v1740 = vsub.f32 %v1736, %v1738
    %v1741 = vmul.f32 %v1739, 4.0
    %v1742 = vmul.f32 %v1740, 4.0
    %v1743 = vmul.f32 %v1647, %v1621
    %v1744 = vmul.f32 %v1648, %v1622
    %v1745 = vmul.f32 %v1651, %v1623
    %v1746 = vmul.f32 %v1652, %v1624
    %v1747 = vsub.f32 %v1743, %v1745
    %v1748 = vsub.f32 %v1744, %v1746
    %v1749 = vmul.f32 %v1747, 4.0
    %v1750 = vmul.f32 %v1748, 4.0
    %v1751 = vmul.f32 %v1649, %v1623
    %v1752 = vmul.f32 %v1650, %v1624
    %v1753 = vmul.f32 %v1653, %v1625
    %v1754 = vmul.f32 %v1654, %v1626
    %v1755 = vsub.f32 %v1751, %v1753
    %v1756 = vsub.f32 %v1752, %v1754
    %v1757 = vmul.f32 %v1755, 4.0
    %v1758 = vmul.f32 %v1756, 4.0
    %v1759 = vmul.f32 %v1627, %v1661
    %v1760 = vmul.f32 %v1628, %v1662
    %v1761 = vmul.f32 %v1633, %v1669
    %v1762 = vmul.f32 %v1634, %v1670
    %v1763 = vsub.f32 %v1759, %v1761
    %v1764 = vsub.f32 %v1760, %v1762
    %v1765 = vmul.f32 %v1763, 2.0
    %v1766 = vmul.f32 %v1764, 2.0
    %v1767 = vmul.f32 %v1629, %v1669
    %v1768 = vmul.f32 %v1630, %v1670
    %v1769 = vmul.f32 %v1635, %v1677
    %v1770 = vmul.f32 %v1636, %v1678
    %v1771 = vsub.f32 %v1767, %v1769
    %v1772 = vsub.f32 %v1768, %v1770
    %v1773 = vmul.f32 %v1771, 2.0
    %v1774 = vmul.f32 %v1772, 2.0
    %v1775 = vmul.f32 %v1631, %v1677
    %v1776 = vmul.f32 %v1632, %v1678
    %v1777 = vmul.f32 %v1637, %v1685
    %v1778 = vmul.f32 %v1638, %v1686
    %v1779 = vsub.f32 %v1775, %v1777
    %v1780 = vsub.f32 %v1776, %v1778
    %v1781 = vmul.f32 %v1779, 2.0
    %v1782 = vmul.f32 %v1780, 2.0
    %v1783 = vmul.f32 %v1633, %v1685
    %v1784 = vmul.f32 %v1634, %v1686
    %v1785 = vmul.f32 %v1639, %v1693
    %v1786 = vmul.f32 %v1640, %v1694
    %v1787 = vsub.f32 %v1783, %v1785
    %v1788 = vsub.f32 %v1784, %v1786
    %v1789 = vmul.f32 %v1787, 2.0
    %v1790 = vmul.f32 %v1788, 2.0
    %v1791 = vmul.f32 %v1635, %v1693
    %v1792 = vmul.f32 %v1636, %v1694
    %v1793 = vmul.f32 %v1458, %v1701
    %v1794 = vmul.f32 %v1459, %v1702
    %v1795 = vsub.f32 %v1791, %v1793
    %v1796 = vsub.f32 %v1792, %v1794
    %v1797 = vmul.f32 %v1795, 2.0
    %v1798 = vmul.f32 %v1796, 2.0
    %v1799 = vmul.f32 %v1637, %v1701
    %v1800 = vmul.f32 %v1638, %v1702
    %v1801 = vmul.f32 %v1641, %v1709
    %v1802 = vmul.f32 %v1642, %v1710
    %v1803 = vsub.f32 %v1799, %v1801
    %v1804 = vsub.f32 %v1800, %v1802
    %v1805 = vmul.f32 %v1803, 2.0
    %v1806 = vmul.f32 %v1804, 2.0
    %v1807 = vmul.f32 %v1639, %v1709
    %v1808 = vmul.f32 %v1640, %v1710
    %v1809 = vmul.f32 %v1643, %v1717
    %v1810 = vmul.f32 %v1644, %v1718
    %v1811 = vsub.f32 %v1807, %v1809
    %v1812 = vsub.f32 %v1808, %v1810
    %v1813 = vmul.f32 %v1811, 2.0
    %v1814 = vmul.f32 %v1812, 2.0
    %v1815 = vmul.f32 %v1458, %v1717
    %v1816 = vmul.f32 %v1459, %v1718
    %v1817 = vmul.f32 %v1645, %v1725
    %v1818 = vmul.f32 %v1646, %v1726
    %v1819 = vsub.f32 %v1815, %v1817
    %v1820 = vsub.f32 %v1816, %v1818
    %v1821 = vmul.f32 %v1819, 2.0
    %v1822 = vmul.f32 %v1820, 2.0
    %v1823 = vmul.f32 %v1641, %v1725
    %v1824 = vmul.f32 %v1642, %v1726
    %v1825 = vmul.f32 %v1647, %v1733
    %v1826 = vmul.f32 %v1648, %v1734
    %v1827 = vsub.f32 %v1823, %v1825
    %v1828 = vsub.f32 %v1824, %v1826
    %v1829 = vmul.f32 %v1827, 2.0
    %v1830 = vmul.f32 %v1828, 2.0
    %v1831 = vmul.f32 %v1643, %v1733
    %v1832 = vmul.f32 %v1644, %v1734
    %v1833 = vmul.f32 %v1649, %v1741
    %v1834 = vmul.f32 %v1650, %v1742
    %v1835 = vsub.f32 %v1831, %v1833
    %v1836 = vsub.f32 %v1832, %v1834
    %v1837 = vmul.f32 %v1835, 2.0
    %v1838 = vmul.f32 %v1836, 2.0
    %v1839 = vmul.f32 %v1645, %v1741
    %v1840 = vmul.f32 %v1646, %v1742
    %v1841 = vmul.f32 %v1651, %v1749
    %v1842 = vmul.f32 %v1652, %v1750
    %v1843 = vsub.f32 %v1839, %v1841
    %v1844 = vsub.f32 %v1840, %v1842
    %v1845 = vmul.f32 %v1843, 2.0
    %v1846 = vmul.f32 %v1844, 2.0
    %v1847 = vmul.f32 %v1647, %v1749
    %v1848 = vmul.f32 %v1648, %v1750
    %v1849 = vmul.f32 %v1653, %v1757
    %v1850 = vmul.f32 %v1654, %v1758
    %v1851 = vsub.f32 %v1847, %v1849
    %v1852 = vsub.f32 %v1848, %v1850
    %v1853 = vmul.f32 %v1851, 2.0
    %v1854 = vmul.f32 %v1852, 2.0
    %v1855 = vmul.f32 %v1627, %v1765
    %v1856 = vmul.f32 %v1628, %v1766
    %v1857 = vmul.f32 %v1635, %v1773
    %v1858 = vmul.f32 %v1636, %v1774
    %v1859 = vsub.f32 %v1855, %v1857
    %v1860 = vsub.f32 %v1856, %v1858
    %v1861 = vmul.f32 %v1859, 1.3333334
    %v1862 = vmul.f32 %v1860, 1.3333334
    %v1863 = vmul.f32 %v1629, %v1773
    %v1864 = vmul.f32 %v1630, %v1774
    %v1865 = vmul.f32 %v1637, %v1781
    %v1866 = vmul.f32 %v1638, %v1782
    %v1867 = vsub.f32 %v1863, %v1865
    %v1868 = vsub.f32 %v1864, %v1866
    %v1869 = vmul.f32 %v1867, 1.3333334
    %v1870 = vmul.f32 %v1868, 1.3333334
    %v1871 = vmul.f32 %v1631, %v1781
    %v1872 = vmul.f32 %v1632, %v1782
    %v1873 = vmul.f32 %v1639, %v1789
    %v1874 = vmul.f32 %v1640, %v1790
    %v1875 = vsub.f32 %v1871, %v1873
    %v1876 = vsub.f32 %v1872, %v1874
    %v1877 = vmul.f32 %v1875, 1.3333334
    %v1878 = vmul.f32 %v1876, 1.3333334
    %v1879 = vmul.f32 %v1633, %v1789
    %v1880 = vmul.f32 %v1634, %v1790
    %v1881 = vmul.f32 %v1458, %v1797
    %v1882 = vmul.f32 %v1459, %v1798
    %v1883 = vsub.f32 %v1879, %v1881
    %v1884 = vsub.f32 %v1880, %v1882
    %v1885 = vmul.f32 %v1883, 1.3333334
    %v1886 = vmul.f32 %v1884, 1.3333334
    %v1887 = vmul.f32 %v1635, %v1797
    %v1888 = vmul.f32 %v1636, %v1798
    %v1889 = vmul.f32 %v1641, %v1805
    %v1890 = vmul.f32 %v1642, %v1806
    %v1891 = vsub.f32 %v1887, %v1889
    %v1892 = vsub.f32 %v1888, %v1890
    %v1893 = vmul.f32 %v1891, 1.3333334
    %v1894 = vmul.f32 %v1892, 1.3333334
    %v1895 = vmul.f32 %v1637, %v1805
    %v1896 = vmul.f32 %v1638, %v1806
    %v1897 = vmul.f32 %v1643, %v1813
    %v1898 = vmul.f32 %v1644, %v1814
    %v1899 = vsub.f32 %v1895, %v1897
    %v1900 = vsub.f32 %v1896, %v1898
    %v1901 = vmul.f32 %v1899, 1.3333334
    %v1902 = vmul.f32 %v1900, 1.3333334
    %v1903 = vmul.f32 %v1639, %v1813
    %v1904 = vmul.f32 %v1640, %v1814
    %v1905 = vmul.f32 %v1645, %v1821
    %v1906 = vmul.f32 %v1646, %v1822
    %v1907 = vsub.f32 %v1903, %v1905
    %v1908 = vsub.f32 %v1904, %v1906
    %v1909 = vmul.f32 %v1907, 1.3333334
    %v1910 = vmul.f32 %v1908, 1.3333334
    %v1911 = vmul.f32 %v1458, %v1821
    %v1912 = vmul.f32 %v1459, %v1822
    %v1913 = vmul.f32 %v1647, %v1829
    %v1914 = vmul.f32 %v1648, %v1830
    %v1915 = vsub.f32 %v1911, %v1913
    %v1916 = vsub.f32 %v1912, %v1914
    %v1917 = vmul.f32 %v1915, 1.3333334
    %v1918 = vmul.f32 %v1916, 1.3333334
    %v1919 = vmul.f32 %v1641, %v1829
    %v1920 = vmul.f32 %v1642, %v1830
    %v1921 = vmul.f32 %v1649, %v1837
    %v1922 = vmul.f32 %v1650, %v1838
    %v1923 = vsub.f32 %v1919, %v1921
    %v1924 = vsub.f32 %v1920, %v1922
    %v1925 = vmul.f32 %v1923, 1.3333334
    %v1926 = vmul.f32 %v1924, 1.3333334
    %v1927 = vmul.f32 %v1643, %v1837
    %v1928 = vmul.f32 %v1644, %v1838
    %v1929 = vmul.f32 %v1651, %v1845
    %v1930 = vmul.f32 %v1652, %v1846
    %v1931 = vsub.f32 %v1927, %v1929
    %v1932 = vsub.f32 %v1928, %v1930
    %v1933 = vmul.f32 %v1931, 1.3333334
    %v1934 = vmul.f32 %v1932, 1.3333334
    %v1935 = vmul.f32 %v1645, %v1845
    %v1936 = vmul.f32 %v1646, %v1846
    %v1937 = vmul.f32 %v1653, %v1853
    %v1938 = vmul.f32 %v1654, %v1854
    %v1939 = vsub.f32 %v1935, %v1937
    %v1940 = vsub.f32 %v1936, %v1938
    %v1941 = vmul.f32 %v1939, 1.3333334
    %v1942 = vmul.f32 %v1940, 1.3333334
    %v1943 = vxor.u32 %v1458, 2147483648
    %v1944 = vxor.u32 %v1459, 2147483648
    %v1945 = vmul.f32 %v1943, 1.442695
    %v1946 = vpow.pop %v1945
    %v1947 = vmul.f32 %v1944, 1.442695
    %v1948 = vpow.pop %v1947
    %v1949 = vadd.f32 %v1946, 1.0
    %v1950 = vadd.f32 %v1948, 1.0
    %v1951 = vrcp.pop %v1949
    %v1952 = vmul.f32 %v1949, %v1951
    %v1953 = vsub.f32 1.0, %v1952
    %v1954 = vmul.f32 %v1951, %v1953
    %v1955 = vadd.f32 %v1951, %v1954
    %vm1956 = vweird.f32 %v1949
    %vm1957 = vweird.f32 %v1951
    %vm1958 = vmor %vm1956, %vm1957
    %v1959 = vsel %vm1958, %v1951, %v1955
    %v1960 = vand.u32 2147483647, %v1949
    %vm1961 = vcmp.eq.f32.partialorder %v1960, 8.507059e+37
    %v1962 = vand.u32 %v1949, 2147483648
    %v1963 = vor.u32 1.1754944e-38, %v1962
    %v1964 = vsel %vm1961, %v1963, %v1959
    %v1965 = vmul.f32 1.0, %v1964
    %v1966 = vrcp.pop %v1950
    %v1967 = vmul.f32 %v1950, %v1966
    %v1968 = vsub.f32 1.0, %v1967
    %v1969 = vmul.f32 %v1966, %v1968
    %v1970 = vadd.f32 %v1966, %v1969
    %vm1971 = vweird.f32 %v1950
    %vm1972 = vweird.f32 %v1966
    %vm1973 = vmor %vm1971, %vm1972
    %v1974 = vsel %vm1973, %v1966, %v1970
    %v1975 = vand.u32 2147483647, %v1950
    %vm1976 = vcmp.eq.f32.partialorder %v1975, 8.507059e+37
    %v1977 = vand.u32 %v1950, 2147483648
    %v1978 = vor.u32 1.1754944e-38, %v1977
    %v1979 = vsel %vm1976, %v1978, %v1974
    %v1980 = vmul.f32 1.0, %v1979
    %v1981 = vmul.f32 %v1458, %v1965
    %v1982 = vmul.f32 %v1459, %v1980
    %v1983 = vpack.c.bf16 %v1982, %v1981
    %v1984 = vpack.c.bf16 %v1862, %v1861
    %v1989 = vunpack.c.l.b16 %v1465
    %v1990 = vunpack.c.l.b16 %v1466
    %v1991 = vunpack.c.l.b16 %v1467
    %v1992 = vunpack.c.l.b16 %v1468
    %v1993 = vpack.c.b16 %v1990, %v1989
    %v1994 = vpack.c.b16 %v1992, %v1991
    %v1998 = vsel %vm56, %v1984, 0
    %2000 = vmatpush.bf16.msra.mxu0 0
    %2001 = vmatpush.bf16.msra.mxu0 0
    %2002 = vmatpush.bf16.msra.mxu0 0
    %2003 = vmatpush.bf16.msra.mxu0 0
    %2004 = vmatpush.bf16.msra.mxu0 0
    %2005 = vmatpush.bf16.msra.mxu0 0
    %2006 = vmatpush.bf16.msra.mxu0 %v1994
    %2007 = vmatpush.bf16.msra.mxu0 %v1993
    %2008 = vmatmul.bf16.gmra.mxu0 %v1998
    %v2009 = vpop.f32.mrf.mxu0
    %v2010 = vadd.f32 0.0, %v2009
    %v2011 = vpop.f32.mrf.mxu0
    %v2012 = vadd.f32 0.0, %v2011
    %2013 = vdwg.mxu0
    %v2018 = vunpack.c.l.b16 %v1461
    %v2019 = vunpack.c.l.b16 %v1462
    %v2020 = vunpack.c.l.b16 %v1463
    %v2021 = vunpack.c.l.b16 %v1464
    %v2022 = vpack.c.b16 %v2019, %v2018
    %v2023 = vpack.c.b16 %v2021, %v2020
    %v2027 = vsel %vm56, %v1983, 0
    %2029 = vmatpush.bf16.msra.mxu0 0
    %2030 = vmatpush.bf16.msra.mxu0 0
    %2031 = vmatpush.bf16.msra.mxu0 0
    %2032 = vmatpush.bf16.msra.mxu0 0
    %2033 = vmatpush.bf16.msra.mxu0 0
    %2034 = vmatpush.bf16.msra.mxu0 0
    %2035 = vmatpush.bf16.msra.mxu0 %v2023
    %2036 = vmatpush.bf16.msra.mxu0 %v2022
    %2037 = vmatmul.bf16.gmra.mxu0 %v2027
    %v2038 = vpop.f32.mrf.mxu0
    %v2039 = vadd.f32 %v2010, %v2038
    %v2040 = vpop.f32.mrf.mxu0
    %v2041 = vadd.f32 %v2012, %v2040
    %2042 = vdwg.mxu0
    %v2043 = vpack.c.bf16 %v1870, %v1869
    %v2048 = vunpack.c.l.b16 %v1469
    %v2049 = vunpack.c.l.b16 %v1470
    %v2050 = vunpack.c.l.b16 %v1471
    %v2051 = vunpack.c.l.b16 %v1472
    %v2052 = vpack.c.b16 %v2049, %v2048
    %v2053 = vpack.c.b16 %v2051, %v2050
    %v2057 = vsel %vm56, %v2043, 0
    %2059 = vmatpush.bf16.msra.mxu0 0
    %2060 = vmatpush.bf16.msra.mxu0 0
    %2061 = vmatpush.bf16.msra.mxu0 0
    %2062 = vmatpush.bf16.msra.mxu0 0
    %2063 = vmatpush.bf16.msra.mxu0 0
    %2064 = vmatpush.bf16.msra.mxu0 0
    %2065 = vmatpush.bf16.msra.mxu0 %v2053
    %2066 = vmatpush.bf16.msra.mxu0 %v2052
    %2067 = vmatmul.bf16.gmra.mxu0 %v2057
    %v2068 = vpop.f32.mrf.mxu0
    %v2069 = vadd.f32 0.0, %v2068
    %v2070 = vpop.f32.mrf.mxu0
    %v2071 = vadd.f32 0.0, %v2070
    %2072 = vdwg.mxu0
    %v2073 = vadd.f32 %v2039, %v2069
    %v2074 = vadd.f32 %v2041, %v2071
    %v2075 = vpack.c.bf16 %v1878, %v1877
    %v2080 = vunpack.c.l.b16 %v1473
    %v2081 = vunpack.c.l.b16 %v1474
    %v2082 = vunpack.c.l.b16 %v1475
    %v2083 = vunpack.c.l.b16 %v1476
    %v2084 = vpack.c.b16 %v2081, %v2080
    %v2085 = vpack.c.b16 %v2083, %v2082
    %v2089 = vsel %vm56, %v2075, 0
    %2091 = vmatpush.bf16.msra.mxu0 0
    %2092 = vmatpush.bf16.msra.mxu0 0
    %2093 = vmatpush.bf16.msra.mxu0 0
    %2094 = vmatpush.bf16.msra.mxu0 0
    %2095 = vmatpush.bf16.msra.mxu0 0
    %2096 = vmatpush.bf16.msra.mxu0 0
    %2097 = vmatpush.bf16.msra.mxu0 %v2085
    %2098 = vmatpush.bf16.msra.mxu0 %v2084
    %2099 = vmatmul.bf16.gmra.mxu0 %v2089
    %v2100 = vpop.f32.mrf.mxu0
    %v2101 = vadd.f32 0.0, %v2100
    %v2102 = vpop.f32.mrf.mxu0
    %v2103 = vadd.f32 0.0, %v2102
    %2104 = vdwg.mxu0
    %v2105 = vadd.f32 %v2073, %v2101
    %v2106 = vadd.f32 %v2074, %v2103
    %v2107 = vpack.c.bf16 %v1886, %v1885
    %v2112 = vunpack.c.l.b16 %v1477
    %v2113 = vunpack.c.l.b16 %v1478
    %v2114 = vunpack.c.l.b16 %v1479
    %v2115 = vunpack.c.l.b16 %v1480
    %v2116 = vpack.c.b16 %v2113, %v2112
    %v2117 = vpack.c.b16 %v2115, %v2114
    %v2121 = vsel %vm56, %v2107, 0
    %2123 = vmatpush.bf16.msra.mxu0 0
    %2124 = vmatpush.bf16.msra.mxu0 0
    %2125 = vmatpush.bf16.msra.mxu0 0
    %2126 = vmatpush.bf16.msra.mxu0 0
    %2127 = vmatpush.bf16.msra.mxu0 0
    %2128 = vmatpush.bf16.msra.mxu0 0
    %2129 = vmatpush.bf16.msra.mxu0 %v2117
    %2130 = vmatpush.bf16.msra.mxu0 %v2116
    %2131 = vmatmul.bf16.gmra.mxu0 %v2121
    %v2132 = vpop.f32.mrf.mxu0
    %v2133 = vadd.f32 0.0, %v2132
    %v2134 = vpop.f32.mrf.mxu0
    %v2135 = vadd.f32 0.0, %v2134
    %2136 = vdwg.mxu0
    %v2137 = vadd.f32 %v2105, %v2133
    %v2138 = vadd.f32 %v2106, %v2135
    %v2139 = vpack.c.bf16 %v1894, %v1893
    %v2144 = vunpack.c.l.b16 %v1481
    %v2145 = vunpack.c.l.b16 %v1482
    %v2146 = vunpack.c.l.b16 %v1483
    %v2147 = vunpack.c.l.b16 %v1484
    %v2148 = vpack.c.b16 %v2145, %v2144
    %v2149 = vpack.c.b16 %v2147, %v2146
    %v2153 = vsel %vm56, %v2139, 0
    %2155 = vmatpush.bf16.msra.mxu0 0
    %2156 = vmatpush.bf16.msra.mxu0 0
    %2157 = vmatpush.bf16.msra.mxu0 0
    %2158 = vmatpush.bf16.msra.mxu0 0
    %2159 = vmatpush.bf16.msra.mxu0 0
    %2160 = vmatpush.bf16.msra.mxu0 0
    %2161 = vmatpush.bf16.msra.mxu0 %v2149
    %2162 = vmatpush.bf16.msra.mxu0 %v2148
    %2163 = vmatmul.bf16.gmra.mxu0 %v2153
    %v2164 = vpop.f32.mrf.mxu0
    %v2165 = vadd.f32 0.0, %v2164
    %v2166 = vpop.f32.mrf.mxu0
    %v2167 = vadd.f32 0.0, %v2166
    %2168 = vdwg.mxu0
    %v2169 = vadd.f32 %v2137, %v2165
    %v2170 = vadd.f32 %v2138, %v2167
    %v2171 = vpack.c.bf16 %v1902, %v1901
    %v2176 = vunpack.c.l.b16 %v1485
    %v2177 = vunpack.c.l.b16 %v1486
    %v2178 = vunpack.c.l.b16 %v1487
    %v2179 = vunpack.c.l.b16 %v1488
    %v2180 = vpack.c.b16 %v2177, %v2176
    %v2181 = vpack.c.b16 %v2179, %v2178
    %v2185 = vsel %vm56, %v2171, 0
    %2187 = vmatpush.bf16.msra.mxu0 0
    %2188 = vmatpush.bf16.msra.mxu0 0
    %2189 = vmatpush.bf16.msra.mxu0 0
    %2190 = vmatpush.bf16.msra.mxu0 0
    %2191 = vmatpush.bf16.msra.mxu0 0
    %2192 = vmatpush.bf16.msra.mxu0 0
    %2193 = vmatpush.bf16.msra.mxu0 %v2181
    %2194 = vmatpush.bf16.msra.mxu0 %v2180
    %2195 = vmatmul.bf16.gmra.mxu0 %v2185
    %v2196 = vpop.f32.mrf.mxu0
    %v2197 = vadd.f32 0.0, %v2196
    %v2198 = vpop.f32.mrf.mxu0
    %v2199 = vadd.f32 0.0, %v2198
    %2200 = vdwg.mxu0
    %v2201 = vadd.f32 %v2169, %v2197
    %v2202 = vadd.f32 %v2170, %v2199
    %v2203 = vpack.c.bf16 %v1910, %v1909
    %v2208 = vunpack.c.l.b16 %v1489
    %v2209 = vunpack.c.l.b16 %v1490
    %v2210 = vunpack.c.l.b16 %v1491
    %v2211 = vunpack.c.l.b16 %v1492
    %v2212 = vpack.c.b16 %v2209, %v2208
    %v2213 = vpack.c.b16 %v2211, %v2210
    %v2217 = vsel %vm56, %v2203, 0
    %2219 = vmatpush.bf16.msra.mxu0 0
    %2220 = vmatpush.bf16.msra.mxu0 0
    %2221 = vmatpush.bf16.msra.mxu0 0
    %2222 = vmatpush.bf16.msra.mxu0 0
    %2223 = vmatpush.bf16.msra.mxu0 0
    %2224 = vmatpush.bf16.msra.mxu0 0
    %2225 = vmatpush.bf16.msra.mxu0 %v2213
    %2226 = vmatpush.bf16.msra.mxu0 %v2212
    %2227 = vmatmul.bf16.gmra.mxu0 %v2217
    %v2228 = vpop.f32.mrf.mxu0
    %v2229 = vadd.f32 0.0, %v2228
    %v2230 = vpop.f32.mrf.mxu0
    %v2231 = vadd.f32 0.0, %v2230
    %2232 = vdwg.mxu0
    %v2233 = vadd.f32 %v2201, %v2229
    %v2234 = vadd.f32 %v2202, %v2231
    %v2235 = vpack.c.bf16 %v1918, %v1917
    %v2240 = vunpack.c.l.b16 %v1493
    %v2241 = vunpack.c.l.b16 %v1494
    %v2242 = vunpack.c.l.b16 %v1495
    %v2243 = vunpack.c.l.b16 %v1496
    %v2244 = vpack.c.b16 %v2241, %v2240
    %v2245 = vpack.c.b16 %v2243, %v2242
    %v2249 = vsel %vm56, %v2235, 0
    %2251 = vmatpush.bf16.msra.mxu0 0
    %2252 = vmatpush.bf16.msra.mxu0 0
    %2253 = vmatpush.bf16.msra.mxu0 0
    %2254 = vmatpush.bf16.msra.mxu0 0
    %2255 = vmatpush.bf16.msra.mxu0 0
    %2256 = vmatpush.bf16.msra.mxu0 0
    %2257 = vmatpush.bf16.msra.mxu0 %v2245
    %2258 = vmatpush.bf16.msra.mxu0 %v2244
    %2259 = vmatmul.bf16.gmra.mxu0 %v2249
    %v2260 = vpop.f32.mrf.mxu0
    %v2261 = vadd.f32 0.0, %v2260
    %v2262 = vpop.f32.mrf.mxu0
    %v2263 = vadd.f32 0.0, %v2262
    %2264 = vdwg.mxu0
    %v2265 = vadd.f32 %v2233, %v2261
    %v2266 = vadd.f32 %v2234, %v2263
    %v2267 = vpack.c.bf16 %v1926, %v1925
    %v2272 = vunpack.c.l.b16 %v1497
    %v2273 = vunpack.c.l.b16 %v1498
    %v2274 = vunpack.c.l.b16 %v1499
    %v2275 = vunpack.c.l.b16 %v1500
    %v2276 = vpack.c.b16 %v2273, %v2272
    %v2277 = vpack.c.b16 %v2275, %v2274
    %v2281 = vsel %vm56, %v2267, 0
    %2283 = vmatpush.bf16.msra.mxu0 0
    %2284 = vmatpush.bf16.msra.mxu0 0
    %2285 = vmatpush.bf16.msra.mxu0 0
    %2286 = vmatpush.bf16.msra.mxu0 0
    %2287 = vmatpush.bf16.msra.mxu0 0
    %2288 = vmatpush.bf16.msra.mxu0 0
    %2289 = vmatpush.bf16.msra.mxu0 %v2277
    %2290 = vmatpush.bf16.msra.mxu0 %v2276
    %2291 = vmatmul.bf16.gmra.mxu0 %v2281
    %v2292 = vpop.f32.mrf.mxu0
    %v2293 = vadd.f32 0.0, %v2292
    %v2294 = vpop.f32.mrf.mxu0
    %v2295 = vadd.f32 0.0, %v2294
    %2296 = vdwg.mxu0
    %v2297 = vadd.f32 %v2265, %v2293
    %v2298 = vadd.f32 %v2266, %v2295
    %v2299 = vpack.c.bf16 %v1934, %v1933
    %v2304 = vunpack.c.l.b16 %v1501
    %v2305 = vunpack.c.l.b16 %v1502
    %v2306 = vunpack.c.l.b16 %v1503
    %v2307 = vunpack.c.l.b16 %v1504
    %v2308 = vpack.c.b16 %v2305, %v2304
    %v2309 = vpack.c.b16 %v2307, %v2306
    %v2313 = vsel %vm56, %v2299, 0
    %2315 = vmatpush.bf16.msra.mxu0 0
    %2316 = vmatpush.bf16.msra.mxu0 0
    %2317 = vmatpush.bf16.msra.mxu0 0
    %2318 = vmatpush.bf16.msra.mxu0 0
    %2319 = vmatpush.bf16.msra.mxu0 0
    %2320 = vmatpush.bf16.msra.mxu0 0
    %2321 = vmatpush.bf16.msra.mxu0 %v2309
    %2322 = vmatpush.bf16.msra.mxu0 %v2308
    %2323 = vmatmul.bf16.gmra.mxu0 %v2313
    %v2324 = vpop.f32.mrf.mxu0
    %v2325 = vadd.f32 0.0, %v2324
    %v2326 = vpop.f32.mrf.mxu0
    %v2327 = vadd.f32 0.0, %v2326
    %2328 = vdwg.mxu0
    %v2329 = vadd.f32 %v2297, %v2325
    %v2330 = vadd.f32 %v2298, %v2327
    %v2331 = vpack.c.bf16 %v1942, %v1941
    %v2336 = vunpack.c.l.b16 %v1505
    %v2337 = vunpack.c.l.b16 %v1506
    %v2338 = vunpack.c.l.b16 %v1507
    %v2339 = vunpack.c.l.b16 %v1508
    %v2340 = vpack.c.b16 %v2337, %v2336
    %v2341 = vpack.c.b16 %v2339, %v2338
    %v2345 = vsel %vm56, %v2331, 0
    %2347 = vmatpush.bf16.msra.mxu0 0
    %2348 = vmatpush.bf16.msra.mxu0 0
    %2349 = vmatpush.bf16.msra.mxu0 0
    %2350 = vmatpush.bf16.msra.mxu0 0
    %2351 = vmatpush.bf16.msra.mxu0 0
    %2352 = vmatpush.bf16.msra.mxu0 0
    %2353 = vmatpush.bf16.msra.mxu0 %v2341
    %2354 = vmatpush.bf16.msra.mxu0 %v2340
    %2355 = vmatmul.bf16.gmra.mxu0 %v2345
    %v2356 = vpop.f32.mrf.mxu0
    %v2357 = vadd.f32 0.0, %v2356
    %v2358 = vpop.f32.mrf.mxu0
    %v2359 = vadd.f32 0.0, %v2358
    %2360 = vdwg.mxu0
    %v2361 = vadd.f32 %v2329, %v2357
    %v2362 = vadd.f32 %v2330, %v2359
    %v2363 = vadd.f32 %v556, %v2361
    %v2364 = vadd.f32 %v557, %v2362
    %v2365 = vsel %vm56, %v2363, 0.0
    %2366 = vadd.xlane.f32.xlu0 %v2365
    %v2367 = vpop.xlane.xlu0 %2366
    %v2368 = vsel %vm56, %v2364, 0.0
    %2369 = vadd.xlane.f32.xlu0 %v2368
    %v2370 = vpop.xlane.xlu0 %2369
    %v2371 = vmul.f32 %v2367, %v69
    %v2372 = vmul.f32 %v2370, %v69
    %v2373 = vsub.f32 %v2363, %v2371
    %v2374 = vsub.f32 %v2364, %v2372
    %v2375 = vmul.f32 %v2373, %v2373
    %v2376 = vmul.f32 %v2374, %v2374
    %v2377 = vsel %vm56, %v2375, 0.0
    %2378 = vadd.xlane.f32.xlu0 %v2377
    %v2379 = vpop.xlane.xlu0 %2378
    %v2380 = vsel %vm56, %v2376, 0.0
    %2381 = vadd.xlane.f32.xlu0 %v2380
    %v2382 = vpop.xlane.xlu0 %2381
    %v2383 = vmul.f32 %v2379, %v69
    %v2384 = vmul.f32 %v2382, %v69
    %v2385 = vadd.f32 %v2383, 1e-05
    %v2386 = vadd.f32 %v2384, 1e-05
    %v2387 = vrsqrt.pop %v2385
    %v2388 = vmul.f32 %v2387, %v2385
    %v2389 = vmul.f32 %v2388, %v2387
    %v2390 = vmul.f32 0.5, %v2389
    %v2391 = vsub.f32 1.5, %v2390
    %v2392 = vmul.f32 %v2387, %v2391
    %vm2393 = vweird.f32 %v2385
    %vm2394 = vweird.f32 %v2387
    %vm2395 = vmor %vm2393, %vm2394
    %v2396 = vsel %vm2395, %v2387, %v2392
    %v2397 = vrsqrt.pop %v2386
    %v2398 = vmul.f32 %v2397, %v2386
    %v2399 = vmul.f32 %v2398, %v2397
    %v2400 = vmul.f32 0.5, %v2399
    %v2401 = vsub.f32 1.5, %v2400
    %v2402 = vmul.f32 %v2397, %v2401
    %vm2403 = vweird.f32 %v2386
    %vm2404 = vweird.f32 %v2397
    %vm2405 = vmor %vm2403, %vm2404
    %v2406 = vsel %vm2405, %v2397, %v2402
    %v2407 = vmul.f32 %v2373, %v2396
    %v2408 = vmul.f32 %v2374, %v2406
    %v2409 = vperm.slane %v117, 0
    %v2410 = vmul.f32 %v2407, %v2409
    %v2411 = vmul.f32 %v2408, %v2409
    %v2412 = vperm.slane %v118, 0
    %v2413 = vadd.f32 %v2410, %v2412
    %v2414 = vadd.f32 %v2411, %v2412
    %v2415 = vld [vmem:[%s2 + $0x9] sm:$0x1]
    %v2416 = vld [vmem:[%s2 + $0xa] sm:$0x1]
    %v2417 = vld [vmem:[%s2 + $0xb] sm:$0x1]
    %v2418 = vld [vmem:[%s2 + $0xc] sm:$0x1]
    %v2419 = vld [vmem:[%s2 + $0xd] sm:$0x1]
    %v2420 = vpack.c.bf16 %v2414, %v2413
    %s2421 = scalar_lea.vmem %s3, 16
    %v2422 = vld [vmem:[%s2421] sm:$0xf]
    %v2423 = vld [vmem:[%s2421 + $0x4] sm:$0xf]
    %v2424 = vld [vmem:[%s2421 + $0x8] sm:$0xf]
    %v2425 = vld [vmem:[%s2421 + $0xc] sm:$0xf]
    %s2426 = scalar_lea.vmem %s4, 1
    %v2427 = vld [vmem:[%s2426] sm:$0x1]
    %v2429 = vperm.slane %v2427, 0
    %v2435 = vunpack.c.l.b16 %v2422
    %v2436 = vunpack.c.l.b16 %v2423
    %v2437 = vunpack.c.l.b16 %v2424
    %v2438 = vunpack.c.l.b16 %v2425
    %v2439 = vpack.c.b16 %v2436, %v2435
    %v2440 = vpack.c.b16 %v2438, %v2437
    %v2444 = vsel %vm56, %v2420, 0
    %2446 = vmatpush.bf16.msra.mxu0 0
    %2447 = vmatpush.bf16.msra.mxu0 0
    %2448 = vmatpush.bf16.msra.mxu0 0
    %2449 = vmatpush.bf16.msra.mxu0 0
    %2450 = vmatpush.bf16.msra.mxu0 0
    %2451 = vmatpush.bf16.msra.mxu0 0
    %2452 = vmatpush.bf16.msra.mxu0 %v2440
    %2453 = vmatpush.bf16.msra.mxu0 %v2439
    %2454 = vmatmul.bf16.gmra.mxu0 %v2444
    %v2455 = vpop.f32.mrf.mxu0
    %v2456 = vadd.f32 %v2429, %v2455
    %v2457 = vpop.f32.mrf.mxu0
    %v2458 = vadd.f32 %v2429, %v2457
    %2459 = vdwg.mxu0
    %v2460 = vmul.f32 %v2456, 0.25
    %v2461 = vmul.f32 %v2458, 0.25
    %v2462 = vpack.c.bf16 %v2460, %v2460
    %v2463 = vpack.c.bf16 %v2461, %v2461
    %v2464 = vpack.c.bf16 %v2456, %v2456
    %v2465 = vpack.c.bf16 %v2458, %v2458
    %v2467 = vunpack.c.l.b16 %v2464
    %v2468 = vpack.c.b16 %v2467, %v2467
    %2469 = vrot.lane.b32.xlu0 %v2468, 96
    %v2470 = vpop.permute.xlu0 %2469
    %v2472 = vsel %vm168, %v2462, 0
    %v2475 = vsel %vm168, %v2470, 0
    %2477 = vmatpush.bf16.xpose.msra.mxu0 0
    %2478 = vmatpush.bf16.xpose.msra.mxu0 0
    %2479 = vmatpush.bf16.xpose.msra.mxu0 0
    %2480 = vmatpush.bf16.xpose.msra.mxu0 0
    %2481 = vmatpush.bf16.xpose.msra.mxu0 0
    %2482 = vmatpush.bf16.xpose.msra.mxu0 0
    %2483 = vmatpush.bf16.xpose.msra.mxu0 0
    %2484 = vmatpush.bf16.xpose.msra.mxu0 %v2475
    %2485 = vmatmul.bf16.gmra.mxu0 %v2472
    %v2486 = vpop.f32.mrf.mxu0
    %v2487 = vadd.f32 0.0, %v2486
    %v2488 = vpop.f32.mrf.mxu0
    %2489 = vdwg.mxu0
    %v2491 = vunpack.c.l.b16 %v2465
    %v2492 = vpack.c.b16 %v2491, %v2491
    %2493 = vrot.lane.b32.xlu0 %v2492, 96
    %v2494 = vpop.permute.xlu0 %2493
    %v2496 = vsel %vm168, %v2463, 0
    %v2499 = vsel %vm168, %v2494, 0
    %2501 = vmatpush.bf16.xpose.msra.mxu0 0
    %2502 = vmatpush.bf16.xpose.msra.mxu0 0
    %2503 = vmatpush.bf16.xpose.msra.mxu0 0
    %2504 = vmatpush.bf16.xpose.msra.mxu0 0
    %2505 = vmatpush.bf16.xpose.msra.mxu0 0
    %2506 = vmatpush.bf16.xpose.msra.mxu0 0
    %2507 = vmatpush.bf16.xpose.msra.mxu0 0
    %2508 = vmatpush.bf16.xpose.msra.mxu0 %v2499
    %2509 = vmatmul.bf16.gmra.mxu0 %v2496
    %v2510 = vpop.f32.mrf.mxu0
    %v2511 = vadd.f32 0.0, %v2510
    %v2512 = vpop.f32.mrf.mxu0
    %2513 = vdwg.mxu0
    %v2514 = vsel %vm212, %v2487, -inf
    %2515 = vmax.xlane.f32.xlu0 %v2514
    %v2516 = vpop.xlane.xlu0 %2515
    %v2517 = vsel %vm212, %v2511, -inf
    %2518 = vmax.xlane.f32.xlu0 %v2517
    %v2519 = vpop.xlane.xlu0 %2518
    %v2520 = vsub.f32 %v2487, %v2516
    %v2521 = vsub.f32 %v2511, %v2519
    %v2522 = vmul.f32 %v2520, 1.442695
    %v2523 = vpow.pop %v2522
    %v2524 = vmul.f32 %v2521, 1.442695
    %v2525 = vpow.pop %v2524
    %v2526 = vsel %vm212, %v2523, 0.0
    %2527 = vadd.xlane.f32.xlu0 %v2526
    %v2528 = vpop.xlane.xlu0 %2527
    %v2529 = vsel %vm212, %v2525, 0.0
    %2530 = vadd.xlane.f32.xlu0 %v2529
    %v2531 = vpop.xlane.xlu0 %2530
    %v2532 = vrcp.pop %v2528
    %v2533 = vmul.f32 %v2528, %v2532
    %v2534 = vsub.f32 1.0, %v2533
    %v2535 = vmul.f32 %v2532, %v2534
    %v2536 = vadd.f32 %v2532, %v2535
    %vm2537 = vweird.f32 %v2528
    %vm2538 = vweird.f32 %v2532
    %vm2539 = vmor %vm2537, %vm2538
    %v2540 = vsel %vm2539, %v2532, %v2536
    %v2541 = vand.u32 2147483647, %v2528
    %vm2542 = vcmp.eq.f32.partialorder %v2541, 8.507059e+37
    %v2543 = vand.u32 %v2528, 2147483648
    %v2544 = vor.u32 1.1754944e-38, %v2543
    %v2545 = vsel %vm2542, %v2544, %v2540
    %v2546 = vmul.f32 %v2523, %v2545
    %v2547 = vrcp.pop %v2531
    %v2548 = vmul.f32 %v2531, %v2547
    %v2549 = vsub.f32 1.0, %v2548
    %v2550 = vmul.f32 %v2547, %v2549
    %v2551 = vadd.f32 %v2547, %v2550
    %vm2552 = vweird.f32 %v2531
    %vm2553 = vweird.f32 %v2547
    %vm2554 = vmor %vm2552, %vm2553
    %v2555 = vsel %vm2554, %v2547, %v2551
    %v2556 = vand.u32 2147483647, %v2531
    %vm2557 = vcmp.eq.f32.partialorder %v2556, 8.507059e+37
    %v2558 = vand.u32 %v2531, 2147483648
    %v2559 = vor.u32 1.1754944e-38, %v2558
    %v2560 = vsel %vm2557, %v2559, %v2555
    %v2561 = vmul.f32 %v2525, %v2560
    %v2562 = vpack.c.bf16 %v2546, %v2546
    %v2563 = vpack.c.bf16 %v2561, %v2561
    %2564 = vrot.lane.b32.xlu0 %v2468, 64
    %v2565 = vpop.permute.xlu0 %2564
    %v2567 = vsel %vm212, %v2562, 0
    %v2570 = vsel %vm268, %v2565, 0
    %2572 = vmatpush.bf16.msra.mxu0 0
    %2573 = vmatpush.bf16.msra.mxu0 0
    %2574 = vmatpush.bf16.msra.mxu0 0
    %2575 = vmatpush.bf16.msra.mxu0 0
    %2576 = vmatpush.bf16.msra.mxu0 0
    %2577 = vmatpush.bf16.msra.mxu0 0
    %2578 = vmatpush.bf16.msra.mxu0 0
    %2579 = vmatpush.bf16.msra.mxu0 %v2570
    %2580 = vmatmul.bf16.gmra.mxu0 %v2567
    %v2581 = vpop.f32.mrf.mxu0
    %v2582 = vadd.f32 0.0, %v2581
    %v2583 = vpop.f32.mrf.mxu0
    %2584 = vdwg.mxu0
    %2585 = vrot.lane.b32.xlu0 %v2492, 64
    %v2586 = vpop.permute.xlu0 %2585
    %v2588 = vsel %vm212, %v2563, 0
    %v2591 = vsel %vm268, %v2586, 0
    %2593 = vmatpush.bf16.msra.mxu0 0
    %2594 = vmatpush.bf16.msra.mxu0 0
    %2595 = vmatpush.bf16.msra.mxu0 0
    %2596 = vmatpush.bf16.msra.mxu0 0
    %2597 = vmatpush.bf16.msra.mxu0 0
    %2598 = vmatpush.bf16.msra.mxu0 0
    %2599 = vmatpush.bf16.msra.mxu0 0
    %2600 = vmatpush.bf16.msra.mxu0 %v2591
    %2601 = vmatmul.bf16.gmra.mxu0 %v2588
    %v2602 = vpop.f32.mrf.mxu0
    %v2603 = vadd.f32 0.0, %v2602
    %v2604 = vpop.f32.mrf.mxu0
    %2605 = vdwg.mxu0
    %v2606 = vpack.c.bf16 %v2603, %v2582
    %s2607 = scalar_lea.vmem %s5, 16
    %v2608 = vld [vmem:[%s2607] sm:$0xf]
    %v2609 = vld [vmem:[%s2607 + $0x4] sm:$0xf]
    %v2611 = vunpack.c.l.b16 %v2462
    %v2612 = vpack.c.b16 %v2611, %v2611
    %2613 = vrot.lane.b32.xlu0 %v2612, 112
    %v2614 = vpop.permute.xlu0 %2613
    %2615 = vrot.lane.b32.xlu0 %v2468, 80
    %v2616 = vpop.permute.xlu0 %2615
    %v2618 = vsel %vm168, %v2614, 0
    %v2621 = vsel %vm168, %v2616, 0
    %2623 = vmatpush.bf16.xpose.msra.mxu0 0
    %2624 = vmatpush.bf16.xpose.msra.mxu0 0
    %2625 = vmatpush.bf16.xpose.msra.mxu0 0
    %2626 = vmatpush.bf16.xpose.msra.mxu0 0
    %2627 = vmatpush.bf16.xpose.msra.mxu0 0
    %2628 = vmatpush.bf16.xpose.msra.mxu0 0
    %2629 = vmatpush.bf16.xpose.msra.mxu0 0
    %2630 = vmatpush.bf16.xpose.msra.mxu0 %v2621
    %2631 = vmatmul.bf16.gmra.mxu0 %v2618
    %v2632 = vpop.f32.mrf.mxu0
    %v2633 = vadd.f32 0.0, %v2632
    %v2634 = vpop.f32.mrf.mxu0
    %2635 = vdwg.mxu0
    %v2637 = vunpack.c.l.b16 %v2463
    %v2638 = vpack.c.b16 %v2637, %v2637
    %2639 = vrot.lane.b32.xlu0 %v2638, 112
    %v2640 = vpop.permute.xlu0 %2639
    %2641 = vrot.lane.b32.xlu0 %v2492, 80
    %v2642 = vpop.permute.xlu0 %2641
    %v2644 = vsel %vm168, %v2640, 0
    %v2647 = vsel %vm168, %v2642, 0
    %2649 = vmatpush.bf16.xpose.msra.mxu0 0
    %2650 = vmatpush.bf16.xpose.msra.mxu0 0
    %2651 = vmatpush.bf16.xpose.msra.mxu0 0
    %2652 = vmatpush.bf16.xpose.msra.mxu0 0
    %2653 = vmatpush.bf16.xpose.msra.mxu0 0
    %2654 = vmatpush.bf16.xpose.msra.mxu0 0
    %2655 = vmatpush.bf16.xpose.msra.mxu0 0
    %2656 = vmatpush.bf16.xpose.msra.mxu0 %v2647
    %2657 = vmatmul.bf16.gmra.mxu0 %v2644
    %v2658 = vpop.f32.mrf.mxu0
    %v2659 = vadd.f32 0.0, %v2658
    %v2660 = vpop.f32.mrf.mxu0
    %2661 = vdwg.mxu0
    %v2662 = vsel %vm212, %v2633, -inf
    %2663 = vmax.xlane.f32.xlu0 %v2662
    %v2664 = vpop.xlane.xlu0 %2663
    %v2665 = vsel %vm212, %v2659, -inf
    %2666 = vmax.xlane.f32.xlu0 %v2665
    %v2667 = vpop.xlane.xlu0 %2666
    %v2668 = vsub.f32 %v2633, %v2664
    %v2669 = vsub.f32 %v2659, %v2667
    %v2670 = vmul.f32 %v2668, 1.442695
    %v2671 = vpow.pop %v2670
    %v2672 = vmul.f32 %v2669, 1.442695
    %v2673 = vpow.pop %v2672
    %v2674 = vsel %vm212, %v2671, 0.0
    %2675 = vadd.xlane.f32.xlu0 %v2674
    %v2676 = vpop.xlane.xlu0 %2675
    %v2677 = vsel %vm212, %v2673, 0.0
    %2678 = vadd.xlane.f32.xlu0 %v2677
    %v2679 = vpop.xlane.xlu0 %2678
    %v2680 = vrcp.pop %v2676
    %v2681 = vmul.f32 %v2676, %v2680
    %v2682 = vsub.f32 1.0, %v2681
    %v2683 = vmul.f32 %v2680, %v2682
    %v2684 = vadd.f32 %v2680, %v2683
    %vm2685 = vweird.f32 %v2676
    %vm2686 = vweird.f32 %v2680
    %vm2687 = vmor %vm2685, %vm2686
    %v2688 = vsel %vm2687, %v2680, %v2684
    %v2689 = vand.u32 2147483647, %v2676
    %vm2690 = vcmp.eq.f32.partialorder %v2689, 8.507059e+37
    %v2691 = vand.u32 %v2676, 2147483648
    %v2692 = vor.u32 1.1754944e-38, %v2691
    %v2693 = vsel %vm2690, %v2692, %v2688
    %v2694 = vmul.f32 %v2671, %v2693
    %v2695 = vrcp.pop %v2679
    %v2696 = vmul.f32 %v2679, %v2695
    %v2697 = vsub.f32 1.0, %v2696
    %v2698 = vmul.f32 %v2695, %v2697
    %v2699 = vadd.f32 %v2695, %v2698
    %vm2700 = vweird.f32 %v2679
    %vm2701 = vweird.f32 %v2695
    %vm2702 = vmor %vm2700, %vm2701
    %v2703 = vsel %vm2702, %v2695, %v2699
    %v2704 = vand.u32 2147483647, %v2679
    %vm2705 = vcmp.eq.f32.partialorder %v2704, 8.507059e+37
    %v2706 = vand.u32 %v2679, 2147483648
    %v2707 = vor.u32 1.1754944e-38, %v2706
    %v2708 = vsel %vm2705, %v2707, %v2703
    %v2709 = vmul.f32 %v2673, %v2708
    %v2710 = vpack.c.bf16 %v2694, %v2694
    %v2711 = vpack.c.bf16 %v2709, %v2709
    %2712 = vrot.lane.b32.xlu0 %v2468, 48
    %v2713 = vpop.permute.xlu0 %2712
    %v2715 = vsel %vm212, %v2710, 0
    %v2718 = vsel %vm268, %v2713, 0
    %2720 = vmatpush.bf16.msra.mxu0 0
    %2721 = vmatpush.bf16.msra.mxu0 0
    %2722 = vmatpush.bf16.msra.mxu0 0
    %2723 = vmatpush.bf16.msra.mxu0 0
    %2724 = vmatpush.bf16.msra.mxu0 0
    %2725 = vmatpush.bf16.msra.mxu0 0
    %2726 = vmatpush.bf16.msra.mxu0 0
    %2727 = vmatpush.bf16.msra.mxu0 %v2718
    %2728 = vmatmul.bf16.gmra.mxu0 %v2715
    %v2729 = vpop.f32.mrf.mxu0
    %v2730 = vadd.f32 0.0, %v2729
    %v2731 = vpop.f32.mrf.mxu0
    %2732 = vdwg.mxu0
    %2733 = vrot.lane.b32.xlu0 %v2492, 48
    %v2734 = vpop.permute.xlu0 %2733
    %v2736 = vsel %vm212, %v2711, 0
    %v2739 = vsel %vm268, %v2734, 0
    %2741 = vmatpush.bf16.msra.mxu0 0
    %2742 = vmatpush.bf16.msra.mxu0 0
    %2743 = vmatpush.bf16.msra.mxu0 0
    %2744 = vmatpush.bf16.msra.mxu0 0
    %2745 = vmatpush.bf16.msra.mxu0 0
    %2746 = vmatpush.bf16.msra.mxu0 0
    %2747 = vmatpush.bf16.msra.mxu0 0
    %2748 = vmatpush.bf16.msra.mxu0 %v2739
    %2749 = vmatmul.bf16.gmra.mxu0 %v2736
    %v2750 = vpop.f32.mrf.mxu0
    %v2751 = vadd.f32 0.0, %v2750
    %v2752 = vpop.f32.mrf.mxu0
    %2753 = vdwg.mxu0
    %v2754 = vpack.c.bf16 %v2751, %v2730
    %s2755 = scalar_lea.vmem %s5, 24
    %v2756 = vld [vmem:[%s2755] sm:$0xf]
    %v2757 = vld [vmem:[%s2755 + $0x4] sm:$0xf]
    %v2760 = vunpack.c.l.b16 %v2756
    %v2761 = vunpack.c.l.b16 %v2757
    %v2762 = vpack.c.b16 %v2761, %v2760
    %v2765 = vsel %vm168, %v2754, 0
    %2767 = vmatpush.bf16.msra.mxu0 0
    %2768 = vmatpush.bf16.msra.mxu0 0
    %2769 = vmatpush.bf16.msra.mxu0 0
    %2770 = vmatpush.bf16.msra.mxu0 0
    %2771 = vmatpush.bf16.msra.mxu0 0
    %2772 = vmatpush.bf16.msra.mxu0 0
    %2773 = vmatpush.bf16.msra.mxu0 0
    %2774 = vmatpush.bf16.msra.mxu0 %v2762
    %2775 = vmatmul.bf16.gmra.mxu0 %v2765
    %v2776 = vpop.f32.mrf.mxu0
    %v2777 = vadd.f32 0.0, %v2776
    %v2778 = vpop.f32.mrf.mxu0
    %v2779 = vadd.f32 0.0, %v2778
    %2780 = vdwg.mxu0
    %v2783 = vunpack.c.l.b16 %v2608
    %v2784 = vunpack.c.l.b16 %v2609
    %v2785 = vpack.c.b16 %v2784, %v2783
    %v2788 = vsel %vm168, %v2606, 0
    %2790 = vmatpush.bf16.msra.mxu0 0
    %2791 = vmatpush.bf16.msra.mxu0 0
    %2792 = vmatpush.bf16.msra.mxu0 0
    %2793 = vmatpush.bf16.msra.mxu0 0
    %2794 = vmatpush.bf16.msra.mxu0 0
    %2795 = vmatpush.bf16.msra.mxu0 0
    %2796 = vmatpush.bf16.msra.mxu0 0
    %2797 = vmatpush.bf16.msra.mxu0 %v2785
    %2798 = vmatmul.bf16.gmra.mxu0 %v2788
    %v2799 = vpop.f32.mrf.mxu0
    %v2800 = vadd.f32 %v2777, %v2799
    %v2801 = vpop.f32.mrf.mxu0
    %v2802 = vadd.f32 %v2779, %v2801
    %2803 = vdwg.mxu0
    %v2804 = vperm.slane %v2415, 0
    %v2805 = vadd.f32 %v2800, %v2804
    %v2806 = vadd.f32 %v2802, %v2804
    %v2807 = vadd.f32 %v2413, %v2805
    %v2808 = vadd.f32 %v2414, %v2806
    %v2809 = vsel %vm56, %v2807, 0.0
    %2810 = vadd.xlane.f32.xlu0 %v2809
    %v2811 = vpop.xlane.xlu0 %2810
    %v2812 = vsel %vm56, %v2808, 0.0
    %2813 = vadd.xlane.f32.xlu0 %v2812
    %v2814 = vpop.xlane.xlu0 %2813
    %v2815 = vmul.f32 %v2811, %v69
    %v2816 = vmul.f32 %v2814, %v69
    %v2817 = vsub.f32 %v2807, %v2815
    %v2818 = vsub.f32 %v2808, %v2816
    %v2819 = vmul.f32 %v2817, %v2817
    %v2820 = vmul.f32 %v2818, %v2818
    %v2821 = vsel %vm56, %v2819, 0.0
    %2822 = vadd.xlane.f32.xlu0 %v2821
    %v2823 = vpop.xlane.xlu0 %2822
    %v2824 = vsel %vm56, %v2820, 0.0
    %2825 = vadd.xlane.f32.xlu0 %v2824
    %v2826 = vpop.xlane.xlu0 %2825
    %v2827 = vmul.f32 %v2823, %v69
    %v2828 = vmul.f32 %v2826, %v69
    %v2829 = vadd.f32 %v2827, 1e-05
    %v2830 = vadd.f32 %v2828, 1e-05
    %v2831 = vrsqrt.pop %v2829
    %v2832 = vmul.f32 %v2831, %v2829
    %v2833 = vmul.f32 %v2832, %v2831
    %v2834 = vmul.f32 0.5, %v2833
    %v2835 = vsub.f32 1.5, %v2834
    %v2836 = vmul.f32 %v2831, %v2835
    %vm2837 = vweird.f32 %v2829
    %vm2838 = vweird.f32 %v2831
    %vm2839 = vmor %vm2837, %vm2838
    %v2840 = vsel %vm2839, %v2831, %v2836
    %v2841 = vrsqrt.pop %v2830
    %v2842 = vmul.f32 %v2841, %v2830
    %v2843 = vmul.f32 %v2842, %v2841
    %v2844 = vmul.f32 0.5, %v2843
    %v2845 = vsub.f32 1.5, %v2844
    %v2846 = vmul.f32 %v2841, %v2845
    %vm2847 = vweird.f32 %v2830
    %vm2848 = vweird.f32 %v2841
    %vm2849 = vmor %vm2847, %vm2848
    %v2850 = vsel %vm2849, %v2841, %v2846
    %v2851 = vmul.f32 %v2817, %v2840
    %v2852 = vmul.f32 %v2818, %v2850
    %v2853 = vperm.slane %v2416, 0
    %v2854 = vmul.f32 %v2851, %v2853
    %v2855 = vmul.f32 %v2852, %v2853
    %v2856 = vperm.slane %v2417, 0
    %v2857 = vadd.f32 %v2854, %v2856
    %v2858 = vadd.f32 %v2855, %v2856
    %s2859 = scalar_lea.vmem %s6, 384
    %v2860 = vld [vmem:[%s2859] sm:$0xf]
    %v2861 = vld [vmem:[%s2859 + $0x4] sm:$0xf]
    %v2862 = vld [vmem:[%s2859 + $0x8] sm:$0xf]
    %v2863 = vld [vmem:[%s2859 + $0xc] sm:$0xf]
    %v2864 = vld [vmem:[%s2859 + $0x10] sm:$0xf]
    %v2865 = vld [vmem:[%s2859 + $0x14] sm:$0xf]
    %v2866 = vld [vmem:[%s2859 + $0x18] sm:$0xf]
    %v2867 = vld [vmem:[%s2859 + $0x1c] sm:$0xf]
    %v2868 = vld [vmem:[%s2859 + $0x20] sm:$0xf]
    %v2869 = vld [vmem:[%s2859 + $0x24] sm:$0xf]
    %v2870 = vld [vmem:[%s2859 + $0x28] sm:$0xf]
    %v2871 = vld [vmem:[%s2859 + $0x2c] sm:$0xf]
    %v2872 = vld [vmem:[%s2859 + $0x30] sm:$0xf]
    %v2873 = vld [vmem:[%s2859 + $0x34] sm:$0xf]
    %v2874 = vld [vmem:[%s2859 + $0x38] sm:$0xf]
    %v2875 = vld [vmem:[%s2859 + $0x3c] sm:$0xf]
    %v2876 = vld [vmem:[%s2859 + $0x40] sm:$0xf]
    %v2877 = vld [vmem:[%s2859 + $0x44] sm:$0xf]
    %v2878 = vld [vmem:[%s2859 + $0x48] sm:$0xf]
    %v2879 = vld [vmem:[%s2859 + $0x4c] sm:$0xf]
    %v2880 = vld [vmem:[%s2859 + $0x50] sm:$0xf]
    %v2881 = vld [vmem:[%s2859 + $0x54] sm:$0xf]
    %v2882 = vld [vmem:[%s2859 + $0x58] sm:$0xf]
    %v2883 = vld [vmem:[%s2859 + $0x5c] sm:$0xf]
    %v2884 = vld [vmem:[%s2859 + $0x60] sm:$0xf]
    %v2885 = vld [vmem:[%s2859 + $0x64] sm:$0xf]
    %v2886 = vld [vmem:[%s2859 + $0x68] sm:$0xf]
    %v2887 = vld [vmem:[%s2859 + $0x6c] sm:$0xf]
    %v2888 = vld [vmem:[%s2859 + $0x70] sm:$0xf]
    %v2889 = vld [vmem:[%s2859 + $0x74] sm:$0xf]
    %v2890 = vld [vmem:[%s2859 + $0x78] sm:$0xf]
    %v2891 = vld [vmem:[%s2859 + $0x7c] sm:$0xf]
    %v2892 = vld [vmem:[%s2859 + $0x80] sm:$0xf]
    %v2893 = vld [vmem:[%s2859 + $0x84] sm:$0xf]
    %v2894 = vld [vmem:[%s2859 + $0x88] sm:$0xf]
    %v2895 = vld [vmem:[%s2859 + $0x8c] sm:$0xf]
    %v2896 = vld [vmem:[%s2859 + $0x90] sm:$0xf]
    %v2897 = vld [vmem:[%s2859 + $0x94] sm:$0xf]
    %v2898 = vld [vmem:[%s2859 + $0x98] sm:$0xf]
    %v2899 = vld [vmem:[%s2859 + $0x9c] sm:$0xf]
    %v2900 = vld [vmem:[%s2859 + $0xa0] sm:$0xf]
    %v2901 = vld [vmem:[%s2859 + $0xa4] sm:$0xf]
    %v2902 = vld [vmem:[%s2859 + $0xa8] sm:$0xf]
    %v2903 = vld [vmem:[%s2859 + $0xac] sm:$0xf]
    %v2904 = vld [vmem:[%s2859 + $0xb0] sm:$0xf]
    %v2905 = vld [vmem:[%s2859 + $0xb4] sm:$0xf]
    %v2906 = vld [vmem:[%s2859 + $0xb8] sm:$0xf]
    %v2907 = vld [vmem:[%s2859 + $0xbc] sm:$0xf]
    %vm2908 = vcmp.ge.f32.partialorder %v2857, -1.75
    %vm2909 = vcmp.ge.f32.partialorder %v2858, -1.75
    %v2910 = vsel %vm2908, 1, 0
    %v2911 = vsel %vm2909, 1, 0
    %v2912 = vcvt.s32.f32 %v2910
    %v2913 = vcvt.s32.f32 %v2911
    %vm2914 = vcmp.ge.f32.partialorder %v2857, -1.5
    %vm2915 = vcmp.ge.f32.partialorder %v2858, -1.5
    %v2916 = vsel %vm2914, 1, 0
    %v2917 = vsel %vm2915, 1, 0
    %v2918 = vcvt.s32.f32 %v2916
    %v2919 = vcvt.s32.f32 %v2917
    %vm2920 = vcmp.ge.f32.partialorder %v2857, -1.25
    %vm2921 = vcmp.ge.f32.partialorder %v2858, -1.25
    %v2922 = vsel %vm2920, 1, 0
    %v2923 = vsel %vm2921, 1, 0
    %v2924 = vcvt.s32.f32 %v2922
    %v2925 = vcvt.s32.f32 %v2923
    %vm2926 = vcmp.ge.f32.partialorder %v2857, -1.0
    %vm2927 = vcmp.ge.f32.partialorder %v2858, -1.0
    %v2928 = vsel %vm2926, 1, 0
    %v2929 = vsel %vm2927, 1, 0
    %v2930 = vcvt.s32.f32 %v2928
    %v2931 = vcvt.s32.f32 %v2929
    %vm2932 = vcmp.ge.f32.partialorder %v2857, -0.75
    %vm2933 = vcmp.ge.f32.partialorder %v2858, -0.75
    %v2934 = vsel %vm2932, 1, 0
    %v2935 = vsel %vm2933, 1, 0
    %v2936 = vcvt.s32.f32 %v2934
    %v2937 = vcvt.s32.f32 %v2935
    %vm2938 = vcmp.ge.f32.partialorder %v2857, -0.5
    %vm2939 = vcmp.ge.f32.partialorder %v2858, -0.5
    %v2940 = vsel %vm2938, 1, 0
    %v2941 = vsel %vm2939, 1, 0
    %v2942 = vcvt.s32.f32 %v2940
    %v2943 = vcvt.s32.f32 %v2941
    %vm2944 = vcmp.ge.f32.partialorder %v2857, -0.25
    %vm2945 = vcmp.ge.f32.partialorder %v2858, -0.25
    %v2946 = vsel %vm2944, 1, 0
    %v2947 = vsel %vm2945, 1, 0
    %v2948 = vcvt.s32.f32 %v2946
    %v2949 = vcvt.s32.f32 %v2947
    %vm2950 = vcmp.ge.f32.partialorder %v2857, 0.0
    %vm2951 = vcmp.ge.f32.partialorder %v2858, 0.0
    %v2952 = vsel %vm2950, 1, 0
    %v2953 = vsel %vm2951, 1, 0
    %v2954 = vcvt.s32.f32 %v2952
    %v2955 = vcvt.s32.f32 %v2953
    %vm2956 = vcmp.ge.f32.partialorder %v2857, 0.25
    %vm2957 = vcmp.ge.f32.partialorder %v2858, 0.25
    %v2958 = vsel %vm2956, 1, 0
    %v2959 = vsel %vm2957, 1, 0
    %v2960 = vcvt.s32.f32 %v2958
    %v2961 = vcvt.s32.f32 %v2959
    %vm2962 = vcmp.ge.f32.partialorder %v2857, 0.5
    %vm2963 = vcmp.ge.f32.partialorder %v2858, 0.5
    %v2964 = vsel %vm2962, 1, 0
    %v2965 = vsel %vm2963, 1, 0
    %v2966 = vcvt.s32.f32 %v2964
    %v2967 = vcvt.s32.f32 %v2965
    %vm2968 = vcmp.ge.f32.partialorder %v2857, 0.75
    %vm2969 = vcmp.ge.f32.partialorder %v2858, 0.75
    %v2970 = vsel %vm2968, 1, 0
    %v2971 = vsel %vm2969, 1, 0
    %v2972 = vcvt.s32.f32 %v2970
    %v2973 = vcvt.s32.f32 %v2971
    %vm2974 = vcmp.ge.f32.partialorder %v2857, 1.0
    %vm2975 = vcmp.ge.f32.partialorder %v2858, 1.0
    %v2976 = vsel %vm2974, 1, 0
    %v2977 = vsel %vm2975, 1, 0
    %v2978 = vcvt.s32.f32 %v2976
    %v2979 = vcvt.s32.f32 %v2977
    %vm2980 = vcmp.ge.f32.partialorder %v2857, 1.25
    %vm2981 = vcmp.ge.f32.partialorder %v2858, 1.25
    %v2982 = vsel %vm2980, 1, 0
    %v2983 = vsel %vm2981, 1, 0
    %v2984 = vcvt.s32.f32 %v2982
    %v2985 = vcvt.s32.f32 %v2983
    %vm2986 = vcmp.ge.f32.partialorder %v2857, 1.5
    %vm2987 = vcmp.ge.f32.partialorder %v2858, 1.5
    %v2988 = vsel %vm2986, 1, 0
    %v2989 = vsel %vm2987, 1, 0
    %v2990 = vcvt.s32.f32 %v2988
    %v2991 = vcvt.s32.f32 %v2989
    %vm2992 = vcmp.ge.f32.partialorder %v2857, 1.75
    %vm2993 = vcmp.ge.f32.partialorder %v2858, 1.75
    %v2994 = vsel %vm2992, 1, 0
    %v2995 = vsel %vm2993, 1, 0
    %v2996 = vcvt.s32.f32 %v2994
    %v2997 = vcvt.s32.f32 %v2995
    %v2998 = vsub.f32 %v2912, %v2918
    %v2999 = vsub.f32 %v2913, %v2919
    %v3000 = vsub.f32 %v2918, %v2924
    %v3001 = vsub.f32 %v2919, %v2925
    %v3002 = vsub.f32 %v2924, %v2930
    %v3003 = vsub.f32 %v2925, %v2931
    %v3004 = vsub.f32 %v2930, %v2936
    %v3005 = vsub.f32 %v2931, %v2937
    %v3006 = vsub.f32 %v2936, %v2942
    %v3007 = vsub.f32 %v2937, %v2943
    %v3008 = vsub.f32 %v2942, %v2948
    %v3009 = vsub.f32 %v2943, %v2949
    %v3010 = vsub.f32 %v2948, %v2954
    %v3011 = vsub.f32 %v2949, %v2955
    %v3012 = vsub.f32 %v2954, %v2960
    %v3013 = vsub.f32 %v2955, %v2961
    %v3014 = vsub.f32 %v2960, %v2966
    %v3015 = vsub.f32 %v2961, %v2967
    %v3016 = vsub.f32 %v2966, %v2972
    %v3017 = vsub.f32 %v2967, %v2973
    %v3018 = vsub.f32 %v2972, %v2978
    %v3019 = vsub.f32 %v2973, %v2979
    %v3020 = vsub.f32 %v2978, %v2984
    %v3021 = vsub.f32 %v2979, %v2985
    %v3022 = vsub.f32 %v2984, %v2990
    %v3023 = vsub.f32 %v2985, %v2991
    %v3024 = vsub.f32 %v2990, %v2996
    %v3025 = vsub.f32 %v2991, %v2997
    %v3026 = vsub.f32 %v2857, -1.75
    %v3027 = vsub.f32 %v2858, -1.75
    %v3028 = vsub.f32 %v2857, -1.5
    %v3029 = vsub.f32 %v2858, -1.5
    %v3030 = vsub.f32 %v2857, -1.25
    %v3031 = vsub.f32 %v2858, -1.25
    %v3032 = vsub.f32 %v2857, -1.0
    %v3033 = vsub.f32 %v2858, -1.0
    %v3034 = vsub.f32 %v2857, -0.75
    %v3035 = vsub.f32 %v2858, -0.75
    %v3036 = vsub.f32 %v2857, -0.5
    %v3037 = vsub.f32 %v2858, -0.5
    %v3038 = vsub.f32 %v2857, -0.25
    %v3039 = vsub.f32 %v2858, -0.25
    %v3040 = vsub.f32 %v2857, 0.25
    %v3041 = vsub.f32 %v2858, 0.25
    %v3042 = vsub.f32 %v2857, 0.5
    %v3043 = vsub.f32 %v2858, 0.5
    %v3044 = vsub.f32 %v2857, 0.75
    %v3045 = vsub.f32 %v2858, 0.75
    %v3046 = vsub.f32 %v2857, 1.0
    %v3047 = vsub.f32 %v2858, 1.0
    %v3048 = vsub.f32 %v2857, 1.25
    %v3049 = vsub.f32 %v2858, 1.25
    %v3050 = vsub.f32 %v2857, 1.5
    %v3051 = vsub.f32 %v2858, 1.5
    %v3052 = vsub.f32 %v2857, 1.75
    %v3053 = vsub.f32 %v2858, 1.75
    %v3054 = vmul.f32 %v3026, %v2998
    %v3055 = vmul.f32 %v3027, %v2999
    %v3056 = vmul.f32 %v3030, %v3000
    %v3057 = vmul.f32 %v3031, %v3001
    %v3058 = vsub.f32 %v3054, %v3056
    %v3059 = vsub.f32 %v3055, %v3057
    %v3060 = vmul.f32 %v3058, 4.0
    %v3061 = vmul.f32 %v3059, 4.0
    %v3062 = vmul.f32 %v3028, %v3000
    %v3063 = vmul.f32 %v3029, %v3001
    %v3064 = vmul.f32 %v3032, %v3002
    %v3065 = vmul.f32 %v3033, %v3003
    %v3066 = vsub.f32 %v3062, %v3064
    %v3067 = vsub.f32 %v3063, %v3065
    %v3068 = vmul.f32 %v3066, 4.0
    %v3069 = vmul.f32 %v3067, 4.0
    %v3070 = vmul.f32 %v3030, %v3002
    %v3071 = vmul.f32 %v3031, %v3003
    %v3072 = vmul.f32 %v3034, %v3004
    %v3073 = vmul.f32 %v3035, %v3005
    %v3074 = vsub.f32 %v3070, %v3072
    %v3075 = vsub.f32 %v3071, %v3073
    %v3076 = vmul.f32 %v3074, 4.0
    %v3077 = vmul.f32 %v3075, 4.0
    %v3078 = vmul.f32 %v3032, %v3004
    %v3079 = vmul.f32 %v3033, %v3005
    %v3080 = vmul.f32 %v3036, %v3006
    %v3081 = vmul.f32 %v3037, %v3007
    %v3082 = vsub.f32 %v3078, %v3080
    %v3083 = vsub.f32 %v3079, %v3081
    %v3084 = vmul.f32 %v3082, 4.0
    %v3085 = vmul.f32 %v3083, 4.0
    %v3086 = vmul.f32 %v3034, %v3006
    %v3087 = vmul.f32 %v3035, %v3007
    %v3088 = vmul.f32 %v3038, %v3008
    %v3089 = vmul.f32 %v3039, %v3009
    %v3090 = vsub.f32 %v3086, %v3088
    %v3091 = vsub.f32 %v3087, %v3089
    %v3092 = vmul.f32 %v3090, 4.0
    %v3093 = vmul.f32 %v3091, 4.0
    %v3094 = vmul.f32 %v3036, %v3008
    %v3095 = vmul.f32 %v3037, %v3009
    %v3096 = vmul.f32 %v2857, %v3010
    %v3097 = vmul.f32 %v2858, %v3011
    %v3098 = vsub.f32 %v3094, %v3096
    %v3099 = vsub.f32 %v3095, %v3097
    %v3100 = vmul.f32 %v3098, 4.0
    %v3101 = vmul.f32 %v3099, 4.0
    %v3102 = vmul.f32 %v3038, %v3010
    %v3103 = vmul.f32 %v3039, %v3011
    %v3104 = vmul.f32 %v3040, %v3012
    %v3105 = vmul.f32 %v3041, %v3013
    %v3106 = vsub.f32 %v3102, %v3104
    %v3107 = vsub.f32 %v3103, %v3105
    %v3108 = vmul.f32 %v3106, 4.0
    %v3109 = vmul.f32 %v3107, 4.0
    %v3110 = vmul.f32 %v2857, %v3012
    %v3111 = vmul.f32 %v2858, %v3013
    %v3112 = vmul.f32 %v3042, %v3014
    %v3113 = vmul.f32 %v3043, %v3015
    %v3114 = vsub.f32 %v3110, %v3112
    %v3115 = vsub.f32 %v3111, %v3113
    %v3116 = vmul.f32 %v3114, 4.0
    %v3117 = vmul.f32 %v3115, 4.0
    %v3118 = vmul.f32 %v3040, %v3014
    %v3119 = vmul.f32 %v3041, %v3015
    %v3120 = vmul.f32 %v3044, %v3016
    %v3121 = vmul.f32 %v3045, %v3017
    %v3122 = vsub.f32 %v3118, %v3120
    %v3123 = vsub.f32 %v3119, %v3121
    %v3124 = vmul.f32 %v3122, 4.0
    %v3125 = vmul.f32 %v3123, 4.0
    %v3126 = vmul.f32 %v3042, %v3016
    %v3127 = vmul.f32 %v3043, %v3017
    %v3128 = vmul.f32 %v3046, %v3018
    %v3129 = vmul.f32 %v3047, %v3019
    %v3130 = vsub.f32 %v3126, %v3128
    %v3131 = vsub.f32 %v3127, %v3129
    %v3132 = vmul.f32 %v3130, 4.0
    %v3133 = vmul.f32 %v3131, 4.0
    %v3134 = vmul.f32 %v3044, %v3018
    %v3135 = vmul.f32 %v3045, %v3019
    %v3136 = vmul.f32 %v3048, %v3020
    %v3137 = vmul.f32 %v3049, %v3021
    %v3138 = vsub.f32 %v3134, %v3136
    %v3139 = vsub.f32 %v3135, %v3137
    %v3140 = vmul.f32 %v3138, 4.0
    %v3141 = vmul.f32 %v3139, 4.0
    %v3142 = vmul.f32 %v3046, %v3020
    %v3143 = vmul.f32 %v3047, %v3021
    %v3144 = vmul.f32 %v3050, %v3022
    %v3145 = vmul.f32 %v3051, %v3023
    %v3146 = vsub.f32 %v3142, %v3144
    %v3147 = vsub.f32 %v3143, %v3145
    %v3148 = vmul.f32 %v3146, 4.0
    %v3149 = vmul.f32 %v3147, 4.0
    %v3150 = vmul.f32 %v3048, %v3022
    %v3151 = vmul.f32 %v3049, %v3023
    %v3152 = vmul.f32 %v3052, %v3024
    %v3153 = vmul.f32 %v3053, %v3025
    %v3154 = vsub.f32 %v3150, %v3152
    %v3155 = vsub.f32 %v3151, %v3153
    %v3156 = vmul.f32 %v3154, 4.0
    %v3157 = vmul.f32 %v3155, 4.0
    %v3158 = vmul.f32 %v3026, %v3060
    %v3159 = vmul.f32 %v3027, %v3061
    %v3160 = vmul.f32 %v3032, %v3068
    %v3161 = vmul.f32 %v3033, %v3069
    %v3162 = vsub.f32 %v3158, %v3160
    %v3163 = vsub.f32 %v3159, %v3161
    %v3164 = vmul.f32 %v3162, 2.0
    %v3165 = vmul.f32 %v3163, 2.0
    %v3166 = vmul.f32 %v3028, %v3068
    %v3167 = vmul.f32 %v3029, %v3069
    %v3168 = vmul.f32 %v3034, %v3076
    %v3169 = vmul.f32 %v3035, %v3077
    %v3170 = vsub.f32 %v3166, %v3168
    %v3171 = vsub.f32 %v3167, %v3169
    %v3172 = vmul.f32 %v3170, 2.0
    %v3173 = vmul.f32 %v3171, 2.0
    %v3174 = vmul.f32 %v3030, %v3076
    %v3175 = vmul.f32 %v3031, %v3077
    %v3176 = vmul.f32 %v3036, %v3084
    %v3177 = vmul.f32 %v3037, %v3085
    %v3178 = vsub.f32 %v3174, %v3176
    %v3179 = vsub.f32 %v3175, %v3177
    %v3180 = vmul.f32 %v3178, 2.0
    %v3181 = vmul.f32 %v3179, 2.0
    %v3182 = vmul.f32 %v3032, %v3084
    %v3183 = vmul.f32 %v3033, %v3085
    %v3184 = vmul.f32 %v3038, %v3092
    %v3185 = vmul.f32 %v3039, %v3093
    %v3186 = vsub.f32 %v3182, %v3184
    %v3187 = vsub.f32 %v3183, %v3185
    %v3188 = vmul.f32 %v3186, 2.0
    %v3189 = vmul.f32 %v3187, 2.0
    %v3190 = vmul.f32 %v3034, %v3092
    %v3191 = vmul.f32 %v3035, %v3093
    %v3192 = vmul.f32 %v2857, %v3100
    %v3193 = vmul.f32 %v2858, %v3101
    %v3194 = vsub.f32 %v3190, %v3192
    %v3195 = vsub.f32 %v3191, %v3193
    %v3196 = vmul.f32 %v3194, 2.0
    %v3197 = vmul.f32 %v3195, 2.0
    %v3198 = vmul.f32 %v3036, %v3100
    %v3199 = vmul.f32 %v3037, %v3101
    %v3200 = vmul.f32 %v3040, %v3108
    %v3201 = vmul.f32 %v3041, %v3109
    %v3202 = vsub.f32 %v3198, %v3200
    %v3203 = vsub.f32 %v3199, %v3201
    %v3204 = vmul.f32 %v3202, 2.0
    %v3205 = vmul.f32 %v3203, 2.0
    %v3206 = vmul.f32 %v3038, %v3108
    %v3207 = vmul.f32 %v3039, %v3109
    %v3208 = vmul.f32 %v3042, %v3116
    %v3209 = vmul.f32 %v3043, %v3117
    %v3210 = vsub.f32 %v3206, %v3208
    %v3211 = vsub.f32 %v3207, %v3209
    %v3212 = vmul.f32 %v3210, 2.0
    %v3213 = vmul.f32 %v3211, 2.0
    %v3214 = vmul.f32 %v2857, %v3116
    %v3215 = vmul.f32 %v2858, %v3117
    %v3216 = vmul.f32 %v3044, %v3124
    %v3217 = vmul.f32 %v3045, %v3125
    %v3218 = vsub.f32 %v3214, %v3216
    %v3219 = vsub.f32 %v3215, %v3217
    %v3220 = vmul.f32 %v3218, 2.0
    %v3221 = vmul.f32 %v3219, 2.0
    %v3222 = vmul.f32 %v3040, %v3124
    %v3223 = vmul.f32 %v3041, %v3125
    %v3224 = vmul.f32 %v3046, %v3132
    %v3225 = vmul.f32 %v3047, %v3133
    %v3226 = vsub.f32 %v3222, %v3224
    %v3227 = vsub.f32 %v3223, %v3225
    %v3228 = vmul.f32 %v3226, 2.0
    %v3229 = vmul.f32 %v3227, 2.0
    %v3230 = vmul.f32 %v3042, %v3132
    %v3231 = vmul.f32 %v3043, %v3133
    %v3232 = vmul.f32 %v3048, %v3140
    %v3233 = vmul.f32 %v3049, %v3141
    %v3234 = vsub.f32 %v3230, %v3232
    %v3235 = vsub.f32 %v3231, %v3233
    %v3236 = vmul.f32 %v3234, 2.0
    %v3237 = vmul.f32 %v3235, 2.0
    %v3238 = vmul.f32 %v3044, %v3140
    %v3239 = vmul.f32 %v3045, %v3141
    %v3240 = vmul.f32 %v3050, %v3148
    %v3241 = vmul.f32 %v3051, %v3149
    %v3242 = vsub.f32 %v3238, %v3240
    %v3243 = vsub.f32 %v3239, %v3241
    %v3244 = vmul.f32 %v3242, 2.0
    %v3245 = vmul.f32 %v3243, 2.0
    %v3246 = vmul.f32 %v3046, %v3148
    %v3247 = vmul.f32 %v3047, %v3149
    %v3248 = vmul.f32 %v3052, %v3156
    %v3249 = vmul.f32 %v3053, %v3157
    %v3250 = vsub.f32 %v3246, %v3248
    %v3251 = vsub.f32 %v3247, %v3249
    %v3252 = vmul.f32 %v3250, 2.0
    %v3253 = vmul.f32 %v3251, 2.0
    %v3254 = vmul.f32 %v3026, %v3164
    %v3255 = vmul.f32 %v3027, %v3165
    %v3256 = vmul.f32 %v3034, %v3172
    %v3257 = vmul.f32 %v3035, %v3173
    %v3258 = vsub.f32 %v3254, %v3256
    %v3259 = vsub.f32 %v3255, %v3257
    %v3260 = vmul.f32 %v3258, 1.3333334
    %v3261 = vmul.f32 %v3259, 1.3333334
    %v3262 = vmul.f32 %v3028, %v3172
    %v3263 = vmul.f32 %v3029, %v3173
    %v3264 = vmul.f32 %v3036, %v3180
    %v3265 = vmul.f32 %v3037, %v3181
    %v3266 = vsub.f32 %v3262, %v3264
    %v3267 = vsub.f32 %v3263, %v3265
    %v3268 = vmul.f32 %v3266, 1.3333334
    %v3269 = vmul.f32 %v3267, 1.3333334
    %v3270 = vmul.f32 %v3030, %v3180
    %v3271 = vmul.f32 %v3031, %v3181
    %v3272 = vmul.f32 %v3038, %v3188
    %v3273 = vmul.f32 %v3039, %v3189
    %v3274 = vsub.f32 %v3270, %v3272
    %v3275 = vsub.f32 %v3271, %v3273
    %v3276 = vmul.f32 %v3274, 1.3333334
    %v3277 = vmul.f32 %v3275, 1.3333334
    %v3278 = vmul.f32 %v3032, %v3188
    %v3279 = vmul.f32 %v3033, %v3189
    %v3280 = vmul.f32 %v2857, %v3196
    %v3281 = vmul.f32 %v2858, %v3197
    %v3282 = vsub.f32 %v3278, %v3280
    %v3283 = vsub.f32 %v3279, %v3281
    %v3284 = vmul.f32 %v3282, 1.3333334
    %v3285 = vmul.f32 %v3283, 1.3333334
    %v3286 = vmul.f32 %v3034, %v3196
    %v3287 = vmul.f32 %v3035, %v3197
    %v3288 = vmul.f32 %v3040, %v3204
    %v3289 = vmul.f32 %v3041, %v3205
    %v3290 = vsub.f32 %v3286, %v3288
    %v3291 = vsub.f32 %v3287, %v3289
    %v3292 = vmul.f32 %v3290, 1.3333334
    %v3293 = vmul.f32 %v3291, 1.3333334
    %v3294 = vmul.f32 %v3036, %v3204
    %v3295 = vmul.f32 %v3037, %v3205
    %v3296 = vmul.f32 %v3042, %v3212
    %v3297 = vmul.f32 %v3043, %v3213
    %v3298 = vsub.f32 %v3294, %v3296
    %v3299 = vsub.f32 %v3295, %v3297
    %v3300 = vmul.f32 %v3298, 1.3333334
    %v3301 = vmul.f32 %v3299, 1.3333334
    %v3302 = vmul.f32 %v3038, %v3212
    %v3303 = vmul.f32 %v3039, %v3213
    %v3304 = vmul.f32 %v3044, %v3220
    %v3305 = vmul.f32 %v3045, %v3221
    %v3306 = vsub.f32 %v3302, %v3304
    %v3307 = vsub.f32 %v3303, %v3305
    %v3308 = vmul.f32 %v3306, 1.3333334
    %v3309 = vmul.f32 %v3307, 1.3333334
    %v3310 = vmul.f32 %v2857, %v3220
    %v3311 = vmul.f32 %v2858, %v3221
    %v3312 = vmul.f32 %v3046, %v3228
    %v3313 = vmul.f32 %v3047, %v3229
    %v3314 = vsub.f32 %v3310, %v3312
    %v3315 = vsub.f32 %v3311, %v3313
    %v3316 = vmul.f32 %v3314, 1.3333334
    %v3317 = vmul.f32 %v3315, 1.3333334
    %v3318 = vmul.f32 %v3040, %v3228
    %v3319 = vmul.f32 %v3041, %v3229
    %v3320 = vmul.f32 %v3048, %v3236
    %v3321 = vmul.f32 %v3049, %v3237
    %v3322 = vsub.f32 %v3318, %v3320
    %v3323 = vsub.f32 %v3319, %v3321
    %v3324 = vmul.f32 %v3322, 1.3333334
    %v3325 = vmul.f32 %v3323, 1.3333334
    %v3326 = vmul.f32 %v3042, %v3236
    %v3327 = vmul.f32 %v3043, %v3237
    %v3328 = vmul.f32 %v3050, %v3244
    %v3329 = vmul.f32 %v3051, %v3245
    %v3330 = vsub.f32 %v3326, %v3328
    %v3331 = vsub.f32 %v3327, %v3329
    %v3332 = vmul.f32 %v3330, 1.3333334
    %v3333 = vmul.f32 %v3331, 1.3333334
    %v3334 = vmul.f32 %v3044, %v3244
    %v3335 = vmul.f32 %v3045, %v3245
    %v3336 = vmul.f32 %v3052, %v3252
    %v3337 = vmul.f32 %v3053, %v3253
    %v3338 = vsub.f32 %v3334, %v3336
    %v3339 = vsub.f32 %v3335, %v3337
    %v3340 = vmul.f32 %v3338, 1.3333334
    %v3341 = vmul.f32 %v3339, 1.3333334
    %v3342 = vxor.u32 %v2857, 2147483648
    %v3343 = vxor.u32 %v2858, 2147483648
    %v3344 = vmul.f32 %v3342, 1.442695
    %v3345 = vpow.pop %v3344
    %v3346 = vmul.f32 %v3343, 1.442695
    %v3347 = vpow.pop %v3346
    %v3348 = vadd.f32 %v3345, 1.0
    %v3349 = vadd.f32 %v3347, 1.0
    %v3350 = vrcp.pop %v3348
    %v3351 = vmul.f32 %v3348, %v3350
    %v3352 = vsub.f32 1.0, %v3351
    %v3353 = vmul.f32 %v3350, %v3352
    %v3354 = vadd.f32 %v3350, %v3353
    %vm3355 = vweird.f32 %v3348
    %vm3356 = vweird.f32 %v3350
    %vm3357 = vmor %vm3355, %vm3356
    %v3358 = vsel %vm3357, %v3350, %v3354
    %v3359 = vand.u32 2147483647, %v3348
    %vm3360 = vcmp.eq.f32.partialorder %v3359, 8.507059e+37
    %v3361 = vand.u32 %v3348, 2147483648
    %v3362 = vor.u32 1.1754944e-38, %v3361
    %v3363 = vsel %vm3360, %v3362, %v3358
    %v3364 = vmul.f32 1.0, %v3363
    %v3365 = vrcp.pop %v3349
    %v3366 = vmul.f32 %v3349, %v3365
    %v3367 = vsub.f32 1.0, %v3366
    %v3368 = vmul.f32 %v3365, %v3367
    %v3369 = vadd.f32 %v3365, %v3368
    %vm3370 = vweird.f32 %v3349
    %vm3371 = vweird.f32 %v3365
    %vm3372 = vmor %vm3370, %vm3371
    %v3373 = vsel %vm3372, %v3365, %v3369
    %v3374 = vand.u32 2147483647, %v3349
    %vm3375 = vcmp.eq.f32.partialorder %v3374, 8.507059e+37
    %v3376 = vand.u32 %v3349, 2147483648
    %v3377 = vor.u32 1.1754944e-38, %v3376
    %v3378 = vsel %vm3375, %v3377, %v3373
    %v3379 = vmul.f32 1.0, %v3378
    %v3380 = vmul.f32 %v2857, %v3364
    %v3381 = vmul.f32 %v2858, %v3379
    %v3382 = vpack.c.bf16 %v3381, %v3380
    %v3383 = vpack.c.bf16 %v3261, %v3260
    %v3388 = vunpack.c.l.b16 %v2864
    %v3389 = vunpack.c.l.b16 %v2865
    %v3390 = vunpack.c.l.b16 %v2866
    %v3391 = vunpack.c.l.b16 %v2867
    %v3392 = vpack.c.b16 %v3389, %v3388
    %v3393 = vpack.c.b16 %v3391, %v3390
    %v3397 = vsel %vm56, %v3383, 0
    %3399 = vmatpush.bf16.msra.mxu0 0
    %3400 = vmatpush.bf16.msra.mxu0 0
    %3401 = vmatpush.bf16.msra.mxu0 0
    %3402 = vmatpush.bf16.msra.mxu0 0
    %3403 = vmatpush.bf16.msra.mxu0 0
    %3404 = vmatpush.bf16.msra.mxu0 0
    %3405 = vmatpush.bf16.msra.mxu0 %v3393
    %3406 = vmatpush.bf16.msra.mxu0 %v3392
    %3407 = vmatmul.bf16.gmra.mxu0 %v3397
    %v3408 = vpop.f32.mrf.mxu0
    %v3409 = vadd.f32 0.0, %v3408
    %v3410 = vpop.f32.mrf.mxu0
    %v3411 = vadd.f32 0.0, %v3410
    %3412 = vdwg.mxu0
    %v3417 = vunpack.c.l.b16 %v2860
    %v3418 = vunpack.c.l.b16 %v2861
    %v3419 = vunpack.c.l.b16 %v2862
    %v3420 = vunpack.c.l.b16 %v2863
    %v3421 = vpack.c.b16 %v3418, %v3417
    %v3422 = vpack.c.b16 %v3420, %v3419
    %v3426 = vsel %vm56, %v3382, 0
    %3428 = vmatpush.bf16.msra.mxu0 0
    %3429 = vmatpush.bf16.msra.mxu0 0
    %3430 = vmatpush.bf16.msra.mxu0 0
    %3431 = vmatpush.bf16.msra.mxu0 0
    %3432 = vmatpush.bf16.msra.mxu0 0
    %3433 = vmatpush.bf16.msra.mxu0 0
    %3434 = vmatpush.bf16.msra.mxu0 %v3422
    %3435 = vmatpush.bf16.msra.mxu0 %v3421
    %3436 = vmatmul.bf16.gmra.mxu0 %v3426
    %v3437 = vpop.f32.mrf.mxu0
    %v3438 = vadd.f32 %v3409, %v3437
    %v3439 = vpop.f32.mrf.mxu0
    %v3440 = vadd.f32 %v3411, %v3439
    %3441 = vdwg.mxu0
    %v3442 = vpack.c.bf16 %v3269, %v3268
    %v3447 = vunpack.c.l.b16 %v2868
    %v3448 = vunpack.c.l.b16 %v2869
    %v3449 = vunpack.c.l.b16 %v2870
    %v3450 = vunpack.c.l.b16 %v2871
    %v3451 = vpack.c.b16 %v3448, %v3447
    %v3452 = vpack.c.b16 %v3450, %v3449
    %v3456 = vsel %vm56, %v3442, 0
    %3458 = vmatpush.bf16.msra.mxu0 0
    %3459 = vmatpush.bf16.msra.mxu0 0
    %3460 = vmatpush.bf16.msra.mxu0 0
    %3461 = vmatpush.bf16.msra.mxu0 0
    %3462 = vmatpush.bf16.msra.mxu0 0
    %3463 = vmatpush.bf16.msra.mxu0 0
    %3464 = vmatpush.bf16.msra.mxu0 %v3452
    %3465 = vmatpush.bf16.msra.mxu0 %v3451
    %3466 = vmatmul.bf16.gmra.mxu0 %v3456
    %v3467 = vpop.f32.mrf.mxu0
    %v3468 = vadd.f32 0.0, %v3467
    %v3469 = vpop.f32.mrf.mxu0
    %v3470 = vadd.f32 0.0, %v3469
    %3471 = vdwg.mxu0
    %v3472 = vadd.f32 %v3438, %v3468
    %v3473 = vadd.f32 %v3440, %v3470
    %v3474 = vpack.c.bf16 %v3277, %v3276
    %v3479 = vunpack.c.l.b16 %v2872
    %v3480 = vunpack.c.l.b16 %v2873
    %v3481 = vunpack.c.l.b16 %v2874
    %v3482 = vunpack.c.l.b16 %v2875
    %v3483 = vpack.c.b16 %v3480, %v3479
    %v3484 = vpack.c.b16 %v3482, %v3481
    %v3488 = vsel %vm56, %v3474, 0
    %3490 = vmatpush.bf16.msra.mxu0 0
    %3491 = vmatpush.bf16.msra.mxu0 0
    %3492 = vmatpush.bf16.msra.mxu0 0
    %3493 = vmatpush.bf16.msra.mxu0 0
    %3494 = vmatpush.bf16.msra.mxu0 0
    %3495 = vmatpush.bf16.msra.mxu0 0
    %3496 = vmatpush.bf16.msra.mxu0 %v3484
    %3497 = vmatpush.bf16.msra.mxu0 %v3483
    %3498 = vmatmul.bf16.gmra.mxu0 %v3488
    %v3499 = vpop.f32.mrf.mxu0
    %v3500 = vadd.f32 0.0, %v3499
    %v3501 = vpop.f32.mrf.mxu0
    %v3502 = vadd.f32 0.0, %v3501
    %3503 = vdwg.mxu0
    %v3504 = vadd.f32 %v3472, %v3500
    %v3505 = vadd.f32 %v3473, %v3502
    %v3506 = vpack.c.bf16 %v3285, %v3284
    %v3511 = vunpack.c.l.b16 %v2876
    %v3512 = vunpack.c.l.b16 %v2877
    %v3513 = vunpack.c.l.b16 %v2878
    %v3514 = vunpack.c.l.b16 %v2879
    %v3515 = vpack.c.b16 %v3512, %v3511
    %v3516 = vpack.c.b16 %v3514, %v3513
    %v3520 = vsel %vm56, %v3506, 0
    %3522 = vmatpush.bf16.msra.mxu0 0
    %3523 = vmatpush.bf16.msra.mxu0 0
    %3524 = vmatpush.bf16.msra.mxu0 0
    %3525 = vmatpush.bf16.msra.mxu0 0
    %3526 = vmatpush.bf16.msra.mxu0 0
    %3527 = vmatpush.bf16.msra.mxu0 0
    %3528 = vmatpush.bf16.msra.mxu0 %v3516
    %3529 = vmatpush.bf16.msra.mxu0 %v3515
    %3530 = vmatmul.bf16.gmra.mxu0 %v3520
    %v3531 = vpop.f32.mrf.mxu0
    %v3532 = vadd.f32 0.0, %v3531
    %v3533 = vpop.f32.mrf.mxu0
    %v3534 = vadd.f32 0.0, %v3533
    %3535 = vdwg.mxu0
    %v3536 = vadd.f32 %v3504, %v3532
    %v3537 = vadd.f32 %v3505, %v3534
    %v3538 = vpack.c.bf16 %v3293, %v3292
    %v3543 = vunpack.c.l.b16 %v2880
    %v3544 = vunpack.c.l.b16 %v2881
    %v3545 = vunpack.c.l.b16 %v2882
    %v3546 = vunpack.c.l.b16 %v2883
    %v3547 = vpack.c.b16 %v3544, %v3543
    %v3548 = vpack.c.b16 %v3546, %v3545
    %v3552 = vsel %vm56, %v3538, 0
    %3554 = vmatpush.bf16.msra.mxu0 0
    %3555 = vmatpush.bf16.msra.mxu0 0
    %3556 = vmatpush.bf16.msra.mxu0 0
    %3557 = vmatpush.bf16.msra.mxu0 0
    %3558 = vmatpush.bf16.msra.mxu0 0
    %3559 = vmatpush.bf16.msra.mxu0 0
    %3560 = vmatpush.bf16.msra.mxu0 %v3548
    %3561 = vmatpush.bf16.msra.mxu0 %v3547
    %3562 = vmatmul.bf16.gmra.mxu0 %v3552
    %v3563 = vpop.f32.mrf.mxu0
    %v3564 = vadd.f32 0.0, %v3563
    %v3565 = vpop.f32.mrf.mxu0
    %v3566 = vadd.f32 0.0, %v3565
    %3567 = vdwg.mxu0
    %v3568 = vadd.f32 %v3536, %v3564
    %v3569 = vadd.f32 %v3537, %v3566
    %v3570 = vpack.c.bf16 %v3301, %v3300
    %v3575 = vunpack.c.l.b16 %v2884
    %v3576 = vunpack.c.l.b16 %v2885
    %v3577 = vunpack.c.l.b16 %v2886
    %v3578 = vunpack.c.l.b16 %v2887
    %v3579 = vpack.c.b16 %v3576, %v3575
    %v3580 = vpack.c.b16 %v3578, %v3577
    %v3584 = vsel %vm56, %v3570, 0
    %3586 = vmatpush.bf16.msra.mxu0 0
    %3587 = vmatpush.bf16.msra.mxu0 0
    %3588 = vmatpush.bf16.msra.mxu0 0
    %3589 = vmatpush.bf16.msra.mxu0 0
    %3590 = vmatpush.bf16.msra.mxu0 0
    %3591 = vmatpush.bf16.msra.mxu0 0
    %3592 = vmatpush.bf16.msra.mxu0 %v3580
    %3593 = vmatpush.bf16.msra.mxu0 %v3579
    %3594 = vmatmul.bf16.gmra.mxu0 %v3584
    %v3595 = vpop.f32.mrf.mxu0
    %v3596 = vadd.f32 0.0, %v3595
    %v3597 = vpop.f32.mrf.mxu0
    %v3598 = vadd.f32 0.0, %v3597
    %3599 = vdwg.mxu0
    %v3600 = vadd.f32 %v3568, %v3596
    %v3601 = vadd.f32 %v3569, %v3598
    %v3602 = vpack.c.bf16 %v3309, %v3308
    %v3607 = vunpack.c.l.b16 %v2888
    %v3608 = vunpack.c.l.b16 %v2889
    %v3609 = vunpack.c.l.b16 %v2890
    %v3610 = vunpack.c.l.b16 %v2891
    %v3611 = vpack.c.b16 %v3608, %v3607
    %v3612 = vpack.c.b16 %v3610, %v3609
    %v3616 = vsel %vm56, %v3602, 0
    %3618 = vmatpush.bf16.msra.mxu0 0
    %3619 = vmatpush.bf16.msra.mxu0 0
    %3620 = vmatpush.bf16.msra.mxu0 0
    %3621 = vmatpush.bf16.msra.mxu0 0
    %3622 = vmatpush.bf16.msra.mxu0 0
    %3623 = vmatpush.bf16.msra.mxu0 0
    %3624 = vmatpush.bf16.msra.mxu0 %v3612
    %3625 = vmatpush.bf16.msra.mxu0 %v3611
    %3626 = vmatmul.bf16.gmra.mxu0 %v3616
    %v3627 = vpop.f32.mrf.mxu0
    %v3628 = vadd.f32 0.0, %v3627
    %v3629 = vpop.f32.mrf.mxu0
    %v3630 = vadd.f32 0.0, %v3629
    %3631 = vdwg.mxu0
    %v3632 = vadd.f32 %v3600, %v3628
    %v3633 = vadd.f32 %v3601, %v3630
    %v3634 = vpack.c.bf16 %v3317, %v3316
    %v3639 = vunpack.c.l.b16 %v2892
    %v3640 = vunpack.c.l.b16 %v2893
    %v3641 = vunpack.c.l.b16 %v2894
    %v3642 = vunpack.c.l.b16 %v2895
    %v3643 = vpack.c.b16 %v3640, %v3639
    %v3644 = vpack.c.b16 %v3642, %v3641
    %v3648 = vsel %vm56, %v3634, 0
    %3650 = vmatpush.bf16.msra.mxu0 0
    %3651 = vmatpush.bf16.msra.mxu0 0
    %3652 = vmatpush.bf16.msra.mxu0 0
    %3653 = vmatpush.bf16.msra.mxu0 0
    %3654 = vmatpush.bf16.msra.mxu0 0
    %3655 = vmatpush.bf16.msra.mxu0 0
    %3656 = vmatpush.bf16.msra.mxu0 %v3644
    %3657 = vmatpush.bf16.msra.mxu0 %v3643
    %3658 = vmatmul.bf16.gmra.mxu0 %v3648
    %v3659 = vpop.f32.mrf.mxu0
    %v3660 = vadd.f32 0.0, %v3659
    %v3661 = vpop.f32.mrf.mxu0
    %v3662 = vadd.f32 0.0, %v3661
    %3663 = vdwg.mxu0
    %v3664 = vadd.f32 %v3632, %v3660
    %v3665 = vadd.f32 %v3633, %v3662
    %v3666 = vpack.c.bf16 %v3325, %v3324
    %v3671 = vunpack.c.l.b16 %v2896
    %v3672 = vunpack.c.l.b16 %v2897
    %v3673 = vunpack.c.l.b16 %v2898
    %v3674 = vunpack.c.l.b16 %v2899
    %v3675 = vpack.c.b16 %v3672, %v3671
    %v3676 = vpack.c.b16 %v3674, %v3673
    %v3680 = vsel %vm56, %v3666, 0
    %3682 = vmatpush.bf16.msra.mxu0 0
    %3683 = vmatpush.bf16.msra.mxu0 0
    %3684 = vmatpush.bf16.msra.mxu0 0
    %3685 = vmatpush.bf16.msra.mxu0 0
    %3686 = vmatpush.bf16.msra.mxu0 0
    %3687 = vmatpush.bf16.msra.mxu0 0
    %3688 = vmatpush.bf16.msra.mxu0 %v3676
    %3689 = vmatpush.bf16.msra.mxu0 %v3675
    %3690 = vmatmul.bf16.gmra.mxu0 %v3680
    %v3691 = vpop.f32.mrf.mxu0
    %v3692 = vadd.f32 0.0, %v3691
    %v3693 = vpop.f32.mrf.mxu0
    %v3694 = vadd.f32 0.0, %v3693
    %3695 = vdwg.mxu0
    %v3696 = vadd.f32 %v3664, %v3692
    %v3697 = vadd.f32 %v3665, %v3694
    %v3698 = vpack.c.bf16 %v3333, %v3332
    %v3703 = vunpack.c.l.b16 %v2900
    %v3704 = vunpack.c.l.b16 %v2901
    %v3705 = vunpack.c.l.b16 %v2902
    %v3706 = vunpack.c.l.b16 %v2903
    %v3707 = vpack.c.b16 %v3704, %v3703
    %v3708 = vpack.c.b16 %v3706, %v3705
    %v3712 = vsel %vm56, %v3698, 0
    %3714 = vmatpush.bf16.msra.mxu0 0
    %3715 = vmatpush.bf16.msra.mxu0 0
    %3716 = vmatpush.bf16.msra.mxu0 0
    %3717 = vmatpush.bf16.msra.mxu0 0
    %3718 = vmatpush.bf16.msra.mxu0 0
    %3719 = vmatpush.bf16.msra.mxu0 0
    %3720 = vmatpush.bf16.msra.mxu0 %v3708
    %3721 = vmatpush.bf16.msra.mxu0 %v3707
    %3722 = vmatmul.bf16.gmra.mxu0 %v3712
    %v3723 = vpop.f32.mrf.mxu0
    %v3724 = vadd.f32 0.0, %v3723
    %v3725 = vpop.f32.mrf.mxu0
    %v3726 = vadd.f32 0.0, %v3725
    %3727 = vdwg.mxu0
    %v3728 = vadd.f32 %v3696, %v3724
    %v3729 = vadd.f32 %v3697, %v3726
    %v3730 = vpack.c.bf16 %v3341, %v3340
    %v3735 = vunpack.c.l.b16 %v2904
    %v3736 = vunpack.c.l.b16 %v2905
    %v3737 = vunpack.c.l.b16 %v2906
    %v3738 = vunpack.c.l.b16 %v2907
    %v3739 = vpack.c.b16 %v3736, %v3735
    %v3740 = vpack.c.b16 %v3738, %v3737
    %v3744 = vsel %vm56, %v3730, 0
    %3746 = vmatpush.bf16.msra.mxu0 0
    %3747 = vmatpush.bf16.msra.mxu0 0
    %3748 = vmatpush.bf16.msra.mxu0 0
    %3749 = vmatpush.bf16.msra.mxu0 0
    %3750 = vmatpush.bf16.msra.mxu0 0
    %3751 = vmatpush.bf16.msra.mxu0 0
    %3752 = vmatpush.bf16.msra.mxu0 %v3740
    %3753 = vmatpush.bf16.msra.mxu0 %v3739
    %3754 = vmatmul.bf16.gmra.mxu0 %v3744
    %v3755 = vpop.f32.mrf.mxu0
    %v3756 = vadd.f32 0.0, %v3755
    %v3757 = vpop.f32.mrf.mxu0
    %v3758 = vadd.f32 0.0, %v3757
    %3759 = vdwg.mxu0
    %v3760 = vadd.f32 %v3728, %v3756
    %v3761 = vadd.f32 %v3729, %v3758
    %s3762 = scalar_lea.vmem %s6, 576
    %v3763 = vld [vmem:[%s3762] sm:$0xf]
    %v3764 = vld [vmem:[%s3762 + $0x4] sm:$0xf]
    %v3765 = vld [vmem:[%s3762 + $0x8] sm:$0xf]
    %v3766 = vld [vmem:[%s3762 + $0xc] sm:$0xf]
    %v3767 = vld [vmem:[%s3762 + $0x10] sm:$0xf]
    %v3768 = vld [vmem:[%s3762 + $0x14] sm:$0xf]
    %v3769 = vld [vmem:[%s3762 + $0x18] sm:$0xf]
    %v3770 = vld [vmem:[%s3762 + $0x1c] sm:$0xf]
    %v3771 = vld [vmem:[%s3762 + $0x20] sm:$0xf]
    %v3772 = vld [vmem:[%s3762 + $0x24] sm:$0xf]
    %v3773 = vld [vmem:[%s3762 + $0x28] sm:$0xf]
    %v3774 = vld [vmem:[%s3762 + $0x2c] sm:$0xf]
    %v3775 = vld [vmem:[%s3762 + $0x30] sm:$0xf]
    %v3776 = vld [vmem:[%s3762 + $0x34] sm:$0xf]
    %v3777 = vld [vmem:[%s3762 + $0x38] sm:$0xf]
    %v3778 = vld [vmem:[%s3762 + $0x3c] sm:$0xf]
    %v3779 = vld [vmem:[%s3762 + $0x40] sm:$0xf]
    %v3780 = vld [vmem:[%s3762 + $0x44] sm:$0xf]
    %v3781 = vld [vmem:[%s3762 + $0x48] sm:$0xf]
    %v3782 = vld [vmem:[%s3762 + $0x4c] sm:$0xf]
    %v3783 = vld [vmem:[%s3762 + $0x50] sm:$0xf]
    %v3784 = vld [vmem:[%s3762 + $0x54] sm:$0xf]
    %v3785 = vld [vmem:[%s3762 + $0x58] sm:$0xf]
    %v3786 = vld [vmem:[%s3762 + $0x5c] sm:$0xf]
    %v3787 = vld [vmem:[%s3762 + $0x60] sm:$0xf]
    %v3788 = vld [vmem:[%s3762 + $0x64] sm:$0xf]
    %v3789 = vld [vmem:[%s3762 + $0x68] sm:$0xf]
    %v3790 = vld [vmem:[%s3762 + $0x6c] sm:$0xf]
    %v3791 = vld [vmem:[%s3762 + $0x70] sm:$0xf]
    %v3792 = vld [vmem:[%s3762 + $0x74] sm:$0xf]
    %v3793 = vld [vmem:[%s3762 + $0x78] sm:$0xf]
    %v3794 = vld [vmem:[%s3762 + $0x7c] sm:$0xf]
    %v3795 = vld [vmem:[%s3762 + $0x80] sm:$0xf]
    %v3796 = vld [vmem:[%s3762 + $0x84] sm:$0xf]
    %v3797 = vld [vmem:[%s3762 + $0x88] sm:$0xf]
    %v3798 = vld [vmem:[%s3762 + $0x8c] sm:$0xf]
    %v3799 = vld [vmem:[%s3762 + $0x90] sm:$0xf]
    %v3800 = vld [vmem:[%s3762 + $0x94] sm:$0xf]
    %v3801 = vld [vmem:[%s3762 + $0x98] sm:$0xf]
    %v3802 = vld [vmem:[%s3762 + $0x9c] sm:$0xf]
    %v3803 = vld [vmem:[%s3762 + $0xa0] sm:$0xf]
    %v3804 = vld [vmem:[%s3762 + $0xa4] sm:$0xf]
    %v3805 = vld [vmem:[%s3762 + $0xa8] sm:$0xf]
    %v3806 = vld [vmem:[%s3762 + $0xac] sm:$0xf]
    %v3807 = vld [vmem:[%s3762 + $0xb0] sm:$0xf]
    %v3808 = vld [vmem:[%s3762 + $0xb4] sm:$0xf]
    %v3809 = vld [vmem:[%s3762 + $0xb8] sm:$0xf]
    %v3810 = vld [vmem:[%s3762 + $0xbc] sm:$0xf]
    %vm3811 = vcmp.ge.f32.partialorder %v3760, -1.75
    %vm3812 = vcmp.ge.f32.partialorder %v3761, -1.75
    %v3813 = vsel %vm3811, 1, 0
    %v3814 = vsel %vm3812, 1, 0
    %v3815 = vcvt.s32.f32 %v3813
    %v3816 = vcvt.s32.f32 %v3814
    %vm3817 = vcmp.ge.f32.partialorder %v3760, -1.5
    %vm3818 = vcmp.ge.f32.partialorder %v3761, -1.5
    %v3819 = vsel %vm3817, 1, 0
    %v3820 = vsel %vm3818, 1, 0
    %v3821 = vcvt.s32.f32 %v3819
    %v3822 = vcvt.s32.f32 %v3820
    %vm3823 = vcmp.ge.f32.partialorder %v3760, -1.25
    %vm3824 = vcmp.ge.f32.partialorder %v3761, -1.25
    %v3825 = vsel %vm3823, 1, 0
    %v3826 = vsel %vm3824, 1, 0
    %v3827 = vcvt.s32.f32 %v3825
    %v3828 = vcvt.s32.f32 %v3826
    %vm3829 = vcmp.ge.f32.partialorder %v3760, -1.0
    %vm3830 = vcmp.ge.f32.partialorder %v3761, -1.0
    %v3831 = vsel %vm3829, 1, 0
    %v3832 = vsel %vm3830, 1, 0
    %v3833 = vcvt.s32.f32 %v3831
    %v3834 = vcvt.s32.f32 %v3832
    %vm3835 = vcmp.ge.f32.partialorder %v3760, -0.75
    %vm3836 = vcmp.ge.f32.partialorder %v3761, -0.75
    %v3837 = vsel %vm3835, 1, 0
    %v3838 = vsel %vm3836, 1, 0
    %v3839 = vcvt.s32.f32 %v3837
    %v3840 = vcvt.s32.f32 %v3838
    %vm3841 = vcmp.ge.f32.partialorder %v3760, -0.5
    %vm3842 = vcmp.ge.f32.partialorder %v3761, -0.5
    %v3843 = vsel %vm3841, 1, 0
    %v3844 = vsel %vm3842, 1, 0
    %v3845 = vcvt.s32.f32 %v3843
    %v3846 = vcvt.s32.f32 %v3844
    %vm3847 = vcmp.ge.f32.partialorder %v3760, -0.25
    %vm3848 = vcmp.ge.f32.partialorder %v3761, -0.25
    %v3849 = vsel %vm3847, 1, 0
    %v3850 = vsel %vm3848, 1, 0
    %v3851 = vcvt.s32.f32 %v3849
    %v3852 = vcvt.s32.f32 %v3850
    %vm3853 = vcmp.ge.f32.partialorder %v3760, 0.0
    %vm3854 = vcmp.ge.f32.partialorder %v3761, 0.0
    %v3855 = vsel %vm3853, 1, 0
    %v3856 = vsel %vm3854, 1, 0
    %v3857 = vcvt.s32.f32 %v3855
    %v3858 = vcvt.s32.f32 %v3856
    %vm3859 = vcmp.ge.f32.partialorder %v3760, 0.25
    %vm3860 = vcmp.ge.f32.partialorder %v3761, 0.25
    %v3861 = vsel %vm3859, 1, 0
    %v3862 = vsel %vm3860, 1, 0
    %v3863 = vcvt.s32.f32 %v3861
    %v3864 = vcvt.s32.f32 %v3862
    %vm3865 = vcmp.ge.f32.partialorder %v3760, 0.5
    %vm3866 = vcmp.ge.f32.partialorder %v3761, 0.5
    %v3867 = vsel %vm3865, 1, 0
    %v3868 = vsel %vm3866, 1, 0
    %v3869 = vcvt.s32.f32 %v3867
    %v3870 = vcvt.s32.f32 %v3868
    %vm3871 = vcmp.ge.f32.partialorder %v3760, 0.75
    %vm3872 = vcmp.ge.f32.partialorder %v3761, 0.75
    %v3873 = vsel %vm3871, 1, 0
    %v3874 = vsel %vm3872, 1, 0
    %v3875 = vcvt.s32.f32 %v3873
    %v3876 = vcvt.s32.f32 %v3874
    %vm3877 = vcmp.ge.f32.partialorder %v3760, 1.0
    %vm3878 = vcmp.ge.f32.partialorder %v3761, 1.0
    %v3879 = vsel %vm3877, 1, 0
    %v3880 = vsel %vm3878, 1, 0
    %v3881 = vcvt.s32.f32 %v3879
    %v3882 = vcvt.s32.f32 %v3880
    %vm3883 = vcmp.ge.f32.partialorder %v3760, 1.25
    %vm3884 = vcmp.ge.f32.partialorder %v3761, 1.25
    %v3885 = vsel %vm3883, 1, 0
    %v3886 = vsel %vm3884, 1, 0
    %v3887 = vcvt.s32.f32 %v3885
    %v3888 = vcvt.s32.f32 %v3886
    %vm3889 = vcmp.ge.f32.partialorder %v3760, 1.5
    %vm3890 = vcmp.ge.f32.partialorder %v3761, 1.5
    %v3891 = vsel %vm3889, 1, 0
    %v3892 = vsel %vm3890, 1, 0
    %v3893 = vcvt.s32.f32 %v3891
    %v3894 = vcvt.s32.f32 %v3892
    %vm3895 = vcmp.ge.f32.partialorder %v3760, 1.75
    %vm3896 = vcmp.ge.f32.partialorder %v3761, 1.75
    %v3897 = vsel %vm3895, 1, 0
    %v3898 = vsel %vm3896, 1, 0
    %v3899 = vcvt.s32.f32 %v3897
    %v3900 = vcvt.s32.f32 %v3898
    %v3901 = vsub.f32 %v3815, %v3821
    %v3902 = vsub.f32 %v3816, %v3822
    %v3903 = vsub.f32 %v3821, %v3827
    %v3904 = vsub.f32 %v3822, %v3828
    %v3905 = vsub.f32 %v3827, %v3833
    %v3906 = vsub.f32 %v3828, %v3834
    %v3907 = vsub.f32 %v3833, %v3839
    %v3908 = vsub.f32 %v3834, %v3840
    %v3909 = vsub.f32 %v3839, %v3845
    %v3910 = vsub.f32 %v3840, %v3846
    %v3911 = vsub.f32 %v3845, %v3851
    %v3912 = vsub.f32 %v3846, %v3852
    %v3913 = vsub.f32 %v3851, %v3857
    %v3914 = vsub.f32 %v3852, %v3858
    %v3915 = vsub.f32 %v3857, %v3863
    %v3916 = vsub.f32 %v3858, %v3864
    %v3917 = vsub.f32 %v3863, %v3869
    %v3918 = vsub.f32 %v3864, %v3870
    %v3919 = vsub.f32 %v3869, %v3875
    %v3920 = vsub.f32 %v3870, %v3876
    %v3921 = vsub.f32 %v3875, %v3881
    %v3922 = vsub.f32 %v3876, %v3882
    %v3923 = vsub.f32 %v3881, %v3887
    %v3924 = vsub.f32 %v3882, %v3888
    %v3925 = vsub.f32 %v3887, %v3893
    %v3926 = vsub.f32 %v3888, %v3894
    %v3927 = vsub.f32 %v3893, %v3899
    %v3928 = vsub.f32 %v3894, %v3900
    %v3929 = vsub.f32 %v3760, -1.75
    %v3930 = vsub.f32 %v3761, -1.75
    %v3931 = vsub.f32 %v3760, -1.5
    %v3932 = vsub.f32 %v3761, -1.5
    %v3933 = vsub.f32 %v3760, -1.25
    %v3934 = vsub.f32 %v3761, -1.25
    %v3935 = vsub.f32 %v3760, -1.0
    %v3936 = vsub.f32 %v3761, -1.0
    %v3937 = vsub.f32 %v3760, -0.75
    %v3938 = vsub.f32 %v3761, -0.75
    %v3939 = vsub.f32 %v3760, -0.5
    %v3940 = vsub.f32 %v3761, -0.5
    %v3941 = vsub.f32 %v3760, -0.25
    %v3942 = vsub.f32 %v3761, -0.25
    %v3943 = vsub.f32 %v3760, 0.25
    %v3944 = vsub.f32 %v3761, 0.25
    %v3945 = vsub.f32 %v3760, 0.5
    %v3946 = vsub.f32 %v3761, 0.5
    %v3947 = vsub.f32 %v3760, 0.75
    %v3948 = vsub.f32 %v3761, 0.75
    %v3949 = vsub.f32 %v3760, 1.0
    %v3950 = vsub.f32 %v3761, 1.0
    %v3951 = vsub.f32 %v3760, 1.25
    %v3952 = vsub.f32 %v3761, 1.25
    %v3953 = vsub.f32 %v3760, 1.5
    %v3954 = vsub.f32 %v3761, 1.5
    %v3955 = vsub.f32 %v3760, 1.75
    %v3956 = vsub.f32 %v3761, 1.75
    %v3957 = vmul.f32 %v3929, %v3901
    %v3958 = vmul.f32 %v3930, %v3902
    %v3959 = vmul.f32 %v3933, %v3903
    %v3960 = vmul.f32 %v3934, %v3904
    %v3961 = vsub.f32 %v3957, %v3959
    %v3962 = vsub.f32 %v3958, %v3960
    %v3963 = vmul.f32 %v3961, 4.0
    %v3964 = vmul.f32 %v3962, 4.0
    %v3965 = vmul.f32 %v3931, %v3903
    %v3966 = vmul.f32 %v3932, %v3904
    %v3967 = vmul.f32 %v3935, %v3905
    %v3968 = vmul.f32 %v3936, %v3906
    %v3969 = vsub.f32 %v3965, %v3967
    %v3970 = vsub.f32 %v3966, %v3968
    %v3971 = vmul.f32 %v3969, 4.0
    %v3972 = vmul.f32 %v3970, 4.0
    %v3973 = vmul.f32 %v3933, %v3905
    %v3974 = vmul.f32 %v3934, %v3906
    %v3975 = vmul.f32 %v3937, %v3907
    %v3976 = vmul.f32 %v3938, %v3908
    %v3977 = vsub.f32 %v3973, %v3975
    %v3978 = vsub.f32 %v3974, %v3976
    %v3979 = vmul.f32 %v3977, 4.0
    %v3980 = vmul.f32 %v3978, 4.0
    %v3981 = vmul.f32 %v3935, %v3907
    %v3982 = vmul.f32 %v3936, %v3908
    %v3983 = vmul.f32 %v3939, %v3909
    %v3984 = vmul.f32 %v3940, %v3910
    %v3985 = vsub.f32 %v3981, %v3983
    %v3986 = vsub.f32 %v3982, %v3984
    %v3987 = vmul.f32 %v3985, 4.0
    %v3988 = vmul.f32 %v3986, 4.0
    %v3989 = vmul.f32 %v3937, %v3909
    %v3990 = vmul.f32 %v3938, %v3910
    %v3991 = vmul.f32 %v3941, %v3911
    %v3992 = vmul.f32 %v3942, %v3912
    %v3993 = vsub.f32 %v3989, %v3991
    %v3994 = vsub.f32 %v3990, %v3992
    %v3995 = vmul.f32 %v3993, 4.0
    %v3996 = vmul.f32 %v3994, 4.0
    %v3997 = vmul.f32 %v3939, %v3911
    %v3998 = vmul.f32 %v3940, %v3912
    %v3999 = vmul.f32 %v3760, %v3913
    %v4000 = vmul.f32 %v3761, %v3914
    %v4001 = vsub.f32 %v3997, %v3999
    %v4002 = vsub.f32 %v3998, %v4000
    %v4003 = vmul.f32 %v4001, 4.0
    %v4004 = vmul.f32 %v4002, 4.0
    %v4005 = vmul.f32 %v3941, %v3913
    %v4006 = vmul.f32 %v3942, %v3914
    %v4007 = vmul.f32 %v3943, %v3915
    %v4008 = vmul.f32 %v3944, %v3916
    %v4009 = vsub.f32 %v4005, %v4007
    %v4010 = vsub.f32 %v4006, %v4008
    %v4011 = vmul.f32 %v4009, 4.0
    %v4012 = vmul.f32 %v4010, 4.0
    %v4013 = vmul.f32 %v3760, %v3915
    %v4014 = vmul.f32 %v3761, %v3916
    %v4015 = vmul.f32 %v3945, %v3917
    %v4016 = vmul.f32 %v3946, %v3918
    %v4017 = vsub.f32 %v4013, %v4015
    %v4018 = vsub.f32 %v4014, %v4016
    %v4019 = vmul.f32 %v4017, 4.0
    %v4020 = vmul.f32 %v4018, 4.0
    %v4021 = vmul.f32 %v3943, %v3917
    %v4022 = vmul.f32 %v3944, %v3918
    %v4023 = vmul.f32 %v3947, %v3919
    %v4024 = vmul.f32 %v3948, %v3920
    %v4025 = vsub.f32 %v4021, %v4023
    %v4026 = vsub.f32 %v4022, %v4024
    %v4027 = vmul.f32 %v4025, 4.0
    %v4028 = vmul.f32 %v4026, 4.0
    %v4029 = vmul.f32 %v3945, %v3919
    %v4030 = vmul.f32 %v3946, %v3920
    %v4031 = vmul.f32 %v3949, %v3921
    %v4032 = vmul.f32 %v3950, %v3922
    %v4033 = vsub.f32 %v4029, %v4031
    %v4034 = vsub.f32 %v4030, %v4032
    %v4035 = vmul.f32 %v4033, 4.0
    %v4036 = vmul.f32 %v4034, 4.0
    %v4037 = vmul.f32 %v3947, %v3921
    %v4038 = vmul.f32 %v3948, %v3922
    %v4039 = vmul.f32 %v3951, %v3923
    %v4040 = vmul.f32 %v3952, %v3924
    %v4041 = vsub.f32 %v4037, %v4039
    %v4042 = vsub.f32 %v4038, %v4040
    %v4043 = vmul.f32 %v4041, 4.0
    %v4044 = vmul.f32 %v4042, 4.0
    %v4045 = vmul.f32 %v3949, %v3923
    %v4046 = vmul.f32 %v3950, %v3924
    %v4047 = vmul.f32 %v3953, %v3925
    %v4048 = vmul.f32 %v3954, %v3926
    %v4049 = vsub.f32 %v4045, %v4047
    %v4050 = vsub.f32 %v4046, %v4048
    %v4051 = vmul.f32 %v4049, 4.0
    %v4052 = vmul.f32 %v4050, 4.0
    %v4053 = vmul.f32 %v3951, %v3925
    %v4054 = vmul.f32 %v3952, %v3926
    %v4055 = vmul.f32 %v3955, %v3927
    %v4056 = vmul.f32 %v3956, %v3928
    %v4057 = vsub.f32 %v4053, %v4055
    %v4058 = vsub.f32 %v4054, %v4056
    %v4059 = vmul.f32 %v4057, 4.0
    %v4060 = vmul.f32 %v4058, 4.0
    %v4061 = vmul.f32 %v3929, %v3963
    %v4062 = vmul.f32 %v3930, %v3964
    %v4063 = vmul.f32 %v3935, %v3971
    %v4064 = vmul.f32 %v3936, %v3972
    %v4065 = vsub.f32 %v4061, %v4063
    %v4066 = vsub.f32 %v4062, %v4064
    %v4067 = vmul.f32 %v4065, 2.0
    %v4068 = vmul.f32 %v4066, 2.0
    %v4069 = vmul.f32 %v3931, %v3971
    %v4070 = vmul.f32 %v3932, %v3972
    %v4071 = vmul.f32 %v3937, %v3979
    %v4072 = vmul.f32 %v3938, %v3980
    %v4073 = vsub.f32 %v4069, %v4071
    %v4074 = vsub.f32 %v4070, %v4072
    %v4075 = vmul.f32 %v4073, 2.0
    %v4076 = vmul.f32 %v4074, 2.0
    %v4077 = vmul.f32 %v3933, %v3979
    %v4078 = vmul.f32 %v3934, %v3980
    %v4079 = vmul.f32 %v3939, %v3987
    %v4080 = vmul.f32 %v3940, %v3988
    %v4081 = vsub.f32 %v4077, %v4079
    %v4082 = vsub.f32 %v4078, %v4080
    %v4083 = vmul.f32 %v4081, 2.0
    %v4084 = vmul.f32 %v4082, 2.0
    %v4085 = vmul.f32 %v3935, %v3987
    %v4086 = vmul.f32 %v3936, %v3988
    %v4087 = vmul.f32 %v3941, %v3995
    %v4088 = vmul.f32 %v3942, %v3996
    %v4089 = vsub.f32 %v4085, %v4087
    %v4090 = vsub.f32 %v4086, %v4088
    %v4091 = vmul.f32 %v4089, 2.0
    %v4092 = vmul.f32 %v4090, 2.0
    %v4093 = vmul.f32 %v3937, %v3995
    %v4094 = vmul.f32 %v3938, %v3996
    %v4095 = vmul.f32 %v3760, %v4003
    %v4096 = vmul.f32 %v3761, %v4004
    %v4097 = vsub.f32 %v4093, %v4095
    %v4098 = vsub.f32 %v4094, %v4096
    %v4099 = vmul.f32 %v4097, 2.0
    %v4100 = vmul.f32 %v4098, 2.0
    %v4101 = vmul.f32 %v3939, %v4003
    %v4102 = vmul.f32 %v3940, %v4004
    %v4103 = vmul.f32 %v3943, %v4011
    %v4104 = vmul.f32 %v3944, %v4012
    %v4105 = vsub.f32 %v4101, %v4103
    %v4106 = vsub.f32 %v4102, %v4104
    %v4107 = vmul.f32 %v4105, 2.0
    %v4108 = vmul.f32 %v4106, 2.0
    %v4109 = vmul.f32 %v3941, %v4011
    %v4110 = vmul.f32 %v3942, %v4012
    %v4111 = vmul.f32 %v3945, %v4019
    %v4112 = vmul.f32 %v3946, %v4020
    %v4113 = vsub.f32 %v4109, %v4111
    %v4114 = vsub.f32 %v4110, %v4112
    %v4115 = vmul.f32 %v4113, 2.0
    %v4116 = vmul.f32 %v4114, 2.0
    %v4117 = vmul.f32 %v3760, %v4019
    %v4118 = vmul.f32 %v3761, %v4020
    %v4119 = vmul.f32 %v3947, %v4027
    %v4120 = vmul.f32 %v3948, %v4028
    %v4121 = vsub.f32 %v4117, %v4119
    %v4122 = vsub.f32 %v4118, %v4120
    %v4123 = vmul.f32 %v4121, 2.0
    %v4124 = vmul.f32 %v4122, 2.0
    %v4125 = vmul.f32 %v3943, %v4027
    %v4126 = vmul.f32 %v3944, %v4028
    %v4127 = vmul.f32 %v3949, %v4035
    %v4128 = vmul.f32 %v3950, %v4036
    %v4129 = vsub.f32 %v4125, %v4127
    %v4130 = vsub.f32 %v4126, %v4128
    %v4131 = vmul.f32 %v4129, 2.0
    %v4132 = vmul.f32 %v4130, 2.0
    %v4133 = vmul.f32 %v3945, %v4035
    %v4134 = vmul.f32 %v3946, %v4036
    %v4135 = vmul.f32 %v3951, %v4043
    %v4136 = vmul.f32 %v3952, %v4044
    %v4137 = vsub.f32 %v4133, %v4135
    %v4138 = vsub.f32 %v4134, %v4136
    %v4139 = vmul.f32 %v4137, 2.0
    %v4140 = vmul.f32 %v4138, 2.0
    %v4141 = vmul.f32 %v3947, %v4043
    %v4142 = vmul.f32 %v3948, %v4044
    %v4143 = vmul.f32 %v3953, %v4051
    %v4144 = vmul.f32 %v3954, %v4052
    %v4145 = vsub.f32 %v4141, %v4143
    %v4146 = vsub.f32 %v4142, %v4144
    %v4147 = vmul.f32 %v4145, 2.0
    %v4148 = vmul.f32 %v4146, 2.0
    %v4149 = vmul.f32 %v3949, %v4051
    %v4150 = vmul.f32 %v3950, %v4052
    %v4151 = vmul.f32 %v3955, %v4059
    %v4152 = vmul.f32 %v3956, %v4060
    %v4153 = vsub.f32 %v4149, %v4151
    %v4154 = vsub.f32 %v4150, %v4152
    %v4155 = vmul.f32 %v4153, 2.0
    %v4156 = vmul.f32 %v4154, 2.0
    %v4157 = vmul.f32 %v3929, %v4067
    %v4158 = vmul.f32 %v3930, %v4068
    %v4159 = vmul.f32 %v3937, %v4075
    %v4160 = vmul.f32 %v3938, %v4076
    %v4161 = vsub.f32 %v4157, %v4159
    %v4162 = vsub.f32 %v4158, %v4160
    %v4163 = vmul.f32 %v4161, 1.3333334
    %v4164 = vmul.f32 %v4162, 1.3333334
    %v4165 = vmul.f32 %v3931, %v4075
    %v4166 = vmul.f32 %v3932, %v4076
    %v4167 = vmul.f32 %v3939, %v4083
    %v4168 = vmul.f32 %v3940, %v4084
    %v4169 = vsub.f32 %v4165, %v4167
    %v4170 = vsub.f32 %v4166, %v4168
    %v4171 = vmul.f32 %v4169, 1.3333334
    %v4172 = vmul.f32 %v4170, 1.3333334
    %v4173 = vmul.f32 %v3933, %v4083
    %v4174 = vmul.f32 %v3934, %v4084
    %v4175 = vmul.f32 %v3941, %v4091
    %v4176 = vmul.f32 %v3942, %v4092
    %v4177 = vsub.f32 %v4173, %v4175
    %v4178 = vsub.f32 %v4174, %v4176
    %v4179 = vmul.f32 %v4177, 1.3333334
    %v4180 = vmul.f32 %v4178, 1.3333334
    %v4181 = vmul.f32 %v3935, %v4091
    %v4182 = vmul.f32 %v3936, %v4092
    %v4183 = vmul.f32 %v3760, %v4099
    %v4184 = vmul.f32 %v3761, %v4100
    %v4185 = vsub.f32 %v4181, %v4183
    %v4186 = vsub.f32 %v4182, %v4184
    %v4187 = vmul.f32 %v4185, 1.3333334
    %v4188 = vmul.f32 %v4186, 1.3333334
    %v4189 = vmul.f32 %v3937, %v4099
    %v4190 = vmul.f32 %v3938, %v4100
    %v4191 = vmul.f32 %v3943, %v4107
    %v4192 = vmul.f32 %v3944, %v4108
    %v4193 = vsub.f32 %v4189, %v4191
    %v4194 = vsub.f32 %v4190, %v4192
    %v4195 = vmul.f32 %v4193, 1.3333334
    %v4196 = vmul.f32 %v4194, 1.3333334
    %v4197 = vmul.f32 %v3939, %v4107
    %v4198 = vmul.f32 %v3940, %v4108
    %v4199 = vmul.f32 %v3945, %v4115
    %v4200 = vmul.f32 %v3946, %v4116
    %v4201 = vsub.f32 %v4197, %v4199
    %v4202 = vsub.f32 %v4198, %v4200
    %v4203 = vmul.f32 %v4201, 1.3333334
    %v4204 = vmul.f32 %v4202, 1.3333334
    %v4205 = vmul.f32 %v3941, %v4115
    %v4206 = vmul.f32 %v3942, %v4116
    %v4207 = vmul.f32 %v3947, %v4123
    %v4208 = vmul.f32 %v3948, %v4124
    %v4209 = vsub.f32 %v4205, %v4207
    %v4210 = vsub.f32 %v4206, %v4208
    %v4211 = vmul.f32 %v4209, 1.3333334
    %v4212 = vmul.f32 %v4210, 1.3333334
    %v4213 = vmul.f32 %v3760, %v4123
    %v4214 = vmul.f32 %v3761, %v4124
    %v4215 = vmul.f32 %v3949, %v4131
    %v4216 = vmul.f32 %v3950, %v4132
    %v4217 = vsub.f32 %v4213, %v4215
    %v4218 = vsub.f32 %v4214, %v4216
    %v4219 = vmul.f32 %v4217, 1.3333334
    %v4220 = vmul.f32 %v4218, 1.3333334
    %v4221 = vmul.f32 %v3943, %v4131
    %v4222 = vmul.f32 %v3944, %v4132
    %v4223 = vmul.f32 %v3951, %v4139
    %v4224 = vmul.f32 %v3952, %v4140
    %v4225 = vsub.f32 %v4221, %v4223
    %v4226 = vsub.f32 %v4222, %v4224
    %v4227 = vmul.f32 %v4225, 1.3333334
    %v4228 = vmul.f32 %v4226, 1.3333334
    %v4229 = vmul.f32 %v3945, %v4139
    %v4230 = vmul.f32 %v3946, %v4140
    %v4231 = vmul.f32 %v3953, %v4147
    %v4232 = vmul.f32 %v3954, %v4148
    %v4233 = vsub.f32 %v4229, %v4231
    %v4234 = vsub.f32 %v4230, %v4232
    %v4235 = vmul.f32 %v4233, 1.3333334
    %v4236 = vmul.f32 %v4234, 1.3333334
    %v4237 = vmul.f32 %v3947, %v4147
    %v4238 = vmul.f32 %v3948, %v4148
    %v4239 = vmul.f32 %v3955, %v4155
    %v4240 = vmul.f32 %v3956, %v4156
    %v4241 = vsub.f32 %v4237, %v4239
    %v4242 = vsub.f32 %v4238, %v4240
    %v4243 = vmul.f32 %v4241, 1.3333334
    %v4244 = vmul.f32 %v4242, 1.3333334
    %v4245 = vxor.u32 %v3760, 2147483648
    %v4246 = vxor.u32 %v3761, 2147483648
    %v4247 = vmul.f32 %v4245, 1.442695
    %v4248 = vpow.pop %v4247
    %v4249 = vmul.f32 %v4246, 1.442695
    %v4250 = vpow.pop %v4249
    %v4251 = vadd.f32 %v4248, 1.0
    %v4252 = vadd.f32 %v4250, 1.0
    %v4253 = vrcp.pop %v4251
    %v4254 = vmul.f32 %v4251, %v4253
    %v4255 = vsub.f32 1.0, %v4254
    %v4256 = vmul.f32 %v4253, %v4255
    %v4257 = vadd.f32 %v4253, %v4256
    %vm4258 = vweird.f32 %v4251
    %vm4259 = vweird.f32 %v4253
    %vm4260 = vmor %vm4258, %vm4259
    %v4261 = vsel %vm4260, %v4253, %v4257
    %v4262 = vand.u32 2147483647, %v4251
    %vm4263 = vcmp.eq.f32.partialorder %v4262, 8.507059e+37
    %v4264 = vand.u32 %v4251, 2147483648
    %v4265 = vor.u32 1.1754944e-38, %v4264
    %v4266 = vsel %vm4263, %v4265, %v4261
    %v4267 = vmul.f32 1.0, %v4266
    %v4268 = vrcp.pop %v4252
    %v4269 = vmul.f32 %v4252, %v4268
    %v4270 = vsub.f32 1.0, %v4269
    %v4271 = vmul.f32 %v4268, %v4270
    %v4272 = vadd.f32 %v4268, %v4271
    %vm4273 = vweird.f32 %v4252
    %vm4274 = vweird.f32 %v4268
    %vm4275 = vmor %vm4273, %vm4274
    %v4276 = vsel %vm4275, %v4268, %v4272
    %v4277 = vand.u32 2147483647, %v4252
    %vm4278 = vcmp.eq.f32.partialorder %v4277, 8.507059e+37
    %v4279 = vand.u32 %v4252, 2147483648
    %v4280 = vor.u32 1.1754944e-38, %v4279
    %v4281 = vsel %vm4278, %v4280, %v4276
    %v4282 = vmul.f32 1.0, %v4281
    %v4283 = vmul.f32 %v3760, %v4267
    %v4284 = vmul.f32 %v3761, %v4282
    %v4285 = vpack.c.bf16 %v4284, %v4283
    %v4286 = vpack.c.bf16 %v4164, %v4163
    %v4291 = vunpack.c.l.b16 %v3767
    %v4292 = vunpack.c.l.b16 %v3768
    %v4293 = vunpack.c.l.b16 %v3769
    %v4294 = vunpack.c.l.b16 %v3770
    %v4295 = vpack.c.b16 %v4292, %v4291
    %v4296 = vpack.c.b16 %v4294, %v4293
    %v4300 = vsel %vm56, %v4286, 0
    %4302 = vmatpush.bf16.msra.mxu0 0
    %4303 = vmatpush.bf16.msra.mxu0 0
    %4304 = vmatpush.bf16.msra.mxu0 0
    %4305 = vmatpush.bf16.msra.mxu0 0
    %4306 = vmatpush.bf16.msra.mxu0 0
    %4307 = vmatpush.bf16.msra.mxu0 0
    %4308 = vmatpush.bf16.msra.mxu0 %v4296
    %4309 = vmatpush.bf16.msra.mxu0 %v4295
    %4310 = vmatmul.bf16.gmra.mxu0 %v4300
    %v4311 = vpop.f32.mrf.mxu0
    %v4312 = vadd.f32 0.0, %v4311
    %v4313 = vpop.f32.mrf.mxu0
    %v4314 = vadd.f32 0.0, %v4313
    %4315 = vdwg.mxu0
    %v4320 = vunpack.c.l.b16 %v3763
    %v4321 = vunpack.c.l.b16 %v3764
    %v4322 = vunpack.c.l.b16 %v3765
    %v4323 = vunpack.c.l.b16 %v3766
    %v4324 = vpack.c.b16 %v4321, %v4320
    %v4325 = vpack.c.b16 %v4323, %v4322
    %v4329 = vsel %vm56, %v4285, 0
    %4331 = vmatpush.bf16.msra.mxu0 0
    %4332 = vmatpush.bf16.msra.mxu0 0
    %4333 = vmatpush.bf16.msra.mxu0 0
    %4334 = vmatpush.bf16.msra.mxu0 0
    %4335 = vmatpush.bf16.msra.mxu0 0
    %4336 = vmatpush.bf16.msra.mxu0 0
    %4337 = vmatpush.bf16.msra.mxu0 %v4325
    %4338 = vmatpush.bf16.msra.mxu0 %v4324
    %4339 = vmatmul.bf16.gmra.mxu0 %v4329
    %v4340 = vpop.f32.mrf.mxu0
    %v4341 = vadd.f32 %v4312, %v4340
    %v4342 = vpop.f32.mrf.mxu0
    %v4343 = vadd.f32 %v4314, %v4342
    %4344 = vdwg.mxu0
    %v4345 = vpack.c.bf16 %v4172, %v4171
    %v4350 = vunpack.c.l.b16 %v3771
    %v4351 = vunpack.c.l.b16 %v3772
    %v4352 = vunpack.c.l.b16 %v3773
    %v4353 = vunpack.c.l.b16 %v3774
    %v4354 = vpack.c.b16 %v4351, %v4350
    %v4355 = vpack.c.b16 %v4353, %v4352
    %v4359 = vsel %vm56, %v4345, 0
    %4361 = vmatpush.bf16.msra.mxu0 0
    %4362 = vmatpush.bf16.msra.mxu0 0
    %4363 = vmatpush.bf16.msra.mxu0 0
    %4364 = vmatpush.bf16.msra.mxu0 0
    %4365 = vmatpush.bf16.msra.mxu0 0
    %4366 = vmatpush.bf16.msra.mxu0 0
    %4367 = vmatpush.bf16.msra.mxu0 %v4355
    %4368 = vmatpush.bf16.msra.mxu0 %v4354
    %4369 = vmatmul.bf16.gmra.mxu0 %v4359
    %v4370 = vpop.f32.mrf.mxu0
    %v4371 = vadd.f32 0.0, %v4370
    %v4372 = vpop.f32.mrf.mxu0
    %v4373 = vadd.f32 0.0, %v4372
    %4374 = vdwg.mxu0
    %v4375 = vadd.f32 %v4341, %v4371
    %v4376 = vadd.f32 %v4343, %v4373
    %v4377 = vpack.c.bf16 %v4180, %v4179
    %v4382 = vunpack.c.l.b16 %v3775
    %v4383 = vunpack.c.l.b16 %v3776
    %v4384 = vunpack.c.l.b16 %v3777
    %v4385 = vunpack.c.l.b16 %v3778
    %v4386 = vpack.c.b16 %v4383, %v4382
    %v4387 = vpack.c.b16 %v4385, %v4384
    %v4391 = vsel %vm56, %v4377, 0
    %4393 = vmatpush.bf16.msra.mxu0 0
    %4394 = vmatpush.bf16.msra.mxu0 0
    %4395 = vmatpush.bf16.msra.mxu0 0
    %4396 = vmatpush.bf16.msra.mxu0 0
    %4397 = vmatpush.bf16.msra.mxu0 0
    %4398 = vmatpush.bf16.msra.mxu0 0
    %4399 = vmatpush.bf16.msra.mxu0 %v4387
    %4400 = vmatpush.bf16.msra.mxu0 %v4386
    %4401 = vmatmul.bf16.gmra.mxu0 %v4391
    %v4402 = vpop.f32.mrf.mxu0
    %v4403 = vadd.f32 0.0, %v4402
    %v4404 = vpop.f32.mrf.mxu0
    %v4405 = vadd.f32 0.0, %v4404
    %4406 = vdwg.mxu0
    %v4407 = vadd.f32 %v4375, %v4403
    %v4408 = vadd.f32 %v4376, %v4405
    %v4409 = vpack.c.bf16 %v4188, %v4187
    %v4414 = vunpack.c.l.b16 %v3779
    %v4415 = vunpack.c.l.b16 %v3780
    %v4416 = vunpack.c.l.b16 %v3781
    %v4417 = vunpack.c.l.b16 %v3782
    %v4418 = vpack.c.b16 %v4415, %v4414
    %v4419 = vpack.c.b16 %v4417, %v4416
    %v4423 = vsel %vm56, %v4409, 0
    %4425 = vmatpush.bf16.msra.mxu0 0
    %4426 = vmatpush.bf16.msra.mxu0 0
    %4427 = vmatpush.bf16.msra.mxu0 0
    %4428 = vmatpush.bf16.msra.mxu0 0
    %4429 = vmatpush.bf16.msra.mxu0 0
    %4430 = vmatpush.bf16.msra.mxu0 0
    %4431 = vmatpush.bf16.msra.mxu0 %v4419
    %4432 = vmatpush.bf16.msra.mxu0 %v4418
    %4433 = vmatmul.bf16.gmra.mxu0 %v4423
    %v4434 = vpop.f32.mrf.mxu0
    %v4435 = vadd.f32 0.0, %v4434
    %v4436 = vpop.f32.mrf.mxu0
    %v4437 = vadd.f32 0.0, %v4436
    %4438 = vdwg.mxu0
    %v4439 = vadd.f32 %v4407, %v4435
    %v4440 = vadd.f32 %v4408, %v4437
    %v4441 = vpack.c.bf16 %v4196, %v4195
    %v4446 = vunpack.c.l.b16 %v3783
    %v4447 = vunpack.c.l.b16 %v3784
    %v4448 = vunpack.c.l.b16 %v3785
    %v4449 = vunpack.c.l.b16 %v3786
    %v4450 = vpack.c.b16 %v4447, %v4446
    %v4451 = vpack.c.b16 %v4449, %v4448
    %v4455 = vsel %vm56, %v4441, 0
    %4457 = vmatpush.bf16.msra.mxu0 0
    %4458 = vmatpush.bf16.msra.mxu0 0
    %4459 = vmatpush.bf16.msra.mxu0 0
    %4460 = vmatpush.bf16.msra.mxu0 0
    %4461 = vmatpush.bf16.msra.mxu0 0
    %4462 = vmatpush.bf16.msra.mxu0 0
    %4463 = vmatpush.bf16.msra.mxu0 %v4451
    %4464 = vmatpush.bf16.msra.mxu0 %v4450
    %4465 = vmatmul.bf16.gmra.mxu0 %v4455
    %v4466 = vpop.f32.mrf.mxu0
    %v4467 = vadd.f32 0.0, %v4466
    %v4468 = vpop.f32.mrf.mxu0
    %v4469 = vadd.f32 0.0, %v4468
    %4470 = vdwg.mxu0
    %v4471 = vadd.f32 %v4439, %v4467
    %v4472 = vadd.f32 %v4440, %v4469
    %v4473 = vpack.c.bf16 %v4204, %v4203
    %v4478 = vunpack.c.l.b16 %v3787
    %v4479 = vunpack.c.l.b16 %v3788
    %v4480 = vunpack.c.l.b16 %v3789
    %v4481 = vunpack.c.l.b16 %v3790
    %v4482 = vpack.c.b16 %v4479, %v4478
    %v4483 = vpack.c.b16 %v4481, %v4480
    %v4487 = vsel %vm56, %v4473, 0
    %4489 = vmatpush.bf16.msra.mxu0 0
    %4490 = vmatpush.bf16.msra.mxu0 0
    %4491 = vmatpush.bf16.msra.mxu0 0
    %4492 = vmatpush.bf16.msra.mxu0 0
    %4493 = vmatpush.bf16.msra.mxu0 0
    %4494 = vmatpush.bf16.msra.mxu0 0
    %4495 = vmatpush.bf16.msra.mxu0 %v4483
    %4496 = vmatpush.bf16.msra.mxu0 %v4482
    %4497 = vmatmul.bf16.gmra.mxu0 %v4487
    %v4498 = vpop.f32.mrf.mxu0
    %v4499 = vadd.f32 0.0, %v4498
    %v4500 = vpop.f32.mrf.mxu0
    %v4501 = vadd.f32 0.0, %v4500
    %4502 = vdwg.mxu0
    %v4503 = vadd.f32 %v4471, %v4499
    %v4504 = vadd.f32 %v4472, %v4501
    %v4505 = vpack.c.bf16 %v4212, %v4211
    %v4510 = vunpack.c.l.b16 %v3791
    %v4511 = vunpack.c.l.b16 %v3792
    %v4512 = vunpack.c.l.b16 %v3793
    %v4513 = vunpack.c.l.b16 %v3794
    %v4514 = vpack.c.b16 %v4511, %v4510
    %v4515 = vpack.c.b16 %v4513, %v4512
    %v4519 = vsel %vm56, %v4505, 0
    %4521 = vmatpush.bf16.msra.mxu0 0
    %4522 = vmatpush.bf16.msra.mxu0 0
    %4523 = vmatpush.bf16.msra.mxu0 0
    %4524 = vmatpush.bf16.msra.mxu0 0
    %4525 = vmatpush.bf16.msra.mxu0 0
    %4526 = vmatpush.bf16.msra.mxu0 0
    %4527 = vmatpush.bf16.msra.mxu0 %v4515
    %4528 = vmatpush.bf16.msra.mxu0 %v4514
    %4529 = vmatmul.bf16.gmra.mxu0 %v4519
    %v4530 = vpop.f32.mrf.mxu0
    %v4531 = vadd.f32 0.0, %v4530
    %v4532 = vpop.f32.mrf.mxu0
    %v4533 = vadd.f32 0.0, %v4532
    %4534 = vdwg.mxu0
    %v4535 = vadd.f32 %v4503, %v4531
    %v4536 = vadd.f32 %v4504, %v4533
    %v4537 = vpack.c.bf16 %v4220, %v4219
    %v4542 = vunpack.c.l.b16 %v3795
    %v4543 = vunpack.c.l.b16 %v3796
    %v4544 = vunpack.c.l.b16 %v3797
    %v4545 = vunpack.c.l.b16 %v3798
    %v4546 = vpack.c.b16 %v4543, %v4542
    %v4547 = vpack.c.b16 %v4545, %v4544
    %v4551 = vsel %vm56, %v4537, 0
    %4553 = vmatpush.bf16.msra.mxu0 0
    %4554 = vmatpush.bf16.msra.mxu0 0
    %4555 = vmatpush.bf16.msra.mxu0 0
    %4556 = vmatpush.bf16.msra.mxu0 0
    %4557 = vmatpush.bf16.msra.mxu0 0
    %4558 = vmatpush.bf16.msra.mxu0 0
    %4559 = vmatpush.bf16.msra.mxu0 %v4547
    %4560 = vmatpush.bf16.msra.mxu0 %v4546
    %4561 = vmatmul.bf16.gmra.mxu0 %v4551
    %v4562 = vpop.f32.mrf.mxu0
    %v4563 = vadd.f32 0.0, %v4562
    %v4564 = vpop.f32.mrf.mxu0
    %v4565 = vadd.f32 0.0, %v4564
    %4566 = vdwg.mxu0
    %v4567 = vadd.f32 %v4535, %v4563
    %v4568 = vadd.f32 %v4536, %v4565
    %v4569 = vpack.c.bf16 %v4228, %v4227
    %v4574 = vunpack.c.l.b16 %v3799
    %v4575 = vunpack.c.l.b16 %v3800
    %v4576 = vunpack.c.l.b16 %v3801
    %v4577 = vunpack.c.l.b16 %v3802
    %v4578 = vpack.c.b16 %v4575, %v4574
    %v4579 = vpack.c.b16 %v4577, %v4576
    %v4583 = vsel %vm56, %v4569, 0
    %4585 = vmatpush.bf16.msra.mxu0 0
    %4586 = vmatpush.bf16.msra.mxu0 0
    %4587 = vmatpush.bf16.msra.mxu0 0
    %4588 = vmatpush.bf16.msra.mxu0 0
    %4589 = vmatpush.bf16.msra.mxu0 0
    %4590 = vmatpush.bf16.msra.mxu0 0
    %4591 = vmatpush.bf16.msra.mxu0 %v4579
    %4592 = vmatpush.bf16.msra.mxu0 %v4578
    %4593 = vmatmul.bf16.gmra.mxu0 %v4583
    %v4594 = vpop.f32.mrf.mxu0
    %v4595 = vadd.f32 0.0, %v4594
    %v4596 = vpop.f32.mrf.mxu0
    %v4597 = vadd.f32 0.0, %v4596
    %4598 = vdwg.mxu0
    %v4599 = vadd.f32 %v4567, %v4595
    %v4600 = vadd.f32 %v4568, %v4597
    %v4601 = vpack.c.bf16 %v4236, %v4235
    %v4606 = vunpack.c.l.b16 %v3803
    %v4607 = vunpack.c.l.b16 %v3804
    %v4608 = vunpack.c.l.b16 %v3805
    %v4609 = vunpack.c.l.b16 %v3806
    %v4610 = vpack.c.b16 %v4607, %v4606
    %v4611 = vpack.c.b16 %v4609, %v4608
    %v4615 = vsel %vm56, %v4601, 0
    %4617 = vmatpush.bf16.msra.mxu0 0
    %4618 = vmatpush.bf16.msra.mxu0 0
    %4619 = vmatpush.bf16.msra.mxu0 0
    %4620 = vmatpush.bf16.msra.mxu0 0
    %4621 = vmatpush.bf16.msra.mxu0 0
    %4622 = vmatpush.bf16.msra.mxu0 0
    %4623 = vmatpush.bf16.msra.mxu0 %v4611
    %4624 = vmatpush.bf16.msra.mxu0 %v4610
    %4625 = vmatmul.bf16.gmra.mxu0 %v4615
    %v4626 = vpop.f32.mrf.mxu0
    %v4627 = vadd.f32 0.0, %v4626
    %v4628 = vpop.f32.mrf.mxu0
    %v4629 = vadd.f32 0.0, %v4628
    %4630 = vdwg.mxu0
    %v4631 = vadd.f32 %v4599, %v4627
    %v4632 = vadd.f32 %v4600, %v4629
    %v4633 = vpack.c.bf16 %v4244, %v4243
    %v4638 = vunpack.c.l.b16 %v3807
    %v4639 = vunpack.c.l.b16 %v3808
    %v4640 = vunpack.c.l.b16 %v3809
    %v4641 = vunpack.c.l.b16 %v3810
    %v4642 = vpack.c.b16 %v4639, %v4638
    %v4643 = vpack.c.b16 %v4641, %v4640
    %v4647 = vsel %vm56, %v4633, 0
    %4649 = vmatpush.bf16.msra.mxu0 0
    %4650 = vmatpush.bf16.msra.mxu0 0
    %4651 = vmatpush.bf16.msra.mxu0 0
    %4652 = vmatpush.bf16.msra.mxu0 0
    %4653 = vmatpush.bf16.msra.mxu0 0
    %4654 = vmatpush.bf16.msra.mxu0 0
    %4655 = vmatpush.bf16.msra.mxu0 %v4643
    %4656 = vmatpush.bf16.msra.mxu0 %v4642
    %4657 = vmatmul.bf16.gmra.mxu0 %v4647
    %v4658 = vpop.f32.mrf.mxu0
    %v4659 = vadd.f32 0.0, %v4658
    %v4660 = vpop.f32.mrf.mxu0
    %v4661 = vadd.f32 0.0, %v4660
    %4662 = vdwg.mxu0
    %v4663 = vadd.f32 %v4631, %v4659
    %v4664 = vadd.f32 %v4632, %v4661
    %v4665 = vadd.f32 %v2857, %v4663
    %v4666 = vadd.f32 %v2858, %v4664
    %v4667 = vsel %vm56, %v4665, 0.0
    %4668 = vadd.xlane.f32.xlu0 %v4667
    %v4669 = vpop.xlane.xlu0 %4668
    %v4670 = vsel %vm56, %v4666, 0.0
    %4671 = vadd.xlane.f32.xlu0 %v4670
    %v4672 = vpop.xlane.xlu0 %4671
    %v4673 = vmul.f32 %v4669, %v69
    %v4674 = vmul.f32 %v4672, %v69
    %v4675 = vsub.f32 %v4665, %v4673
    %v4676 = vsub.f32 %v4666, %v4674
    %v4677 = vmul.f32 %v4675, %v4675
    %v4678 = vmul.f32 %v4676, %v4676
    %v4679 = vsel %vm56, %v4677, 0.0
    %4680 = vadd.xlane.f32.xlu0 %v4679
    %v4681 = vpop.xlane.xlu0 %4680
    %v4682 = vsel %vm56, %v4678, 0.0
    %4683 = vadd.xlane.f32.xlu0 %v4682
    %v4684 = vpop.xlane.xlu0 %4683
    %v4685 = vmul.f32 %v4681, %v69
    %v4686 = vmul.f32 %v4684, %v69
    %v4687 = vadd.f32 %v4685, 1e-05
    %v4688 = vadd.f32 %v4686, 1e-05
    %v4689 = vrsqrt.pop %v4687
    %v4690 = vmul.f32 %v4689, %v4687
    %v4691 = vmul.f32 %v4690, %v4689
    %v4692 = vmul.f32 0.5, %v4691
    %v4693 = vsub.f32 1.5, %v4692
    %v4694 = vmul.f32 %v4689, %v4693
    %vm4695 = vweird.f32 %v4687
    %vm4696 = vweird.f32 %v4689
    %vm4697 = vmor %vm4695, %vm4696
    %v4698 = vsel %vm4697, %v4689, %v4694
    %v4699 = vrsqrt.pop %v4688
    %v4700 = vmul.f32 %v4699, %v4688
    %v4701 = vmul.f32 %v4700, %v4699
    %v4702 = vmul.f32 0.5, %v4701
    %v4703 = vsub.f32 1.5, %v4702
    %v4704 = vmul.f32 %v4699, %v4703
    %vm4705 = vweird.f32 %v4688
    %vm4706 = vweird.f32 %v4699
    %vm4707 = vmor %vm4705, %vm4706
    %v4708 = vsel %vm4707, %v4699, %v4704
    %v4709 = vmul.f32 %v4675, %v4698
    %v4710 = vmul.f32 %v4676, %v4708
    %v4711 = vperm.slane %v2418, 0
    %v4712 = vmul.f32 %v4709, %v4711
    %v4713 = vmul.f32 %v4710, %v4711
    %v4714 = vperm.slane %v2419, 0
    %v4715 = vadd.f32 %v4712, %v4714
    %v4716 = vadd.f32 %v4713, %v4714
    %v4719 = vrot.slane %v4716, 7
    %vm4720 = vcmask 1041409
    %v4721 = vsel %vm4720, %v4719, %v4715
    %v4723 = vrot.slane %v4715, 1
    %v4724 = vsel %vm4720, %v4716, %v4723
    %4725 = vrot.lane.b32.xlu0 %v4724, 32
    %v4726 = vpop.permute.xlu0 %4725
    %v4728 = vrot.slane %v4715, 2
    %v4729 = vrot.slane %v4716, 1
    %v4730 = vsel %vm4720, %v4729, %v4728
    %4731 = vrot.lane.b32.xlu0 %v4730, 64
    %v4732 = vpop.permute.xlu0 %4731
    %v4734 = vrot.slane %v4715, 3
    %v4735 = vrot.slane %v4716, 2
    %v4736 = vsel %vm4720, %v4735, %v4734
    %4737 = vrot.lane.b32.xlu0 %v4736, 96
    %v4738 = vpop.permute.xlu0 %4737
    %v4740 = vrot.slane %v4715, 4
    %v4741 = vrot.slane %v4716, 3
    %v4742 = vsel %vm4720, %v4741, %v4740
    %v4744 = vrot.slane %v4715, 5
    %v4745 = vrot.slane %v4716, 4
    %v4746 = vsel %vm4720, %v4745, %v4744
    %4747 = vrot.lane.b32.xlu0 %v4746, 32
    %v4748 = vpop.permute.xlu0 %4747
    %v4750 = vrot.slane %v4715, 6
    %v4751 = vrot.slane %v4716, 5
    %v4752 = vsel %vm4720, %v4751, %v4750
    %4753 = vrot.lane.b32.xlu0 %v4752, 64
    %v4754 = vpop.permute.xlu0 %4753
    %v4756 = vrot.slane %v4715, 7
    %v4757 = vrot.slane %v4716, 6
    %v4758 = vsel %vm4720, %v4757, %v4756
    %4759 = vrot.lane.b32.xlu0 %v4758, 96
    %v4760 = vpop.permute.xlu0 %4759
    %v4762 = vsel %vm56, %v4721, %v4726
    %vm4763 = vcmask 523264
    %v4764 = vsel %vm4763, %v4762, %v4732
    %vm4765 = vcmask 785408
    %v4766 = vsel %vm4765, %v4764, %v4738
    %v4767 = vsel %vm56, %v4742, %v4748
    %v4768 = vsel %vm4763, %v4767, %v4754
    %v4769 = vsel %vm4765, %v4768, %v4760
    %vm4770 = vcmp.ge.f32.partialorder %v4766, -1.75
    %vm4771 = vcmp.ge.f32.partialorder %v4769, -1.75
    %v4772 = vsel %vm4770, 1, 0
    %v4773 = vsel %vm4771, 1, 0
    %v4774 = vcvt.s32.f32 %v4772
    %v4775 = vcvt.s32.f32 %v4773
    %vm4776 = vcmp.ge.f32.partialorder %v4766, -1.5
    %vm4777 = vcmp.ge.f32.partialorder %v4769, -1.5
    %v4778 = vsel %vm4776, 1, 0
    %v4779 = vsel %vm4777, 1, 0
    %v4780 = vcvt.s32.f32 %v4778
    %v4781 = vcvt.s32.f32 %v4779
    %vm4782 = vcmp.ge.f32.partialorder %v4766, -1.25
    %vm4783 = vcmp.ge.f32.partialorder %v4769, -1.25
    %v4784 = vsel %vm4782, 1, 0
    %v4785 = vsel %vm4783, 1, 0
    %v4786 = vcvt.s32.f32 %v4784
    %v4787 = vcvt.s32.f32 %v4785
    %vm4788 = vcmp.ge.f32.partialorder %v4766, -1.0
    %vm4789 = vcmp.ge.f32.partialorder %v4769, -1.0
    %v4790 = vsel %vm4788, 1, 0
    %v4791 = vsel %vm4789, 1, 0
    %v4792 = vcvt.s32.f32 %v4790
    %v4793 = vcvt.s32.f32 %v4791
    %vm4794 = vcmp.ge.f32.partialorder %v4766, -0.75
    %vm4795 = vcmp.ge.f32.partialorder %v4769, -0.75
    %v4796 = vsel %vm4794, 1, 0
    %v4797 = vsel %vm4795, 1, 0
    %v4798 = vcvt.s32.f32 %v4796
    %v4799 = vcvt.s32.f32 %v4797
    %vm4800 = vcmp.ge.f32.partialorder %v4766, -0.5
    %vm4801 = vcmp.ge.f32.partialorder %v4769, -0.5
    %v4802 = vsel %vm4800, 1, 0
    %v4803 = vsel %vm4801, 1, 0
    %v4804 = vcvt.s32.f32 %v4802
    %v4805 = vcvt.s32.f32 %v4803
    %vm4806 = vcmp.ge.f32.partialorder %v4766, -0.25
    %vm4807 = vcmp.ge.f32.partialorder %v4769, -0.25
    %v4808 = vsel %vm4806, 1, 0
    %v4809 = vsel %vm4807, 1, 0
    %v4810 = vcvt.s32.f32 %v4808
    %v4811 = vcvt.s32.f32 %v4809
    %vm4812 = vcmp.ge.f32.partialorder %v4766, 0.0
    %vm4813 = vcmp.ge.f32.partialorder %v4769, 0.0
    %v4814 = vsel %vm4812, 1, 0
    %v4815 = vsel %vm4813, 1, 0
    %v4816 = vcvt.s32.f32 %v4814
    %v4817 = vcvt.s32.f32 %v4815
    %vm4818 = vcmp.ge.f32.partialorder %v4766, 0.25
    %vm4819 = vcmp.ge.f32.partialorder %v4769, 0.25
    %v4820 = vsel %vm4818, 1, 0
    %v4821 = vsel %vm4819, 1, 0
    %v4822 = vcvt.s32.f32 %v4820
    %v4823 = vcvt.s32.f32 %v4821
    %vm4824 = vcmp.ge.f32.partialorder %v4766, 0.5
    %vm4825 = vcmp.ge.f32.partialorder %v4769, 0.5
    %v4826 = vsel %vm4824, 1, 0
    %v4827 = vsel %vm4825, 1, 0
    %v4828 = vcvt.s32.f32 %v4826
    %v4829 = vcvt.s32.f32 %v4827
    %vm4830 = vcmp.ge.f32.partialorder %v4766, 0.75
    %vm4831 = vcmp.ge.f32.partialorder %v4769, 0.75
    %v4832 = vsel %vm4830, 1, 0
    %v4833 = vsel %vm4831, 1, 0
    %v4834 = vcvt.s32.f32 %v4832
    %v4835 = vcvt.s32.f32 %v4833
    %vm4836 = vcmp.ge.f32.partialorder %v4766, 1.0
    %vm4837 = vcmp.ge.f32.partialorder %v4769, 1.0
    %v4838 = vsel %vm4836, 1, 0
    %v4839 = vsel %vm4837, 1, 0
    %v4840 = vcvt.s32.f32 %v4838
    %v4841 = vcvt.s32.f32 %v4839
    %vm4842 = vcmp.ge.f32.partialorder %v4766, 1.25
    %vm4843 = vcmp.ge.f32.partialorder %v4769, 1.25
    %v4844 = vsel %vm4842, 1, 0
    %v4845 = vsel %vm4843, 1, 0
    %v4846 = vcvt.s32.f32 %v4844
    %v4847 = vcvt.s32.f32 %v4845
    %vm4848 = vcmp.ge.f32.partialorder %v4766, 1.5
    %vm4849 = vcmp.ge.f32.partialorder %v4769, 1.5
    %v4850 = vsel %vm4848, 1, 0
    %v4851 = vsel %vm4849, 1, 0
    %v4852 = vcvt.s32.f32 %v4850
    %v4853 = vcvt.s32.f32 %v4851
    %vm4854 = vcmp.ge.f32.partialorder %v4766, 1.75
    %vm4855 = vcmp.ge.f32.partialorder %v4769, 1.75
    %v4856 = vsel %vm4854, 1, 0
    %v4857 = vsel %vm4855, 1, 0
    %v4858 = vcvt.s32.f32 %v4856
    %v4859 = vcvt.s32.f32 %v4857
    %v4860 = vsub.f32 %v4774, %v4780
    %v4861 = vsub.f32 %v4775, %v4781
    %v4862 = vsub.f32 %v4780, %v4786
    %v4863 = vsub.f32 %v4781, %v4787
    %v4864 = vsub.f32 %v4786, %v4792
    %v4865 = vsub.f32 %v4787, %v4793
    %v4866 = vsub.f32 %v4792, %v4798
    %v4867 = vsub.f32 %v4793, %v4799
    %v4868 = vsub.f32 %v4798, %v4804
    %v4869 = vsub.f32 %v4799, %v4805
    %v4870 = vsub.f32 %v4804, %v4810
    %v4871 = vsub.f32 %v4805, %v4811
    %v4872 = vsub.f32 %v4810, %v4816
    %v4873 = vsub.f32 %v4811, %v4817
    %v4874 = vsub.f32 %v4816, %v4822
    %v4875 = vsub.f32 %v4817, %v4823
    %v4876 = vsub.f32 %v4822, %v4828
    %v4877 = vsub.f32 %v4823, %v4829
    %v4878 = vsub.f32 %v4828, %v4834
    %v4879 = vsub.f32 %v4829, %v4835
    %v4880 = vsub.f32 %v4834, %v4840
    %v4881 = vsub.f32 %v4835, %v4841
    %v4882 = vsub.f32 %v4840, %v4846
    %v4883 = vsub.f32 %v4841, %v4847
    %v4884 = vsub.f32 %v4846, %v4852
    %v4885 = vsub.f32 %v4847, %v4853
    %v4886 = vsub.f32 %v4852, %v4858
    %v4887 = vsub.f32 %v4853, %v4859
    %v4888 = vsub.f32 %v4766, -1.75
    %v4889 = vsub.f32 %v4769, -1.75
    %v4890 = vsub.f32 %v4766, -1.5
    %v4891 = vsub.f32 %v4769, -1.5
    %v4892 = vsub.f32 %v4766, -1.25
    %v4893 = vsub.f32 %v4769, -1.25
    %v4894 = vsub.f32 %v4766, -1.0
    %v4895 = vsub.f32 %v4769, -1.0
    %v4896 = vsub.f32 %v4766, -0.75
    %v4897 = vsub.f32 %v4769, -0.75
    %v4898 = vsub.f32 %v4766, -0.5
    %v4899 = vsub.f32 %v4769, -0.5
    %v4900 = vsub.f32 %v4766, -0.25
    %v4901 = vsub.f32 %v4769, -0.25
    %v4902 = vsub.f32 %v4766, 0.25
    %v4903 = vsub.f32 %v4769, 0.25
    %v4904 = vsub.f32 %v4766, 0.5
    %v4905 = vsub.f32 %v4769, 0.5
    %v4906 = vsub.f32 %v4766, 0.75
    %v4907 = vsub.f32 %v4769, 0.75
    %v4908 = vsub.f32 %v4766, 1.0
    %v4909 = vsub.f32 %v4769, 1.0
    %v4910 = vsub.f32 %v4766, 1.25
    %v4911 = vsub.f32 %v4769, 1.25
    %v4912 = vsub.f32 %v4766, 1.5
    %v4913 = vsub.f32 %v4769, 1.5
    %v4914 = vsub.f32 %v4766, 1.75
    %v4915 = vsub.f32 %v4769, 1.75
    %v4916 = vmul.f32 %v4888, %v4860
    %v4917 = vmul.f32 %v4889, %v4861
    %v4918 = vmul.f32 %v4892, %v4862
    %v4919 = vmul.f32 %v4893, %v4863
    %v4920 = vsub.f32 %v4916, %v4918
    %v4921 = vsub.f32 %v4917, %v4919
    %v4922 = vmul.f32 %v4920, 4.0
    %v4923 = vmul.f32 %v4921, 4.0
    %v4924 = vmul.f32 %v4890, %v4862
    %v4925 = vmul.f32 %v4891, %v4863
    %v4926 = vmul.f32 %v4894, %v4864
    %v4927 = vmul.f32 %v4895, %v4865
    %v4928 = vsub.f32 %v4924, %v4926
    %v4929 = vsub.f32 %v4925, %v4927
    %v4930 = vmul.f32 %v4928, 4.0
    %v4931 = vmul.f32 %v4929, 4.0
    %v4932 = vmul.f32 %v4892, %v4864
    %v4933 = vmul.f32 %v4893, %v4865
    %v4934 = vmul.f32 %v4896, %v4866
    %v4935 = vmul.f32 %v4897, %v4867
    %v4936 = vsub.f32 %v4932, %v4934
    %v4937 = vsub.f32 %v4933, %v4935
    %v4938 = vmul.f32 %v4936, 4.0
    %v4939 = vmul.f32 %v4937, 4.0
    %v4940 = vmul.f32 %v4894, %v4866
    %v4941 = vmul.f32 %v4895, %v4867
    %v4942 = vmul.f32 %v4898, %v4868
    %v4943 = vmul.f32 %v4899, %v4869
    %v4944 = vsub.f32 %v4940, %v4942
    %v4945 = vsub.f32 %v4941, %v4943
    %v4946 = vmul.f32 %v4944, 4.0
    %v4947 = vmul.f32 %v4945, 4.0
    %v4948 = vmul.f32 %v4896, %v4868
    %v4949 = vmul.f32 %v4897, %v4869
    %v4950 = vmul.f32 %v4900, %v4870
    %v4951 = vmul.f32 %v4901, %v4871
    %v4952 = vsub.f32 %v4948, %v4950
    %v4953 = vsub.f32 %v4949, %v4951
    %v4954 = vmul.f32 %v4952, 4.0
    %v4955 = vmul.f32 %v4953, 4.0
    %v4956 = vmul.f32 %v4898, %v4870
    %v4957 = vmul.f32 %v4899, %v4871
    %v4958 = vmul.f32 %v4766, %v4872
    %v4959 = vmul.f32 %v4769, %v4873
    %v4960 = vsub.f32 %v4956, %v4958
    %v4961 = vsub.f32 %v4957, %v4959
    %v4962 = vmul.f32 %v4960, 4.0
    %v4963 = vmul.f32 %v4961, 4.0
    %v4964 = vmul.f32 %v4900, %v4872
    %v4965 = vmul.f32 %v4901, %v4873
    %v4966 = vmul.f32 %v4902, %v4874
    %v4967 = vmul.f32 %v4903, %v4875
    %v4968 = vsub.f32 %v4964, %v4966
    %v4969 = vsub.f32 %v4965, %v4967
    %v4970 = vmul.f32 %v4968, 4.0
    %v4971 = vmul.f32 %v4969, 4.0
    %v4972 = vmul.f32 %v4766, %v4874
    %v4973 = vmul.f32 %v4769, %v4875
    %v4974 = vmul.f32 %v4904, %v4876
    %v4975 = vmul.f32 %v4905, %v4877
    %v4976 = vsub.f32 %v4972, %v4974
    %v4977 = vsub.f32 %v4973, %v4975
    %v4978 = vmul.f32 %v4976, 4.0
    %v4979 = vmul.f32 %v4977, 4.0
    %v4980 = vmul.f32 %v4902, %v4876
    %v4981 = vmul.f32 %v4903, %v4877
    %v4982 = vmul.f32 %v4906, %v4878
    %v4983 = vmul.f32 %v4907, %v4879
    %v4984 = vsub.f32 %v4980, %v4982
    %v4985 = vsub.f32 %v4981, %v4983
    %v4986 = vmul.f32 %v4984, 4.0
    %v4987 = vmul.f32 %v4985, 4.0
    %v4988 = vmul.f32 %v4904, %v4878
    %v4989 = vmul.f32 %v4905, %v4879
    %v4990 = vmul.f32 %v4908, %v4880
    %v4991 = vmul.f32 %v4909, %v4881
    %v4992 = vsub.f32 %v4988, %v4990
    %v4993 = vsub.f32 %v4989, %v4991
    %v4994 = vmul.f32 %v4992, 4.0
    %v4995 = vmul.f32 %v4993, 4.0
    %v4996 = vmul.f32 %v4906, %v4880
    %v4997 = vmul.f32 %v4907, %v4881
    %v4998 = vmul.f32 %v4910, %v4882
    %v4999 = vmul.f32 %v4911, %v4883
    %v5000 = vsub.f32 %v4996, %v4998
    %v5001 = vsub.f32 %v4997, %v4999
    %v5002 = vmul.f32 %v5000, 4.0
    %v5003 = vmul.f32 %v5001, 4.0
    %v5004 = vmul.f32 %v4908, %v4882
    %v5005 = vmul.f32 %v4909, %v4883
    %v5006 = vmul.f32 %v4912, %v4884
    %v5007 = vmul.f32 %v4913, %v4885
    %v5008 = vsub.f32 %v5004, %v5006
    %v5009 = vsub.f32 %v5005, %v5007
    %v5010 = vmul.f32 %v5008, 4.0
    %v5011 = vmul.f32 %v5009, 4.0
    %v5012 = vmul.f32 %v4910, %v4884
    %v5013 = vmul.f32 %v4911, %v4885
    %v5014 = vmul.f32 %v4914, %v4886
    %v5015 = vmul.f32 %v4915, %v4887
    %v5016 = vsub.f32 %v5012, %v5014
    %v5017 = vsub.f32 %v5013, %v5015
    %v5018 = vmul.f32 %v5016, 4.0
    %v5019 = vmul.f32 %v5017, 4.0
    %v5020 = vmul.f32 %v4888, %v4922
    %v5021 = vmul.f32 %v4889, %v4923
    %v5022 = vmul.f32 %v4894, %v4930
    %v5023 = vmul.f32 %v4895, %v4931
    %v5024 = vsub.f32 %v5020, %v5022
    %v5025 = vsub.f32 %v5021, %v5023
    %v5026 = vmul.f32 %v5024, 2.0
    %v5027 = vmul.f32 %v5025, 2.0
    %v5028 = vmul.f32 %v4890, %v4930
    %v5029 = vmul.f32 %v4891, %v4931
    %v5030 = vmul.f32 %v4896, %v4938
    %v5031 = vmul.f32 %v4897, %v4939
    %v5032 = vsub.f32 %v5028, %v5030
    %v5033 = vsub.f32 %v5029, %v5031
    %v5034 = vmul.f32 %v5032, 2.0
    %v5035 = vmul.f32 %v5033, 2.0
    %v5036 = vmul.f32 %v4892, %v4938
    %v5037 = vmul.f32 %v4893, %v4939
    %v5038 = vmul.f32 %v4898, %v4946
    %v5039 = vmul.f32 %v4899, %v4947
    %v5040 = vsub.f32 %v5036, %v5038
    %v5041 = vsub.f32 %v5037, %v5039
    %v5042 = vmul.f32 %v5040, 2.0
    %v5043 = vmul.f32 %v5041, 2.0
    %v5044 = vmul.f32 %v4894, %v4946
    %v5045 = vmul.f32 %v4895, %v4947
    %v5046 = vmul.f32 %v4900, %v4954
    %v5047 = vmul.f32 %v4901, %v4955
    %v5048 = vsub.f32 %v5044, %v5046
    %v5049 = vsub.f32 %v5045, %v5047
    %v5050 = vmul.f32 %v5048, 2.0
    %v5051 = vmul.f32 %v5049, 2.0
    %v5052 = vmul.f32 %v4896, %v4954
    %v5053 = vmul.f32 %v4897, %v4955
    %v5054 = vmul.f32 %v4766, %v4962
    %v5055 = vmul.f32 %v4769, %v4963
    %v5056 = vsub.f32 %v5052, %v5054
    %v5057 = vsub.f32 %v5053, %v5055
    %v5058 = vmul.f32 %v5056, 2.0
    %v5059 = vmul.f32 %v5057, 2.0
    %v5060 = vmul.f32 %v4898, %v4962
    %v5061 = vmul.f32 %v4899, %v4963
    %v5062 = vmul.f32 %v4902, %v4970
    %v5063 = vmul.f32 %v4903, %v4971
    %v5064 = vsub.f32 %v5060, %v5062
    %v5065 = vsub.f32 %v5061, %v5063
    %v5066 = vmul.f32 %v5064, 2.0
    %v5067 = vmul.f32 %v5065, 2.0
    %v5068 = vmul.f32 %v4900, %v4970
    %v5069 = vmul.f32 %v4901, %v4971
    %v5070 = vmul.f32 %v4904, %v4978
    %v5071 = vmul.f32 %v4905, %v4979
    %v5072 = vsub.f32 %v5068, %v5070
    %v5073 = vsub.f32 %v5069, %v5071
    %v5074 = vmul.f32 %v5072, 2.0
    %v5075 = vmul.f32 %v5073, 2.0
    %v5076 = vmul.f32 %v4766, %v4978
    %v5077 = vmul.f32 %v4769, %v4979
    %v5078 = vmul.f32 %v4906, %v4986
    %v5079 = vmul.f32 %v4907, %v4987
    %v5080 = vsub.f32 %v5076, %v5078
    %v5081 = vsub.f32 %v5077, %v5079
    %v5082 = vmul.f32 %v5080, 2.0
    %v5083 = vmul.f32 %v5081, 2.0
    %v5084 = vmul.f32 %v4902, %v4986
    %v5085 = vmul.f32 %v4903, %v4987
    %v5086 = vmul.f32 %v4908, %v4994
    %v5087 = vmul.f32 %v4909, %v4995
    %v5088 = vsub.f32 %v5084, %v5086
    %v5089 = vsub.f32 %v5085, %v5087
    %v5090 = vmul.f32 %v5088, 2.0
    %v5091 = vmul.f32 %v5089, 2.0
    %v5092 = vmul.f32 %v4904, %v4994
    %v5093 = vmul.f32 %v4905, %v4995
    %v5094 = vmul.f32 %v4910, %v5002
    %v5095 = vmul.f32 %v4911, %v5003
    %v5096 = vsub.f32 %v5092, %v5094
    %v5097 = vsub.f32 %v5093, %v5095
    %v5098 = vmul.f32 %v5096, 2.0
    %v5099 = vmul.f32 %v5097, 2.0
    %v5100 = vmul.f32 %v4906, %v5002
    %v5101 = vmul.f32 %v4907, %v5003
    %v5102 = vmul.f32 %v4912, %v5010
    %v5103 = vmul.f32 %v4913, %v5011
    %v5104 = vsub.f32 %v5100, %v5102
    %v5105 = vsub.f32 %v5101, %v5103
    %v5106 = vmul.f32 %v5104, 2.0
    %v5107 = vmul.f32 %v5105, 2.0
    %v5108 = vmul.f32 %v4908, %v5010
    %v5109 = vmul.f32 %v4909, %v5011
    %v5110 = vmul.f32 %v4914, %v5018
    %v5111 = vmul.f32 %v4915, %v5019
    %v5112 = vsub.f32 %v5108, %v5110
    %v5113 = vsub.f32 %v5109, %v5111
    %v5114 = vmul.f32 %v5112, 2.0
    %v5115 = vmul.f32 %v5113, 2.0
    %v5116 = vmul.f32 %v4888, %v5026
    %v5117 = vmul.f32 %v4889, %v5027
    %v5118 = vmul.f32 %v4896, %v5034
    %v5119 = vmul.f32 %v4897, %v5035
    %v5120 = vsub.f32 %v5116, %v5118
    %v5121 = vsub.f32 %v5117, %v5119
    %v5122 = vmul.f32 %v5120, 1.3333334
    %v5123 = vmul.f32 %v5121, 1.3333334
    %v5124 = vmul.f32 %v4890, %v5034
    %v5125 = vmul.f32 %v4891, %v5035
    %v5126 = vmul.f32 %v4898, %v5042
    %v5127 = vmul.f32 %v4899, %v5043
    %v5128 = vsub.f32 %v5124, %v5126
    %v5129 = vsub.f32 %v5125, %v5127
    %v5130 = vmul.f32 %v5128, 1.3333334
    %v5131 = vmul.f32 %v5129, 1.3333334
    %v5132 = vmul.f32 %v4892, %v5042
    %v5133 = vmul.f32 %v4893, %v5043
    %v5134 = vmul.f32 %v4900, %v5050
    %v5135 = vmul.f32 %v4901, %v5051
    %v5136 = vsub.f32 %v5132, %v5134
    %v5137 = vsub.f32 %v5133, %v5135
    %v5138 = vmul.f32 %v5136, 1.3333334
    %v5139 = vmul.f32 %v5137, 1.3333334
    %v5140 = vmul.f32 %v4894, %v5050
    %v5141 = vmul.f32 %v4895, %v5051
    %v5142 = vmul.f32 %v4766, %v5058
    %v5143 = vmul.f32 %v4769, %v5059
    %v5144 = vsub.f32 %v5140, %v5142
    %v5145 = vsub.f32 %v5141, %v5143
    %v5146 = vmul.f32 %v5144, 1.3333334
    %v5147 = vmul.f32 %v5145, 1.3333334
    %v5148 = vmul.f32 %v4896, %v5058
    %v5149 = vmul.f32 %v4897, %v5059
    %v5150 = vmul.f32 %v4902, %v5066
    %v5151 = vmul.f32 %v4903, %v5067
    %v5152 = vsub.f32 %v5148, %v5150
    %v5153 = vsub.f32 %v5149, %v5151
    %v5154 = vmul.f32 %v5152, 1.3333334
    %v5155 = vmul.f32 %v5153, 1.3333334
    %v5156 = vmul.f32 %v4898, %v5066
    %v5157 = vmul.f32 %v4899, %v5067
    %v5158 = vmul.f32 %v4904, %v5074
    %v5159 = vmul.f32 %v4905, %v5075
    %v5160 = vsub.f32 %v5156, %v5158
    %v5161 = vsub.f32 %v5157, %v5159
    %v5162 = vmul.f32 %v5160, 1.3333334
    %v5163 = vmul.f32 %v5161, 1.3333334
    %v5164 = vmul.f32 %v4900, %v5074
    %v5165 = vmul.f32 %v4901, %v5075
    %v5166 = vmul.f32 %v4906, %v5082
    %v5167 = vmul.f32 %v4907, %v5083
    %v5168 = vsub.f32 %v5164, %v5166
    %v5169 = vsub.f32 %v5165, %v5167
    %v5170 = vmul.f32 %v5168, 1.3333334
    %v5171 = vmul.f32 %v5169, 1.3333334
    %v5172 = vmul.f32 %v4766, %v5082
    %v5173 = vmul.f32 %v4769, %v5083
    %v5174 = vmul.f32 %v4908, %v5090
    %v5175 = vmul.f32 %v4909, %v5091
    %v5176 = vsub.f32 %v5172, %v5174
    %v5177 = vsub.f32 %v5173, %v5175
    %v5178 = vmul.f32 %v5176, 1.3333334
    %v5179 = vmul.f32 %v5177, 1.3333334
    %v5180 = vmul.f32 %v4902, %v5090
    %v5181 = vmul.f32 %v4903, %v5091
    %v5182 = vmul.f32 %v4910, %v5098
    %v5183 = vmul.f32 %v4911, %v5099
    %v5184 = vsub.f32 %v5180, %v5182
    %v5185 = vsub.f32 %v5181, %v5183
    %v5186 = vmul.f32 %v5184, 1.3333334
    %v5187 = vmul.f32 %v5185, 1.3333334
    %v5188 = vmul.f32 %v4904, %v5098
    %v5189 = vmul.f32 %v4905, %v5099
    %v5190 = vmul.f32 %v4912, %v5106
    %v5191 = vmul.f32 %v4913, %v5107
    %v5192 = vsub.f32 %v5188, %v5190
    %v5193 = vsub.f32 %v5189, %v5191
    %v5194 = vmul.f32 %v5192, 1.3333334
    %v5195 = vmul.f32 %v5193, 1.3333334
    %v5196 = vmul.f32 %v4906, %v5106
    %v5197 = vmul.f32 %v4907, %v5107
    %v5198 = vmul.f32 %v4914, %v5114
    %v5199 = vmul.f32 %v4915, %v5115
    %v5200 = vsub.f32 %v5196, %v5198
    %v5201 = vsub.f32 %v5197, %v5199
    %v5202 = vmul.f32 %v5200, 1.3333334
    %v5203 = vmul.f32 %v5201, 1.3333334
    %v5204 = vxor.u32 %v4766, 2147483648
    %v5205 = vxor.u32 %v4769, 2147483648
    %v5206 = vmul.f32 %v5204, 1.442695
    %v5207 = vpow.pop %v5206
    %v5208 = vmul.f32 %v5205, 1.442695
    %v5209 = vpow.pop %v5208
    %v5210 = vadd.f32 %v5207, 1.0
    %v5211 = vadd.f32 %v5209, 1.0
    %v5212 = vrcp.pop %v5210
    %v5213 = vmul.f32 %v5210, %v5212
    %v5214 = vsub.f32 1.0, %v5213
    %v5215 = vmul.f32 %v5212, %v5214
    %v5216 = vadd.f32 %v5212, %v5215
    %vm5217 = vweird.f32 %v5210
    %vm5218 = vweird.f32 %v5212
    %vm5219 = vmor %vm5217, %vm5218
    %v5220 = vsel %vm5219, %v5212, %v5216
    %v5221 = vand.u32 2147483647, %v5210
    %vm5222 = vcmp.eq.f32.partialorder %v5221, 8.507059e+37
    %v5223 = vand.u32 %v5210, 2147483648
    %v5224 = vor.u32 1.1754944e-38, %v5223
    %v5225 = vsel %vm5222, %v5224, %v5220
    %v5226 = vmul.f32 1.0, %v5225
    %v5227 = vrcp.pop %v5211
    %v5228 = vmul.f32 %v5211, %v5227
    %v5229 = vsub.f32 1.0, %v5228
    %v5230 = vmul.f32 %v5227, %v5229
    %v5231 = vadd.f32 %v5227, %v5230
    %vm5232 = vweird.f32 %v5211
    %vm5233 = vweird.f32 %v5227
    %vm5234 = vmor %vm5232, %vm5233
    %v5235 = vsel %vm5234, %v5227, %v5231
    %v5236 = vand.u32 2147483647, %v5211
    %vm5237 = vcmp.eq.f32.partialorder %v5236, 8.507059e+37
    %v5238 = vand.u32 %v5211, 2147483648
    %v5239 = vor.u32 1.1754944e-38, %v5238
    %v5240 = vsel %vm5237, %v5239, %v5235
    %v5241 = vmul.f32 1.0, %v5240
    %v5242 = vmul.f32 %v4766, %v5226
    %v5243 = vmul.f32 %v4769, %v5241
    %v5244 = vpack.c.bf16 %v5242, %v5242
    %v5245 = vpack.c.bf16 %v5243, %v5243
    %v5246 = vld [vmem:[%s7] sm:$0xf]
    %v5247 = vld [vmem:[%s7 + $0x4] sm:$0xf]
    %v5248 = vld [vmem:[%s7 + $0x8] sm:$0xf]
    %v5249 = vld [vmem:[%s7 + $0xc] sm:$0xf]
    %v5250 = vld [vmem:[%s7 + $0x10] sm:$0xf]
    %v5251 = vld [vmem:[%s7 + $0x14] sm:$0xf]
    %v5252 = vld [vmem:[%s7 + $0x18] sm:$0xf]
    %v5253 = vld [vmem:[%s7 + $0x1c] sm:$0xf]
    %v5254 = vld [vmem:[%s7 + $0x20] sm:$0xf]
    %v5255 = vld [vmem:[%s7 + $0x24] sm:$0xf]
    %v5256 = vld [vmem:[%s7 + $0x28] sm:$0xf]
    %v5257 = vld [vmem:[%s7 + $0x2c] sm:$0xf]
    %v5258 = vld [vmem:[%s7 + $0x30] sm:$0xf]
    %v5259 = vld [vmem:[%s7 + $0x34] sm:$0xf]
    %v5260 = vld [vmem:[%s7 + $0x38] sm:$0xf]
    %v5261 = vld [vmem:[%s7 + $0x3c] sm:$0xf]
    %v5262 = vld [vmem:[%s7 + $0x40] sm:$0xf]
    %v5263 = vld [vmem:[%s7 + $0x44] sm:$0xf]
    %v5264 = vld [vmem:[%s7 + $0x48] sm:$0xf]
    %v5265 = vld [vmem:[%s7 + $0x4c] sm:$0xf]
    %v5266 = vld [vmem:[%s7 + $0x50] sm:$0xf]
    %v5267 = vld [vmem:[%s7 + $0x54] sm:$0xf]
    %v5268 = vld [vmem:[%s7 + $0x58] sm:$0xf]
    %v5269 = vld [vmem:[%s7 + $0x5c] sm:$0xf]
    %v5270 = vld [vmem:[%s7 + $0x60] sm:$0xf]
    %v5271 = vld [vmem:[%s7 + $0x64] sm:$0xf]
    %v5272 = vld [vmem:[%s7 + $0x68] sm:$0xf]
    %v5273 = vld [vmem:[%s7 + $0x6c] sm:$0xf]
    %v5274 = vld [vmem:[%s7 + $0x70] sm:$0xf]
    %v5275 = vld [vmem:[%s7 + $0x74] sm:$0xf]
    %v5276 = vld [vmem:[%s7 + $0x78] sm:$0xf]
    %v5277 = vld [vmem:[%s7 + $0x7c] sm:$0xf]
    %v5278 = vpack.c.bf16 %v5122, %v5122
    %v5279 = vpack.c.bf16 %v5123, %v5123
    %s5280 = scalar_lea.vmem %s7, 128
    %v5281 = vld [vmem:[%s5280] sm:$0xf]
    %v5282 = vld [vmem:[%s5280 + $0x4] sm:$0xf]
    %v5283 = vld [vmem:[%s5280 + $0x8] sm:$0xf]
    %v5284 = vld [vmem:[%s5280 + $0xc] sm:$0xf]
    %v5285 = vld [vmem:[%s5280 + $0x10] sm:$0xf]
    %v5286 = vld [vmem:[%s5280 + $0x14] sm:$0xf]
    %v5287 = vld [vmem:[%s5280 + $0x18] sm:$0xf]
    %v5288 = vld [vmem:[%s5280 + $0x1c] sm:$0xf]
    %v5289 = vld [vmem:[%s5280 + $0x20] sm:$0xf]
    %v5290 = vld [vmem:[%s5280 + $0x24] sm:$0xf]
    %v5291 = vld [vmem:[%s5280 + $0x28] sm:$0xf]
    %v5292 = vld [vmem:[%s5280 + $0x2c] sm:$0xf]
    %v5293 = vld [vmem:[%s5280 + $0x30] sm:$0xf]
    %v5294 = vld [vmem:[%s5280 + $0x34] sm:$0xf]
    %v5295 = vld [vmem:[%s5280 + $0x38] sm:$0xf]
    %v5296 = vld [vmem:[%s5280 + $0x3c] sm:$0xf]
    %v5297 = vld [vmem:[%s5280 + $0x40] sm:$0xf]
    %v5298 = vld [vmem:[%s5280 + $0x44] sm:$0xf]
    %v5299 = vld [vmem:[%s5280 + $0x48] sm:$0xf]
    %v5300 = vld [vmem:[%s5280 + $0x4c] sm:$0xf]
    %v5301 = vld [vmem:[%s5280 + $0x50] sm:$0xf]
    %v5302 = vld [vmem:[%s5280 + $0x54] sm:$0xf]
    %v5303 = vld [vmem:[%s5280 + $0x58] sm:$0xf]
    %v5304 = vld [vmem:[%s5280 + $0x5c] sm:$0xf]
    %v5305 = vld [vmem:[%s5280 + $0x60] sm:$0xf]
    %v5306 = vld [vmem:[%s5280 + $0x64] sm:$0xf]
    %v5307 = vld [vmem:[%s5280 + $0x68] sm:$0xf]
    %v5308 = vld [vmem:[%s5280 + $0x6c] sm:$0xf]
    %v5309 = vld [vmem:[%s5280 + $0x70] sm:$0xf]
    %v5310 = vld [vmem:[%s5280 + $0x74] sm:$0xf]
    %v5311 = vld [vmem:[%s5280 + $0x78] sm:$0xf]
    %v5312 = vld [vmem:[%s5280 + $0x7c] sm:$0xf]
    %v5345 = vunpack.c.l.b16 %v5281
    %v5346 = vunpack.c.l.b16 %v5282
    %v5347 = vunpack.c.l.b16 %v5283
    %v5348 = vunpack.c.l.b16 %v5284
    %v5349 = vunpack.c.l.b16 %v5285
    %v5350 = vunpack.c.l.b16 %v5286
    %v5351 = vunpack.c.l.b16 %v5287
    %v5352 = vunpack.c.l.b16 %v5288
    %v5353 = vunpack.c.l.b16 %v5289
    %v5354 = vunpack.c.l.b16 %v5290
    %v5355 = vunpack.c.l.b16 %v5291
    %v5356 = vunpack.c.l.b16 %v5292
    %v5357 = vunpack.c.l.b16 %v5293
    %v5358 = vunpack.c.l.b16 %v5294
    %v5359 = vunpack.c.l.b16 %v5295
    %v5360 = vunpack.c.l.b16 %v5296
    %v5361 = vunpack.c.l.b16 %v5297
    %v5362 = vunpack.c.l.b16 %v5298
    %v5363 = vunpack.c.l.b16 %v5299
    %v5364 = vunpack.c.l.b16 %v5300
    %v5365 = vunpack.c.l.b16 %v5301
    %v5366 = vunpack.c.l.b16 %v5302
    %v5367 = vunpack.c.l.b16 %v5303
    %v5368 = vunpack.c.l.b16 %v5304
    %v5369 = vunpack.c.l.b16 %v5305
    %v5370 = vunpack.c.l.b16 %v5306
    %v5371 = vunpack.c.l.b16 %v5307
    %v5372 = vunpack.c.l.b16 %v5308
    %v5373 = vunpack.c.l.b16 %v5309
    %v5374 = vunpack.c.l.b16 %v5310
    %v5375 = vunpack.c.l.b16 %v5311
    %v5376 = vunpack.c.l.b16 %v5312
    %v5377 = vpack.c.b16 %v5346, %v5345
    %v5378 = vpack.c.b16 %v5348, %v5347
    %v5379 = vpack.c.b16 %v5350, %v5349
    %v5380 = vpack.c.b16 %v5352, %v5351
    %v5381 = vpack.c.b16 %v5354, %v5353
    %v5382 = vpack.c.b16 %v5356, %v5355
    %v5383 = vpack.c.b16 %v5358, %v5357
    %v5384 = vpack.c.b16 %v5360, %v5359
    %v5385 = vpack.c.b16 %v5362, %v5361
    %v5386 = vpack.c.b16 %v5364, %v5363
    %v5387 = vpack.c.b16 %v5366, %v5365
    %v5388 = vpack.c.b16 %v5368, %v5367
    %v5389 = vpack.c.b16 %v5370, %v5369
    %v5390 = vpack.c.b16 %v5372, %v5371
    %v5391 = vpack.c.b16 %v5374, %v5373
    %v5392 = vpack.c.b16 %v5376, %v5375
    %5409 = vmatpush.bf16.msra.mxu0 %v5384
    %5410 = vmatpush.bf16.msra.mxu0 %v5383
    %5411 = vmatpush.bf16.msra.mxu0 %v5382
    %5412 = vmatpush.bf16.msra.mxu0 %v5381
    %5413 = vmatpush.bf16.msra.mxu0 %v5380
    %5414 = vmatpush.bf16.msra.mxu0 %v5379
    %5415 = vmatpush.bf16.msra.mxu0 %v5378
    %5416 = vmatpush.bf16.msra.mxu0 %v5377
    %5417 = vmatmul.bf16.gmra.mxu0 %v5278
    %v5418 = vpop.f32.mrf.mxu0
    %v5419 = vadd.f32 0.0, %v5418
    %v5420 = vpop.f32.mrf.mxu0
    %5421 = vdwg.mxu0
    %5422 = vmatpush.bf16.msra.mxu0 %v5392
    %5423 = vmatpush.bf16.msra.mxu0 %v5391
    %5424 = vmatpush.bf16.msra.mxu0 %v5390
    %5425 = vmatpush.bf16.msra.mxu0 %v5389
    %5426 = vmatpush.bf16.msra.mxu0 %v5388
    %5427 = vmatpush.bf16.msra.mxu0 %v5387
    %5428 = vmatpush.bf16.msra.mxu0 %v5386
    %5429 = vmatpush.bf16.msra.mxu0 %v5385
    %5430 = vmatmul.bf16.gmra.mxu0 %v5279
    %v5431 = vpop.f32.mrf.mxu0
    %v5432 = vadd.f32 %v5419, %v5431
    %v5433 = vpop.f32.mrf.mxu0
    %5434 = vdwg.mxu0
    %v5467 = vunpack.c.l.b16 %v5246
    %v5468 = vunpack.c.l.b16 %v5247
    %v5469 = vunpack.c.l.b16 %v5248
    %v5470 = vunpack.c.l.b16 %v5249
    %v5471 = vunpack.c.l.b16 %v5250
    %v5472 = vunpack.c.l.b16 %v5251
    %v5473 = vunpack.c.l.b16 %v5252
    %v5474 = vunpack.c.l.b16 %v5253
    %v5475 = vunpack.c.l.b16 %v5254
    %v5476 = vunpack.c.l.b16 %v5255
    %v5477 = vunpack.c.l.b16 %v5256
    %v5478 = vunpack.c.l.b16 %v5257
    %v5479 = vunpack.c.l.b16 %v5258
    %v5480 = vunpack.c.l.b16 %v5259
    %v5481 = vunpack.c.l.b16 %v5260
    %v5482 = vunpack.c.l.b16 %v5261
    %v5483 = vunpack.c.l.b16 %v5262
    %v5484 = vunpack.c.l.b16 %v5263
    %v5485 = vunpack.c.l.b16 %v5264
    %v5486 = vunpack.c.l.b16 %v5265
    %v5487 = vunpack.c.l.b16 %v5266
    %v5488 = vunpack.c.l.b16 %v5267
    %v5489 = vunpack.c.l.b16 %v5268
    %v5490 = vunpack.c.l.b16 %v5269
    %v5491 = vunpack.c.l.b16 %v5270
    %v5492 = vunpack.c.l.b16 %v5271
    %v5493 = vunpack.c.l.b16 %v5272
    %v5494 = vunpack.c.l.b16 %v5273
    %v5495 = vunpack.c.l.b16 %v5274
    %v5496 = vunpack.c.l.b16 %v5275
    %v5497 = vunpack.c.l.b16 %v5276
    %v5498 = vunpack.c.l.b16 %v5277
    %v5499 = vpack.c.b16 %v5468, %v5467
    %v5500 = vpack.c.b16 %v5470, %v5469
    %v5501 = vpack.c.b16 %v5472, %v5471
    %v5502 = vpack.c.b16 %v5474, %v5473
    %v5503 = vpack.c.b16 %v5476, %v5475
    %v5504 = vpack.c.b16 %v5478, %v5477
    %v5505 = vpack.c.b16 %v5480, %v5479
    %v5506 = vpack.c.b16 %v5482, %v5481
    %v5507 = vpack.c.b16 %v5484, %v5483
    %v5508 = vpack.c.b16 %v5486, %v5485
    %v5509 = vpack.c.b16 %v5488, %v5487
    %v5510 = vpack.c.b16 %v5490, %v5489
    %v5511 = vpack.c.b16 %v5492, %v5491
    %v5512 = vpack.c.b16 %v5494, %v5493
    %v5513 = vpack.c.b16 %v5496, %v5495
    %v5514 = vpack.c.b16 %v5498, %v5497
    %5531 = vmatpush.bf16.msra.mxu0 %v5506
    %5532 = vmatpush.bf16.msra.mxu0 %v5505
    %5533 = vmatpush.bf16.msra.mxu0 %v5504
    %5534 = vmatpush.bf16.msra.mxu0 %v5503
    %5535 = vmatpush.bf16.msra.mxu0 %v5502
    %5536 = vmatpush.bf16.msra.mxu0 %v5501
    %5537 = vmatpush.bf16.msra.mxu0 %v5500
    %5538 = vmatpush.bf16.msra.mxu0 %v5499
    %5539 = vmatmul.bf16.gmra.mxu0 %v5244
    %v5540 = vpop.f32.mrf.mxu0
    %v5541 = vadd.f32 %v5432, %v5540
    %v5542 = vpop.f32.mrf.mxu0
    %5543 = vdwg.mxu0
    %5544 = vmatpush.bf16.msra.mxu0 %v5514
    %5545 = vmatpush.bf16.msra.mxu0 %v5513
    %5546 = vmatpush.bf16.msra.mxu0 %v5512
    %5547 = vmatpush.bf16.msra.mxu0 %v5511
    %5548 = vmatpush.bf16.msra.mxu0 %v5510
    %5549 = vmatpush.bf16.msra.mxu0 %v5509
    %5550 = vmatpush.bf16.msra.mxu0 %v5508
    %5551 = vmatpush.bf16.msra.mxu0 %v5507
    %5552 = vmatmul.bf16.gmra.mxu0 %v5245
    %v5553 = vpop.f32.mrf.mxu0
    %v5554 = vadd.f32 %v5541, %v5553
    %v5555 = vpop.f32.mrf.mxu0
    %5556 = vdwg.mxu0
    %v5557 = vpack.c.bf16 %v5130, %v5130
    %v5558 = vpack.c.bf16 %v5131, %v5131
    %s5559 = scalar_lea.vmem %s7, 256
    %v5560 = vld [vmem:[%s5559] sm:$0xf]
    %v5561 = vld [vmem:[%s5559 + $0x4] sm:$0xf]
    %v5562 = vld [vmem:[%s5559 + $0x8] sm:$0xf]
    %v5563 = vld [vmem:[%s5559 + $0xc] sm:$0xf]
    %v5564 = vld [vmem:[%s5559 + $0x10] sm:$0xf]
    %v5565 = vld [vmem:[%s5559 + $0x14] sm:$0xf]
    %v5566 = vld [vmem:[%s5559 + $0x18] sm:$0xf]
    %v5567 = vld [vmem:[%s5559 + $0x1c] sm:$0xf]
    %v5568 = vld [vmem:[%s5559 + $0x20] sm:$0xf]
    %v5569 = vld [vmem:[%s5559 + $0x24] sm:$0xf]
    %v5570 = vld [vmem:[%s5559 + $0x28] sm:$0xf]
    %v5571 = vld [vmem:[%s5559 + $0x2c] sm:$0xf]
    %v5572 = vld [vmem:[%s5559 + $0x30] sm:$0xf]
    %v5573 = vld [vmem:[%s5559 + $0x34] sm:$0xf]
    %v5574 = vld [vmem:[%s5559 + $0x38] sm:$0xf]
    %v5575 = vld [vmem:[%s5559 + $0x3c] sm:$0xf]
    %v5576 = vld [vmem:[%s5559 + $0x40] sm:$0xf]
    %v5577 = vld [vmem:[%s5559 + $0x44] sm:$0xf]
    %v5578 = vld [vmem:[%s5559 + $0x48] sm:$0xf]
    %v5579 = vld [vmem:[%s5559 + $0x4c] sm:$0xf]
    %v5580 = vld [vmem:[%s5559 + $0x50] sm:$0xf]
    %v5581 = vld [vmem:[%s5559 + $0x54] sm:$0xf]
    %v5582 = vld [vmem:[%s5559 + $0x58] sm:$0xf]
    %v5583 = vld [vmem:[%s5559 + $0x5c] sm:$0xf]
    %v5584 = vld [vmem:[%s5559 + $0x60] sm:$0xf]
    %v5585 = vld [vmem:[%s5559 + $0x64] sm:$0xf]
    %v5586 = vld [vmem:[%s5559 + $0x68] sm:$0xf]
    %v5587 = vld [vmem:[%s5559 + $0x6c] sm:$0xf]
    %v5588 = vld [vmem:[%s5559 + $0x70] sm:$0xf]
    %v5589 = vld [vmem:[%s5559 + $0x74] sm:$0xf]
    %v5590 = vld [vmem:[%s5559 + $0x78] sm:$0xf]
    %v5591 = vld [vmem:[%s5559 + $0x7c] sm:$0xf]
    %v5624 = vunpack.c.l.b16 %v5560
    %v5625 = vunpack.c.l.b16 %v5561
    %v5626 = vunpack.c.l.b16 %v5562
    %v5627 = vunpack.c.l.b16 %v5563
    %v5628 = vunpack.c.l.b16 %v5564
    %v5629 = vunpack.c.l.b16 %v5565
    %v5630 = vunpack.c.l.b16 %v5566
    %v5631 = vunpack.c.l.b16 %v5567
    %v5632 = vunpack.c.l.b16 %v5568
    %v5633 = vunpack.c.l.b16 %v5569
    %v5634 = vunpack.c.l.b16 %v5570
    %v5635 = vunpack.c.l.b16 %v5571
    %v5636 = vunpack.c.l.b16 %v5572
    %v5637 = vunpack.c.l.b16 %v5573
    %v5638 = vunpack.c.l.b16 %v5574
    %v5639 = vunpack.c.l.b16 %v5575
    %v5640 = vunpack.c.l.b16 %v5576
    %v5641 = vunpack.c.l.b16 %v5577
    %v5642 = vunpack.c.l.b16 %v5578
    %v5643 = vunpack.c.l.b16 %v5579
    %v5644 = vunpack.c.l.b16 %v5580
    %v5645 = vunpack.c.l.b16 %v5581
    %v5646 = vunpack.c.l.b16 %v5582
    %v5647 = vunpack.c.l.b16 %v5583
    %v5648 = vunpack.c.l.b16 %v5584
    %v5649 = vunpack.c.l.b16 %v5585
    %v5650 = vunpack.c.l.b16 %v5586
    %v5651 = vunpack.c.l.b16 %v5587
    %v5652 = vunpack.c.l.b16 %v5588
    %v5653 = vunpack.c.l.b16 %v5589
    %v5654 = vunpack.c.l.b16 %v5590
    %v5655 = vunpack.c.l.b16 %v5591
    %v5656 = vpack.c.b16 %v5625, %v5624
    %v5657 = vpack.c.b16 %v5627, %v5626
    %v5658 = vpack.c.b16 %v5629, %v5628
    %v5659 = vpack.c.b16 %v5631, %v5630
    %v5660 = vpack.c.b16 %v5633, %v5632
    %v5661 = vpack.c.b16 %v5635, %v5634
    %v5662 = vpack.c.b16 %v5637, %v5636
    %v5663 = vpack.c.b16 %v5639, %v5638
    %v5664 = vpack.c.b16 %v5641, %v5640
    %v5665 = vpack.c.b16 %v5643, %v5642
    %v5666 = vpack.c.b16 %v5645, %v5644
    %v5667 = vpack.c.b16 %v5647, %v5646
    %v5668 = vpack.c.b16 %v5649, %v5648
    %v5669 = vpack.c.b16 %v5651, %v5650
    %v5670 = vpack.c.b16 %v5653, %v5652
    %v5671 = vpack.c.b16 %v5655, %v5654
    %5688 = vmatpush.bf16.msra.mxu0 %v5663
    %5689 = vmatpush.bf16.msra.mxu0 %v5662
    %5690 = vmatpush.bf16.msra.mxu0 %v5661
    %5691 = vmatpush.bf16.msra.mxu0 %v5660
    %5692 = vmatpush.bf16.msra.mxu0 %v5659
    %5693 = vmatpush.bf16.msra.mxu0 %v5658
    %5694 = vmatpush.bf16.msra.mxu0 %v5657
    %5695 = vmatpush.bf16.msra.mxu0 %v5656
    %5696 = vmatmul.bf16.gmra.mxu0 %v5557
    %v5697 = vpop.f32.mrf.mxu0
    %v5698 = vadd.f32 0.0, %v5697
    %v5699 = vpop.f32.mrf.mxu0
    %5700 = vdwg.mxu0
    %5701 = vmatpush.bf16.msra.mxu0 %v5671
    %5702 = vmatpush.bf16.msra.mxu0 %v5670
    %5703 = vmatpush.bf16.msra.mxu0 %v5669
    %5704 = vmatpush.bf16.msra.mxu0 %v5668
    %5705 = vmatpush.bf16.msra.mxu0 %v5667
    %5706 = vmatpush.bf16.msra.mxu0 %v5666
    %5707 = vmatpush.bf16.msra.mxu0 %v5665
    %5708 = vmatpush.bf16.msra.mxu0 %v5664
    %5709 = vmatmul.bf16.gmra.mxu0 %v5558
    %v5710 = vpop.f32.mrf.mxu0
    %v5711 = vadd.f32 %v5698, %v5710
    %v5712 = vpop.f32.mrf.mxu0
    %5713 = vdwg.mxu0
    %v5714 = vadd.f32 %v5554, %v5711
    %v5715 = vpack.c.bf16 %v5138, %v5138
    %v5716 = vpack.c.bf16 %v5139, %v5139
    %s5717 = scalar_lea.vmem %s7, 384
    %v5718 = vld [vmem:[%s5717] sm:$0xf]
    %v5719 = vld [vmem:[%s5717 + $0x4] sm:$0xf]
    %v5720 = vld [vmem:[%s5717 + $0x8] sm:$0xf]
    %v5721 = vld [vmem:[%s5717 + $0xc] sm:$0xf]
    %v5722 = vld [vmem:[%s5717 + $0x10] sm:$0xf]
    %v5723 = vld [vmem:[%s5717 + $0x14] sm:$0xf]
    %v5724 = vld [vmem:[%s5717 + $0x18] sm:$0xf]
    %v5725 = vld [vmem:[%s5717 + $0x1c] sm:$0xf]
    %v5726 = vld [vmem:[%s5717 + $0x20] sm:$0xf]
    %v5727 = vld [vmem:[%s5717 + $0x24] sm:$0xf]
    %v5728 = vld [vmem:[%s5717 + $0x28] sm:$0xf]
    %v5729 = vld [vmem:[%s5717 + $0x2c] sm:$0xf]
    %v5730 = vld [vmem:[%s5717 + $0x30] sm:$0xf]
    %v5731 = vld [vmem:[%s5717 + $0x34] sm:$0xf]
    %v5732 = vld [vmem:[%s5717 + $0x38] sm:$0xf]
    %v5733 = vld [vmem:[%s5717 + $0x3c] sm:$0xf]
    %v5734 = vld [vmem:[%s5717 + $0x40] sm:$0xf]
    %v5735 = vld [vmem:[%s5717 + $0x44] sm:$0xf]
    %v5736 = vld [vmem:[%s5717 + $0x48] sm:$0xf]
    %v5737 = vld [vmem:[%s5717 + $0x4c] sm:$0xf]
    %v5738 = vld [vmem:[%s5717 + $0x50] sm:$0xf]
    %v5739 = vld [vmem:[%s5717 + $0x54] sm:$0xf]
    %v5740 = vld [vmem:[%s5717 + $0x58] sm:$0xf]
    %v5741 = vld [vmem:[%s5717 + $0x5c] sm:$0xf]
    %v5742 = vld [vmem:[%s5717 + $0x60] sm:$0xf]
    %v5743 = vld [vmem:[%s5717 + $0x64] sm:$0xf]
    %v5744 = vld [vmem:[%s5717 + $0x68] sm:$0xf]
    %v5745 = vld [vmem:[%s5717 + $0x6c] sm:$0xf]
    %v5746 = vld [vmem:[%s5717 + $0x70] sm:$0xf]
    %v5747 = vld [vmem:[%s5717 + $0x74] sm:$0xf]
    %v5748 = vld [vmem:[%s5717 + $0x78] sm:$0xf]
    %v5749 = vld [vmem:[%s5717 + $0x7c] sm:$0xf]
    %v5782 = vunpack.c.l.b16 %v5718
    %v5783 = vunpack.c.l.b16 %v5719
    %v5784 = vunpack.c.l.b16 %v5720
    %v5785 = vunpack.c.l.b16 %v5721
    %v5786 = vunpack.c.l.b16 %v5722
    %v5787 = vunpack.c.l.b16 %v5723
    %v5788 = vunpack.c.l.b16 %v5724
    %v5789 = vunpack.c.l.b16 %v5725
    %v5790 = vunpack.c.l.b16 %v5726
    %v5791 = vunpack.c.l.b16 %v5727
    %v5792 = vunpack.c.l.b16 %v5728
    %v5793 = vunpack.c.l.b16 %v5729
    %v5794 = vunpack.c.l.b16 %v5730
    %v5795 = vunpack.c.l.b16 %v5731
    %v5796 = vunpack.c.l.b16 %v5732
    %v5797 = vunpack.c.l.b16 %v5733
    %v5798 = vunpack.c.l.b16 %v5734
    %v5799 = vunpack.c.l.b16 %v5735
    %v5800 = vunpack.c.l.b16 %v5736
    %v5801 = vunpack.c.l.b16 %v5737
    %v5802 = vunpack.c.l.b16 %v5738
    %v5803 = vunpack.c.l.b16 %v5739
    %v5804 = vunpack.c.l.b16 %v5740
    %v5805 = vunpack.c.l.b16 %v5741
    %v5806 = vunpack.c.l.b16 %v5742
    %v5807 = vunpack.c.l.b16 %v5743
    %v5808 = vunpack.c.l.b16 %v5744
    %v5809 = vunpack.c.l.b16 %v5745
    %v5810 = vunpack.c.l.b16 %v5746
    %v5811 = vunpack.c.l.b16 %v5747
    %v5812 = vunpack.c.l.b16 %v5748
    %v5813 = vunpack.c.l.b16 %v5749
    %v5814 = vpack.c.b16 %v5783, %v5782
    %v5815 = vpack.c.b16 %v5785, %v5784
    %v5816 = vpack.c.b16 %v5787, %v5786
    %v5817 = vpack.c.b16 %v5789, %v5788
    %v5818 = vpack.c.b16 %v5791, %v5790
    %v5819 = vpack.c.b16 %v5793, %v5792
    %v5820 = vpack.c.b16 %v5795, %v5794
    %v5821 = vpack.c.b16 %v5797, %v5796
    %v5822 = vpack.c.b16 %v5799, %v5798
    %v5823 = vpack.c.b16 %v5801, %v5800
    %v5824 = vpack.c.b16 %v5803, %v5802
    %v5825 = vpack.c.b16 %v5805, %v5804
    %v5826 = vpack.c.b16 %v5807, %v5806
    %v5827 = vpack.c.b16 %v5809, %v5808
    %v5828 = vpack.c.b16 %v5811, %v5810
    %v5829 = vpack.c.b16 %v5813, %v5812
    %5846 = vmatpush.bf16.msra.mxu0 %v5821
    %5847 = vmatpush.bf16.msra.mxu0 %v5820
    %5848 = vmatpush.bf16.msra.mxu0 %v5819
    %5849 = vmatpush.bf16.msra.mxu0 %v5818
    %5850 = vmatpush.bf16.msra.mxu0 %v5817
    %5851 = vmatpush.bf16.msra.mxu0 %v5816
    %5852 = vmatpush.bf16.msra.mxu0 %v5815
    %5853 = vmatpush.bf16.msra.mxu0 %v5814
    %5854 = vmatmul.bf16.gmra.mxu0 %v5715
    %v5855 = vpop.f32.mrf.mxu0
    %v5856 = vadd.f32 0.0, %v5855
    %v5857 = vpop.f32.mrf.mxu0
    %5858 = vdwg.mxu0
    %5859 = vmatpush.bf16.msra.mxu0 %v5829
    %5860 = vmatpush.bf16.msra.mxu0 %v5828
    %5861 = vmatpush.bf16.msra.mxu0 %v5827
    %5862 = vmatpush.bf16.msra.mxu0 %v5826
    %5863 = vmatpush.bf16.msra.mxu0 %v5825
    %5864 = vmatpush.bf16.msra.mxu0 %v5824
    %5865 = vmatpush.bf16.msra.mxu0 %v5823
    %5866 = vmatpush.bf16.msra.mxu0 %v5822
    %5867 = vmatmul.bf16.gmra.mxu0 %v5716
    %v5868 = vpop.f32.mrf.mxu0
    %v5869 = vadd.f32 %v5856, %v5868
    %v5870 = vpop.f32.mrf.mxu0
    %5871 = vdwg.mxu0
    %v5872 = vadd.f32 %v5714, %v5869
    %v5873 = vpack.c.bf16 %v5146, %v5146
    %v5874 = vpack.c.bf16 %v5147, %v5147
    %s5875 = scalar_lea.vmem %s7, 512
    %v5876 = vld [vmem:[%s5875] sm:$0xf]
    %v5877 = vld [vmem:[%s5875 + $0x4] sm:$0xf]
    %v5878 = vld [vmem:[%s5875 + $0x8] sm:$0xf]
    %v5879 = vld [vmem:[%s5875 + $0xc] sm:$0xf]
    %v5880 = vld [vmem:[%s5875 + $0x10] sm:$0xf]
    %v5881 = vld [vmem:[%s5875 + $0x14] sm:$0xf]
    %v5882 = vld [vmem:[%s5875 + $0x18] sm:$0xf]
    %v5883 = vld [vmem:[%s5875 + $0x1c] sm:$0xf]
    %v5884 = vld [vmem:[%s5875 + $0x20] sm:$0xf]
    %v5885 = vld [vmem:[%s5875 + $0x24] sm:$0xf]
    %v5886 = vld [vmem:[%s5875 + $0x28] sm:$0xf]
    %v5887 = vld [vmem:[%s5875 + $0x2c] sm:$0xf]
    %v5888 = vld [vmem:[%s5875 + $0x30] sm:$0xf]
    %v5889 = vld [vmem:[%s5875 + $0x34] sm:$0xf]
    %v5890 = vld [vmem:[%s5875 + $0x38] sm:$0xf]
    %v5891 = vld [vmem:[%s5875 + $0x3c] sm:$0xf]
    %v5892 = vld [vmem:[%s5875 + $0x40] sm:$0xf]
    %v5893 = vld [vmem:[%s5875 + $0x44] sm:$0xf]
    %v5894 = vld [vmem:[%s5875 + $0x48] sm:$0xf]
    %v5895 = vld [vmem:[%s5875 + $0x4c] sm:$0xf]
    %v5896 = vld [vmem:[%s5875 + $0x50] sm:$0xf]
    %v5897 = vld [vmem:[%s5875 + $0x54] sm:$0xf]
    %v5898 = vld [vmem:[%s5875 + $0x58] sm:$0xf]
    %v5899 = vld [vmem:[%s5875 + $0x5c] sm:$0xf]
    %v5900 = vld [vmem:[%s5875 + $0x60] sm:$0xf]
    %v5901 = vld [vmem:[%s5875 + $0x64] sm:$0xf]
    %v5902 = vld [vmem:[%s5875 + $0x68] sm:$0xf]
    %v5903 = vld [vmem:[%s5875 + $0x6c] sm:$0xf]
    %v5904 = vld [vmem:[%s5875 + $0x70] sm:$0xf]
    %v5905 = vld [vmem:[%s5875 + $0x74] sm:$0xf]
    %v5906 = vld [vmem:[%s5875 + $0x78] sm:$0xf]
    %v5907 = vld [vmem:[%s5875 + $0x7c] sm:$0xf]
    %v5940 = vunpack.c.l.b16 %v5876
    %v5941 = vunpack.c.l.b16 %v5877
    %v5942 = vunpack.c.l.b16 %v5878
    %v5943 = vunpack.c.l.b16 %v5879
    %v5944 = vunpack.c.l.b16 %v5880
    %v5945 = vunpack.c.l.b16 %v5881
    %v5946 = vunpack.c.l.b16 %v5882
    %v5947 = vunpack.c.l.b16 %v5883
    %v5948 = vunpack.c.l.b16 %v5884
    %v5949 = vunpack.c.l.b16 %v5885
    %v5950 = vunpack.c.l.b16 %v5886
    %v5951 = vunpack.c.l.b16 %v5887
    %v5952 = vunpack.c.l.b16 %v5888
    %v5953 = vunpack.c.l.b16 %v5889
    %v5954 = vunpack.c.l.b16 %v5890
    %v5955 = vunpack.c.l.b16 %v5891
    %v5956 = vunpack.c.l.b16 %v5892
    %v5957 = vunpack.c.l.b16 %v5893
    %v5958 = vunpack.c.l.b16 %v5894
    %v5959 = vunpack.c.l.b16 %v5895
    %v5960 = vunpack.c.l.b16 %v5896
    %v5961 = vunpack.c.l.b16 %v5897
    %v5962 = vunpack.c.l.b16 %v5898
    %v5963 = vunpack.c.l.b16 %v5899
    %v5964 = vunpack.c.l.b16 %v5900
    %v5965 = vunpack.c.l.b16 %v5901
    %v5966 = vunpack.c.l.b16 %v5902
    %v5967 = vunpack.c.l.b16 %v5903
    %v5968 = vunpack.c.l.b16 %v5904
    %v5969 = vunpack.c.l.b16 %v5905
    %v5970 = vunpack.c.l.b16 %v5906
    %v5971 = vunpack.c.l.b16 %v5907
    %v5972 = vpack.c.b16 %v5941, %v5940
    %v5973 = vpack.c.b16 %v5943, %v5942
    %v5974 = vpack.c.b16 %v5945, %v5944
    %v5975 = vpack.c.b16 %v5947, %v5946
    %v5976 = vpack.c.b16 %v5949, %v5948
    %v5977 = vpack.c.b16 %v5951, %v5950
    %v5978 = vpack.c.b16 %v5953, %v5952
    %v5979 = vpack.c.b16 %v5955, %v5954
    %v5980 = vpack.c.b16 %v5957, %v5956
    %v5981 = vpack.c.b16 %v5959, %v5958
    %v5982 = vpack.c.b16 %v5961, %v5960
    %v5983 = vpack.c.b16 %v5963, %v5962
    %v5984 = vpack.c.b16 %v5965, %v5964
    %v5985 = vpack.c.b16 %v5967, %v5966
    %v5986 = vpack.c.b16 %v5969, %v5968
    %v5987 = vpack.c.b16 %v5971, %v5970
    %6004 = vmatpush.bf16.msra.mxu0 %v5979
    %6005 = vmatpush.bf16.msra.mxu0 %v5978
    %6006 = vmatpush.bf16.msra.mxu0 %v5977
    %6007 = vmatpush.bf16.msra.mxu0 %v5976
    %6008 = vmatpush.bf16.msra.mxu0 %v5975
    %6009 = vmatpush.bf16.msra.mxu0 %v5974
    %6010 = vmatpush.bf16.msra.mxu0 %v5973
    %6011 = vmatpush.bf16.msra.mxu0 %v5972
    %6012 = vmatmul.bf16.gmra.mxu0 %v5873
    %v6013 = vpop.f32.mrf.mxu0
    %v6014 = vadd.f32 0.0, %v6013
    %v6015 = vpop.f32.mrf.mxu0
    %6016 = vdwg.mxu0
    %6017 = vmatpush.bf16.msra.mxu0 %v5987
    %6018 = vmatpush.bf16.msra.mxu0 %v5986
    %6019 = vmatpush.bf16.msra.mxu0 %v5985
    %6020 = vmatpush.bf16.msra.mxu0 %v5984
    %6021 = vmatpush.bf16.msra.mxu0 %v5983
    %6022 = vmatpush.bf16.msra.mxu0 %v5982
    %6023 = vmatpush.bf16.msra.mxu0 %v5981
    %6024 = vmatpush.bf16.msra.mxu0 %v5980
    %6025 = vmatmul.bf16.gmra.mxu0 %v5874
    %v6026 = vpop.f32.mrf.mxu0
    %v6027 = vadd.f32 %v6014, %v6026
    %v6028 = vpop.f32.mrf.mxu0
    %6029 = vdwg.mxu0
    %v6030 = vadd.f32 %v5872, %v6027
    %v6031 = vpack.c.bf16 %v5154, %v5154
    %v6032 = vpack.c.bf16 %v5155, %v5155
    %s6033 = scalar_lea.vmem %s7, 640
    %v6034 = vld [vmem:[%s6033] sm:$0xf]
    %v6035 = vld [vmem:[%s6033 + $0x4] sm:$0xf]
    %v6036 = vld [vmem:[%s6033 + $0x8] sm:$0xf]
    %v6037 = vld [vmem:[%s6033 + $0xc] sm:$0xf]
    %v6038 = vld [vmem:[%s6033 + $0x10] sm:$0xf]
    %v6039 = vld [vmem:[%s6033 + $0x14] sm:$0xf]
    %v6040 = vld [vmem:[%s6033 + $0x18] sm:$0xf]
    %v6041 = vld [vmem:[%s6033 + $0x1c] sm:$0xf]
    %v6042 = vld [vmem:[%s6033 + $0x20] sm:$0xf]
    %v6043 = vld [vmem:[%s6033 + $0x24] sm:$0xf]
    %v6044 = vld [vmem:[%s6033 + $0x28] sm:$0xf]
    %v6045 = vld [vmem:[%s6033 + $0x2c] sm:$0xf]
    %v6046 = vld [vmem:[%s6033 + $0x30] sm:$0xf]
    %v6047 = vld [vmem:[%s6033 + $0x34] sm:$0xf]
    %v6048 = vld [vmem:[%s6033 + $0x38] sm:$0xf]
    %v6049 = vld [vmem:[%s6033 + $0x3c] sm:$0xf]
    %v6050 = vld [vmem:[%s6033 + $0x40] sm:$0xf]
    %v6051 = vld [vmem:[%s6033 + $0x44] sm:$0xf]
    %v6052 = vld [vmem:[%s6033 + $0x48] sm:$0xf]
    %v6053 = vld [vmem:[%s6033 + $0x4c] sm:$0xf]
    %v6054 = vld [vmem:[%s6033 + $0x50] sm:$0xf]
    %v6055 = vld [vmem:[%s6033 + $0x54] sm:$0xf]
    %v6056 = vld [vmem:[%s6033 + $0x58] sm:$0xf]
    %v6057 = vld [vmem:[%s6033 + $0x5c] sm:$0xf]
    %v6058 = vld [vmem:[%s6033 + $0x60] sm:$0xf]
    %v6059 = vld [vmem:[%s6033 + $0x64] sm:$0xf]
    %v6060 = vld [vmem:[%s6033 + $0x68] sm:$0xf]
    %v6061 = vld [vmem:[%s6033 + $0x6c] sm:$0xf]
    %v6062 = vld [vmem:[%s6033 + $0x70] sm:$0xf]
    %v6063 = vld [vmem:[%s6033 + $0x74] sm:$0xf]
    %v6064 = vld [vmem:[%s6033 + $0x78] sm:$0xf]
    %v6065 = vld [vmem:[%s6033 + $0x7c] sm:$0xf]
    %v6098 = vunpack.c.l.b16 %v6034
    %v6099 = vunpack.c.l.b16 %v6035
    %v6100 = vunpack.c.l.b16 %v6036
    %v6101 = vunpack.c.l.b16 %v6037
    %v6102 = vunpack.c.l.b16 %v6038
    %v6103 = vunpack.c.l.b16 %v6039
    %v6104 = vunpack.c.l.b16 %v6040
    %v6105 = vunpack.c.l.b16 %v6041
    %v6106 = vunpack.c.l.b16 %v6042
    %v6107 = vunpack.c.l.b16 %v6043
    %v6108 = vunpack.c.l.b16 %v6044
    %v6109 = vunpack.c.l.b16 %v6045
    %v6110 = vunpack.c.l.b16 %v6046
    %v6111 = vunpack.c.l.b16 %v6047
    %v6112 = vunpack.c.l.b16 %v6048
    %v6113 = vunpack.c.l.b16 %v6049
    %v6114 = vunpack.c.l.b16 %v6050
    %v6115 = vunpack.c.l.b16 %v6051
    %v6116 = vunpack.c.l.b16 %v6052
    %v6117 = vunpack.c.l.b16 %v6053
    %v6118 = vunpack.c.l.b16 %v6054
    %v6119 = vunpack.c.l.b16 %v6055
    %v6120 = vunpack.c.l.b16 %v6056
    %v6121 = vunpack.c.l.b16 %v6057
    %v6122 = vunpack.c.l.b16 %v6058
    %v6123 = vunpack.c.l.b16 %v6059
    %v6124 = vunpack.c.l.b16 %v6060
    %v6125 = vunpack.c.l.b16 %v6061
    %v6126 = vunpack.c.l.b16 %v6062
    %v6127 = vunpack.c.l.b16 %v6063
    %v6128 = vunpack.c.l.b16 %v6064
    %v6129 = vunpack.c.l.b16 %v6065
    %v6130 = vpack.c.b16 %v6099, %v6098
    %v6131 = vpack.c.b16 %v6101, %v6100
    %v6132 = vpack.c.b16 %v6103, %v6102
    %v6133 = vpack.c.b16 %v6105, %v6104
    %v6134 = vpack.c.b16 %v6107, %v6106
    %v6135 = vpack.c.b16 %v6109, %v6108
    %v6136 = vpack.c.b16 %v6111, %v6110
    %v6137 = vpack.c.b16 %v6113, %v6112
    %v6138 = vpack.c.b16 %v6115, %v6114
    %v6139 = vpack.c.b16 %v6117, %v6116
    %v6140 = vpack.c.b16 %v6119, %v6118
    %v6141 = vpack.c.b16 %v6121, %v6120
    %v6142 = vpack.c.b16 %v6123, %v6122
    %v6143 = vpack.c.b16 %v6125, %v6124
    %v6144 = vpack.c.b16 %v6127, %v6126
    %v6145 = vpack.c.b16 %v6129, %v6128
    %6162 = vmatpush.bf16.msra.mxu0 %v6137
    %6163 = vmatpush.bf16.msra.mxu0 %v6136
    %6164 = vmatpush.bf16.msra.mxu0 %v6135
    %6165 = vmatpush.bf16.msra.mxu0 %v6134
    %6166 = vmatpush.bf16.msra.mxu0 %v6133
    %6167 = vmatpush.bf16.msra.mxu0 %v6132
    %6168 = vmatpush.bf16.msra.mxu0 %v6131
    %6169 = vmatpush.bf16.msra.mxu0 %v6130
    %6170 = vmatmul.bf16.gmra.mxu0 %v6031
    %v6171 = vpop.f32.mrf.mxu0
    %v6172 = vadd.f32 0.0, %v6171
    %v6173 = vpop.f32.mrf.mxu0
    %6174 = vdwg.mxu0
    %6175 = vmatpush.bf16.msra.mxu0 %v6145
    %6176 = vmatpush.bf16.msra.mxu0 %v6144
    %6177 = vmatpush.bf16.msra.mxu0 %v6143
    %6178 = vmatpush.bf16.msra.mxu0 %v6142
    %6179 = vmatpush.bf16.msra.mxu0 %v6141
    %6180 = vmatpush.bf16.msra.mxu0 %v6140
    %6181 = vmatpush.bf16.msra.mxu0 %v6139
    %6182 = vmatpush.bf16.msra.mxu0 %v6138
    %6183 = vmatmul.bf16.gmra.mxu0 %v6032
    %v6184 = vpop.f32.mrf.mxu0
    %v6185 = vadd.f32 %v6172, %v6184
    %v6186 = vpop.f32.mrf.mxu0
    %6187 = vdwg.mxu0
    %v6188 = vadd.f32 %v6030, %v6185
    %v6189 = vpack.c.bf16 %v5162, %v5162
    %v6190 = vpack.c.bf16 %v5163, %v5163
    %s6191 = scalar_lea.vmem %s7, 768
    %v6192 = vld [vmem:[%s6191] sm:$0xf]
    %v6193 = vld [vmem:[%s6191 + $0x4] sm:$0xf]
    %v6194 = vld [vmem:[%s6191 + $0x8] sm:$0xf]
    %v6195 = vld [vmem:[%s6191 + $0xc] sm:$0xf]
    %v6196 = vld [vmem:[%s6191 + $0x10] sm:$0xf]
    %v6197 = vld [vmem:[%s6191 + $0x14] sm:$0xf]
    %v6198 = vld [vmem:[%s6191 + $0x18] sm:$0xf]
    %v6199 = vld [vmem:[%s6191 + $0x1c] sm:$0xf]
    %v6200 = vld [vmem:[%s6191 + $0x20] sm:$0xf]
    %v6201 = vld [vmem:[%s6191 + $0x24] sm:$0xf]
    %v6202 = vld [vmem:[%s6191 + $0x28] sm:$0xf]
    %v6203 = vld [vmem:[%s6191 + $0x2c] sm:$0xf]
    %v6204 = vld [vmem:[%s6191 + $0x30] sm:$0xf]
    %v6205 = vld [vmem:[%s6191 + $0x34] sm:$0xf]
    %v6206 = vld [vmem:[%s6191 + $0x38] sm:$0xf]
    %v6207 = vld [vmem:[%s6191 + $0x3c] sm:$0xf]
    %v6208 = vld [vmem:[%s6191 + $0x40] sm:$0xf]
    %v6209 = vld [vmem:[%s6191 + $0x44] sm:$0xf]
    %v6210 = vld [vmem:[%s6191 + $0x48] sm:$0xf]
    %v6211 = vld [vmem:[%s6191 + $0x4c] sm:$0xf]
    %v6212 = vld [vmem:[%s6191 + $0x50] sm:$0xf]
    %v6213 = vld [vmem:[%s6191 + $0x54] sm:$0xf]
    %v6214 = vld [vmem:[%s6191 + $0x58] sm:$0xf]
    %v6215 = vld [vmem:[%s6191 + $0x5c] sm:$0xf]
    %v6216 = vld [vmem:[%s6191 + $0x60] sm:$0xf]
    %v6217 = vld [vmem:[%s6191 + $0x64] sm:$0xf]
    %v6218 = vld [vmem:[%s6191 + $0x68] sm:$0xf]
    %v6219 = vld [vmem:[%s6191 + $0x6c] sm:$0xf]
    %v6220 = vld [vmem:[%s6191 + $0x70] sm:$0xf]
    %v6221 = vld [vmem:[%s6191 + $0x74] sm:$0xf]
    %v6222 = vld [vmem:[%s6191 + $0x78] sm:$0xf]
    %v6223 = vld [vmem:[%s6191 + $0x7c] sm:$0xf]
    %v6256 = vunpack.c.l.b16 %v6192
    %v6257 = vunpack.c.l.b16 %v6193
    %v6258 = vunpack.c.l.b16 %v6194
    %v6259 = vunpack.c.l.b16 %v6195
    %v6260 = vunpack.c.l.b16 %v6196
    %v6261 = vunpack.c.l.b16 %v6197
    %v6262 = vunpack.c.l.b16 %v6198
    %v6263 = vunpack.c.l.b16 %v6199
    %v6264 = vunpack.c.l.b16 %v6200
    %v6265 = vunpack.c.l.b16 %v6201
    %v6266 = vunpack.c.l.b16 %v6202
    %v6267 = vunpack.c.l.b16 %v6203
    %v6268 = vunpack.c.l.b16 %v6204
    %v6269 = vunpack.c.l.b16 %v6205
    %v6270 = vunpack.c.l.b16 %v6206
    %v6271 = vunpack.c.l.b16 %v6207
    %v6272 = vunpack.c.l.b16 %v6208
    %v6273 = vunpack.c.l.b16 %v6209
    %v6274 = vunpack.c.l.b16 %v6210
    %v6275 = vunpack.c.l.b16 %v6211
    %v6276 = vunpack.c.l.b16 %v6212
    %v6277 = vunpack.c.l.b16 %v6213
    %v6278 = vunpack.c.l.b16 %v6214
    %v6279 = vunpack.c.l.b16 %v6215
    %v6280 = vunpack.c.l.b16 %v6216
    %v6281 = vunpack.c.l.b16 %v6217
    %v6282 = vunpack.c.l.b16 %v6218
    %v6283 = vunpack.c.l.b16 %v6219
    %v6284 = vunpack.c.l.b16 %v6220
    %v6285 = vunpack.c.l.b16 %v6221
    %v6286 = vunpack.c.l.b16 %v6222
    %v6287 = vunpack.c.l.b16 %v6223
    %v6288 = vpack.c.b16 %v6257, %v6256
    %v6289 = vpack.c.b16 %v6259, %v6258
    %v6290 = vpack.c.b16 %v6261, %v6260
    %v6291 = vpack.c.b16 %v6263, %v6262
    %v6292 = vpack.c.b16 %v6265, %v6264
    %v6293 = vpack.c.b16 %v6267, %v6266
    %v6294 = vpack.c.b16 %v6269, %v6268
    %v6295 = vpack.c.b16 %v6271, %v6270
    %v6296 = vpack.c.b16 %v6273, %v6272
    %v6297 = vpack.c.b16 %v6275, %v6274
    %v6298 = vpack.c.b16 %v6277, %v6276
    %v6299 = vpack.c.b16 %v6279, %v6278
    %v6300 = vpack.c.b16 %v6281, %v6280
    %v6301 = vpack.c.b16 %v6283, %v6282
    %v6302 = vpack.c.b16 %v6285, %v6284
    %v6303 = vpack.c.b16 %v6287, %v6286
    %6320 = vmatpush.bf16.msra.mxu0 %v6295
    %6321 = vmatpush.bf16.msra.mxu0 %v6294
    %6322 = vmatpush.bf16.msra.mxu0 %v6293
    %6323 = vmatpush.bf16.msra.mxu0 %v6292
    %6324 = vmatpush.bf16.msra.mxu0 %v6291
    %6325 = vmatpush.bf16.msra.mxu0 %v6290
    %6326 = vmatpush.bf16.msra.mxu0 %v6289
    %6327 = vmatpush.bf16.msra.mxu0 %v6288
    %6328 = vmatmul.bf16.gmra.mxu0 %v6189
    %v6329 = vpop.f32.mrf.mxu0
    %v6330 = vadd.f32 0.0, %v6329
    %v6331 = vpop.f32.mrf.mxu0
    %6332 = vdwg.mxu0
    %6333 = vmatpush.bf16.msra.mxu0 %v6303
    %6334 = vmatpush.bf16.msra.mxu0 %v6302
    %6335 = vmatpush.bf16.msra.mxu0 %v6301
    %6336 = vmatpush.bf16.msra.mxu0 %v6300
    %6337 = vmatpush.bf16.msra.mxu0 %v6299
    %6338 = vmatpush.bf16.msra.mxu0 %v6298
    %6339 = vmatpush.bf16.msra.mxu0 %v6297
    %6340 = vmatpush.bf16.msra.mxu0 %v6296
    %6341 = vmatmul.bf16.gmra.mxu0 %v6190
    %v6342 = vpop.f32.mrf.mxu0
    %v6343 = vadd.f32 %v6330, %v6342
    %v6344 = vpop.f32.mrf.mxu0
    %6345 = vdwg.mxu0
    %v6346 = vadd.f32 %v6188, %v6343
    %v6347 = vpack.c.bf16 %v5170, %v5170
    %v6348 = vpack.c.bf16 %v5171, %v5171
    %s6349 = scalar_lea.vmem %s7, 896
    %v6350 = vld [vmem:[%s6349] sm:$0xf]
    %v6351 = vld [vmem:[%s6349 + $0x4] sm:$0xf]
    %v6352 = vld [vmem:[%s6349 + $0x8] sm:$0xf]
    %v6353 = vld [vmem:[%s6349 + $0xc] sm:$0xf]
    %v6354 = vld [vmem:[%s6349 + $0x10] sm:$0xf]
    %v6355 = vld [vmem:[%s6349 + $0x14] sm:$0xf]
    %v6356 = vld [vmem:[%s6349 + $0x18] sm:$0xf]
    %v6357 = vld [vmem:[%s6349 + $0x1c] sm:$0xf]
    %v6358 = vld [vmem:[%s6349 + $0x20] sm:$0xf]
    %v6359 = vld [vmem:[%s6349 + $0x24] sm:$0xf]
    %v6360 = vld [vmem:[%s6349 + $0x28] sm:$0xf]
    %v6361 = vld [vmem:[%s6349 + $0x2c] sm:$0xf]
    %v6362 = vld [vmem:[%s6349 + $0x30] sm:$0xf]
    %v6363 = vld [vmem:[%s6349 + $0x34] sm:$0xf]
    %v6364 = vld [vmem:[%s6349 + $0x38] sm:$0xf]
    %v6365 = vld [vmem:[%s6349 + $0x3c] sm:$0xf]
    %v6366 = vld [vmem:[%s6349 + $0x40] sm:$0xf]
    %v6367 = vld [vmem:[%s6349 + $0x44] sm:$0xf]
    %v6368 = vld [vmem:[%s6349 + $0x48] sm:$0xf]
    %v6369 = vld [vmem:[%s6349 + $0x4c] sm:$0xf]
    %v6370 = vld [vmem:[%s6349 + $0x50] sm:$0xf]
    %v6371 = vld [vmem:[%s6349 + $0x54] sm:$0xf]
    %v6372 = vld [vmem:[%s6349 + $0x58] sm:$0xf]
    %v6373 = vld [vmem:[%s6349 + $0x5c] sm:$0xf]
    %v6374 = vld [vmem:[%s6349 + $0x60] sm:$0xf]
    %v6375 = vld [vmem:[%s6349 + $0x64] sm:$0xf]
    %v6376 = vld [vmem:[%s6349 + $0x68] sm:$0xf]
    %v6377 = vld [vmem:[%s6349 + $0x6c] sm:$0xf]
    %v6378 = vld [vmem:[%s6349 + $0x70] sm:$0xf]
    %v6379 = vld [vmem:[%s6349 + $0x74] sm:$0xf]
    %v6380 = vld [vmem:[%s6349 + $0x78] sm:$0xf]
    %v6381 = vld [vmem:[%s6349 + $0x7c] sm:$0xf]
    %v6414 = vunpack.c.l.b16 %v6350
    %v6415 = vunpack.c.l.b16 %v6351
    %v6416 = vunpack.c.l.b16 %v6352
    %v6417 = vunpack.c.l.b16 %v6353
    %v6418 = vunpack.c.l.b16 %v6354
    %v6419 = vunpack.c.l.b16 %v6355
    %v6420 = vunpack.c.l.b16 %v6356
    %v6421 = vunpack.c.l.b16 %v6357
    %v6422 = vunpack.c.l.b16 %v6358
    %v6423 = vunpack.c.l.b16 %v6359
    %v6424 = vunpack.c.l.b16 %v6360
    %v6425 = vunpack.c.l.b16 %v6361
    %v6426 = vunpack.c.l.b16 %v6362
    %v6427 = vunpack.c.l.b16 %v6363
    %v6428 = vunpack.c.l.b16 %v6364
    %v6429 = vunpack.c.l.b16 %v6365
    %v6430 = vunpack.c.l.b16 %v6366
    %v6431 = vunpack.c.l.b16 %v6367
    %v6432 = vunpack.c.l.b16 %v6368
    %v6433 = vunpack.c.l.b16 %v6369
    %v6434 = vunpack.c.l.b16 %v6370
    %v6435 = vunpack.c.l.b16 %v6371
    %v6436 = vunpack.c.l.b16 %v6372
    %v6437 = vunpack.c.l.b16 %v6373
    %v6438 = vunpack.c.l.b16 %v6374
    %v6439 = vunpack.c.l.b16 %v6375
    %v6440 = vunpack.c.l.b16 %v6376
    %v6441 = vunpack.c.l.b16 %v6377
    %v6442 = vunpack.c.l.b16 %v6378
    %v6443 = vunpack.c.l.b16 %v6379
    %v6444 = vunpack.c.l.b16 %v6380
    %v6445 = vunpack.c.l.b16 %v6381
    %v6446 = vpack.c.b16 %v6415, %v6414
    %v6447 = vpack.c.b16 %v6417, %v6416
    %v6448 = vpack.c.b16 %v6419, %v6418
    %v6449 = vpack.c.b16 %v6421, %v6420
    %v6450 = vpack.c.b16 %v6423, %v6422
    %v6451 = vpack.c.b16 %v6425, %v6424
    %v6452 = vpack.c.b16 %v6427, %v6426
    %v6453 = vpack.c.b16 %v6429, %v6428
    %v6454 = vpack.c.b16 %v6431, %v6430
    %v6455 = vpack.c.b16 %v6433, %v6432
    %v6456 = vpack.c.b16 %v6435, %v6434
    %v6457 = vpack.c.b16 %v6437, %v6436
    %v6458 = vpack.c.b16 %v6439, %v6438
    %v6459 = vpack.c.b16 %v6441, %v6440
    %v6460 = vpack.c.b16 %v6443, %v6442
    %v6461 = vpack.c.b16 %v6445, %v6444
    %6478 = vmatpush.bf16.msra.mxu0 %v6453
    %6479 = vmatpush.bf16.msra.mxu0 %v6452
    %6480 = vmatpush.bf16.msra.mxu0 %v6451
    %6481 = vmatpush.bf16.msra.mxu0 %v6450
    %6482 = vmatpush.bf16.msra.mxu0 %v6449
    %6483 = vmatpush.bf16.msra.mxu0 %v6448
    %6484 = vmatpush.bf16.msra.mxu0 %v6447
    %6485 = vmatpush.bf16.msra.mxu0 %v6446
    %6486 = vmatmul.bf16.gmra.mxu0 %v6347
    %v6487 = vpop.f32.mrf.mxu0
    %v6488 = vadd.f32 0.0, %v6487
    %v6489 = vpop.f32.mrf.mxu0
    %6490 = vdwg.mxu0
    %6491 = vmatpush.bf16.msra.mxu0 %v6461
    %6492 = vmatpush.bf16.msra.mxu0 %v6460
    %6493 = vmatpush.bf16.msra.mxu0 %v6459
    %6494 = vmatpush.bf16.msra.mxu0 %v6458
    %6495 = vmatpush.bf16.msra.mxu0 %v6457
    %6496 = vmatpush.bf16.msra.mxu0 %v6456
    %6497 = vmatpush.bf16.msra.mxu0 %v6455
    %6498 = vmatpush.bf16.msra.mxu0 %v6454
    %6499 = vmatmul.bf16.gmra.mxu0 %v6348
    %v6500 = vpop.f32.mrf.mxu0
    %v6501 = vadd.f32 %v6488, %v6500
    %v6502 = vpop.f32.mrf.mxu0
    %6503 = vdwg.mxu0
    %v6504 = vadd.f32 %v6346, %v6501
    %v6505 = vpack.c.bf16 %v5178, %v5178
    %v6506 = vpack.c.bf16 %v5179, %v5179
    %s6507 = scalar_lea.vmem %s7, 1024
    %v6508 = vld [vmem:[%s6507] sm:$0xf]
    %v6509 = vld [vmem:[%s6507 + $0x4] sm:$0xf]
    %v6510 = vld [vmem:[%s6507 + $0x8] sm:$0xf]
    %v6511 = vld [vmem:[%s6507 + $0xc] sm:$0xf]
    %v6512 = vld [vmem:[%s6507 + $0x10] sm:$0xf]
    %v6513 = vld [vmem:[%s6507 + $0x14] sm:$0xf]
    %v6514 = vld [vmem:[%s6507 + $0x18] sm:$0xf]
    %v6515 = vld [vmem:[%s6507 + $0x1c] sm:$0xf]
    %v6516 = vld [vmem:[%s6507 + $0x20] sm:$0xf]
    %v6517 = vld [vmem:[%s6507 + $0x24] sm:$0xf]
    %v6518 = vld [vmem:[%s6507 + $0x28] sm:$0xf]
    %v6519 = vld [vmem:[%s6507 + $0x2c] sm:$0xf]
    %v6520 = vld [vmem:[%s6507 + $0x30] sm:$0xf]
    %v6521 = vld [vmem:[%s6507 + $0x34] sm:$0xf]
    %v6522 = vld [vmem:[%s6507 + $0x38] sm:$0xf]
    %v6523 = vld [vmem:[%s6507 + $0x3c] sm:$0xf]
    %v6524 = vld [vmem:[%s6507 + $0x40] sm:$0xf]
    %v6525 = vld [vmem:[%s6507 + $0x44] sm:$0xf]
    %v6526 = vld [vmem:[%s6507 + $0x48] sm:$0xf]
    %v6527 = vld [vmem:[%s6507 + $0x4c] sm:$0xf]
    %v6528 = vld [vmem:[%s6507 + $0x50] sm:$0xf]
    %v6529 = vld [vmem:[%s6507 + $0x54] sm:$0xf]
    %v6530 = vld [vmem:[%s6507 + $0x58] sm:$0xf]
    %v6531 = vld [vmem:[%s6507 + $0x5c] sm:$0xf]
    %v6532 = vld [vmem:[%s6507 + $0x60] sm:$0xf]
    %v6533 = vld [vmem:[%s6507 + $0x64] sm:$0xf]
    %v6534 = vld [vmem:[%s6507 + $0x68] sm:$0xf]
    %v6535 = vld [vmem:[%s6507 + $0x6c] sm:$0xf]
    %v6536 = vld [vmem:[%s6507 + $0x70] sm:$0xf]
    %v6537 = vld [vmem:[%s6507 + $0x74] sm:$0xf]
    %v6538 = vld [vmem:[%s6507 + $0x78] sm:$0xf]
    %v6539 = vld [vmem:[%s6507 + $0x7c] sm:$0xf]
    %v6572 = vunpack.c.l.b16 %v6508
    %v6573 = vunpack.c.l.b16 %v6509
    %v6574 = vunpack.c.l.b16 %v6510
    %v6575 = vunpack.c.l.b16 %v6511
    %v6576 = vunpack.c.l.b16 %v6512
    %v6577 = vunpack.c.l.b16 %v6513
    %v6578 = vunpack.c.l.b16 %v6514
    %v6579 = vunpack.c.l.b16 %v6515
    %v6580 = vunpack.c.l.b16 %v6516
    %v6581 = vunpack.c.l.b16 %v6517
    %v6582 = vunpack.c.l.b16 %v6518
    %v6583 = vunpack.c.l.b16 %v6519
    %v6584 = vunpack.c.l.b16 %v6520
    %v6585 = vunpack.c.l.b16 %v6521
    %v6586 = vunpack.c.l.b16 %v6522
    %v6587 = vunpack.c.l.b16 %v6523
    %v6588 = vunpack.c.l.b16 %v6524
    %v6589 = vunpack.c.l.b16 %v6525
    %v6590 = vunpack.c.l.b16 %v6526
    %v6591 = vunpack.c.l.b16 %v6527
    %v6592 = vunpack.c.l.b16 %v6528
    %v6593 = vunpack.c.l.b16 %v6529
    %v6594 = vunpack.c.l.b16 %v6530
    %v6595 = vunpack.c.l.b16 %v6531
    %v6596 = vunpack.c.l.b16 %v6532
    %v6597 = vunpack.c.l.b16 %v6533
    %v6598 = vunpack.c.l.b16 %v6534
    %v6599 = vunpack.c.l.b16 %v6535
    %v6600 = vunpack.c.l.b16 %v6536
    %v6601 = vunpack.c.l.b16 %v6537
    %v6602 = vunpack.c.l.b16 %v6538
    %v6603 = vunpack.c.l.b16 %v6539
    %v6604 = vpack.c.b16 %v6573, %v6572
    %v6605 = vpack.c.b16 %v6575, %v6574
    %v6606 = vpack.c.b16 %v6577, %v6576
    %v6607 = vpack.c.b16 %v6579, %v6578
    %v6608 = vpack.c.b16 %v6581, %v6580
    %v6609 = vpack.c.b16 %v6583, %v6582
    %v6610 = vpack.c.b16 %v6585, %v6584
    %v6611 = vpack.c.b16 %v6587, %v6586
    %v6612 = vpack.c.b16 %v6589, %v6588
    %v6613 = vpack.c.b16 %v6591, %v6590
    %v6614 = vpack.c.b16 %v6593, %v6592
    %v6615 = vpack.c.b16 %v6595, %v6594
    %v6616 = vpack.c.b16 %v6597, %v6596
    %v6617 = vpack.c.b16 %v6599, %v6598
    %v6618 = vpack.c.b16 %v6601, %v6600
    %v6619 = vpack.c.b16 %v6603, %v6602
    %6636 = vmatpush.bf16.msra.mxu0 %v6611
    %6637 = vmatpush.bf16.msra.mxu0 %v6610
    %6638 = vmatpush.bf16.msra.mxu0 %v6609
    %6639 = vmatpush.bf16.msra.mxu0 %v6608
    %6640 = vmatpush.bf16.msra.mxu0 %v6607
    %6641 = vmatpush.bf16.msra.mxu0 %v6606
    %6642 = vmatpush.bf16.msra.mxu0 %v6605
    %6643 = vmatpush.bf16.msra.mxu0 %v6604
    %6644 = vmatmul.bf16.gmra.mxu0 %v6505
    %v6645 = vpop.f32.mrf.mxu0
    %v6646 = vadd.f32 0.0, %v6645
    %v6647 = vpop.f32.mrf.mxu0
    %6648 = vdwg.mxu0
    %6649 = vmatpush.bf16.msra.mxu0 %v6619
    %6650 = vmatpush.bf16.msra.mxu0 %v6618
    %6651 = vmatpush.bf16.msra.mxu0 %v6617
    %6652 = vmatpush.bf16.msra.mxu0 %v6616
    %6653 = vmatpush.bf16.msra.mxu0 %v6615
    %6654 = vmatpush.bf16.msra.mxu0 %v6614
    %6655 = vmatpush.bf16.msra.mxu0 %v6613
    %6656 = vmatpush.bf16.msra.mxu0 %v6612
    %6657 = vmatmul.bf16.gmra.mxu0 %v6506
    %v6658 = vpop.f32.mrf.mxu0
    %v6659 = vadd.f32 %v6646, %v6658
    %v6660 = vpop.f32.mrf.mxu0
    %6661 = vdwg.mxu0
    %v6662 = vadd.f32 %v6504, %v6659
    %v6663 = vpack.c.bf16 %v5186, %v5186
    %v6664 = vpack.c.bf16 %v5187, %v5187
    %s6665 = scalar_lea.vmem %s7, 1152
    %v6666 = vld [vmem:[%s6665] sm:$0xf]
    %v6667 = vld [vmem:[%s6665 + $0x4] sm:$0xf]
    %v6668 = vld [vmem:[%s6665 + $0x8] sm:$0xf]
    %v6669 = vld [vmem:[%s6665 + $0xc] sm:$0xf]
    %v6670 = vld [vmem:[%s6665 + $0x10] sm:$0xf]
    %v6671 = vld [vmem:[%s6665 + $0x14] sm:$0xf]
    %v6672 = vld [vmem:[%s6665 + $0x18] sm:$0xf]
    %v6673 = vld [vmem:[%s6665 + $0x1c] sm:$0xf]
    %v6674 = vld [vmem:[%s6665 + $0x20] sm:$0xf]
    %v6675 = vld [vmem:[%s6665 + $0x24] sm:$0xf]
    %v6676 = vld [vmem:[%s6665 + $0x28] sm:$0xf]
    %v6677 = vld [vmem:[%s6665 + $0x2c] sm:$0xf]
    %v6678 = vld [vmem:[%s6665 + $0x30] sm:$0xf]
    %v6679 = vld [vmem:[%s6665 + $0x34] sm:$0xf]
    %v6680 = vld [vmem:[%s6665 + $0x38] sm:$0xf]
    %v6681 = vld [vmem:[%s6665 + $0x3c] sm:$0xf]
    %v6682 = vld [vmem:[%s6665 + $0x40] sm:$0xf]
    %v6683 = vld [vmem:[%s6665 + $0x44] sm:$0xf]
    %v6684 = vld [vmem:[%s6665 + $0x48] sm:$0xf]
    %v6685 = vld [vmem:[%s6665 + $0x4c] sm:$0xf]
    %v6686 = vld [vmem:[%s6665 + $0x50] sm:$0xf]
    %v6687 = vld [vmem:[%s6665 + $0x54] sm:$0xf]
    %v6688 = vld [vmem:[%s6665 + $0x58] sm:$0xf]
    %v6689 = vld [vmem:[%s6665 + $0x5c] sm:$0xf]
    %v6690 = vld [vmem:[%s6665 + $0x60] sm:$0xf]
    %v6691 = vld [vmem:[%s6665 + $0x64] sm:$0xf]
    %v6692 = vld [vmem:[%s6665 + $0x68] sm:$0xf]
    %v6693 = vld [vmem:[%s6665 + $0x6c] sm:$0xf]
    %v6694 = vld [vmem:[%s6665 + $0x70] sm:$0xf]
    %v6695 = vld [vmem:[%s6665 + $0x74] sm:$0xf]
    %v6696 = vld [vmem:[%s6665 + $0x78] sm:$0xf]
    %v6697 = vld [vmem:[%s6665 + $0x7c] sm:$0xf]
    %v6730 = vunpack.c.l.b16 %v6666
    %v6731 = vunpack.c.l.b16 %v6667
    %v6732 = vunpack.c.l.b16 %v6668
    %v6733 = vunpack.c.l.b16 %v6669
    %v6734 = vunpack.c.l.b16 %v6670
    %v6735 = vunpack.c.l.b16 %v6671
    %v6736 = vunpack.c.l.b16 %v6672
    %v6737 = vunpack.c.l.b16 %v6673
    %v6738 = vunpack.c.l.b16 %v6674
    %v6739 = vunpack.c.l.b16 %v6675
    %v6740 = vunpack.c.l.b16 %v6676
    %v6741 = vunpack.c.l.b16 %v6677
    %v6742 = vunpack.c.l.b16 %v6678
    %v6743 = vunpack.c.l.b16 %v6679
    %v6744 = vunpack.c.l.b16 %v6680
    %v6745 = vunpack.c.l.b16 %v6681
    %v6746 = vunpack.c.l.b16 %v6682
    %v6747 = vunpack.c.l.b16 %v6683
    %v6748 = vunpack.c.l.b16 %v6684
    %v6749 = vunpack.c.l.b16 %v6685
    %v6750 = vunpack.c.l.b16 %v6686
    %v6751 = vunpack.c.l.b16 %v6687
    %v6752 = vunpack.c.l.b16 %v6688
    %v6753 = vunpack.c.l.b16 %v6689
    %v6754 = vunpack.c.l.b16 %v6690
    %v6755 = vunpack.c.l.b16 %v6691
    %v6756 = vunpack.c.l.b16 %v6692
    %v6757 = vunpack.c.l.b16 %v6693
    %v6758 = vunpack.c.l.b16 %v6694
    %v6759 = vunpack.c.l.b16 %v6695
    %v6760 = vunpack.c.l.b16 %v6696
    %v6761 = vunpack.c.l.b16 %v6697
    %v6762 = vpack.c.b16 %v6731, %v6730
    %v6763 = vpack.c.b16 %v6733, %v6732
    %v6764 = vpack.c.b16 %v6735, %v6734
    %v6765 = vpack.c.b16 %v6737, %v6736
    %v6766 = vpack.c.b16 %v6739, %v6738
    %v6767 = vpack.c.b16 %v6741, %v6740
    %v6768 = vpack.c.b16 %v6743, %v6742
    %v6769 = vpack.c.b16 %v6745, %v6744
    %v6770 = vpack.c.b16 %v6747, %v6746
    %v6771 = vpack.c.b16 %v6749, %v6748
    %v6772 = vpack.c.b16 %v6751, %v6750
    %v6773 = vpack.c.b16 %v6753, %v6752
    %v6774 = vpack.c.b16 %v6755, %v6754
    %v6775 = vpack.c.b16 %v6757, %v6756
    %v6776 = vpack.c.b16 %v6759, %v6758
    %v6777 = vpack.c.b16 %v6761, %v6760
    %6794 = vmatpush.bf16.msra.mxu0 %v6769
    %6795 = vmatpush.bf16.msra.mxu0 %v6768
    %6796 = vmatpush.bf16.msra.mxu0 %v6767
    %6797 = vmatpush.bf16.msra.mxu0 %v6766
    %6798 = vmatpush.bf16.msra.mxu0 %v6765
    %6799 = vmatpush.bf16.msra.mxu0 %v6764
    %6800 = vmatpush.bf16.msra.mxu0 %v6763
    %6801 = vmatpush.bf16.msra.mxu0 %v6762
    %6802 = vmatmul.bf16.gmra.mxu0 %v6663
    %v6803 = vpop.f32.mrf.mxu0
    %v6804 = vadd.f32 0.0, %v6803
    %v6805 = vpop.f32.mrf.mxu0
    %6806 = vdwg.mxu0
    %6807 = vmatpush.bf16.msra.mxu0 %v6777
    %6808 = vmatpush.bf16.msra.mxu0 %v6776
    %6809 = vmatpush.bf16.msra.mxu0 %v6775
    %6810 = vmatpush.bf16.msra.mxu0 %v6774
    %6811 = vmatpush.bf16.msra.mxu0 %v6773
    %6812 = vmatpush.bf16.msra.mxu0 %v6772
    %6813 = vmatpush.bf16.msra.mxu0 %v6771
    %6814 = vmatpush.bf16.msra.mxu0 %v6770
    %6815 = vmatmul.bf16.gmra.mxu0 %v6664
    %v6816 = vpop.f32.mrf.mxu0
    %v6817 = vadd.f32 %v6804, %v6816
    %v6818 = vpop.f32.mrf.mxu0
    %6819 = vdwg.mxu0
    %v6820 = vadd.f32 %v6662, %v6817
    %v6821 = vpack.c.bf16 %v5194, %v5194
    %v6822 = vpack.c.bf16 %v5195, %v5195
    %s6823 = scalar_lea.vmem %s7, 1280
    %v6824 = vld [vmem:[%s6823] sm:$0xf]
    %v6825 = vld [vmem:[%s6823 + $0x4] sm:$0xf]
    %v6826 = vld [vmem:[%s6823 + $0x8] sm:$0xf]
    %v6827 = vld [vmem:[%s6823 + $0xc] sm:$0xf]
    %v6828 = vld [vmem:[%s6823 + $0x10] sm:$0xf]
    %v6829 = vld [vmem:[%s6823 + $0x14] sm:$0xf]
    %v6830 = vld [vmem:[%s6823 + $0x18] sm:$0xf]
    %v6831 = vld [vmem:[%s6823 + $0x1c] sm:$0xf]
    %v6832 = vld [vmem:[%s6823 + $0x20] sm:$0xf]
    %v6833 = vld [vmem:[%s6823 + $0x24] sm:$0xf]
    %v6834 = vld [vmem:[%s6823 + $0x28] sm:$0xf]
    %v6835 = vld [vmem:[%s6823 + $0x2c] sm:$0xf]
    %v6836 = vld [vmem:[%s6823 + $0x30] sm:$0xf]
    %v6837 = vld [vmem:[%s6823 + $0x34] sm:$0xf]
    %v6838 = vld [vmem:[%s6823 + $0x38] sm:$0xf]
    %v6839 = vld [vmem:[%s6823 + $0x3c] sm:$0xf]
    %v6840 = vld [vmem:[%s6823 + $0x40] sm:$0xf]
    %v6841 = vld [vmem:[%s6823 + $0x44] sm:$0xf]
    %v6842 = vld [vmem:[%s6823 + $0x48] sm:$0xf]
    %v6843 = vld [vmem:[%s6823 + $0x4c] sm:$0xf]
    %v6844 = vld [vmem:[%s6823 + $0x50] sm:$0xf]
    %v6845 = vld [vmem:[%s6823 + $0x54] sm:$0xf]
    %v6846 = vld [vmem:[%s6823 + $0x58] sm:$0xf]
    %v6847 = vld [vmem:[%s6823 + $0x5c] sm:$0xf]
    %v6848 = vld [vmem:[%s6823 + $0x60] sm:$0xf]
    %v6849 = vld [vmem:[%s6823 + $0x64] sm:$0xf]
    %v6850 = vld [vmem:[%s6823 + $0x68] sm:$0xf]
    %v6851 = vld [vmem:[%s6823 + $0x6c] sm:$0xf]
    %v6852 = vld [vmem:[%s6823 + $0x70] sm:$0xf]
    %v6853 = vld [vmem:[%s6823 + $0x74] sm:$0xf]
    %v6854 = vld [vmem:[%s6823 + $0x78] sm:$0xf]
    %v6855 = vld [vmem:[%s6823 + $0x7c] sm:$0xf]
    %v6888 = vunpack.c.l.b16 %v6824
    %v6889 = vunpack.c.l.b16 %v6825
    %v6890 = vunpack.c.l.b16 %v6826
    %v6891 = vunpack.c.l.b16 %v6827
    %v6892 = vunpack.c.l.b16 %v6828
    %v6893 = vunpack.c.l.b16 %v6829
    %v6894 = vunpack.c.l.b16 %v6830
    %v6895 = vunpack.c.l.b16 %v6831
    %v6896 = vunpack.c.l.b16 %v6832
    %v6897 = vunpack.c.l.b16 %v6833
    %v6898 = vunpack.c.l.b16 %v6834
    %v6899 = vunpack.c.l.b16 %v6835
    %v6900 = vunpack.c.l.b16 %v6836
    %v6901 = vunpack.c.l.b16 %v6837
    %v6902 = vunpack.c.l.b16 %v6838
    %v6903 = vunpack.c.l.b16 %v6839
    %v6904 = vunpack.c.l.b16 %v6840
    %v6905 = vunpack.c.l.b16 %v6841
    %v6906 = vunpack.c.l.b16 %v6842
    %v6907 = vunpack.c.l.b16 %v6843
    %v6908 = vunpack.c.l.b16 %v6844
    %v6909 = vunpack.c.l.b16 %v6845
    %v6910 = vunpack.c.l.b16 %v6846
    %v6911 = vunpack.c.l.b16 %v6847
    %v6912 = vunpack.c.l.b16 %v6848
    %v6913 = vunpack.c.l.b16 %v6849
    %v6914 = vunpack.c.l.b16 %v6850
    %v6915 = vunpack.c.l.b16 %v6851
    %v6916 = vunpack.c.l.b16 %v6852
    %v6917 = vunpack.c.l.b16 %v6853
    %v6918 = vunpack.c.l.b16 %v6854
    %v6919 = vunpack.c.l.b16 %v6855
    %v6920 = vpack.c.b16 %v6889, %v6888
    %v6921 = vpack.c.b16 %v6891, %v6890
    %v6922 = vpack.c.b16 %v6893, %v6892
    %v6923 = vpack.c.b16 %v6895, %v6894
    %v6924 = vpack.c.b16 %v6897, %v6896
    %v6925 = vpack.c.b16 %v6899, %v6898
    %v6926 = vpack.c.b16 %v6901, %v6900
    %v6927 = vpack.c.b16 %v6903, %v6902
    %v6928 = vpack.c.b16 %v6905, %v6904
    %v6929 = vpack.c.b16 %v6907, %v6906
    %v6930 = vpack.c.b16 %v6909, %v6908
    %v6931 = vpack.c.b16 %v6911, %v6910
    %v6932 = vpack.c.b16 %v6913, %v6912
    %v6933 = vpack.c.b16 %v6915, %v6914
    %v6934 = vpack.c.b16 %v6917, %v6916
    %v6935 = vpack.c.b16 %v6919, %v6918
    %6952 = vmatpush.bf16.msra.mxu0 %v6927
    %6953 = vmatpush.bf16.msra.mxu0 %v6926
    %6954 = vmatpush.bf16.msra.mxu0 %v6925
    %6955 = vmatpush.bf16.msra.mxu0 %v6924
    %6956 = vmatpush.bf16.msra.mxu0 %v6923
    %6957 = vmatpush.bf16.msra.mxu0 %v6922
    %6958 = vmatpush.bf16.msra.mxu0 %v6921
    %6959 = vmatpush.bf16.msra.mxu0 %v6920
    %6960 = vmatmul.bf16.gmra.mxu0 %v6821
    %v6961 = vpop.f32.mrf.mxu0
    %v6962 = vadd.f32 0.0, %v6961
    %v6963 = vpop.f32.mrf.mxu0
    %6964 = vdwg.mxu0
    %6965 = vmatpush.bf16.msra.mxu0 %v6935
    %6966 = vmatpush.bf16.msra.mxu0 %v6934
    %6967 = vmatpush.bf16.msra.mxu0 %v6933
    %6968 = vmatpush.bf16.msra.mxu0 %v6932
    %6969 = vmatpush.bf16.msra.mxu0 %v6931
    %6970 = vmatpush.bf16.msra.mxu0 %v6930
    %6971 = vmatpush.bf16.msra.mxu0 %v6929
    %6972 = vmatpush.bf16.msra.mxu0 %v6928
    %6973 = vmatmul.bf16.gmra.mxu0 %v6822
    %v6974 = vpop.f32.mrf.mxu0
    %v6975 = vadd.f32 %v6962, %v6974
    %v6976 = vpop.f32.mrf.mxu0
    %6977 = vdwg.mxu0
    %v6978 = vadd.f32 %v6820, %v6975
    %v6979 = vpack.c.bf16 %v5202, %v5202
    %v6980 = vpack.c.bf16 %v5203, %v5203
    %s6981 = scalar_lea.vmem %s7, 1408
    %v6982 = vld [vmem:[%s6981] sm:$0xf]
    %v6983 = vld [vmem:[%s6981 + $0x4] sm:$0xf]
    %v6984 = vld [vmem:[%s6981 + $0x8] sm:$0xf]
    %v6985 = vld [vmem:[%s6981 + $0xc] sm:$0xf]
    %v6986 = vld [vmem:[%s6981 + $0x10] sm:$0xf]
    %v6987 = vld [vmem:[%s6981 + $0x14] sm:$0xf]
    %v6988 = vld [vmem:[%s6981 + $0x18] sm:$0xf]
    %v6989 = vld [vmem:[%s6981 + $0x1c] sm:$0xf]
    %v6990 = vld [vmem:[%s6981 + $0x20] sm:$0xf]
    %v6991 = vld [vmem:[%s6981 + $0x24] sm:$0xf]
    %v6992 = vld [vmem:[%s6981 + $0x28] sm:$0xf]
    %v6993 = vld [vmem:[%s6981 + $0x2c] sm:$0xf]
    %v6994 = vld [vmem:[%s6981 + $0x30] sm:$0xf]
    %v6995 = vld [vmem:[%s6981 + $0x34] sm:$0xf]
    %v6996 = vld [vmem:[%s6981 + $0x38] sm:$0xf]
    %v6997 = vld [vmem:[%s6981 + $0x3c] sm:$0xf]
    %v6998 = vld [vmem:[%s6981 + $0x40] sm:$0xf]
    %v6999 = vld [vmem:[%s6981 + $0x44] sm:$0xf]
    %v7000 = vld [vmem:[%s6981 + $0x48] sm:$0xf]
    %v7001 = vld [vmem:[%s6981 + $0x4c] sm:$0xf]
    %v7002 = vld [vmem:[%s6981 + $0x50] sm:$0xf]
    %v7003 = vld [vmem:[%s6981 + $0x54] sm:$0xf]
    %v7004 = vld [vmem:[%s6981 + $0x58] sm:$0xf]
    %v7005 = vld [vmem:[%s6981 + $0x5c] sm:$0xf]
    %v7006 = vld [vmem:[%s6981 + $0x60] sm:$0xf]
    %v7007 = vld [vmem:[%s6981 + $0x64] sm:$0xf]
    %v7008 = vld [vmem:[%s6981 + $0x68] sm:$0xf]
    %v7009 = vld [vmem:[%s6981 + $0x6c] sm:$0xf]
    %v7010 = vld [vmem:[%s6981 + $0x70] sm:$0xf]
    %v7011 = vld [vmem:[%s6981 + $0x74] sm:$0xf]
    %v7012 = vld [vmem:[%s6981 + $0x78] sm:$0xf]
    %v7013 = vld [vmem:[%s6981 + $0x7c] sm:$0xf]
    %v7046 = vunpack.c.l.b16 %v6982
    %v7047 = vunpack.c.l.b16 %v6983
    %v7048 = vunpack.c.l.b16 %v6984
    %v7049 = vunpack.c.l.b16 %v6985
    %v7050 = vunpack.c.l.b16 %v6986
    %v7051 = vunpack.c.l.b16 %v6987
    %v7052 = vunpack.c.l.b16 %v6988
    %v7053 = vunpack.c.l.b16 %v6989
    %v7054 = vunpack.c.l.b16 %v6990
    %v7055 = vunpack.c.l.b16 %v6991
    %v7056 = vunpack.c.l.b16 %v6992
    %v7057 = vunpack.c.l.b16 %v6993
    %v7058 = vunpack.c.l.b16 %v6994
    %v7059 = vunpack.c.l.b16 %v6995
    %v7060 = vunpack.c.l.b16 %v6996
    %v7061 = vunpack.c.l.b16 %v6997
    %v7062 = vunpack.c.l.b16 %v6998
    %v7063 = vunpack.c.l.b16 %v6999
    %v7064 = vunpack.c.l.b16 %v7000
    %v7065 = vunpack.c.l.b16 %v7001
    %v7066 = vunpack.c.l.b16 %v7002
    %v7067 = vunpack.c.l.b16 %v7003
    %v7068 = vunpack.c.l.b16 %v7004
    %v7069 = vunpack.c.l.b16 %v7005
    %v7070 = vunpack.c.l.b16 %v7006
    %v7071 = vunpack.c.l.b16 %v7007
    %v7072 = vunpack.c.l.b16 %v7008
    %v7073 = vunpack.c.l.b16 %v7009
    %v7074 = vunpack.c.l.b16 %v7010
    %v7075 = vunpack.c.l.b16 %v7011
    %v7076 = vunpack.c.l.b16 %v7012
    %v7077 = vunpack.c.l.b16 %v7013
    %v7078 = vpack.c.b16 %v7047, %v7046
    %v7079 = vpack.c.b16 %v7049, %v7048
    %v7080 = vpack.c.b16 %v7051, %v7050
    %v7081 = vpack.c.b16 %v7053, %v7052
    %v7082 = vpack.c.b16 %v7055, %v7054
    %v7083 = vpack.c.b16 %v7057, %v7056
    %v7084 = vpack.c.b16 %v7059, %v7058
    %v7085 = vpack.c.b16 %v7061, %v7060
    %v7086 = vpack.c.b16 %v7063, %v7062
    %v7087 = vpack.c.b16 %v7065, %v7064
    %v7088 = vpack.c.b16 %v7067, %v7066
    %v7089 = vpack.c.b16 %v7069, %v7068
    %v7090 = vpack.c.b16 %v7071, %v7070
    %v7091 = vpack.c.b16 %v7073, %v7072
    %v7092 = vpack.c.b16 %v7075, %v7074
    %v7093 = vpack.c.b16 %v7077, %v7076
    %7110 = vmatpush.bf16.msra.mxu0 %v7085
    %7111 = vmatpush.bf16.msra.mxu0 %v7084
    %7112 = vmatpush.bf16.msra.mxu0 %v7083
    %7113 = vmatpush.bf16.msra.mxu0 %v7082
    %7114 = vmatpush.bf16.msra.mxu0 %v7081
    %7115 = vmatpush.bf16.msra.mxu0 %v7080
    %7116 = vmatpush.bf16.msra.mxu0 %v7079
    %7117 = vmatpush.bf16.msra.mxu0 %v7078
    %7118 = vmatmul.bf16.gmra.mxu0 %v6979
    %v7119 = vpop.f32.mrf.mxu0
    %v7120 = vadd.f32 0.0, %v7119
    %v7121 = vpop.f32.mrf.mxu0
    %7122 = vdwg.mxu0
    %7123 = vmatpush.bf16.msra.mxu0 %v7093
    %7124 = vmatpush.bf16.msra.mxu0 %v7092
    %7125 = vmatpush.bf16.msra.mxu0 %v7091
    %7126 = vmatpush.bf16.msra.mxu0 %v7090
    %7127 = vmatpush.bf16.msra.mxu0 %v7089
    %7128 = vmatpush.bf16.msra.mxu0 %v7088
    %7129 = vmatpush.bf16.msra.mxu0 %v7087
    %7130 = vmatpush.bf16.msra.mxu0 %v7086
    %7131 = vmatmul.bf16.gmra.mxu0 %v6980
    %v7132 = vpop.f32.mrf.mxu0
    %v7133 = vadd.f32 %v7120, %v7132
    %v7134 = vpop.f32.mrf.mxu0
    %7135 = vdwg.mxu0
    %v7136 = vadd.f32 %v6978, %v7133
    %vm7137 = vcmask 254976
    %7138 = vst.msk [vmem:[#allocation2] sm:$0x3] %vm7137, %v7136
    // Predicated region
    $region34: #{transformer_kan_forward.1} parent=1 // pred_check
      _
    $region35: #{transformer_kan_forward.1} parent=1 // pred_check_branch
      %7140 = sbr.rel (0) target = $region37
    $region36: #{transformer_kan_forward.1} parent=1 // pred_region
      %7142 = vsyncadd [#allocation3], 0
      %s7144 = sshll.u32 [#allocation2], 4
      %s7145 = int_to_ptr.vmem [resolvable:$true] %s7144
      %s7146 = sshll.u32 %s8, 4
      %s7147 = int_to_ptr.hbm [resolvable:$true] %s7146
      %7149 = dma.vmem_to_hbm [thread:$0]  %s7145, 32, %s7147, [#allocation3]
    $region37: #{transformer_kan_forward.1} parent=1 // pred_fallthru
      _
    // Predicated region
    $region38: #{transformer_kan_forward.1} parent=1 // pred_check
      _
    $region39: #{transformer_kan_forward.1} parent=1 // pred_check_branch
      %7151 = sbr.rel (0) target = $region41
    $region40: #{transformer_kan_forward.1} parent=1 // pred_region
      %7153 = dma.done [#allocation3], 32
    $region41: #{transformer_kan_forward.1} parent=1 // pred_fallthru
      _
    %7154 = vsyncpa [#allocation3], 1

</llo_original>
